<compile_context>
chip_gen: v6e
topology: v6e:2x2x1
jax: 0.10.0
libtpu: 0.0.40
codegen_flags: <defaults>
</compile_context>

<pallas_src>
import functools

import jax
import jax.numpy as jnp
from jax import lax
from jax.experimental import pallas as pl
from jax.experimental.pallas import tpu as pltpu


def _round_up(n, m):
    return ((n + m - 1) // m) * m


# ----------------------------------------------------------------------------
# In-kernel helpers (pure jnp, traced inside the fused kernel)
# ----------------------------------------------------------------------------
def _layernorm(x, gamma, beta, eps=1e-5):
    mean = jnp.mean(x, axis=-1, keepdims=True)
    var = jnp.mean(jnp.square(x - mean), axis=-1, keepdims=True)
    return (x - mean) * lax.rsqrt(var + eps) * gamma + beta


def _softmax_weighted_sum(scores, values):
    """scores: (B, N) with N on lanes; values: (B, N, D) -> (B, D)."""
    s = scores - jnp.max(scores, axis=-1, keepdims=True)
    e = jnp.exp(s)
    alpha = e * pl.reciprocal(jnp.sum(e, axis=-1, keepdims=True), approx=True)
    out = jnp.einsum('bqn,bnd->bqd', alpha[:, None, :], values,
                     preferred_element_type=jnp.float32)        # (B, 1, D)
    return out.reshape(values.shape[0], values.shape[-1])


def _additive_attention(x3, w, b, qv):
    """Additive_Attention: softmax(tanh(xW+b) q) weighted sum.  x3:(B,N,M)->(B,M)."""
    bt, n, m = x3.shape
    proj = jnp.tanh(
        jnp.dot(x3.reshape(bt * n, m), w, preferred_element_type=jnp.float32) + b)
    proj3 = proj.reshape(bt, n, proj.shape[-1])
    s = jnp.sum(proj3 * qv, axis=-1)                            # (B, N), N on lanes
    return _softmax_weighted_sum(s, x3)


# ----------------------------------------------------------------------------
# Fully fused news_encoder kernel
# ----------------------------------------------------------------------------
def _news_encoder_kernel(
        # batch-tiled data
        word_ref, ent_ref, nenr_ref, catsub_ref,
        # word path weights (fused QKV)
        wqkv_ref, bqkv_ref,
        ln_g_ref, ln_b_ref,
        wa_w_ref, wa_b_ref, wa_q_ref,
        # KGAT weights (W1 split into entity slice and stacked neigh/rel slice)
        k1a_ref, k1bc_ref, kb1_ref, k2_ref, kb2_ref,
        # fc3+fc4 fused (split over [ent ; agg]) + GCN
        w34a_ref, w34b_ref, b34_ref, gw_ref, gb_ref,
        # entity / news additive attentions
        ea_w_ref, ea_b_ref, ea_q_ref,
        na_w_ref, na_b_ref, na_q_ref,
        # category+subcategory block-diag fc
        fc12_w_ref, fc12_b_ref,
        # output
        out_ref,
        # scratch
        y_scr,
        *, num_heads):
    f32 = jnp.float32
    bt, seq_l, dw = word_ref.shape
    m_dim = ln_g_ref.shape[1]
    n_ent = ent_ref.shape[1]
    d_pad = ent_ref.shape[-1]
    d_pad2 = nenr_ref.shape[-1]                       # 2 * d_pad
    n_neigh = nenr_ref.shape[1] // n_ent
    head_dim = m_dim // num_heads
    g_pad = gw_ref.shape[0]

    # -------------------- category / subcategory views (fused fc) -----------
    catsub = jnp.tanh(
        jnp.dot(catsub_ref[...], fc12_w_ref[...], preferred_element_type=f32)
        + fc12_b_ref[...])                            # (BT, 2M)
    cat_rep = catsub[:, :m_dim]
    sub_rep = catsub[:, m_dim:]

    # -------------------- word path: MHSA + LayerNorm -----------------------
    x2 = word_ref[...].reshape(bt * seq_l, dw)
    qkv = (jnp.dot(x2, wqkv_ref[...], preferred_element_type=f32)
           + bqkv_ref[...])                           # (BT*L, 3M)
    q3 = qkv[:, :m_dim].reshape(bt, seq_l, m_dim)
    k3 = qkv[:, m_dim:2 * m_dim].reshape(bt, seq_l, m_dim)
    v3 = qkv[:, 2 * m_dim:].reshape(bt, seq_l, m_dim)
    scale = float(head_dim) ** -0.5
    for h in range(num_heads):                        # static unroll
        lo, hi = h * head_dim, (h + 1) * head_dim
        qh, kh, vh = q3[:, :, lo:hi], k3[:, :, lo:hi], v3[:, :, lo:hi]
        s = jnp.einsum('bld,bmd->blm', qh, kh,
                       preferred_element_type=f32) * scale       # (BT, L, L)
        s = s - jnp.max(s, axis=-1, keepdims=True)
        p = jnp.exp(s)
        p = p * pl.reciprocal(jnp.sum(p, axis=-1, keepdims=True), approx=True)
        y_scr[:, :, lo:hi] = jnp.einsum('blm,bmd->bld', p, vh,
                                        preferred_element_type=f32)
    word_ctx = _layernorm(y_scr[...], ln_g_ref[...], ln_b_ref[...])  # (BT,L,M)
    word_rep = jnp.tanh(_additive_attention(word_ctx, wa_w_ref[...],
                                            wa_b_ref[...], wa_q_ref[...]))

    # -------------------- KGAT (batched over B*E*K) -------------------------
    ent2 = ent_ref[...].reshape(bt * n_ent, d_pad)               # (BE, Dp)
    nenr = nenr_ref[...]                                         # (BT, E*K, 2Dp)
    nenr2 = nenr.reshape(bt * n_ent * n_neigh, d_pad2)
    pn = (jnp.dot(nenr2, k1bc_ref[...], preferred_element_type=f32)
          + kb1_ref[...])                                        # (BEK, M)
    pe = jnp.dot(ent2, k1a_ref[...], preferred_element_type=f32)  # (BE, M)
    hkg = jnp.maximum(
        pn.reshape(bt * n_ent, n_neigh, m_dim) + pe[:, None, :], 0.0)
    s_kg = jnp.sum(hkg * k2_ref[...], axis=-1) + kb2_ref[...]    # (BE, K)
    ne3 = nenr[:, :, :d_pad].reshape(bt * n_ent, n_neigh, d_pad)
    agg2 = _softmax_weighted_sum(s_kg, ne3)                      # (BE, Dp)
    # entity_agg == concat([ent2, agg2], -1); never materialized -- fc3/fc4
    # consume it through split weights below.

    # -------------------- fc3 + fc4 (fused) ----------------------------------
    y34 = (jnp.dot(ent2, w34a_ref[...], preferred_element_type=f32)
           + jnp.dot(agg2, w34b_ref[...], preferred_element_type=f32)
           + b34_ref[...])                                       # (BE, Gp+M)
    xg = jnp.tanh(y34[:, :g_pad])                                # (BE, Gp)
    cand2 = y34[:, g_pad:]                                       # (BE, M)  fc4 out

    # -------------------- GCN + LayerNorm + entity attention ----------------
    # TODO(synk): gcn definition absent from the reference file; a single
    #             normalized all-ones adjacency (== mean over the news
    #             entities) followed by Linear + ReLU is used, identical to
    #             the previously accepted placeholder but computed as a
    #             VPU/XLU mean instead of an (E,E) MXU matmul.
    xm = jnp.mean(xg.reshape(bt, n_ent, g_pad), axis=1)          # (BT, Gp)
    gout = jnp.maximum(
        jnp.dot(xm, gw_ref[...], preferred_element_type=f32) + gb_ref[...], 0.0)
    ent_inter_row = _layernorm(gout, ln_g_ref[...], ln_b_ref[...])   # (BT, M)
    ent_inter = jnp.broadcast_to(ent_inter_row[:, None, :],
                                 (bt, n_ent, m_dim))
    entity_rep = jnp.tanh(_additive_attention(ent_inter, ea_w_ref[...],
                                              ea_b_ref[...], ea_q_ref[...]))

    # -------------------- view fusion (news-level attention) ----------------
    views = jnp.stack([word_rep, entity_rep, cat_rep, sub_rep], axis=1)
    semantic_rep = jnp.tanh(_additive_attention(views, na_w_ref[...],
                                                na_b_ref[...], na_q_ref[...]))

    # -------------------- relation view: SimilarityAttention ----------------
    cand3 = cand2.reshape(bt, n_ent, m_dim)
    s_rel = jnp.sum(cand3 * semantic_rep[:, None, :], axis=-1)   # (BT, E)
    relation_rep = jnp.tanh(_softmax_weighted_sum(s_rel, cand3))

    # -------------------- final stack + outer tanh ---------------------------
    out_ref[...] = jnp.tanh(jnp.stack([semantic_rep, relation_rep], axis=1))


# ----------------------------------------------------------------------------
# Parameter init (logical shapes) and kernel-form preparation (split / pad)
# ----------------------------------------------------------------------------
def init_params(key, cfg):
    m = cfg["attention_dim"] * cfg["attention_heads"]
    d = cfg["entity_embedding_dim"]
    q = cfg["query_vector_dim"]

    def nrm(k, shape, scale=0.1):
        return scale * jax.random.normal(k, shape, dtype=jnp.float32)

    ks = iter(jax.random.split(key, 40))
    return {
        "emb1": nrm(next(ks), (cfg["category_size"], cfg["category_dim"])),
        "fc1_w": nrm(next(ks), (cfg["category_dim"], m)),
        "fc1_b": nrm(next(ks), (1, m)),
        "emb2": nrm(next(ks), (cfg["subcategory_size"], cfg["subcategory_dim"])),
        "fc2_w": nrm(next(ks), (cfg["subcategory_dim"], m)),
        "fc2_b": nrm(next(ks), (1, m)),
        "ln_gamma": jnp.ones((1, m), jnp.float32),
        "ln_beta": jnp.zeros((1, m), jnp.float32),
        "wq": nrm(next(ks), (cfg["word_dim"], m)),
        "bq": nrm(next(ks), (1, m)),
        "wk": nrm(next(ks), (cfg["word_dim"], m)),
        "bk": nrm(next(ks), (1, m)),
        "wv": nrm(next(ks), (cfg["word_dim"], m)),
        "bv": nrm(next(ks), (1, m)),
        "wordatt_w": nrm(next(ks), (m, q)),
        "wordatt_b": nrm(next(ks), (1, q)),
        "wordatt_q": nrm(next(ks), (1, q)),
        "fc3_w": nrm(next(ks), (2 * d, 100)),
        "fc3_b": nrm(next(ks), (1, 100)),
        "gcn_w": nrm(next(ks), (100, m)),
        "gcn_b": nrm(next(ks), (1, m)),
        "entatt_w": nrm(next(ks), (m, q)),
        "entatt_b": nrm(next(ks), (1, q)),
        "entatt_q": nrm(next(ks), (1, q)),
        "newsatt_w": nrm(next(ks), (m, q)),
        "newsatt_b": nrm(next(ks), (1, q)),
        "newsatt_q": nrm(next(ks), (1, q)),
        "fc4_w": nrm(next(ks), (2 * d, m)),
        "fc4_b": nrm(next(ks), (1, m)),
        "kgat_w1": nrm(next(ks), (3 * d, m)),
        "kgat_b1": nrm(next(ks), (1, m)),
        "kgat_w2": nrm(next(ks), (m, 1)),
        "kgat_b2": nrm(next(ks), (1, 1)),
    }


def prepare_params(p, cfg):
    """Split/fuse concat-weights and zero-pad the 100-wide dims to 128 lanes."""
    d = cfg["entity_embedding_dim"]
    g = 100                                   # fc3 output width in the reference
    d_pad = _round_up(d, 128)
    g_pad = _round_up(g, 128)
    m = p["wq"].shape[1]

    def pad_rows(w, r):
        return jnp.pad(w, ((0, r - w.shape[0]), (0, 0)))

    def pad_cols(w, c):
        return jnp.pad(w, ((0, 0), (0, c - w.shape[1])))

    w1, w3, w4 = p["kgat_w1"], p["fc3_w"], p["fc4_w"]

    # fc3 / fc4 fused along output lanes: [ fc3(->g_pad) | fc4(->m) ]
    w3a = pad_cols(pad_rows(w3[:d], d_pad), g_pad)
    w3b = pad_cols(pad_rows(w3[d:], d_pad), g_pad)
    w4a = pad_rows(w4[:d], d_pad)
    w4b = pad_rows(w4[d:], d_pad)
    b3p = pad_cols(p["fc3_b"], g_pad)

    # fc1 / fc2 fused as a block-diagonal weight over [cat_emb | sub_emb]
    c_dim = p["fc1_w"].shape[0]
    s_dim = p["fc2_w"].shape[0]
    fc12_w = jnp.zeros((c_dim + s_dim, 2 * m), jnp.float32)
    fc12_w = fc12_w.at[:c_dim, :m].set(p["fc1_w"])
    fc12_w = fc12_w.at[c_dim:, m:].set(p["fc2_w"])
    fc12_b = jnp.concatenate([p["fc1_b"], p["fc2_b"]], axis=1)

    return {
        "emb1": p["emb1"], "emb2": p["emb2"],
        "fc12_w": fc12_w, "fc12_b": fc12_b,
        "wqkv": jnp.concatenate([p["wq"], p["wk"], p["wv"]], axis=1),
        "bqkv": jnp.concatenate([p["bq"], p["bk"], p["bv"]], axis=1),
        "ln_g": p["ln_gamma"], "ln_b": p["ln_beta"],
        "wa_w": p["wordatt_w"], "wa_b": p["wordatt_b"], "wa_q": p["wordatt_q"],
        "k1a": pad_rows(w1[:d], d_pad),
        "k1bc": jnp.concatenate([pad_rows(w1[d:2 * d], d_pad),
                                 pad_rows(w1[2 * d:], d_pad)], axis=0),
        "kb1": p["kgat_b1"],
        "k2": p["kgat_w2"].T,                 # (1, M) lane-major score weight
        "kb2": p["kgat_b2"],
        "w34a": jnp.concatenate([w3a, w4a], axis=1),
        "w34b": jnp.concatenate([w3b, w4b], axis=1),
        "b34": jnp.concatenate([b3p, p["fc4_b"]], axis=1),
        "gw": pad_rows(p["gcn_w"], g_pad), "gb": p["gcn_b"],
        "ea_w": p["entatt_w"], "ea_b": p["entatt_b"], "ea_q": p["entatt_q"],
        "na_w": p["newsatt_w"], "na_b": p["newsatt_b"], "na_q": p["newsatt_q"],
    }


_WEIGHT_ORDER = (
    "wqkv", "bqkv",
    "ln_g", "ln_b",
    "wa_w", "wa_b", "wa_q",
    "k1a", "k1bc", "kb1", "k2", "kb2",
    "w34a", "w34b", "b34", "gw", "gb",
    "ea_w", "ea_b", "ea_q",
    "na_w", "na_b", "na_q",
    "fc12_w", "fc12_b",
)


# ----------------------------------------------------------------------------
# Forward wrapper: embedding gathers + padding/concat in XLA, rest fused
# ----------------------------------------------------------------------------
def news_encoder_forward(params, word_embedding, entity_embedding,
                         neigh_entity_embedding, neigh_relation_embedding,
                         category_index, subcategory_index, *, num_heads):
    b, seq_l, dw = word_embedding.shape
    n_ent, d = entity_embedding.shape[1], entity_embedding.shape[2]
    n_neigh = neigh_entity_embedding.shape[2]
    m_dim = params["ln_g"].shape[1]
    d_pad = params["k1a"].shape[0]
    pad = d_pad - d

    # Embedding lookups (gather) + zero-padding of the 100-wide entity dims,
    # plus the lane-concats that let the kernel run single fused matmuls.
    cat_emb = jnp.take(params["emb1"], category_index.astype(jnp.int32), axis=0)
    sub_emb = jnp.take(params["emb2"], subcategory_index.astype(jnp.int32), axis=0)
    catsub = jnp.concatenate([cat_emb, sub_emb], axis=-1)          # (B, Cc+Cs)
    ent_p = jnp.pad(entity_embedding.astype(jnp.float32),
                    ((0, 0), (0, 0), (0, pad)))
    nent_p = jnp.pad(
        neigh_entity_embedding.astype(jnp.float32).reshape(b, n_ent * n_neigh, d),
        ((0, 0), (0, 0), (0, pad)))
    nrel_p = jnp.pad(
        neigh_relation_embedding.astype(jnp.float32).reshape(b, n_ent * n_neigh, d),
        ((0, 0), (0, 0), (0, pad)))
    nenr = jnp.concatenate([nent_p, nrel_p], axis=-1)              # (B, E*K, 2Dp)

    # Whole batch per grid step at small B; tile at 8 if the batch grows
    # (gives a parallel axis for v7x's second TensorCore).
    bt = b if (b <= 8 or b % 8 != 0) else 8
    grid = (b // bt,)

    batch_args = [word_embedding.astype(jnp.float32), ent_p, nenr, catsub]
    weights = [params[name] for name in _WEIGHT_ORDER]

    def batch_spec(shape):
        nd = len(shape)
        return pl.BlockSpec((bt,) + tuple(shape[1:]),
                            lambda i, _nd=nd: (i,) + (0,) * (_nd - 1))

    def weight_spec(shape):
        nd = len(shape)
        return pl.BlockSpec(tuple(shape), lambda i, _nd=nd: (0,) * _nd)

    in_specs = ([batch_spec(a.shape) for a in batch_args]
                + [weight_spec(w.shape) for w in weights])

    kern = functools.partial(_news_encoder_kernel, num_heads=num_heads)
    return pl.pallas_call(
        kern,
        out_shape=jax.ShapeDtypeStruct((b, 2, m_dim), jnp.float32),
        grid=grid,
        in_specs=in_specs,
        out_specs=pl.BlockSpec((bt, 2, m_dim), lambda i: (i, 0, 0)),
        scratch_shapes=[pltpu.VMEM((bt, seq_l, m_dim), jnp.float32)],
        compiler_params=pltpu.CompilerParams(
            dimension_semantics=("parallel",)),
    )(*batch_args, *weights)


if __name__ == "__main__":
    cfg = dict(word_dim=32, attention_dim=32, attention_heads=4,
               query_vector_dim=32, news_entity_size=8,
               entity_embedding_dim=100, category_dim=16, subcategory_dim=16,
               category_size=10, subcategory_size=10)
    B, L, K = 2, 16, 5
    E, d = cfg["news_entity_size"], cfg["entity_embedding_dim"]

    key = jax.random.PRNGKey(0)
    kp, k1, k2, k3, k4, k5, k6 = jax.random.split(key, 7)
    params = prepare_params(init_params(kp, cfg), cfg)

    word_embedding = jax.random.normal(k1, (B, L, cfg["word_dim"]), jnp.float32)
    entity_embedding = jax.random.normal(k2, (B, E, d), jnp.float32)
    neigh_entity_embedding = jax.random.normal(k3, (B, E, K, d), jnp.float32)
    neigh_relation_embedding = jax.random.normal(k4, (B, E, K, d), jnp.float32)
    category_index = jax.random.randint(k5, (B,), 0, cfg["category_size"])
    subcategory_index = jax.random.randint(k6, (B,), 0, cfg["subcategory_size"])

    out = news_encoder_forward(params, word_embedding, entity_embedding,
                               neigh_entity_embedding, neigh_relation_embedding,
                               category_index, subcategory_index,
                               num_heads=cfg["attention_heads"])
    out = jax.block_until_ready(out)
    assert out.shape == (B, 2, cfg["attention_dim"] * cfg["attention_heads"])
    print("KERNEL_OK")
</pallas_src>

<mosaic_0001>
module attributes {stable_mosaic.version = 11 : i64} {
  func.func @_news_encoder_kernel(%arg0: i32, %arg1: memref<2x16x32xf32, #tpu.memory_space<vmem>>, %arg2: memref<2x8x128xf32, #tpu.memory_space<vmem>>, %arg3: memref<2x40x256xf32, #tpu.memory_space<vmem>>, %arg4: memref<2x32xf32, #tpu.memory_space<vmem>>, %arg5: memref<32x384xf32, #tpu.memory_space<vmem>>, %arg6: memref<1x384xf32, #tpu.memory_space<vmem>>, %arg7: memref<1x128xf32, #tpu.memory_space<vmem>>, %arg8: memref<1x128xf32, #tpu.memory_space<vmem>>, %arg9: memref<128x32xf32, #tpu.memory_space<vmem>>, %arg10: memref<1x32xf32, #tpu.memory_space<vmem>>, %arg11: memref<1x32xf32, #tpu.memory_space<vmem>>, %arg12: memref<128x128xf32, #tpu.memory_space<vmem>>, %arg13: memref<256x128xf32, #tpu.memory_space<vmem>>, %arg14: memref<1x128xf32, #tpu.memory_space<vmem>>, %arg15: memref<1x128xf32, #tpu.memory_space<vmem>>, %arg16: memref<1x1xf32, #tpu.memory_space<vmem>>, %arg17: memref<128x256xf32, #tpu.memory_space<vmem>>, %arg18: memref<128x256xf32, #tpu.memory_space<vmem>>, %arg19: memref<1x256xf32, #tpu.memory_space<vmem>>, %arg20: memref<128x128xf32, #tpu.memory_space<vmem>>, %arg21: memref<1x128xf32, #tpu.memory_space<vmem>>, %arg22: memref<128x32xf32, #tpu.memory_space<vmem>>, %arg23: memref<1x32xf32, #tpu.memory_space<vmem>>, %arg24: memref<1x32xf32, #tpu.memory_space<vmem>>, %arg25: memref<128x32xf32, #tpu.memory_space<vmem>>, %arg26: memref<1x32xf32, #tpu.memory_space<vmem>>, %arg27: memref<1x32xf32, #tpu.memory_space<vmem>>, %arg28: memref<32x256xf32, #tpu.memory_space<vmem>>, %arg29: memref<1x256xf32, #tpu.memory_space<vmem>>, %arg30: memref<2x2x128xf32, #tpu.memory_space<vmem>>, %arg31: memref<2x16x128xf32, #tpu.memory_space<vmem>>) attributes {dimension_semantics = [#tpu.dimension_semantics<parallel>], iteration_bounds = array<i64: 1>, scalar_prefetch = 0 : i64, scratch_operands = 1 : i64, tpu.core_type = #tpu.core_type<tc>, window_params = [{transform_indices = @transform_0, window_bounds = array<i64: 2, 16, 32>}, {transform_indices = @transform_1, window_bounds = array<i64: 2, 8, 128>}, {transform_indices = @transform_2, window_bounds = array<i64: 2, 40, 256>}, {transform_indices = @transform_3, window_bounds = array<i64: 2, 32>}, {pipeline_mode = #tpu.pipeline_mode<synchronous>, transform_indices = @transform_4, window_bounds = array<i64: 32, 384>}, {pipeline_mode = #tpu.pipeline_mode<synchronous>, transform_indices = @transform_5, window_bounds = array<i64: 1, 384>}, {pipeline_mode = #tpu.pipeline_mode<synchronous>, transform_indices = @transform_6, window_bounds = array<i64: 1, 128>}, {pipeline_mode = #tpu.pipeline_mode<synchronous>, transform_indices = @transform_7, window_bounds = array<i64: 1, 128>}, {pipeline_mode = #tpu.pipeline_mode<synchronous>, transform_indices = @transform_8, window_bounds = array<i64: 128, 32>}, {pipeline_mode = #tpu.pipeline_mode<synchronous>, transform_indices = @transform_9, window_bounds = array<i64: 1, 32>}, {pipeline_mode = #tpu.pipeline_mode<synchronous>, transform_indices = @transform_10, window_bounds = array<i64: 1, 32>}, {pipeline_mode = #tpu.pipeline_mode<synchronous>, transform_indices = @transform_11, window_bounds = array<i64: 128, 128>}, {pipeline_mode = #tpu.pipeline_mode<synchronous>, transform_indices = @transform_12, window_bounds = array<i64: 256, 128>}, {pipeline_mode = #tpu.pipeline_mode<synchronous>, transform_indices = @transform_13, window_bounds = array<i64: 1, 128>}, {pipeline_mode = #tpu.pipeline_mode<synchronous>, transform_indices = @transform_14, window_bounds = array<i64: 1, 128>}, {pipeline_mode = #tpu.pipeline_mode<synchronous>, transform_indices = @transform_15, window_bounds = array<i64: 1, 1>}, {pipeline_mode = #tpu.pipeline_mode<synchronous>, transform_indices = @transform_16, window_bounds = array<i64: 128, 256>}, {pipeline_mode = #tpu.pipeline_mode<synchronous>, transform_indices = @transform_17, window_bounds = array<i64: 128, 256>}, {pipeline_mode = #tpu.pipeline_mode<synchronous>, transform_indices = @transform_18, window_bounds = array<i64: 1, 256>}, {pipeline_mode = #tpu.pipeline_mode<synchronous>, transform_indices = @transform_19, window_bounds = array<i64: 128, 128>}, {pipeline_mode = #tpu.pipeline_mode<synchronous>, transform_indices = @transform_20, window_bounds = array<i64: 1, 128>}, {pipeline_mode = #tpu.pipeline_mode<synchronous>, transform_indices = @transform_21, window_bounds = array<i64: 128, 32>}, {pipeline_mode = #tpu.pipeline_mode<synchronous>, transform_indices = @transform_22, window_bounds = array<i64: 1, 32>}, {pipeline_mode = #tpu.pipeline_mode<synchronous>, transform_indices = @transform_23, window_bounds = array<i64: 1, 32>}, {pipeline_mode = #tpu.pipeline_mode<synchronous>, transform_indices = @transform_24, window_bounds = array<i64: 128, 32>}, {pipeline_mode = #tpu.pipeline_mode<synchronous>, transform_indices = @transform_25, window_bounds = array<i64: 1, 32>}, {pipeline_mode = #tpu.pipeline_mode<synchronous>, transform_indices = @transform_26, window_bounds = array<i64: 1, 32>}, {pipeline_mode = #tpu.pipeline_mode<synchronous>, transform_indices = @transform_27, window_bounds = array<i64: 32, 256>}, {pipeline_mode = #tpu.pipeline_mode<synchronous>, transform_indices = @transform_28, window_bounds = array<i64: 1, 256>}, {transform_indices = @transform_29, window_bounds = array<i64: 2, 2, 128>}]} {
    %c0 = arith.constant 0 : index
    %c0_0 = arith.constant 0 : index
    %0 = vector.load %arg4[%c0, %c0_0] : memref<2x32xf32, #tpu.memory_space<vmem>>, vector<2x32xf32>
    %c0_1 = arith.constant 0 : index
    %c0_2 = arith.constant 0 : index
    %1 = vector.load %arg28[%c0_1, %c0_2] : memref<32x256xf32, #tpu.memory_space<vmem>>, vector<32x256xf32>
    %cst = arith.constant dense<0.000000e+00> : vector<2x256xf32>
    %2 = tpu.matmul %0, %1, %cst {dimension_numbers = #tpu.dot_dimension_numbers<[1], [0], [0], [1], [0, 0, 1, 1], [], []>} : vector<2x32xf32>, vector<32x256xf32>, vector<2x256xf32> -> vector<2x256xf32>
    %c0_3 = arith.constant 0 : index
    %c0_4 = arith.constant 0 : index
    %3 = vector.load %arg29[%c0_3, %c0_4] : memref<1x256xf32, #tpu.memory_space<vmem>>, vector<1x256xf32>
    %4 = vector.broadcast %3 : vector<1x256xf32> to vector<2x256xf32>
    %5 = arith.addf %2, %4 : vector<2x256xf32>
    %6 = math.tanh %5 : vector<2x256xf32>
    %7 = vector.extract_strided_slice %6 {offsets = [0, 0], sizes = [2, 128], strides = [1, 1]} : vector<2x256xf32> to vector<2x128xf32>
    %8 = vector.extract_strided_slice %6 {offsets = [0, 128], sizes = [2, 128], strides = [1, 1]} : vector<2x256xf32> to vector<2x128xf32>
    %c0_5 = arith.constant 0 : index
    %c0_6 = arith.constant 0 : index
    %c0_7 = arith.constant 0 : index
    %9 = vector.load %arg1[%c0_5, %c0_6, %c0_7] : memref<2x16x32xf32, #tpu.memory_space<vmem>>, vector<2x16x32xf32>
    %10 = vector.shape_cast %9 : vector<2x16x32xf32> to vector<32x32xf32>
    %c0_8 = arith.constant 0 : index
    %c0_9 = arith.constant 0 : index
    %11 = vector.load %arg5[%c0_8, %c0_9] : memref<32x384xf32, #tpu.memory_space<vmem>>, vector<32x384xf32>
    %cst_10 = arith.constant dense<0.000000e+00> : vector<32x384xf32>
    %12 = tpu.matmul %10, %11, %cst_10 {dimension_numbers = #tpu.dot_dimension_numbers<[1], [0], [0], [1], [0, 0, 1, 1], [], []>} : vector<32x32xf32>, vector<32x384xf32>, vector<32x384xf32> -> vector<32x384xf32>
    %c0_11 = arith.constant 0 : index
    %c0_12 = arith.constant 0 : index
    %13 = vector.load %arg6[%c0_11, %c0_12] : memref<1x384xf32, #tpu.memory_space<vmem>>, vector<1x384xf32>
    %14 = vector.broadcast %13 : vector<1x384xf32> to vector<32x384xf32>
    %15 = arith.addf %12, %14 : vector<32x384xf32>
    %16 = vector.extract_strided_slice %15 {offsets = [0, 0], sizes = [32, 128], strides = [1, 1]} : vector<32x384xf32> to vector<32x128xf32>
    %17 = vector.shape_cast %16 : vector<32x128xf32> to vector<2x16x128xf32>
    %18 = vector.extract_strided_slice %15 {offsets = [0, 128], sizes = [32, 128], strides = [1, 1]} : vector<32x384xf32> to vector<32x128xf32>
    %19 = vector.shape_cast %18 : vector<32x128xf32> to vector<2x16x128xf32>
    %20 = vector.extract_strided_slice %15 {offsets = [0, 256], sizes = [32, 128], strides = [1, 1]} : vector<32x384xf32> to vector<32x128xf32>
    %21 = vector.shape_cast %20 : vector<32x128xf32> to vector<2x16x128xf32>
    %22 = vector.extract_strided_slice %17 {offsets = [0, 0, 0], sizes = [2, 16, 32], strides = [1, 1, 1]} : vector<2x16x128xf32> to vector<2x16x32xf32>
    %23 = vector.extract_strided_slice %19 {offsets = [0, 0, 0], sizes = [2, 16, 32], strides = [1, 1, 1]} : vector<2x16x128xf32> to vector<2x16x32xf32>
    %24 = vector.extract_strided_slice %21 {offsets = [0, 0, 0], sizes = [2, 16, 32], strides = [1, 1, 1]} : vector<2x16x128xf32> to vector<2x16x32xf32>
    "tpu.trace_start"() <{level = 10 : i32, message = "bld,bmd->blm"}> : () -> ()
    %cst_13 = arith.constant dense<0.000000e+00> : vector<2x16x16xf32>
    %25 = tpu.matmul %22, %23, %cst_13 {dimension_numbers = #tpu.dot_dimension_numbers<[2], [2], [1], [1], [0, 0, 0, 1, 1, 1], [0], [0]>} : vector<2x16x32xf32>, vector<2x16x32xf32>, vector<2x16x16xf32> -> vector<2x16x16xf32>
    "tpu.trace_stop"() : () -> ()
    %cst_14 = arith.constant 0.176776692 : f32
    %26 = vector.broadcast %cst_14 : f32 to vector<2x16x16xf32>
    %27 = arith.mulf %25, %26 : vector<2x16x16xf32>
    %cst_15 = arith.constant dense<0xFF800000> : vector<2x16xf32>
    %28 = vector.multi_reduction <maximumf>, %27, %cst_15 [2] : vector<2x16x16xf32> to vector<2x16xf32>
    %29 = vector.shape_cast %28 : vector<2x16xf32> to vector<2x16x1xf32>
    %30 = vector.broadcast %29 : vector<2x16x1xf32> to vector<2x16x16xf32>
    %31 = arith.subf %27, %30 : vector<2x16x16xf32>
    %32 = math.exp %31 : vector<2x16x16xf32>
    %cst_16 = arith.constant dense<0.000000e+00> : vector<2x16xf32>
    %33 = vector.multi_reduction <add>, %32, %cst_16 [2] : vector<2x16x16xf32> to vector<2x16xf32>
    %34 = vector.shape_cast %33 : vector<2x16xf32> to vector<2x16x1xf32>
    %35 = tpu.reciprocal %34 {approx = true} : vector<2x16x1xf32> -> vector<2x16x1xf32>
    %36 = vector.broadcast %35 : vector<2x16x1xf32> to vector<2x16x16xf32>
    %37 = arith.mulf %32, %36 : vector<2x16x16xf32>
    "tpu.trace_start"() <{level = 10 : i32, message = "blm,bmd->bld"}> : () -> ()
    %cst_17 = arith.constant dense<0.000000e+00> : vector<2x16x32xf32>
    %38 = tpu.matmul %37, %24, %cst_17 {dimension_numbers = #tpu.dot_dimension_numbers<[2], [1], [1], [2], [0, 0, 0, 1, 1, 2], [0], [0]>} : vector<2x16x16xf32>, vector<2x16x32xf32>, vector<2x16x32xf32> -> vector<2x16x32xf32>
    "tpu.trace_stop"() : () -> ()
    %c0_18 = arith.constant 0 : index
    %c0_19 = arith.constant 0 : index
    %c0_20 = arith.constant 0 : index
    %39 = vector.load %arg31[%c0_18, %c0_19, %c0_20] : memref<2x16x128xf32, #tpu.memory_space<vmem>>, vector<2x16x32xf32>
    tpu.vector_store %arg31[%c0_18, %c0_19, %c0_20], %38 {strides = array<i32>} : memref<2x16x128xf32, #tpu.memory_space<vmem>>, vector<2x16x32xf32>,
    %40 = vector.extract_strided_slice %17 {offsets = [0, 0, 32], sizes = [2, 16, 32], strides = [1, 1, 1]} : vector<2x16x128xf32> to vector<2x16x32xf32>
    %41 = vector.extract_strided_slice %19 {offsets = [0, 0, 32], sizes = [2, 16, 32], strides = [1, 1, 1]} : vector<2x16x128xf32> to vector<2x16x32xf32>
    %42 = vector.extract_strided_slice %21 {offsets = [0, 0, 32], sizes = [2, 16, 32], strides = [1, 1, 1]} : vector<2x16x128xf32> to vector<2x16x32xf32>
    "tpu.trace_start"() <{level = 10 : i32, message = "bld,bmd->blm"}> : () -> ()
    %cst_21 = arith.constant dense<0.000000e+00> : vector<2x16x16xf32>
    %43 = tpu.matmul %40, %41, %cst_21 {dimension_numbers = #tpu.dot_dimension_numbers<[2], [2], [1], [1], [0, 0, 0, 1, 1, 1], [0], [0]>} : vector<2x16x32xf32>, vector<2x16x32xf32>, vector<2x16x16xf32> -> vector<2x16x16xf32>
    "tpu.trace_stop"() : () -> ()
    %cst_22 = arith.constant 0.176776692 : f32
    %44 = vector.broadcast %cst_22 : f32 to vector<2x16x16xf32>
    %45 = arith.mulf %43, %44 : vector<2x16x16xf32>
    %cst_23 = arith.constant dense<0xFF800000> : vector<2x16xf32>
    %46 = vector.multi_reduction <maximumf>, %45, %cst_23 [2] : vector<2x16x16xf32> to vector<2x16xf32>
    %47 = vector.shape_cast %46 : vector<2x16xf32> to vector<2x16x1xf32>
    %48 = vector.broadcast %47 : vector<2x16x1xf32> to vector<2x16x16xf32>
    %49 = arith.subf %45, %48 : vector<2x16x16xf32>
    %50 = math.exp %49 : vector<2x16x16xf32>
    %cst_24 = arith.constant dense<0.000000e+00> : vector<2x16xf32>
    %51 = vector.multi_reduction <add>, %50, %cst_24 [2] : vector<2x16x16xf32> to vector<2x16xf32>
    %52 = vector.shape_cast %51 : vector<2x16xf32> to vector<2x16x1xf32>
    %53 = tpu.reciprocal %52 {approx = true} : vector<2x16x1xf32> -> vector<2x16x1xf32>
    %54 = vector.broadcast %53 : vector<2x16x1xf32> to vector<2x16x16xf32>
    %55 = arith.mulf %50, %54 : vector<2x16x16xf32>
    "tpu.trace_start"() <{level = 10 : i32, message = "blm,bmd->bld"}> : () -> ()
    %cst_25 = arith.constant dense<0.000000e+00> : vector<2x16x32xf32>
    %56 = tpu.matmul %55, %42, %cst_25 {dimension_numbers = #tpu.dot_dimension_numbers<[2], [1], [1], [2], [0, 0, 0, 1, 1, 2], [0], [0]>} : vector<2x16x16xf32>, vector<2x16x32xf32>, vector<2x16x32xf32> -> vector<2x16x32xf32>
    "tpu.trace_stop"() : () -> ()
    %c0_26 = arith.constant 0 : index
    %c0_27 = arith.constant 0 : index
    %c32 = arith.constant 32 : index
    %57 = vector.load %arg31[%c0_26, %c0_27, %c32] : memref<2x16x128xf32, #tpu.memory_space<vmem>>, vector<2x16x32xf32>
    tpu.vector_store %arg31[%c0_26, %c0_27, %c32], %56 {strides = array<i32>} : memref<2x16x128xf32, #tpu.memory_space<vmem>>, vector<2x16x32xf32>,
    %58 = vector.extract_strided_slice %17 {offsets = [0, 0, 64], sizes = [2, 16, 32], strides = [1, 1, 1]} : vector<2x16x128xf32> to vector<2x16x32xf32>
    %59 = vector.extract_strided_slice %19 {offsets = [0, 0, 64], sizes = [2, 16, 32], strides = [1, 1, 1]} : vector<2x16x128xf32> to vector<2x16x32xf32>
    %60 = vector.extract_strided_slice %21 {offsets = [0, 0, 64], sizes = [2, 16, 32], strides = [1, 1, 1]} : vector<2x16x128xf32> to vector<2x16x32xf32>
    "tpu.trace_start"() <{level = 10 : i32, message = "bld,bmd->blm"}> : () -> ()
    %cst_28 = arith.constant dense<0.000000e+00> : vector<2x16x16xf32>
    %61 = tpu.matmul %58, %59, %cst_28 {dimension_numbers = #tpu.dot_dimension_numbers<[2], [2], [1], [1], [0, 0, 0, 1, 1, 1], [0], [0]>} : vector<2x16x32xf32>, vector<2x16x32xf32>, vector<2x16x16xf32> -> vector<2x16x16xf32>
    "tpu.trace_stop"() : () -> ()
    %cst_29 = arith.constant 0.176776692 : f32
    %62 = vector.broadcast %cst_29 : f32 to vector<2x16x16xf32>
    %63 = arith.mulf %61, %62 : vector<2x16x16xf32>
    %cst_30 = arith.constant dense<0xFF800000> : vector<2x16xf32>
    %64 = vector.multi_reduction <maximumf>, %63, %cst_30 [2] : vector<2x16x16xf32> to vector<2x16xf32>
    %65 = vector.shape_cast %64 : vector<2x16xf32> to vector<2x16x1xf32>
    %66 = vector.broadcast %65 : vector<2x16x1xf32> to vector<2x16x16xf32>
    %67 = arith.subf %63, %66 : vector<2x16x16xf32>
    %68 = math.exp %67 : vector<2x16x16xf32>
    %cst_31 = arith.constant dense<0.000000e+00> : vector<2x16xf32>
    %69 = vector.multi_reduction <add>, %68, %cst_31 [2] : vector<2x16x16xf32> to vector<2x16xf32>
    %70 = vector.shape_cast %69 : vector<2x16xf32> to vector<2x16x1xf32>
    %71 = tpu.reciprocal %70 {approx = true} : vector<2x16x1xf32> -> vector<2x16x1xf32>
    %72 = vector.broadcast %71 : vector<2x16x1xf32> to vector<2x16x16xf32>
    %73 = arith.mulf %68, %72 : vector<2x16x16xf32>
    "tpu.trace_start"() <{level = 10 : i32, message = "blm,bmd->bld"}> : () -> ()
    %cst_32 = arith.constant dense<0.000000e+00> : vector<2x16x32xf32>
    %74 = tpu.matmul %73, %60, %cst_32 {dimension_numbers = #tpu.dot_dimension_numbers<[2], [1], [1], [2], [0, 0, 0, 1, 1, 2], [0], [0]>} : vector<2x16x16xf32>, vector<2x16x32xf32>, vector<2x16x32xf32> -> vector<2x16x32xf32>
    "tpu.trace_stop"() : () -> ()
    %c0_33 = arith.constant 0 : index
    %c0_34 = arith.constant 0 : index
    %c64 = arith.constant 64 : index
    %75 = vector.load %arg31[%c0_33, %c0_34, %c64] : memref<2x16x128xf32, #tpu.memory_space<vmem>>, vector<2x16x32xf32>
    tpu.vector_store %arg31[%c0_33, %c0_34, %c64], %74 {strides = array<i32>} : memref<2x16x128xf32, #tpu.memory_space<vmem>>, vector<2x16x32xf32>,
    %76 = vector.extract_strided_slice %17 {offsets = [0, 0, 96], sizes = [2, 16, 32], strides = [1, 1, 1]} : vector<2x16x128xf32> to vector<2x16x32xf32>
    %77 = vector.extract_strided_slice %19 {offsets = [0, 0, 96], sizes = [2, 16, 32], strides = [1, 1, 1]} : vector<2x16x128xf32> to vector<2x16x32xf32>
    %78 = vector.extract_strided_slice %21 {offsets = [0, 0, 96], sizes = [2, 16, 32], strides = [1, 1, 1]} : vector<2x16x128xf32> to vector<2x16x32xf32>
    "tpu.trace_start"() <{level = 10 : i32, message = "bld,bmd->blm"}> : () -> ()
    %cst_35 = arith.constant dense<0.000000e+00> : vector<2x16x16xf32>
    %79 = tpu.matmul %76, %77, %cst_35 {dimension_numbers = #tpu.dot_dimension_numbers<[2], [2], [1], [1], [0, 0, 0, 1, 1, 1], [0], [0]>} : vector<2x16x32xf32>, vector<2x16x32xf32>, vector<2x16x16xf32> -> vector<2x16x16xf32>
    "tpu.trace_stop"() : () -> ()
    %cst_36 = arith.constant 0.176776692 : f32
    %80 = vector.broadcast %cst_36 : f32 to vector<2x16x16xf32>
    %81 = arith.mulf %79, %80 : vector<2x16x16xf32>
    %cst_37 = arith.constant dense<0xFF800000> : vector<2x16xf32>
    %82 = vector.multi_reduction <maximumf>, %81, %cst_37 [2] : vector<2x16x16xf32> to vector<2x16xf32>
    %83 = vector.shape_cast %82 : vector<2x16xf32> to vector<2x16x1xf32>
    %84 = vector.broadcast %83 : vector<2x16x1xf32> to vector<2x16x16xf32>
    %85 = arith.subf %81, %84 : vector<2x16x16xf32>
    %86 = math.exp %85 : vector<2x16x16xf32>
    %cst_38 = arith.constant dense<0.000000e+00> : vector<2x16xf32>
    %87 = vector.multi_reduction <add>, %86, %cst_38 [2] : vector<2x16x16xf32> to vector<2x16xf32>
    %88 = vector.shape_cast %87 : vector<2x16xf32> to vector<2x16x1xf32>
    %89 = tpu.reciprocal %88 {approx = true} : vector<2x16x1xf32> -> vector<2x16x1xf32>
    %90 = vector.broadcast %89 : vector<2x16x1xf32> to vector<2x16x16xf32>
    %91 = arith.mulf %86, %90 : vector<2x16x16xf32>
    "tpu.trace_start"() <{level = 10 : i32, message = "blm,bmd->bld"}> : () -> ()
    %cst_39 = arith.constant dense<0.000000e+00> : vector<2x16x32xf32>
    %92 = tpu.matmul %91, %78, %cst_39 {dimension_numbers = #tpu.dot_dimension_numbers<[2], [1], [1], [2], [0, 0, 0, 1, 1, 2], [0], [0]>} : vector<2x16x16xf32>, vector<2x16x32xf32>, vector<2x16x32xf32> -> vector<2x16x32xf32>
    "tpu.trace_stop"() : () -> ()
    %c0_40 = arith.constant 0 : index
    %c0_41 = arith.constant 0 : index
    %c96 = arith.constant 96 : index
    %93 = vector.load %arg31[%c0_40, %c0_41, %c96] : memref<2x16x128xf32, #tpu.memory_space<vmem>>, vector<2x16x32xf32>
    tpu.vector_store %arg31[%c0_40, %c0_41, %c96], %92 {strides = array<i32>} : memref<2x16x128xf32, #tpu.memory_space<vmem>>, vector<2x16x32xf32>,
    %c0_42 = arith.constant 0 : index
    %c0_43 = arith.constant 0 : index
    %c0_44 = arith.constant 0 : index
    %94 = vector.load %arg31[%c0_42, %c0_43, %c0_44] : memref<2x16x128xf32, #tpu.memory_space<vmem>>, vector<2x16x128xf32>
    %c0_45 = arith.constant 0 : index
    %c0_46 = arith.constant 0 : index
    %95 = vector.load %arg7[%c0_45, %c0_46] : memref<1x128xf32, #tpu.memory_space<vmem>>, vector<1x128xf32>
    %c0_47 = arith.constant 0 : index
    %c0_48 = arith.constant 0 : index
    %96 = vector.load %arg8[%c0_47, %c0_48] : memref<1x128xf32, #tpu.memory_space<vmem>>, vector<1x128xf32>
    %cst_49 = arith.constant dense<0.000000e+00> : vector<2x16xf32>
    %97 = vector.multi_reduction <add>, %94, %cst_49 [2] : vector<2x16x128xf32> to vector<2x16xf32>
    %98 = vector.shape_cast %97 : vector<2x16xf32> to vector<2x16x1xf32>
    %cst_50 = arith.constant 1.280000e+02 : f32
    %99 = vector.broadcast %cst_50 : f32 to vector<2x16x1xf32>
    %100 = arith.divf %98, %99 : vector<2x16x1xf32>
    %101 = vector.broadcast %100 : vector<2x16x1xf32> to vector<2x16x128xf32>
    %102 = arith.subf %94, %101 : vector<2x16x128xf32>
    %103 = arith.mulf %102, %102 : vector<2x16x128xf32>
    %cst_51 = arith.constant dense<0.000000e+00> : vector<2x16xf32>
    %104 = vector.multi_reduction <add>, %103, %cst_51 [2] : vector<2x16x128xf32> to vector<2x16xf32>
    %105 = vector.shape_cast %104 : vector<2x16xf32> to vector<2x16x1xf32>
    %cst_52 = arith.constant 1.280000e+02 : f32
    %106 = vector.broadcast %cst_52 : f32 to vector<2x16x1xf32>
    %107 = arith.divf %105, %106 : vector<2x16x1xf32>
    %108 = vector.broadcast %100 : vector<2x16x1xf32> to vector<2x16x128xf32>
    %109 = arith.subf %94, %108 : vector<2x16x128xf32>
    %cst_53 = arith.constant 9.99999974E-6 : f32
    %110 = vector.broadcast %cst_53 : f32 to vector<2x16x1xf32>
    %111 = arith.addf %107, %110 : vector<2x16x1xf32>
    %112 = math.rsqrt %111 : vector<2x16x1xf32>
    %113 = vector.broadcast %112 : vector<2x16x1xf32> to vector<2x16x128xf32>
    %114 = arith.mulf %109, %113 : vector<2x16x128xf32>
    %115 = vector.shape_cast %95 : vector<1x128xf32> to vector<1x1x128xf32>
    %116 = vector.broadcast %115 : vector<1x1x128xf32> to vector<2x16x128xf32>
    %117 = arith.mulf %114, %116 : vector<2x16x128xf32>
    %118 = vector.shape_cast %96 : vector<1x128xf32> to vector<1x1x128xf32>
    %119 = vector.broadcast %118 : vector<1x1x128xf32> to vector<2x16x128xf32>
    %120 = arith.addf %117, %119 : vector<2x16x128xf32>
    %c0_54 = arith.constant 0 : index
    %c0_55 = arith.constant 0 : index
    %121 = vector.load %arg9[%c0_54, %c0_55] : memref<128x32xf32, #tpu.memory_space<vmem>>, vector<128x32xf32>
    %c0_56 = arith.constant 0 : index
    %c0_57 = arith.constant 0 : index
    %122 = vector.load %arg10[%c0_56, %c0_57] : memref<1x32xf32, #tpu.memory_space<vmem>>, vector<1x32xf32>
    %c0_58 = arith.constant 0 : index
    %c0_59 = arith.constant 0 : index
    %123 = vector.load %arg11[%c0_58, %c0_59] : memref<1x32xf32, #tpu.memory_space<vmem>>, vector<1x32xf32>
    %124 = vector.shape_cast %120 : vector<2x16x128xf32> to vector<32x128xf32>
    %cst_60 = arith.constant dense<0.000000e+00> : vector<32x32xf32>
    %125 = tpu.matmul %124, %121, %cst_60 {dimension_numbers = #tpu.dot_dimension_numbers<[1], [0], [0], [1], [0, 0, 1, 1], [], []>} : vector<32x128xf32>, vector<128x32xf32>, vector<32x32xf32> -> vector<32x32xf32>
    %126 = vector.broadcast %122 : vector<1x32xf32> to vector<32x32xf32>
    %127 = arith.addf %125, %126 : vector<32x32xf32>
    %128 = math.tanh %127 : vector<32x32xf32>
    %129 = vector.shape_cast %128 : vector<32x32xf32> to vector<2x16x32xf32>
    %130 = vector.shape_cast %123 : vector<1x32xf32> to vector<1x1x32xf32>
    %131 = vector.broadcast %130 : vector<1x1x32xf32> to vector<2x16x32xf32>
    %132 = arith.mulf %129, %131 : vector<2x16x32xf32>
    %cst_61 = arith.constant dense<0.000000e+00> : vector<2x16xf32>
    %133 = vector.multi_reduction <add>, %132, %cst_61 [2] : vector<2x16x32xf32> to vector<2x16xf32>
    %cst_62 = arith.constant dense<0xFF800000> : vector<2xf32>
    %134 = vector.multi_reduction <maximumf>, %133, %cst_62 [1] : vector<2x16xf32> to vector<2xf32>
    %135 = vector.shape_cast %134 : vector<2xf32> to vector<2x1xf32>
    %136 = vector.broadcast %135 : vector<2x1xf32> to vector<2x16xf32>
    %137 = arith.subf %133, %136 : vector<2x16xf32>
    %138 = math.exp %137 : vector<2x16xf32>
    %cst_63 = arith.constant dense<0.000000e+00> : vector<2xf32>
    %139 = vector.multi_reduction <add>, %138, %cst_63 [1] : vector<2x16xf32> to vector<2xf32>
    %140 = vector.shape_cast %139 : vector<2xf32> to vector<2x1xf32>
    %141 = tpu.reciprocal %140 {approx = true} : vector<2x1xf32> -> vector<2x1xf32>
    %142 = vector.broadcast %141 : vector<2x1xf32> to vector<2x16xf32>
    %143 = arith.mulf %138, %142 : vector<2x16xf32>
    %144 = vector.shape_cast %143 : vector<2x16xf32> to vector<2x1x16xf32>
    "tpu.trace_start"() <{level = 10 : i32, message = "bqn,bnd->bqd"}> : () -> ()
    %cst_64 = arith.constant dense<0.000000e+00> : vector<2x1x128xf32>
    %145 = tpu.matmul %144, %120, %cst_64 {dimension_numbers = #tpu.dot_dimension_numbers<[2], [1], [1], [2], [0, 0, 0, 1, 1, 2], [0], [0]>} : vector<2x1x16xf32>, vector<2x16x128xf32>, vector<2x1x128xf32> -> vector<2x1x128xf32>
    "tpu.trace_stop"() : () -> ()
    %146 = vector.shape_cast %145 : vector<2x1x128xf32> to vector<2x128xf32>
    %147 = math.tanh %146 : vector<2x128xf32>
    %c0_65 = arith.constant 0 : index
    %c0_66 = arith.constant 0 : index
    %c0_67 = arith.constant 0 : index
    %148 = vector.load %arg2[%c0_65, %c0_66, %c0_67] : memref<2x8x128xf32, #tpu.memory_space<vmem>>, vector<2x8x128xf32>
    %149 = vector.shape_cast %148 : vector<2x8x128xf32> to vector<16x128xf32>
    %c0_68 = arith.constant 0 : index
    %c0_69 = arith.constant 0 : index
    %c0_70 = arith.constant 0 : index
    %150 = vector.load %arg3[%c0_68, %c0_69, %c0_70] : memref<2x40x256xf32, #tpu.memory_space<vmem>>, vector<2x40x256xf32>
    %151 = vector.shape_cast %150 : vector<2x40x256xf32> to vector<80x256xf32>
    %c0_71 = arith.constant 0 : index
    %c0_72 = arith.constant 0 : index
    %152 = vector.load %arg13[%c0_71, %c0_72] : memref<256x128xf32, #tpu.memory_space<vmem>>, vector<256x128xf32>
    %cst_73 = arith.constant dense<0.000000e+00> : vector<80x128xf32>
    %153 = tpu.matmul %151, %152, %cst_73 {dimension_numbers = #tpu.dot_dimension_numbers<[1], [0], [0], [1], [0, 0, 1, 1], [], []>} : vector<80x256xf32>, vector<256x128xf32>, vector<80x128xf32> -> vector<80x128xf32>
    %c0_74 = arith.constant 0 : index
    %c0_75 = arith.constant 0 : index
    %154 = vector.load %arg14[%c0_74, %c0_75] : memref<1x128xf32, #tpu.memory_space<vmem>>, vector<1x128xf32>
    %155 = vector.broadcast %154 : vector<1x128xf32> to vector<80x128xf32>
    %156 = arith.addf %153, %155 : vector<80x128xf32>
    %c0_76 = arith.constant 0 : index
    %c0_77 = arith.constant 0 : index
    %157 = vector.load %arg12[%c0_76, %c0_77] : memref<128x128xf32, #tpu.memory_space<vmem>>, vector<128x128xf32>
    %cst_78 = arith.constant dense<0.000000e+00> : vector<16x128xf32>
    %158 = tpu.matmul %149, %157, %cst_78 {dimension_numbers = #tpu.dot_dimension_numbers<[1], [0], [0], [1], [0, 0, 1, 1], [], []>} : vector<16x128xf32>, vector<128x128xf32>, vector<16x128xf32> -> vector<16x128xf32>
    %159 = vector.shape_cast %156 : vector<80x128xf32> to vector<16x5x128xf32>
    %160 = vector.shape_cast %158 : vector<16x128xf32> to vector<16x1x128xf32>
    %161 = vector.broadcast %160 : vector<16x1x128xf32> to vector<16x5x128xf32>
    %162 = arith.addf %159, %161 : vector<16x5x128xf32>
    %cst_79 = arith.constant 0.000000e+00 : f32
    %163 = vector.broadcast %cst_79 : f32 to vector<16x5x128xf32>
    %164 = arith.maximumf %162, %163 : vector<16x5x128xf32>
    %c0_80 = arith.constant 0 : index
    %c0_81 = arith.constant 0 : index
    %165 = vector.load %arg15[%c0_80, %c0_81] : memref<1x128xf32, #tpu.memory_space<vmem>>, vector<1x128xf32>
    %166 = vector.shape_cast %165 : vector<1x128xf32> to vector<1x1x128xf32>
    %167 = vector.broadcast %166 : vector<1x1x128xf32> to vector<16x5x128xf32>
    %168 = arith.mulf %164, %167 : vector<16x5x128xf32>
    %cst_82 = arith.constant dense<0.000000e+00> : vector<16x5xf32>
    %169 = vector.multi_reduction <add>, %168, %cst_82 [2] : vector<16x5x128xf32> to vector<16x5xf32>
    %c0_83 = arith.constant 0 : index
    %c0_84 = arith.constant 0 : index
    %170 = vector.load %arg16[%c0_83, %c0_84] : memref<1x1xf32, #tpu.memory_space<vmem>>, vector<1x1xf32>
    %171 = vector.broadcast %170 : vector<1x1xf32> to vector<16x5xf32>
    %172 = arith.addf %169, %171 : vector<16x5xf32>
    %173 = vector.extract_strided_slice %150 {offsets = [0, 0, 0], sizes = [2, 40, 128], strides = [1, 1, 1]} : vector<2x40x256xf32> to vector<2x40x128xf32>
    %174 = vector.shape_cast %173 : vector<2x40x128xf32> to vector<16x5x128xf32>
    %cst_85 = arith.constant dense<0xFF800000> : vector<16xf32>
    %175 = vector.multi_reduction <maximumf>, %172, %cst_85 [1] : vector<16x5xf32> to vector<16xf32>
    %176 = vector.shape_cast %175 : vector<16xf32> to vector<16x1xf32>
    %177 = vector.broadcast %176 : vector<16x1xf32> to vector<16x5xf32>
    %178 = arith.subf %172, %177 : vector<16x5xf32>
    %179 = math.exp %178 : vector<16x5xf32>
    %cst_86 = arith.constant dense<0.000000e+00> : vector<16xf32>
    %180 = vector.multi_reduction <add>, %179, %cst_86 [1] : vector<16x5xf32> to vector<16xf32>
    %181 = vector.shape_cast %180 : vector<16xf32> to vector<16x1xf32>
    %182 = tpu.reciprocal %181 {approx = true} : vector<16x1xf32> -> vector<16x1xf32>
    %183 = vector.broadcast %182 : vector<16x1xf32> to vector<16x5xf32>
    %184 = arith.mulf %179, %183 : vector<16x5xf32>
    %185 = vector.shape_cast %184 : vector<16x5xf32> to vector<16x1x5xf32>
    "tpu.trace_start"() <{level = 10 : i32, message = "bqn,bnd->bqd"}> : () -> ()
    %cst_87 = arith.constant dense<0.000000e+00> : vector<16x1x128xf32>
    %186 = tpu.matmul %185, %174, %cst_87 {dimension_numbers = #tpu.dot_dimension_numbers<[2], [1], [1], [2], [0, 0, 0, 1, 1, 2], [0], [0]>} : vector<16x1x5xf32>, vector<16x5x128xf32>, vector<16x1x128xf32> -> vector<16x1x128xf32>
    "tpu.trace_stop"() : () -> ()
    %187 = vector.shape_cast %186 : vector<16x1x128xf32> to vector<16x128xf32>
    %c0_88 = arith.constant 0 : index
    %c0_89 = arith.constant 0 : index
    %188 = vector.load %arg17[%c0_88, %c0_89] : memref<128x256xf32, #tpu.memory_space<vmem>>, vector<128x256xf32>
    %cst_90 = arith.constant dense<0.000000e+00> : vector<16x256xf32>
    %189 = tpu.matmul %149, %188, %cst_90 {dimension_numbers = #tpu.dot_dimension_numbers<[1], [0], [0], [1], [0, 0, 1, 1], [], []>} : vector<16x128xf32>, vector<128x256xf32>, vector<16x256xf32> -> vector<16x256xf32>
    %c0_91 = arith.constant 0 : index
    %c0_92 = arith.constant 0 : index
    %190 = vector.load %arg18[%c0_91, %c0_92] : memref<128x256xf32, #tpu.memory_space<vmem>>, vector<128x256xf32>
    %cst_93 = arith.constant dense<0.000000e+00> : vector<16x256xf32>
    %191 = tpu.matmul %187, %190, %cst_93 {dimension_numbers = #tpu.dot_dimension_numbers<[1], [0], [0], [1], [0, 0, 1, 1], [], []>} : vector<16x128xf32>, vector<128x256xf32>, vector<16x256xf32> -> vector<16x256xf32>
    %192 = arith.addf %189, %191 : vector<16x256xf32>
    %c0_94 = arith.constant 0 : index
    %c0_95 = arith.constant 0 : index
    %193 = vector.load %arg19[%c0_94, %c0_95] : memref<1x256xf32, #tpu.memory_space<vmem>>, vector<1x256xf32>
    %194 = vector.broadcast %193 : vector<1x256xf32> to vector<16x256xf32>
    %195 = arith.addf %192, %194 : vector<16x256xf32>
    %196 = vector.extract_strided_slice %195 {offsets = [0, 0], sizes = [16, 128], strides = [1, 1]} : vector<16x256xf32> to vector<16x128xf32>
    %197 = math.tanh %196 : vector<16x128xf32>
    %198 = vector.extract_strided_slice %195 {offsets = [0, 128], sizes = [16, 128], strides = [1, 1]} : vector<16x256xf32> to vector<16x128xf32>
    %199 = vector.shape_cast %197 : vector<16x128xf32> to vector<2x8x128xf32>
    %cst_96 = arith.constant dense<0.000000e+00> : vector<2x128xf32>
    %200 = vector.multi_reduction <add>, %199, %cst_96 [1] : vector<2x8x128xf32> to vector<2x128xf32>
    %cst_97 = arith.constant 8.000000e+00 : f32
    %201 = vector.broadcast %cst_97 : f32 to vector<2x128xf32>
    %202 = arith.divf %200, %201 : vector<2x128xf32>
    %c0_98 = arith.constant 0 : index
    %c0_99 = arith.constant 0 : index
    %203 = vector.load %arg20[%c0_98, %c0_99] : memref<128x128xf32, #tpu.memory_space<vmem>>, vector<128x128xf32>
    %cst_100 = arith.constant dense<0.000000e+00> : vector<2x128xf32>
    %204 = tpu.matmul %202, %203, %cst_100 {dimension_numbers = #tpu.dot_dimension_numbers<[1], [0], [0], [1], [0, 0, 1, 1], [], []>} : vector<2x128xf32>, vector<128x128xf32>, vector<2x128xf32> -> vector<2x128xf32>
    %c0_101 = arith.constant 0 : index
    %c0_102 = arith.constant 0 : index
    %205 = vector.load %arg21[%c0_101, %c0_102] : memref<1x128xf32, #tpu.memory_space<vmem>>, vector<1x128xf32>
    %206 = vector.broadcast %205 : vector<1x128xf32> to vector<2x128xf32>
    %207 = arith.addf %204, %206 : vector<2x128xf32>
    %cst_103 = arith.constant 0.000000e+00 : f32
    %208 = vector.broadcast %cst_103 : f32 to vector<2x128xf32>
    %209 = arith.maximumf %207, %208 : vector<2x128xf32>
    %c0_104 = arith.constant 0 : index
    %c0_105 = arith.constant 0 : index
    %210 = vector.load %arg7[%c0_104, %c0_105] : memref<1x128xf32, #tpu.memory_space<vmem>>, vector<1x128xf32>
    %c0_106 = arith.constant 0 : index
    %c0_107 = arith.constant 0 : index
    %211 = vector.load %arg8[%c0_106, %c0_107] : memref<1x128xf32, #tpu.memory_space<vmem>>, vector<1x128xf32>
    %cst_108 = arith.constant dense<0.000000e+00> : vector<2xf32>
    %212 = vector.multi_reduction <add>, %209, %cst_108 [1] : vector<2x128xf32> to vector<2xf32>
    %213 = vector.shape_cast %212 : vector<2xf32> to vector<2x1xf32>
    %cst_109 = arith.constant 1.280000e+02 : f32
    %214 = vector.broadcast %cst_109 : f32 to vector<2x1xf32>
    %215 = arith.divf %213, %214 : vector<2x1xf32>
    %216 = vector.broadcast %215 : vector<2x1xf32> to vector<2x128xf32>
    %217 = arith.subf %209, %216 : vector<2x128xf32>
    %218 = arith.mulf %217, %217 : vector<2x128xf32>
    %cst_110 = arith.constant dense<0.000000e+00> : vector<2xf32>
    %219 = vector.multi_reduction <add>, %218, %cst_110 [1] : vector<2x128xf32> to vector<2xf32>
    %220 = vector.shape_cast %219 : vector<2xf32> to vector<2x1xf32>
    %cst_111 = arith.constant 1.280000e+02 : f32
    %221 = vector.broadcast %cst_111 : f32 to vector<2x1xf32>
    %222 = arith.divf %220, %221 : vector<2x1xf32>
    %223 = vector.broadcast %215 : vector<2x1xf32> to vector<2x128xf32>
    %224 = arith.subf %209, %223 : vector<2x128xf32>
    %cst_112 = arith.constant 9.99999974E-6 : f32
    %225 = vector.broadcast %cst_112 : f32 to vector<2x1xf32>
    %226 = arith.addf %222, %225 : vector<2x1xf32>
    %227 = math.rsqrt %226 : vector<2x1xf32>
    %228 = vector.broadcast %227 : vector<2x1xf32> to vector<2x128xf32>
    %229 = arith.mulf %224, %228 : vector<2x128xf32>
    %230 = vector.broadcast %210 : vector<1x128xf32> to vector<2x128xf32>
    %231 = arith.mulf %229, %230 : vector<2x128xf32>
    %232 = vector.broadcast %211 : vector<1x128xf32> to vector<2x128xf32>
    %233 = arith.addf %231, %232 : vector<2x128xf32>
    %234 = vector.shape_cast %233 : vector<2x128xf32> to vector<2x1x128xf32>
    %235 = vector.shape_cast %234 : vector<2x1x128xf32> to vector<2x1x128xf32>
    %236 = vector.broadcast %235 : vector<2x1x128xf32> to vector<2x8x128xf32>
    %c0_113 = arith.constant 0 : index
    %c0_114 = arith.constant 0 : index
    %237 = vector.load %arg22[%c0_113, %c0_114] : memref<128x32xf32, #tpu.memory_space<vmem>>, vector<128x32xf32>
    %c0_115 = arith.constant 0 : index
    %c0_116 = arith.constant 0 : index
    %238 = vector.load %arg23[%c0_115, %c0_116] : memref<1x32xf32, #tpu.memory_space<vmem>>, vector<1x32xf32>
    %c0_117 = arith.constant 0 : index
    %c0_118 = arith.constant 0 : index
    %239 = vector.load %arg24[%c0_117, %c0_118] : memref<1x32xf32, #tpu.memory_space<vmem>>, vector<1x32xf32>
    %240 = vector.shape_cast %236 : vector<2x8x128xf32> to vector<16x128xf32>
    %cst_119 = arith.constant dense<0.000000e+00> : vector<16x32xf32>
    %241 = tpu.matmul %240, %237, %cst_119 {dimension_numbers = #tpu.dot_dimension_numbers<[1], [0], [0], [1], [0, 0, 1, 1], [], []>} : vector<16x128xf32>, vector<128x32xf32>, vector<16x32xf32> -> vector<16x32xf32>
    %242 = vector.broadcast %238 : vector<1x32xf32> to vector<16x32xf32>
    %243 = arith.addf %241, %242 : vector<16x32xf32>
    %244 = math.tanh %243 : vector<16x32xf32>
    %245 = vector.shape_cast %244 : vector<16x32xf32> to vector<2x8x32xf32>
    %246 = vector.shape_cast %239 : vector<1x32xf32> to vector<1x1x32xf32>
    %247 = vector.broadcast %246 : vector<1x1x32xf32> to vector<2x8x32xf32>
    %248 = arith.mulf %245, %247 : vector<2x8x32xf32>
    %cst_120 = arith.constant dense<0.000000e+00> : vector<2x8xf32>
    %249 = vector.multi_reduction <add>, %248, %cst_120 [2] : vector<2x8x32xf32> to vector<2x8xf32>
    %cst_121 = arith.constant dense<0xFF800000> : vector<2xf32>
    %250 = vector.multi_reduction <maximumf>, %249, %cst_121 [1] : vector<2x8xf32> to vector<2xf32>
    %251 = vector.shape_cast %250 : vector<2xf32> to vector<2x1xf32>
    %252 = vector.broadcast %251 : vector<2x1xf32> to vector<2x8xf32>
    %253 = arith.subf %249, %252 : vector<2x8xf32>
    %254 = math.exp %253 : vector<2x8xf32>
    %cst_122 = arith.constant dense<0.000000e+00> : vector<2xf32>
    %255 = vector.multi_reduction <add>, %254, %cst_122 [1] : vector<2x8xf32> to vector<2xf32>
    %256 = vector.shape_cast %255 : vector<2xf32> to vector<2x1xf32>
    %257 = tpu.reciprocal %256 {approx = true} : vector<2x1xf32> -> vector<2x1xf32>
    %258 = vector.broadcast %257 : vector<2x1xf32> to vector<2x8xf32>
    %259 = arith.mulf %254, %258 : vector<2x8xf32>
    %260 = vector.shape_cast %259 : vector<2x8xf32> to vector<2x1x8xf32>
    "tpu.trace_start"() <{level = 10 : i32, message = "bqn,bnd->bqd"}> : () -> ()
    %cst_123 = arith.constant dense<0.000000e+00> : vector<2x1x128xf32>
    %261 = tpu.matmul %260, %236, %cst_123 {dimension_numbers = #tpu.dot_dimension_numbers<[2], [1], [1], [2], [0, 0, 0, 1, 1, 2], [0], [0]>} : vector<2x1x8xf32>, vector<2x8x128xf32>, vector<2x1x128xf32> -> vector<2x1x128xf32>
    "tpu.trace_stop"() : () -> ()
    %262 = vector.shape_cast %261 : vector<2x1x128xf32> to vector<2x128xf32>
    %263 = math.tanh %262 : vector<2x128xf32>
    %264 = vector.shape_cast %147 : vector<2x128xf32> to vector<2x1x128xf32>
    %265 = vector.shape_cast %263 : vector<2x128xf32> to vector<2x1x128xf32>
    %266 = vector.shape_cast %7 : vector<2x128xf32> to vector<2x1x128xf32>
    %267 = vector.shape_cast %8 : vector<2x128xf32> to vector<2x1x128xf32>
    %268 = tpu.concatenate %264, %265, %266, %267 in 1 : vector<2x1x128xf32>, vector<2x1x128xf32>, vector<2x1x128xf32>, vector<2x1x128xf32> -> vector<2x4x128xf32>
    %c0_124 = arith.constant 0 : index
    %c0_125 = arith.constant 0 : index
    %269 = vector.load %arg25[%c0_124, %c0_125] : memref<128x32xf32, #tpu.memory_space<vmem>>, vector<128x32xf32>
    %c0_126 = arith.constant 0 : index
    %c0_127 = arith.constant 0 : index
    %270 = vector.load %arg26[%c0_126, %c0_127] : memref<1x32xf32, #tpu.memory_space<vmem>>, vector<1x32xf32>
    %c0_128 = arith.constant 0 : index
    %c0_129 = arith.constant 0 : index
    %271 = vector.load %arg27[%c0_128, %c0_129] : memref<1x32xf32, #tpu.memory_space<vmem>>, vector<1x32xf32>
    %272 = vector.shape_cast %268 : vector<2x4x128xf32> to vector<8x128xf32>
    %cst_130 = arith.constant dense<0.000000e+00> : vector<8x32xf32>
    %273 = tpu.matmul %272, %269, %cst_130 {dimension_numbers = #tpu.dot_dimension_numbers<[1], [0], [0], [1], [0, 0, 1, 1], [], []>} : vector<8x128xf32>, vector<128x32xf32>, vector<8x32xf32> -> vector<8x32xf32>
    %274 = vector.broadcast %270 : vector<1x32xf32> to vector<8x32xf32>
    %275 = arith.addf %273, %274 : vector<8x32xf32>
    %276 = math.tanh %275 : vector<8x32xf32>
    %277 = vector.shape_cast %276 : vector<8x32xf32> to vector<2x4x32xf32>
    %278 = vector.shape_cast %271 : vector<1x32xf32> to vector<1x1x32xf32>
    %279 = vector.broadcast %278 : vector<1x1x32xf32> to vector<2x4x32xf32>
    %280 = arith.mulf %277, %279 : vector<2x4x32xf32>
    %cst_131 = arith.constant dense<0.000000e+00> : vector<2x4xf32>
    %281 = vector.multi_reduction <add>, %280, %cst_131 [2] : vector<2x4x32xf32> to vector<2x4xf32>
    %cst_132 = arith.constant dense<0xFF800000> : vector<2xf32>
    %282 = vector.multi_reduction <maximumf>, %281, %cst_132 [1] : vector<2x4xf32> to vector<2xf32>
    %283 = vector.shape_cast %282 : vector<2xf32> to vector<2x1xf32>
    %284 = vector.broadcast %283 : vector<2x1xf32> to vector<2x4xf32>
    %285 = arith.subf %281, %284 : vector<2x4xf32>
    %286 = math.exp %285 : vector<2x4xf32>
    %cst_133 = arith.constant dense<0.000000e+00> : vector<2xf32>
    %287 = vector.multi_reduction <add>, %286, %cst_133 [1] : vector<2x4xf32> to vector<2xf32>
    %288 = vector.shape_cast %287 : vector<2xf32> to vector<2x1xf32>
    %289 = tpu.reciprocal %288 {approx = true} : vector<2x1xf32> -> vector<2x1xf32>
    %290 = vector.broadcast %289 : vector<2x1xf32> to vector<2x4xf32>
    %291 = arith.mulf %286, %290 : vector<2x4xf32>
    %292 = vector.shape_cast %291 : vector<2x4xf32> to vector<2x1x4xf32>
    "tpu.trace_start"() <{level = 10 : i32, message = "bqn,bnd->bqd"}> : () -> ()
    %cst_134 = arith.constant dense<0.000000e+00> : vector<2x1x128xf32>
    %293 = tpu.matmul %292, %268, %cst_134 {dimension_numbers = #tpu.dot_dimension_numbers<[2], [1], [1], [2], [0, 0, 0, 1, 1, 2], [0], [0]>} : vector<2x1x4xf32>, vector<2x4x128xf32>, vector<2x1x128xf32> -> vector<2x1x128xf32>
    "tpu.trace_stop"() : () -> ()
    %294 = vector.shape_cast %293 : vector<2x1x128xf32> to vector<2x128xf32>
    %295 = math.tanh %294 : vector<2x128xf32>
    %296 = vector.shape_cast %198 : vector<16x128xf32> to vector<2x8x128xf32>
    %297 = vector.shape_cast %295 : vector<2x128xf32> to vector<2x1x128xf32>
    %298 = vector.broadcast %297 : vector<2x1x128xf32> to vector<2x8x128xf32>
    %299 = arith.mulf %296, %298 : vector<2x8x128xf32>
    %cst_135 = arith.constant dense<0.000000e+00> : vector<2x8xf32>
    %300 = vector.multi_reduction <add>, %299, %cst_135 [2] : vector<2x8x128xf32> to vector<2x8xf32>
    %cst_136 = arith.constant dense<0xFF800000> : vector<2xf32>
    %301 = vector.multi_reduction <maximumf>, %300, %cst_136 [1] : vector<2x8xf32> to vector<2xf32>
    %302 = vector.shape_cast %301 : vector<2xf32> to vector<2x1xf32>
    %303 = vector.broadcast %302 : vector<2x1xf32> to vector<2x8xf32>
    %304 = arith.subf %300, %303 : vector<2x8xf32>
    %305 = math.exp %304 : vector<2x8xf32>
    %cst_137 = arith.constant dense<0.000000e+00> : vector<2xf32>
    %306 = vector.multi_reduction <add>, %305, %cst_137 [1] : vector<2x8xf32> to vector<2xf32>
    %307 = vector.shape_cast %306 : vector<2xf32> to vector<2x1xf32>
    %308 = tpu.reciprocal %307 {approx = true} : vector<2x1xf32> -> vector<2x1xf32>
    %309 = vector.broadcast %308 : vector<2x1xf32> to vector<2x8xf32>
    %310 = arith.mulf %305, %309 : vector<2x8xf32>
    %311 = vector.shape_cast %310 : vector<2x8xf32> to vector<2x1x8xf32>
    "tpu.trace_start"() <{level = 10 : i32, message = "bqn,bnd->bqd"}> : () -> ()
    %cst_138 = arith.constant dense<0.000000e+00> : vector<2x1x128xf32>
    %312 = tpu.matmul %311, %296, %cst_138 {dimension_numbers = #tpu.dot_dimension_numbers<[2], [1], [1], [2], [0, 0, 0, 1, 1, 2], [0], [0]>} : vector<2x1x8xf32>, vector<2x8x128xf32>, vector<2x1x128xf32> -> vector<2x1x128xf32>
    "tpu.trace_stop"() : () -> ()
    %313 = vector.shape_cast %312 : vector<2x1x128xf32> to vector<2x128xf32>
    %314 = math.tanh %313 : vector<2x128xf32>
    %315 = vector.shape_cast %295 : vector<2x128xf32> to vector<2x1x128xf32>
    %316 = vector.shape_cast %314 : vector<2x128xf32> to vector<2x1x128xf32>
    %317 = tpu.concatenate %315, %316 in 1 : vector<2x1x128xf32>, vector<2x1x128xf32> -> vector<2x2x128xf32>
    %318 = math.tanh %317 : vector<2x2x128xf32>
    %c0_139 = arith.constant 0 : index
    %c0_140 = arith.constant 0 : index
    %c0_141 = arith.constant 0 : index
    %319 = vector.load %arg30[%c0_139, %c0_140, %c0_141] : memref<2x2x128xf32, #tpu.memory_space<vmem>>, vector<2x2x128xf32>
    tpu.vector_store %arg30[%c0_139, %c0_140, %c0_141], %318 {strides = array<i32>} : memref<2x2x128xf32, #tpu.memory_space<vmem>>, vector<2x2x128xf32>,
    return
  }
  func.func @transform_0(%arg0: i32) -> (i32, i32, i32) {
    %c0_i32 = arith.constant 0 : i32
    %c0_i32_0 = arith.constant 0 : i32
    %c0_i32_1 = arith.constant 0 : i32
    return %arg0, %c0_i32, %c0_i32_0 : i32, i32, i32
  }
  func.func @transform_1(%arg0: i32) -> (i32, i32, i32) {
    %c0_i32 = arith.constant 0 : i32
    %c0_i32_0 = arith.constant 0 : i32
    %c0_i32_1 = arith.constant 0 : i32
    return %arg0, %c0_i32, %c0_i32_0 : i32, i32, i32
  }
  func.func @transform_2(%arg0: i32) -> (i32, i32, i32) {
    %c0_i32 = arith.constant 0 : i32
    %c0_i32_0 = arith.constant 0 : i32
    %c0_i32_1 = arith.constant 0 : i32
    return %arg0, %c0_i32, %c0_i32_0 : i32, i32, i32
  }
  func.func @transform_3(%arg0: i32) -> (i32, i32) {
    %c0_i32 = arith.constant 0 : i32
    %c0_i32_0 = arith.constant 0 : i32
    return %arg0, %c0_i32 : i32, i32
  }
  func.func @transform_4(%arg0: i32) -> (i32, i32) {
    %c0_i32 = arith.constant 0 : i32
    %c0_i32_0 = arith.constant 0 : i32
    %c0_i32_1 = arith.constant 0 : i32
    return %c0_i32, %c0_i32_0 : i32, i32
  }
  func.func @transform_5(%arg0: i32) -> (i32, i32) {
    %c0_i32 = arith.constant 0 : i32
    %c0_i32_0 = arith.constant 0 : i32
    %c0_i32_1 = arith.constant 0 : i32
    return %c0_i32, %c0_i32_0 : i32, i32
  }
  func.func @transform_6(%arg0: i32) -> (i32, i32) {
    %c0_i32 = arith.constant 0 : i32
    %c0_i32_0 = arith.constant 0 : i32
    %c0_i32_1 = arith.constant 0 : i32
    return %c0_i32, %c0_i32_0 : i32, i32
  }
  func.func @transform_7(%arg0: i32) -> (i32, i32) {
    %c0_i32 = arith.constant 0 : i32
    %c0_i32_0 = arith.constant 0 : i32
    %c0_i32_1 = arith.constant 0 : i32
    return %c0_i32, %c0_i32_0 : i32, i32
  }
  func.func @transform_8(%arg0: i32) -> (i32, i32) {
    %c0_i32 = arith.constant 0 : i32
    %c0_i32_0 = arith.constant 0 : i32
    %c0_i32_1 = arith.constant 0 : i32
    return %c0_i32, %c0_i32_0 : i32, i32
  }
  func.func @transform_9(%arg0: i32) -> (i32, i32) {
    %c0_i32 = arith.constant 0 : i32
    %c0_i32_0 = arith.constant 0 : i32
    %c0_i32_1 = arith.constant 0 : i32
    return %c0_i32, %c0_i32_0 : i32, i32
  }
  func.func @transform_10(%arg0: i32) -> (i32, i32) {
    %c0_i32 = arith.constant 0 : i32
    %c0_i32_0 = arith.constant 0 : i32
    %c0_i32_1 = arith.constant 0 : i32
    return %c0_i32, %c0_i32_0 : i32, i32
  }
  func.func @transform_11(%arg0: i32) -> (i32, i32) {
    %c0_i32 = arith.constant 0 : i32
    %c0_i32_0 = arith.constant 0 : i32
    %c0_i32_1 = arith.constant 0 : i32
    return %c0_i32, %c0_i32_0 : i32, i32
  }
  func.func @transform_12(%arg0: i32) -> (i32, i32) {
    %c0_i32 = arith.constant 0 : i32
    %c0_i32_0 = arith.constant 0 : i32
    %c0_i32_1 = arith.constant 0 : i32
    return %c0_i32, %c0_i32_0 : i32, i32
  }
  func.func @transform_13(%arg0: i32) -> (i32, i32) {
    %c0_i32 = arith.constant 0 : i32
    %c0_i32_0 = arith.constant 0 : i32
    %c0_i32_1 = arith.constant 0 : i32
    return %c0_i32, %c0_i32_0 : i32, i32
  }
  func.func @transform_14(%arg0: i32) -> (i32, i32) {
    %c0_i32 = arith.constant 0 : i32
    %c0_i32_0 = arith.constant 0 : i32
    %c0_i32_1 = arith.constant 0 : i32
    return %c0_i32, %c0_i32_0 : i32, i32
  }
  func.func @transform_15(%arg0: i32) -> (i32, i32) {
    %c0_i32 = arith.constant 0 : i32
    %c0_i32_0 = arith.constant 0 : i32
    %c0_i32_1 = arith.constant 0 : i32
    return %c0_i32, %c0_i32_0 : i32, i32
  }
  func.func @transform_16(%arg0: i32) -> (i32, i32) {
    %c0_i32 = arith.constant 0 : i32
    %c0_i32_0 = arith.constant 0 : i32
    %c0_i32_1 = arith.constant 0 : i32
    return %c0_i32, %c0_i32_0 : i32, i32
  }
  func.func @transform_17(%arg0: i32) -> (i32, i32) {
    %c0_i32 = arith.constant 0 : i32
    %c0_i32_0 = arith.constant 0 : i32
    %c0_i32_1 = arith.constant 0 : i32
    return %c0_i32, %c0_i32_0 : i32, i32
  }
  func.func @transform_18(%arg0: i32) -> (i32, i32) {
    %c0_i32 = arith.constant 0 : i32
    %c0_i32_0 = arith.constant 0 : i32
    %c0_i32_1 = arith.constant 0 : i32
    return %c0_i32, %c0_i32_0 : i32, i32
  }
  func.func @transform_19(%arg0: i32) -> (i32, i32) {
    %c0_i32 = arith.constant 0 : i32
    %c0_i32_0 = arith.constant 0 : i32
    %c0_i32_1 = arith.constant 0 : i32
    return %c0_i32, %c0_i32_0 : i32, i32
  }
  func.func @transform_20(%arg0: i32) -> (i32, i32) {
    %c0_i32 = arith.constant 0 : i32
    %c0_i32_0 = arith.constant 0 : i32
    %c0_i32_1 = arith.constant 0 : i32
    return %c0_i32, %c0_i32_0 : i32, i32
  }
  func.func @transform_21(%arg0: i32) -> (i32, i32) {
    %c0_i32 = arith.constant 0 : i32
    %c0_i32_0 = arith.constant 0 : i32
    %c0_i32_1 = arith.constant 0 : i32
    return %c0_i32, %c0_i32_0 : i32, i32
  }
  func.func @transform_22(%arg0: i32) -> (i32, i32) {
    %c0_i32 = arith.constant 0 : i32
    %c0_i32_0 = arith.constant 0 : i32
    %c0_i32_1 = arith.constant 0 : i32
    return %c0_i32, %c0_i32_0 : i32, i32
  }
  func.func @transform_23(%arg0: i32) -> (i32, i32) {
    %c0_i32 = arith.constant 0 : i32
    %c0_i32_0 = arith.constant 0 : i32
    %c0_i32_1 = arith.constant 0 : i32
    return %c0_i32, %c0_i32_0 : i32, i32
  }
  func.func @transform_24(%arg0: i32) -> (i32, i32) {
    %c0_i32 = arith.constant 0 : i32
    %c0_i32_0 = arith.constant 0 : i32
    %c0_i32_1 = arith.constant 0 : i32
    return %c0_i32, %c0_i32_0 : i32, i32
  }
  func.func @transform_25(%arg0: i32) -> (i32, i32) {
    %c0_i32 = arith.constant 0 : i32
    %c0_i32_0 = arith.constant 0 : i32
    %c0_i32_1 = arith.constant 0 : i32
    return %c0_i32, %c0_i32_0 : i32, i32
  }
  func.func @transform_26(%arg0: i32) -> (i32, i32) {
    %c0_i32 = arith.constant 0 : i32
    %c0_i32_0 = arith.constant 0 : i32
    %c0_i32_1 = arith.constant 0 : i32
    return %c0_i32, %c0_i32_0 : i32, i32
  }
  func.func @transform_27(%arg0: i32) -> (i32, i32) {
    %c0_i32 = arith.constant 0 : i32
    %c0_i32_0 = arith.constant 0 : i32
    %c0_i32_1 = arith.constant 0 : i32
    return %c0_i32, %c0_i32_0 : i32, i32
  }
  func.func @transform_28(%arg0: i32) -> (i32, i32) {
    %c0_i32 = arith.constant 0 : i32
    %c0_i32_0 = arith.constant 0 : i32
    %c0_i32_1 = arith.constant 0 : i32
    return %c0_i32, %c0_i32_0 : i32, i32
  }
  func.func @transform_29(%arg0: i32) -> (i32, i32, i32) {
    %c0_i32 = arith.constant 0 : i32
    %c0_i32_0 = arith.constant 0 : i32
    %c0_i32_1 = arith.constant 0 : i32
    return %arg0, %c0_i32, %c0_i32_0 : i32, i32, i32
  }
}

</mosaic_0001>

<llo_original>
// kernel: tpu_custom_call.1
$region0: #{tpu_custom_call.1}
  #allocation0 [shape = 'u32[]', space=smem, size = 0x4, offset = 0x4, fixed_abs, tag = 'smem constant byte address 0x4 - core index']
  #allocation1 [shape = 'u32[144,128]{1,0:T(1,128)}', space=vmem, size = 0x12000, scoped, tag = 'internal scratch']
  #allocation2 [shape = 'f32[2,16,128]{2,1,0:T(8,128)}', space=vmem, size = 0x4000, scoped, tag = 'scratch operand']
  #allocation3 [shape = 'f32[1,1]{1,0:T(1,128)S(1)}', space=vmem, size = 0x200, scoped, tag = 'scoped memory for tpu_custom_call.1']
  %s0 = inlined_call_operand.smem [shape: u32[30], index: -1, kind: input, shape index: {}]
  %s1 = sld [smem:[%s0]]
  %s2 = scalar_lea.smem %s0, 1
  %s3 = sld [smem:[%s2]]
  %s4 = scalar_lea.smem %s0, 2
  %s5 = sld [smem:[%s4]]
  %s6 = scalar_lea.smem %s0, 3
  %s7 = sld [smem:[%s6]]
  %s8 = scalar_lea.smem %s0, 4
  %s9 = sld [smem:[%s8]]
  %s10 = scalar_lea.smem %s0, 5
  %s11 = sld [smem:[%s10]]
  %s12 = scalar_lea.smem %s0, 6
  %s13 = sld [smem:[%s12]]
  %s14 = scalar_lea.smem %s0, 7
  %s15 = sld [smem:[%s14]]
  %s16 = scalar_lea.smem %s0, 8
  %s17 = sld [smem:[%s16]]
  %s18 = scalar_lea.smem %s0, 9
  %s19 = sld [smem:[%s18]]
  %s20 = scalar_lea.smem %s0, 10
  %s21 = sld [smem:[%s20]]
  %s22 = scalar_lea.smem %s0, 11
  %s23 = sld [smem:[%s22]]
  %s24 = scalar_lea.smem %s0, 12
  %s25 = sld [smem:[%s24]]
  %s26 = scalar_lea.smem %s0, 13
  %s27 = sld [smem:[%s26]]
  %s28 = scalar_lea.smem %s0, 14
  %s29 = sld [smem:[%s28]]
  %s30 = scalar_lea.smem %s0, 15
  %s31 = sld [smem:[%s30]]
  %s32 = scalar_lea.smem %s0, 16
  %s33 = sld [smem:[%s32]]
  %s34 = scalar_lea.smem %s0, 17
  %s35 = sld [smem:[%s34]]
  %s36 = scalar_lea.smem %s0, 18
  %s37 = sld [smem:[%s36]]
  %s38 = scalar_lea.smem %s0, 19
  %s39 = sld [smem:[%s38]]
  %s40 = scalar_lea.smem %s0, 20
  %s41 = sld [smem:[%s40]]
  %s42 = scalar_lea.smem %s0, 21
  %s43 = sld [smem:[%s42]]
  %s44 = scalar_lea.smem %s0, 22
  %s45 = sld [smem:[%s44]]
  %s46 = scalar_lea.smem %s0, 23
  %s47 = sld [smem:[%s46]]
  %s48 = scalar_lea.smem %s0, 24
  %s49 = sld [smem:[%s48]]
  %s50 = scalar_lea.smem %s0, 25
  %s51 = sld [smem:[%s50]]
  %s52 = scalar_lea.smem %s0, 26
  %s53 = sld [smem:[%s52]]
  %s54 = scalar_lea.smem %s0, 27
  %s55 = sld [smem:[%s54]]
  %s56 = scalar_lea.smem %s0, 28
  %s57 = sld [smem:[%s56]]
  %s58 = scalar_lea.smem %s0, 29
  %s59 = sld [smem:[%s58]]
  %s60 = sld [smem:[#allocation0]]
  $region190: #{tpu_custom_call.1} parent=0
    _
  %s62 = ssub.s32 1, %s60
  %s63 = scalar_select 0, %s62, %s60
  %v64 = vstv %s31
  %65 = vst [vmem:[#allocation3] sm:$0x1] %v64
  $region1: #{tpu_custom_call.1} parent=0
    #allocation4 [shape = 'u8[16384]{0}', space=vmem, size = 0x4000, scoped, tag = 'input window, operand 0, single buffered']
    #allocation5 [shape = 's32[1]{0}', space=sflag, size = 0x4, scoped, tag = 'scoped memory for tpu_custom_call.1']
    #allocation6 [shape = 's32[1]{0}', space=sflag, size = 0x4, scoped, tag = 'scoped memory for tpu_custom_call.1']
    #allocation7 [shape = 'u8[8192]{0}', space=vmem, size = 0x2000, scoped, tag = 'input window, operand 1, single buffered']
    #allocation8 [shape = 's32[1]{0}', space=sflag, size = 0x4, scoped, tag = 'scoped memory for tpu_custom_call.1']
    #allocation9 [shape = 'u8[49152]{0}', space=vmem, size = 0xc000, scoped, tag = 'input window, operand 4, single buffered']
    #allocation10 [shape = 'u8[1536]{0}', space=vmem, size = 0x800, scoped, tag = 'input window, operand 5, single buffered']
    #allocation11 [shape = 's32[1]{0}', space=sflag, size = 0x4, scoped, tag = 'scoped memory for tpu_custom_call.1']
    #allocation12 [shape = 'u8[512]{0}', space=vmem, size = 0x400, scoped, tag = 'input window, operand 6, single buffered']
    #allocation13 [shape = 'u8[512]{0}', space=vmem, size = 0x400, scoped, tag = 'input window, operand 7, single buffered']
    #allocation14 [shape = 's32[1]{0}', space=sflag, size = 0x4, scoped, tag = 'scoped memory for tpu_custom_call.1']
    #allocation15 [shape = 'u8[512]{0}', space=vmem, size = 0x400, scoped, tag = 'input window, operand 9, single buffered']
    #allocation16 [shape = 'u8[512]{0}', space=vmem, size = 0x400, scoped, tag = 'input window, operand 10, single buffered']
    #allocation17 [shape = 's32[1]{0}', space=sflag, size = 0x4, scoped, tag = 'scoped memory for tpu_custom_call.1']
    #allocation18 [shape = 'u8[65536]{0}', space=vmem, size = 0x10000, scoped, tag = 'input window, operand 11, single buffered']
    #allocation19 [shape = 'u8[512]{0}', space=vmem, size = 0x400, scoped, tag = 'input window, operand 13, single buffered']
    #allocation20 [shape = 's32[1]{0}', space=sflag, size = 0x4, scoped, tag = 'scoped memory for tpu_custom_call.1']
    #allocation21 [shape = 'u8[512]{0}', space=vmem, size = 0x400, scoped, tag = 'input window, operand 14, single buffered']
    #allocation22 [shape = 'u8[131072]{0}', space=vmem, size = 0x20000, scoped, tag = 'input window, operand 16, single buffered']
    #allocation23 [shape = 's32[1]{0}', space=sflag, size = 0x4, scoped, tag = 'scoped memory for tpu_custom_call.1']
    #allocation24 [shape = 'u8[131072]{0}', space=vmem, size = 0x20000, scoped, tag = 'input window, operand 17, single buffered']
    #allocation25 [shape = 'u8[1024]{0}', space=vmem, size = 0x400, scoped, tag = 'input window, operand 18, single buffered']
    #allocation26 [shape = 's32[1]{0}', space=sflag, size = 0x4, scoped, tag = 'scoped memory for tpu_custom_call.1']
    #allocation27 [shape = 'u8[65536]{0}', space=vmem, size = 0x10000, scoped, tag = 'input window, operand 19, single buffered']
    #allocation28 [shape = 'u8[512]{0}', space=vmem, size = 0x400, scoped, tag = 'input window, operand 20, single buffered']
    #allocation29 [shape = 's32[1]{0}', space=sflag, size = 0x4, scoped, tag = 'scoped memory for tpu_custom_call.1']
    #allocation30 [shape = 'u8[2048]{0}', space=vmem, size = 0x800, scoped, tag = 'output window, operand 0, single buffered']
    %66 = vsyncpa [#allocation5], 0
    %67 = vsyncpa [#allocation8], 0
    %68 = vsyncpa [#allocation11], 0
    %69 = vsyncpa [#allocation14], 0
    %70 = vsyncpa [#allocation17], 0
    %71 = vsyncpa [#allocation20], 0
    %72 = vsyncpa [#allocation23], 0
    %73 = vsyncpa [#allocation26], 0
    %74 = vsyncpa [#allocation29], 0
    %75 = vsyncpa [#allocation6], 0
    // Predicated region
    $region2: #{tpu_custom_call.1} parent=1 // pred_check
      _
    $region3: #{tpu_custom_call.1} parent=1 // pred_check_branch
      %77 = sbr.rel (0) target = $region5
    $region4: #{tpu_custom_call.1} parent=1 // pred_region
      %s79 = ssub.s32 512, 512
      %80 = vsyncadd [#allocation5], %s79
      %s81 = sshll.u32 [#allocation4], 4
      %s82 = int_to_ptr.vmem [resolvable:$true] %s81
      %87 = dma.hbm_to_vmem [thread:$0]  %s1, 512, %s82, [#allocation5], 128, 128, 8
    $region5: #{tpu_custom_call.1} parent=1 // pred_fallthru
      _
    // Predicated region
    $region6: #{tpu_custom_call.1} parent=1 // pred_check
      _
    $region7: #{tpu_custom_call.1} parent=1 // pred_check_branch
      %89 = sbr.rel (0) target = $region9
    $region8: #{tpu_custom_call.1} parent=1 // pred_region
      %s91 = ssub.s32 256, 256
      %92 = vsyncadd [#allocation8], %s91
      %s93 = sshll.u32 [#allocation7], 4
      %s94 = int_to_ptr.vmem [resolvable:$true] %s93
      %99 = dma.hbm_to_vmem [thread:$0]  %s3, 256, %s94, [#allocation8], 128, 128, 8
    $region9: #{tpu_custom_call.1} parent=1 // pred_fallthru
      _
    // Predicated region
    $region10: #{tpu_custom_call.1} parent=1 // pred_check
      _
    $region11: #{tpu_custom_call.1} parent=1 // pred_check_branch
      %101 = sbr.rel (0) target = $region13
    $region12: #{tpu_custom_call.1} parent=1 // pred_region
      _
    $region13: #{tpu_custom_call.1} parent=1 // pred_fallthru
      _
    // Predicated region
    $region14: #{tpu_custom_call.1} parent=1 // pred_check
      _
    $region15: #{tpu_custom_call.1} parent=1 // pred_check_branch
      %103 = sbr.rel (0) target = $region17
    $region16: #{tpu_custom_call.1} parent=1 // pred_region
      _
    $region17: #{tpu_custom_call.1} parent=1 // pred_fallthru
      _
    // Predicated region
    $region18: #{tpu_custom_call.1} parent=1 // pred_check
      _
    $region19: #{tpu_custom_call.1} parent=1 // pred_check_branch
      %105 = sbr.rel (0) target = $region21
    $region20: #{tpu_custom_call.1} parent=1 // pred_region
      %s107 = ssub.s32 1536, 1536
      %108 = vsyncadd [#allocation8], %s107
      %s109 = sshll.u32 [#allocation9], 4
      %s110 = int_to_ptr.vmem [resolvable:$true] %s109
      %115 = dma.hbm_to_vmem [thread:$0]  %s9, 1536, %s110, [#allocation8], 384, 384, 24
    $region21: #{tpu_custom_call.1} parent=1 // pred_fallthru
      _
    // Predicated region
    $region22: #{tpu_custom_call.1} parent=1 // pred_check
      _
    $region23: #{tpu_custom_call.1} parent=1 // pred_check_branch
      %117 = sbr.rel (0) target = $region25
    $region24: #{tpu_custom_call.1} parent=1 // pred_region
      %s119 = ssub.s32 48, 48
      %120 = vsyncadd [#allocation11], %s119
      %s122 = sshll.u32 [#allocation10], 4
      %s123 = int_to_ptr.vmem [resolvable:$true] %s122
      %125 = dma.hbm_to_vmem [thread:$0]  %s11, 48, %s123, [#allocation11]
    $region25: #{tpu_custom_call.1} parent=1 // pred_fallthru
      _
    // Predicated region
    $region26: #{tpu_custom_call.1} parent=1 // pred_check
      _
    $region27: #{tpu_custom_call.1} parent=1 // pred_check_branch
      %127 = sbr.rel (0) target = $region29
    $region28: #{tpu_custom_call.1} parent=1 // pred_region
      %s129 = ssub.s32 16, 16
      %130 = vsyncadd [#allocation11], %s129
      %s132 = sshll.u32 [#allocation12], 4
      %s133 = int_to_ptr.vmem [resolvable:$true] %s132
      %135 = dma.hbm_to_vmem [thread:$0]  %s13, 16, %s133, [#allocation11]
    $region29: #{tpu_custom_call.1} parent=1 // pred_fallthru
      _
    // Predicated region
    $region30: #{tpu_custom_call.1} parent=1 // pred_check
      _
    $region31: #{tpu_custom_call.1} parent=1 // pred_check_branch
      %137 = sbr.rel (0) target = $region33
    $region32: #{tpu_custom_call.1} parent=1 // pred_region
      %s139 = ssub.s32 16, 16
      %140 = vsyncadd [#allocation14], %s139
      %s142 = sshll.u32 [#allocation13], 4
      %s143 = int_to_ptr.vmem [resolvable:$true] %s142
      %145 = dma.hbm_to_vmem [thread:$0]  %s15, 16, %s143, [#allocation14]
    $region33: #{tpu_custom_call.1} parent=1 // pred_fallthru
      _
    // Predicated region
    $region34: #{tpu_custom_call.1} parent=1 // pred_check
      _
    $region35: #{tpu_custom_call.1} parent=1 // pred_check_branch
      %147 = sbr.rel (0) target = $region37
    $region36: #{tpu_custom_call.1} parent=1 // pred_region
      _
    $region37: #{tpu_custom_call.1} parent=1 // pred_fallthru
      _
    // Predicated region
    $region38: #{tpu_custom_call.1} parent=1 // pred_check
      _
    $region39: #{tpu_custom_call.1} parent=1 // pred_check_branch
      %149 = sbr.rel (0) target = $region41
    $region40: #{tpu_custom_call.1} parent=1 // pred_region
      %s151 = ssub.s32 16, 16
      %152 = vsyncadd [#allocation14], %s151
      %s154 = sshll.u32 [#allocation15], 4
      %s155 = int_to_ptr.vmem [resolvable:$true] %s154
      %157 = dma.hbm_to_vmem [thread:$0]  %s19, 16, %s155, [#allocation14]
    $region41: #{tpu_custom_call.1} parent=1 // pred_fallthru
      _
    // Predicated region
    $region42: #{tpu_custom_call.1} parent=1 // pred_check
      _
    $region43: #{tpu_custom_call.1} parent=1 // pred_check_branch
      %159 = sbr.rel (0) target = $region45
    $region44: #{tpu_custom_call.1} parent=1 // pred_region
      %s161 = ssub.s32 16, 16
      %162 = vsyncadd [#allocation17], %s161
      %s164 = sshll.u32 [#allocation16], 4
      %s165 = int_to_ptr.vmem [resolvable:$true] %s164
      %167 = dma.hbm_to_vmem [thread:$0]  %s21, 16, %s165, [#allocation17]
    $region45: #{tpu_custom_call.1} parent=1 // pred_fallthru
      _
    // Predicated region
    $region46: #{tpu_custom_call.1} parent=1 // pred_check
      _
    $region47: #{tpu_custom_call.1} parent=1 // pred_check_branch
      %169 = sbr.rel (0) target = $region49
    $region48: #{tpu_custom_call.1} parent=1 // pred_region
      %s171 = ssub.s32 2048, 2048
      %172 = vsyncadd [#allocation17], %s171
      %s173 = sshll.u32 [#allocation18], 4
      %s174 = int_to_ptr.vmem [resolvable:$true] %s173
      %179 = dma.hbm_to_vmem [thread:$0]  %s23, 2048, %s174, [#allocation17], 128, 128, 8
    $region49: #{tpu_custom_call.1} parent=1 // pred_fallthru
      _
    // Predicated region
    $region50: #{tpu_custom_call.1} parent=1 // pred_check
      _
    $region51: #{tpu_custom_call.1} parent=1 // pred_check_branch
      %181 = sbr.rel (0) target = $region53
    $region52: #{tpu_custom_call.1} parent=1 // pred_region
      _
    $region53: #{tpu_custom_call.1} parent=1 // pred_fallthru
      _
    // Predicated region
    $region54: #{tpu_custom_call.1} parent=1 // pred_check
      _
    $region55: #{tpu_custom_call.1} parent=1 // pred_check_branch
      %183 = sbr.rel (0) target = $region57
    $region56: #{tpu_custom_call.1} parent=1 // pred_region
      %s185 = ssub.s32 16, 16
      %186 = vsyncadd [#allocation20], %s185
      %s188 = sshll.u32 [#allocation19], 4
      %s189 = int_to_ptr.vmem [resolvable:$true] %s188
      %191 = dma.hbm_to_vmem [thread:$0]  %s27, 16, %s189, [#allocation20]
    $region57: #{tpu_custom_call.1} parent=1 // pred_fallthru
      _
    // Predicated region
    $region58: #{tpu_custom_call.1} parent=1 // pred_check
      _
    $region59: #{tpu_custom_call.1} parent=1 // pred_check_branch
      %193 = sbr.rel (0) target = $region61
    $region60: #{tpu_custom_call.1} parent=1 // pred_region
      %s195 = ssub.s32 16, 16
      %196 = vsyncadd [#allocation20], %s195
      %s198 = sshll.u32 [#allocation21], 4
      %s199 = int_to_ptr.vmem [resolvable:$true] %s198
      %201 = dma.hbm_to_vmem [thread:$0]  %s29, 16, %s199, [#allocation20]
    $region61: #{tpu_custom_call.1} parent=1 // pred_fallthru
      _
    // Predicated region
    $region62: #{tpu_custom_call.1} parent=1 // pred_check
      _
    $region63: #{tpu_custom_call.1} parent=1 // pred_check_branch
      %203 = sbr.rel (0) target = $region65
    $region64: #{tpu_custom_call.1} parent=1 // pred_region
      _
    $region65: #{tpu_custom_call.1} parent=1 // pred_fallthru
      _
    // Predicated region
    $region66: #{tpu_custom_call.1} parent=1 // pred_check
      _
    $region67: #{tpu_custom_call.1} parent=1 // pred_check_branch
      %205 = sbr.rel (0) target = $region69
    $region68: #{tpu_custom_call.1} parent=1 // pred_region
      %s207 = ssub.s32 4096, 4096
      %208 = vsyncadd [#allocation23], %s207
      %s209 = sshll.u32 [#allocation22], 4
      %s210 = int_to_ptr.vmem [resolvable:$true] %s209
      %215 = dma.hbm_to_vmem [thread:$0]  %s33, 4096, %s210, [#allocation23], 256, 256, 16
    $region69: #{tpu_custom_call.1} parent=1 // pred_fallthru
      _
    // Predicated region
    $region70: #{tpu_custom_call.1} parent=1 // pred_check
      _
    $region71: #{tpu_custom_call.1} parent=1 // pred_check_branch
      %217 = sbr.rel (0) target = $region73
    $region72: #{tpu_custom_call.1} parent=1 // pred_region
      %s219 = ssub.s32 4096, 4096
      %220 = vsyncadd [#allocation23], %s219
      %s221 = sshll.u32 [#allocation24], 4
      %s222 = int_to_ptr.vmem [resolvable:$true] %s221
      %227 = dma.hbm_to_vmem [thread:$0]  %s35, 4096, %s222, [#allocation23], 256, 256, 16
    $region73: #{tpu_custom_call.1} parent=1 // pred_fallthru
      _
    // Predicated region
    $region74: #{tpu_custom_call.1} parent=1 // pred_check
      _
    $region75: #{tpu_custom_call.1} parent=1 // pred_check_branch
      %229 = sbr.rel (0) target = $region77
    $region76: #{tpu_custom_call.1} parent=1 // pred_region
      %s231 = ssub.s32 32, 32
      %232 = vsyncadd [#allocation26], %s231
      %s234 = sshll.u32 [#allocation25], 4
      %s235 = int_to_ptr.vmem [resolvable:$true] %s234
      %237 = dma.hbm_to_vmem [thread:$0]  %s37, 32, %s235, [#allocation26]
    $region77: #{tpu_custom_call.1} parent=1 // pred_fallthru
      _
    // Predicated region
    $region78: #{tpu_custom_call.1} parent=1 // pred_check
      _
    $region79: #{tpu_custom_call.1} parent=1 // pred_check_branch
      %239 = sbr.rel (0) target = $region81
    $region80: #{tpu_custom_call.1} parent=1 // pred_region
      %s241 = ssub.s32 2048, 2048
      %242 = vsyncadd [#allocation26], %s241
      %s243 = sshll.u32 [#allocation27], 4
      %s244 = int_to_ptr.vmem [resolvable:$true] %s243
      %249 = dma.hbm_to_vmem [thread:$0]  %s39, 2048, %s244, [#allocation26], 128, 128, 8
    $region81: #{tpu_custom_call.1} parent=1 // pred_fallthru
      _
    // Predicated region
    $region82: #{tpu_custom_call.1} parent=1 // pred_check
      _
    $region83: #{tpu_custom_call.1} parent=1 // pred_check_branch
      %251 = sbr.rel (0) target = $region85
    $region84: #{tpu_custom_call.1} parent=1 // pred_region
      %s253 = ssub.s32 16, 16
      %254 = vsyncadd [#allocation29], %s253
      %s256 = sshll.u32 [#allocation28], 4
      %s257 = int_to_ptr.vmem [resolvable:$true] %s256
      %259 = dma.hbm_to_vmem [thread:$0]  %s41, 16, %s257, [#allocation29]
    $region85: #{tpu_custom_call.1} parent=1 // pred_fallthru
      _
    // Predicated region
    $region86: #{tpu_custom_call.1} parent=1 // pred_check
      _
    $region87: #{tpu_custom_call.1} parent=1 // pred_check_branch
      %261 = sbr.rel (0) target = $region89
    $region88: #{tpu_custom_call.1} parent=1 // pred_region
      _
    $region89: #{tpu_custom_call.1} parent=1 // pred_fallthru
      _
    // Predicated region
    $region90: #{tpu_custom_call.1} parent=1 // pred_check
      _
    $region91: #{tpu_custom_call.1} parent=1 // pred_check_branch
      %263 = sbr.rel (0) target = $region93
    $region92: #{tpu_custom_call.1} parent=1 // pred_region
      _
    $region93: #{tpu_custom_call.1} parent=1 // pred_fallthru
      _
    // Predicated region
    $region94: #{tpu_custom_call.1} parent=1 // pred_check
      _
    $region95: #{tpu_custom_call.1} parent=1 // pred_check_branch
      %265 = sbr.rel (0) target = $region97
    $region96: #{tpu_custom_call.1} parent=1 // pred_region
      _
    $region97: #{tpu_custom_call.1} parent=1 // pred_fallthru
      _
    // Predicated region
    $region98: #{tpu_custom_call.1} parent=1 // pred_check
      _
    $region99: #{tpu_custom_call.1} parent=1 // pred_check_branch
      %267 = sbr.rel (0) target = $region101
    $region100: #{tpu_custom_call.1} parent=1 // pred_region
      _
    $region101: #{tpu_custom_call.1} parent=1 // pred_fallthru
      _
    // Predicated region
    $region102: #{tpu_custom_call.1} parent=1 // pred_check
      _
    $region103: #{tpu_custom_call.1} parent=1 // pred_check_branch
      %269 = sbr.rel (0) target = $region105
    $region104: #{tpu_custom_call.1} parent=1 // pred_region
      _
    $region105: #{tpu_custom_call.1} parent=1 // pred_fallthru
      _
    // Predicated region
    $region106: #{tpu_custom_call.1} parent=1 // pred_check
      _
    $region107: #{tpu_custom_call.1} parent=1 // pred_check_branch
      %271 = sbr.rel (0) target = $region109
    $region108: #{tpu_custom_call.1} parent=1 // pred_region
      _
    $region109: #{tpu_custom_call.1} parent=1 // pred_fallthru
      _
    // Predicated region
    $region110: #{tpu_custom_call.1} parent=1 // pred_check
      _
    $region111: #{tpu_custom_call.1} parent=1 // pred_check_branch
      %273 = sbr.rel (0) target = $region113
    $region112: #{tpu_custom_call.1} parent=1 // pred_region
      _
    $region113: #{tpu_custom_call.1} parent=1 // pred_fallthru
      _
    // Predicated region
    $region114: #{tpu_custom_call.1} parent=1 // pred_check
      _
    $region115: #{tpu_custom_call.1} parent=1 // pred_check_branch
      %275 = sbr.rel (0) target = $region117
    $region116: #{tpu_custom_call.1} parent=1 // pred_region
      _
    $region117: #{tpu_custom_call.1} parent=1 // pred_fallthru
      _
    // Predicated region
    $region118: #{tpu_custom_call.1} parent=1 // pred_check
      _
    $region119: #{tpu_custom_call.1} parent=1 // pred_check_branch
      %277 = sbr.rel (0) target = $region121
    $region120: #{tpu_custom_call.1} parent=1 // pred_region
      %278 = dma.done [#allocation5], 512
    $region121: #{tpu_custom_call.1} parent=1 // pred_fallthru
      _
    // Predicated region
    $region122: #{tpu_custom_call.1} parent=1 // pred_check
      _
    $region123: #{tpu_custom_call.1} parent=1 // pred_check_branch
      %280 = sbr.rel (0) target = $region125
    $region124: #{tpu_custom_call.1} parent=1 // pred_region
      %281 = dma.done [#allocation8], 256
    $region125: #{tpu_custom_call.1} parent=1 // pred_fallthru
      _
    // Predicated region
    $region126: #{tpu_custom_call.1} parent=1 // pred_check
      _
    $region127: #{tpu_custom_call.1} parent=1 // pred_check_branch
      %283 = sbr.rel (0) target = $region129
    $region128: #{tpu_custom_call.1} parent=1 // pred_region
      %284 = dma.done [#allocation8], 1536
    $region129: #{tpu_custom_call.1} parent=1 // pred_fallthru
      _
    // Predicated region
    $region130: #{tpu_custom_call.1} parent=1 // pred_check
      _
    $region131: #{tpu_custom_call.1} parent=1 // pred_check_branch
      %286 = sbr.rel (0) target = $region133
    $region132: #{tpu_custom_call.1} parent=1 // pred_region
      %287 = dma.done [#allocation11], 48
    $region133: #{tpu_custom_call.1} parent=1 // pred_fallthru
      _
    // Predicated region
    $region134: #{tpu_custom_call.1} parent=1 // pred_check
      _
    $region135: #{tpu_custom_call.1} parent=1 // pred_check_branch
      %289 = sbr.rel (0) target = $region137
    $region136: #{tpu_custom_call.1} parent=1 // pred_region
      %290 = dma.done [#allocation11], 16
    $region137: #{tpu_custom_call.1} parent=1 // pred_fallthru
      _
    // Predicated region
    $region138: #{tpu_custom_call.1} parent=1 // pred_check
      _
    $region139: #{tpu_custom_call.1} parent=1 // pred_check_branch
      %292 = sbr.rel (0) target = $region141
    $region140: #{tpu_custom_call.1} parent=1 // pred_region
      %293 = dma.done [#allocation14], 16
    $region141: #{tpu_custom_call.1} parent=1 // pred_fallthru
      _
    // Predicated region
    $region142: #{tpu_custom_call.1} parent=1 // pred_check
      _
    $region143: #{tpu_custom_call.1} parent=1 // pred_check_branch
      %295 = sbr.rel (0) target = $region145
    $region144: #{tpu_custom_call.1} parent=1 // pred_region
      %296 = dma.done [#allocation14], 16
    $region145: #{tpu_custom_call.1} parent=1 // pred_fallthru
      _
    // Predicated region
    $region146: #{tpu_custom_call.1} parent=1 // pred_check
      _
    $region147: #{tpu_custom_call.1} parent=1 // pred_check_branch
      %298 = sbr.rel (0) target = $region149
    $region148: #{tpu_custom_call.1} parent=1 // pred_region
      %299 = dma.done [#allocation17], 16
    $region149: #{tpu_custom_call.1} parent=1 // pred_fallthru
      _
    // Predicated region
    $region150: #{tpu_custom_call.1} parent=1 // pred_check
      _
    $region151: #{tpu_custom_call.1} parent=1 // pred_check_branch
      %301 = sbr.rel (0) target = $region153
    $region152: #{tpu_custom_call.1} parent=1 // pred_region
      %302 = dma.done [#allocation17], 2048
    $region153: #{tpu_custom_call.1} parent=1 // pred_fallthru
      _
    // Predicated region
    $region154: #{tpu_custom_call.1} parent=1 // pred_check
      _
    $region155: #{tpu_custom_call.1} parent=1 // pred_check_branch
      %304 = sbr.rel (0) target = $region157
    $region156: #{tpu_custom_call.1} parent=1 // pred_region
      %305 = dma.done [#allocation20], 16
    $region157: #{tpu_custom_call.1} parent=1 // pred_fallthru
      _
    // Predicated region
    $region158: #{tpu_custom_call.1} parent=1 // pred_check
      _
    $region159: #{tpu_custom_call.1} parent=1 // pred_check_branch
      %307 = sbr.rel (0) target = $region161
    $region160: #{tpu_custom_call.1} parent=1 // pred_region
      %308 = dma.done [#allocation20], 16
    $region161: #{tpu_custom_call.1} parent=1 // pred_fallthru
      _
    // Predicated region
    $region162: #{tpu_custom_call.1} parent=1 // pred_check
      _
    $region163: #{tpu_custom_call.1} parent=1 // pred_check_branch
      %310 = sbr.rel (0) target = $region165
    $region164: #{tpu_custom_call.1} parent=1 // pred_region
      %311 = dma.done [#allocation23], 4096
    $region165: #{tpu_custom_call.1} parent=1 // pred_fallthru
      _
    // Predicated region
    $region166: #{tpu_custom_call.1} parent=1 // pred_check
      _
    $region167: #{tpu_custom_call.1} parent=1 // pred_check_branch
      %313 = sbr.rel (0) target = $region169
    $region168: #{tpu_custom_call.1} parent=1 // pred_region
      %314 = dma.done [#allocation23], 4096
    $region169: #{tpu_custom_call.1} parent=1 // pred_fallthru
      _
    // Predicated region
    $region170: #{tpu_custom_call.1} parent=1 // pred_check
      _
    $region171: #{tpu_custom_call.1} parent=1 // pred_check_branch
      %316 = sbr.rel (0) target = $region173
    $region172: #{tpu_custom_call.1} parent=1 // pred_region
      %317 = dma.done [#allocation26], 32
    $region173: #{tpu_custom_call.1} parent=1 // pred_fallthru
      _
    // Predicated region
    $region174: #{tpu_custom_call.1} parent=1 // pred_check
      _
    $region175: #{tpu_custom_call.1} parent=1 // pred_check_branch
      %319 = sbr.rel (0) target = $region177
    $region176: #{tpu_custom_call.1} parent=1 // pred_region
      %320 = dma.done [#allocation26], 2048
    $region177: #{tpu_custom_call.1} parent=1 // pred_fallthru
      _
    // Predicated region
    $region178: #{tpu_custom_call.1} parent=1 // pred_check
      _
    $region179: #{tpu_custom_call.1} parent=1 // pred_check_branch
      %322 = sbr.rel (0) target = $region181
    $region180: #{tpu_custom_call.1} parent=1 // pred_region
      %323 = dma.done [#allocation29], 16
    $region181: #{tpu_custom_call.1} parent=1 // pred_fallthru
      _
    %v324 = vld [vmem:[%s7] sm:$0x3]
    %v325 = vld [vmem:[%s55] sm:$0xff]
    %v326 = vld [vmem:[%s55 + $0x8] sm:$0xff]
    %v327 = vld [vmem:[%s55 + $0x10] sm:$0xff]
    %v328 = vld [vmem:[%s55 + $0x18] sm:$0xff]
    %v329 = vld [vmem:[%s55 + $0x20] sm:$0xff]
    %v330 = vld [vmem:[%s55 + $0x28] sm:$0xff]
    %v331 = vld [vmem:[%s55 + $0x30] sm:$0xff]
    %v332 = vld [vmem:[%s55 + $0x38] sm:$0xff]
    %v333 = vld [vmem:[%s57] sm:$0x3]
    %v335 = vlaneseq
    %v336 = vshrl.u32 %v335, 7
    %v337 = vsub.s32 0, %v336
    %v338 = vrot.slane %v333, %v337
    %v339 = vlaneseq
    %v340 = vshrl.u32 %v339, 7
    %v341 = vsub.s32 1, %v340
    %v342 = vrot.slane %v333, %v341
    %vm345 = vcmask 261120
    %v347 = vsel %vm345, %v324, 0
    %349 = vmatprep.subr.mxu0 0.0
    %350 = vmatpush1.msra.mxu0 0.0
    %351 = vmatprep.subr.mxu0 0.0
    %352 = vmatpush1.msra.mxu0 0.0
    %353 = vmatprep.subr.mxu0 0.0
    %354 = vmatpush1.msra.mxu0 0.0
    %355 = vmatprep.subr.mxu0 0.0
    %356 = vmatpush1.msra.mxu0 0.0
    %357 = vmatprep.subr.mxu0 0.0
    %358 = vmatpush1.msra.mxu0 0.0
    %359 = vmatprep.subr.mxu0 0.0
    %360 = vmatpush1.msra.mxu0 0.0
    %361 = vmatprep.subr.mxu0 0.0
    %362 = vmatpush1.msra.mxu0 0.0
    %363 = vmatprep.subr.mxu0 0.0
    %364 = vmatpush1.msra.mxu0 0.0
    %365 = vmatprep.subr.mxu0 0.0
    %366 = vmatpush1.msra.mxu0 0.0
    %367 = vmatprep.subr.mxu0 0.0
    %368 = vmatpush1.msra.mxu0 0.0
    %369 = vmatprep.subr.mxu0 0.0
    %370 = vmatpush1.msra.mxu0 0.0
    %371 = vmatprep.subr.mxu0 0.0
    %372 = vmatpush1.msra.mxu0 0.0
    %373 = vmatprep.subr.mxu0 %v332
    %374 = vmatpush1.msra.mxu0 %v331
    %375 = vmatprep.subr.mxu0 %v330
    %376 = vmatpush1.msra.mxu0 %v329
    %377 = vmatprep.subr.mxu0 %v328
    %378 = vmatpush1.msra.mxu0 %v327
    %379 = vmatprep.subr.mxu0 %v326
    %380 = vmatpush1.msra.mxu0 %v325
    %381 = vmatprep.subr.mxu0 0.0
    %382 = vmatpush2.msra.mxu0 0.0
    %383 = vmatprep.subr.mxu0 0.0
    %384 = vmatpush2.msra.mxu0 0.0
    %385 = vmatprep.subr.mxu0 0.0
    %386 = vmatpush2.msra.mxu0 0.0
    %387 = vmatprep.subr.mxu0 0.0
    %388 = vmatpush2.msra.mxu0 0.0
    %389 = vmatprep.subr.mxu0 0.0
    %390 = vmatpush2.msra.mxu0 0.0
    %391 = vmatprep.subr.mxu0 0.0
    %392 = vmatpush2.msra.mxu0 0.0
    %393 = vmatprep.subr.mxu0 0.0
    %394 = vmatpush2.msra.mxu0 0.0
    %395 = vmatprep.subr.mxu0 0.0
    %396 = vmatpush2.msra.mxu0 0.0
    %397 = vmatprep.subr.mxu0 0.0
    %398 = vmatpush2.msra.mxu0 0.0
    %399 = vmatprep.subr.mxu0 0.0
    %400 = vmatpush2.msra.mxu0 0.0
    %401 = vmatprep.subr.mxu0 0.0
    %402 = vmatpush2.msra.mxu0 0.0
    %403 = vmatprep.subr.mxu0 0.0
    %404 = vmatpush2.msra.mxu0 0.0
    %405 = vmatprep.subr.mxu0 0.0
    %406 = vmatpush2.msra.mxu0 0.0
    %407 = vmatprep.subr.mxu0 0.0
    %408 = vmatpush2.msra.mxu0 0.0
    %409 = vmatprep.subr.mxu0 0.0
    %410 = vmatpush2.msra.mxu0 0.0
    %411 = vmatprep.subr.mxu0 0.0
    %412 = vmatpush2.msra.mxu0 0.0
    %413 = vmatprep.mubr.f32.mxu0 0.0
    %414 = vmatmul.mubr.f32.gmra.mxu0 %v347
    %v415 = vpop.f32.mrf.mxu0
    %v416 = vadd.f32 %v338, %v415
    %v417 = vpop.f32.mrf.mxu0
    %v418 = vadd.f32 %v342, %v417
    %419 = vdwg.mxu0
    %v420 = vtanh.pop %v416
    %v421 = vtanh.pop %v418
    %v422 = vld [vmem:[#allocation4] sm:$0xff]
    %v423 = vld [vmem:[#allocation4 + $0x8] sm:$0xff]
    %v424 = vld [vmem:[#allocation4 + $0x10] sm:$0xff]
    %v425 = vld [vmem:[#allocation4 + $0x18] sm:$0xff]
    %v426 = vld [vmem:[#allocation9] sm:$0xff]
    %v427 = vld [vmem:[#allocation9 + $0x8] sm:$0xff]
    %v428 = vld [vmem:[#allocation9 + $0x10] sm:$0xff]
    %v429 = vld [vmem:[#allocation9 + $0x18] sm:$0xff]
    %v430 = vld [vmem:[#allocation9 + $0x20] sm:$0xff]
    %v431 = vld [vmem:[#allocation9 + $0x28] sm:$0xff]
    %v432 = vld [vmem:[#allocation9 + $0x30] sm:$0xff]
    %v433 = vld [vmem:[#allocation9 + $0x38] sm:$0xff]
    %v434 = vld [vmem:[#allocation9 + $0x40] sm:$0xff]
    %v435 = vld [vmem:[#allocation9 + $0x48] sm:$0xff]
    %v436 = vld [vmem:[#allocation9 + $0x50] sm:$0xff]
    %v437 = vld [vmem:[#allocation9 + $0x58] sm:$0xff]
    %v438 = vld [vmem:[#allocation10] sm:$0x7]
    %v440 = vlaneseq
    %v441 = vshrl.u32 %v440, 7
    %v442 = vsub.s32 0, %v441
    %v443 = vrot.slane %v438, %v442
    %v444 = vlaneseq
    %v445 = vshrl.u32 %v444, 7
    %v446 = vsub.s32 1, %v445
    %v447 = vrot.slane %v438, %v446
    %v448 = vlaneseq
    %v449 = vshrl.u32 %v448, 7
    %v450 = vsub.s32 2, %v449
    %v451 = vrot.slane %v438, %v450
    %v456 = vsel %vm345, %v422, 0
    %v459 = vsel %vm345, %v423, 0
    %v462 = vsel %vm345, %v424, 0
    %v465 = vsel %vm345, %v425, 0
    %467 = vmatprep.subr.mxu0 0.0
    %468 = vmatpush1.msra.mxu0 0.0
    %469 = vmatprep.subr.mxu0 0.0
    %470 = vmatpush1.msra.mxu0 0.0
    %471 = vmatprep.subr.mxu0 0.0
    %472 = vmatpush1.msra.mxu0 0.0
    %473 = vmatprep.subr.mxu0 0.0
    %474 = vmatpush1.msra.mxu0 0.0
    %475 = vmatprep.subr.mxu0 0.0
    %476 = vmatpush1.msra.mxu0 0.0
    %477 = vmatprep.subr.mxu0 0.0
    %478 = vmatpush1.msra.mxu0 0.0
    %479 = vmatprep.subr.mxu0 0.0
    %480 = vmatpush1.msra.mxu0 0.0
    %481 = vmatprep.subr.mxu0 0.0
    %482 = vmatpush1.msra.mxu0 0.0
    %483 = vmatprep.subr.mxu0 0.0
    %484 = vmatpush1.msra.mxu0 0.0
    %485 = vmatprep.subr.mxu0 0.0
    %486 = vmatpush1.msra.mxu0 0.0
    %487 = vmatprep.subr.mxu0 0.0
    %488 = vmatpush1.msra.mxu0 0.0
    %489 = vmatprep.subr.mxu0 0.0
    %490 = vmatpush1.msra.mxu0 0.0
    %491 = vmatprep.subr.mxu0 %v436
    %492 = vmatpush1.msra.mxu0 %v435
    %493 = vmatprep.subr.mxu0 %v433
    %494 = vmatpush1.msra.mxu0 %v432
    %495 = vmatprep.subr.mxu0 %v430
    %496 = vmatpush1.msra.mxu0 %v429
    %497 = vmatprep.subr.mxu0 %v427
    %498 = vmatpush1.msra.mxu0 %v426
    %499 = vmatprep.subr.mxu0 0.0
    %500 = vmatpush2.msra.mxu0 0.0
    %501 = vmatprep.subr.mxu0 0.0
    %502 = vmatpush2.msra.mxu0 0.0
    %503 = vmatprep.subr.mxu0 0.0
    %504 = vmatpush2.msra.mxu0 0.0
    %505 = vmatprep.subr.mxu0 0.0
    %506 = vmatpush2.msra.mxu0 0.0
    %507 = vmatprep.subr.mxu0 0.0
    %508 = vmatpush2.msra.mxu0 0.0
    %509 = vmatprep.subr.mxu0 0.0
    %510 = vmatpush2.msra.mxu0 0.0
    %511 = vmatprep.subr.mxu0 0.0
    %512 = vmatpush2.msra.mxu0 0.0
    %513 = vmatprep.subr.mxu0 0.0
    %514 = vmatpush2.msra.mxu0 0.0
    %515 = vmatprep.subr.mxu0 0.0
    %516 = vmatpush2.msra.mxu0 0.0
    %517 = vmatprep.subr.mxu0 0.0
    %518 = vmatpush2.msra.mxu0 0.0
    %519 = vmatprep.subr.mxu0 0.0
    %520 = vmatpush2.msra.mxu0 0.0
    %521 = vmatprep.subr.mxu0 0.0
    %522 = vmatpush2.msra.mxu0 0.0
    %523 = vmatprep.subr.mxu0 0.0
    %524 = vmatpush2.msra.mxu0 0.0
    %525 = vmatprep.subr.mxu0 0.0
    %526 = vmatpush2.msra.mxu0 0.0
    %527 = vmatprep.subr.mxu0 0.0
    %528 = vmatpush2.msra.mxu0 0.0
    %529 = vmatprep.subr.mxu0 0.0
    %530 = vmatpush2.msra.mxu0 0.0
    %531 = vmatprep.mubr.f32.mxu0 0.0
    %532 = vmatmul.mubr.f32.gmra.mxu0 %v456
    %v533 = vpop.f32.mrf.mxu0
    %v534 = vadd.f32 %v443, %v533
    %v535 = vpop.f32.mrf.mxu0
    %v536 = vadd.f32 %v447, %v535
    %537 = vmatprep.mubr.f32.mxu0 0.0
    %538 = vmatmul.mubr.f32.gmra.mxu0 %v459
    %v539 = vpop.f32.mrf.mxu0
    %v540 = vadd.f32 %v443, %v539
    %v541 = vpop.f32.mrf.mxu0
    %v542 = vadd.f32 %v447, %v541
    %543 = vmatprep.mubr.f32.mxu0 0.0
    %544 = vmatmul.mubr.f32.gmra.mxu0 %v462
    %v545 = vpop.f32.mrf.mxu0
    %v546 = vadd.f32 %v443, %v545
    %v547 = vpop.f32.mrf.mxu0
    %v548 = vadd.f32 %v447, %v547
    %549 = vmatprep.mubr.f32.mxu0 0.0
    %550 = vmatmul.mubr.f32.gmra.mxu0 %v465
    %v551 = vpop.f32.mrf.mxu0
    %v552 = vadd.f32 %v443, %v551
    %v553 = vpop.f32.mrf.mxu0
    %v554 = vadd.f32 %v447, %v553
    %555 = vdwg.mxu0
    %556 = vmatprep.subr.mxu0 0.0
    %557 = vmatpush1.msra.mxu0 0.0
    %558 = vmatprep.subr.mxu0 0.0
    %559 = vmatpush1.msra.mxu0 0.0
    %560 = vmatprep.subr.mxu0 0.0
    %561 = vmatpush1.msra.mxu0 0.0
    %562 = vmatprep.subr.mxu0 0.0
    %563 = vmatpush1.msra.mxu0 0.0
    %564 = vmatprep.subr.mxu0 0.0
    %565 = vmatpush1.msra.mxu0 0.0
    %566 = vmatprep.subr.mxu0 0.0
    %567 = vmatpush1.msra.mxu0 0.0
    %568 = vmatprep.subr.mxu0 0.0
    %569 = vmatpush1.msra.mxu0 0.0
    %570 = vmatprep.subr.mxu0 0.0
    %571 = vmatpush1.msra.mxu0 0.0
    %572 = vmatprep.subr.mxu0 0.0
    %573 = vmatpush1.msra.mxu0 0.0
    %574 = vmatprep.subr.mxu0 0.0
    %575 = vmatpush1.msra.mxu0 0.0
    %576 = vmatprep.subr.mxu0 0.0
    %577 = vmatpush1.msra.mxu0 0.0
    %578 = vmatprep.subr.mxu0 0.0
    %579 = vmatpush1.msra.mxu0 0.0
    %580 = vmatprep.subr.mxu0 0.0
    %581 = vmatpush1.msra.mxu0 %v437
    %582 = vmatprep.subr.mxu0 0.0
    %583 = vmatpush1.msra.mxu0 %v434
    %584 = vmatprep.subr.mxu0 0.0
    %585 = vmatpush1.msra.mxu0 %v431
    %586 = vmatprep.subr.mxu0 0.0
    %587 = vmatpush1.msra.mxu0 %v428
    %588 = vmatprep.subr.mxu0 0.0
    %589 = vmatpush2.msra.mxu0 0.0
    %590 = vmatprep.subr.mxu0 0.0
    %591 = vmatpush2.msra.mxu0 0.0
    %592 = vmatprep.subr.mxu0 0.0
    %593 = vmatpush2.msra.mxu0 0.0
    %594 = vmatprep.subr.mxu0 0.0
    %595 = vmatpush2.msra.mxu0 0.0
    %596 = vmatprep.subr.mxu0 0.0
    %597 = vmatpush2.msra.mxu0 0.0
    %598 = vmatprep.subr.mxu0 0.0
    %599 = vmatpush2.msra.mxu0 0.0
    %600 = vmatprep.subr.mxu0 0.0
    %601 = vmatpush2.msra.mxu0 0.0
    %602 = vmatprep.subr.mxu0 0.0
    %603 = vmatpush2.msra.mxu0 0.0
    %604 = vmatprep.subr.mxu0 0.0
    %605 = vmatpush2.msra.mxu0 0.0
    %606 = vmatprep.subr.mxu0 0.0
    %607 = vmatpush2.msra.mxu0 0.0
    %608 = vmatprep.subr.mxu0 0.0
    %609 = vmatpush2.msra.mxu0 0.0
    %610 = vmatprep.subr.mxu0 0.0
    %611 = vmatpush2.msra.mxu0 0.0
    %612 = vmatprep.subr.mxu0 0.0
    %613 = vmatpush2.msra.mxu0 0.0
    %614 = vmatprep.subr.mxu0 0.0
    %615 = vmatpush2.msra.mxu0 0.0
    %616 = vmatprep.subr.mxu0 0.0
    %617 = vmatpush2.msra.mxu0 0.0
    %618 = vmatprep.subr.mxu0 0.0
    %619 = vmatpush2.msra.mxu0 0.0
    %620 = vmatprep.mubr.f32.mxu0 0.0
    %621 = vmatmul.mubr.f32.gmra.mxu0 %v456
    %v622 = vpop.f32.mrf.mxu0
    %v623 = vadd.f32 %v451, %v622
    %v624 = vpop.f32.mrf.mxu0
    %625 = vmatprep.mubr.f32.mxu0 0.0
    %626 = vmatmul.mubr.f32.gmra.mxu0 %v459
    %v627 = vpop.f32.mrf.mxu0
    %v628 = vadd.f32 %v451, %v627
    %v629 = vpop.f32.mrf.mxu0
    %630 = vmatprep.mubr.f32.mxu0 0.0
    %631 = vmatmul.mubr.f32.gmra.mxu0 %v462
    %v632 = vpop.f32.mrf.mxu0
    %v633 = vadd.f32 %v451, %v632
    %v634 = vpop.f32.mrf.mxu0
    %635 = vmatprep.mubr.f32.mxu0 0.0
    %636 = vmatmul.mubr.f32.gmra.mxu0 %v465
    %v637 = vpop.f32.mrf.mxu0
    %v638 = vadd.f32 %v451, %v637
    %v639 = vpop.f32.mrf.mxu0
    %640 = vdwg.mxu0
    %v642 = vsel %vm345, %v534, 0
    %v645 = vsel %vm345, %v540, 0
    %v648 = vsel %vm345, %v536, 0
    %v651 = vsel %vm345, %v542, 0
    %653 = vmatprep.subr.mxu0 0.0
    %654 = vmatpush1.xpose.msra.mxu0 0.0
    %655 = vmatprep.subr.mxu0 0.0
    %656 = vmatpush1.xpose.msra.mxu0 0.0
    %657 = vmatprep.subr.mxu0 0.0
    %658 = vmatpush1.xpose.msra.mxu0 0.0
    %659 = vmatprep.subr.mxu0 0.0
    %660 = vmatpush1.xpose.msra.mxu0 0.0
    %661 = vmatprep.subr.mxu0 0.0
    %662 = vmatpush1.xpose.msra.mxu0 0.0
    %663 = vmatprep.subr.mxu0 0.0
    %664 = vmatpush1.xpose.msra.mxu0 0.0
    %665 = vmatprep.subr.mxu0 0.0
    %666 = vmatpush1.xpose.msra.mxu0 0.0
    %667 = vmatprep.subr.mxu0 0.0
    %668 = vmatpush1.xpose.msra.mxu0 0.0
    %669 = vmatprep.subr.mxu0 0.0
    %670 = vmatpush1.xpose.msra.mxu0 0.0
    %671 = vmatprep.subr.mxu0 0.0
    %672 = vmatpush1.xpose.msra.mxu0 0.0
    %673 = vmatprep.subr.mxu0 0.0
    %674 = vmatpush1.xpose.msra.mxu0 0.0
    %675 = vmatprep.subr.mxu0 0.0
    %676 = vmatpush1.xpose.msra.mxu0 0.0
    %677 = vmatprep.subr.mxu0 0.0
    %678 = vmatpush1.xpose.msra.mxu0 0.0
    %679 = vmatprep.subr.mxu0 0.0
    %680 = vmatpush1.xpose.msra.mxu0 0.0
    %681 = vmatprep.subr.mxu0 0.0
    %682 = vmatpush1.xpose.msra.mxu0 %v651
    %683 = vmatprep.subr.mxu0 0.0
    %684 = vmatpush1.xpose.msra.mxu0 %v648
    %685 = vmatprep.subr.mxu0 0.0
    %686 = vmatpush2.xpose.msra.mxu0 0.0
    %687 = vmatprep.subr.mxu0 0.0
    %688 = vmatpush2.xpose.msra.mxu0 0.0
    %689 = vmatprep.subr.mxu0 0.0
    %690 = vmatpush2.xpose.msra.mxu0 0.0
    %691 = vmatprep.subr.mxu0 0.0
    %692 = vmatpush2.xpose.msra.mxu0 0.0
    %693 = vmatprep.subr.mxu0 0.0
    %694 = vmatpush2.xpose.msra.mxu0 0.0
    %695 = vmatprep.subr.mxu0 0.0
    %696 = vmatpush2.xpose.msra.mxu0 0.0
    %697 = vmatprep.subr.mxu0 0.0
    %698 = vmatpush2.xpose.msra.mxu0 0.0
    %699 = vmatprep.subr.mxu0 0.0
    %700 = vmatpush2.xpose.msra.mxu0 0.0
    %701 = vmatprep.subr.mxu0 0.0
    %702 = vmatpush2.xpose.msra.mxu0 0.0
    %703 = vmatprep.subr.mxu0 0.0
    %704 = vmatpush2.xpose.msra.mxu0 0.0
    %705 = vmatprep.subr.mxu0 0.0
    %706 = vmatpush2.xpose.msra.mxu0 0.0
    %707 = vmatprep.subr.mxu0 0.0
    %708 = vmatpush2.xpose.msra.mxu0 0.0
    %709 = vmatprep.subr.mxu0 0.0
    %710 = vmatpush2.xpose.msra.mxu0 0.0
    %711 = vmatprep.subr.mxu0 0.0
    %712 = vmatpush2.xpose.msra.mxu0 0.0
    %713 = vmatprep.subr.mxu0 0.0
    %714 = vmatpush2.xpose.msra.mxu0 0.0
    %715 = vmatprep.subr.mxu0 0.0
    %716 = vmatpush2.xpose.msra.mxu0 0.0
    %717 = vmatprep.mubr.f32.mxu0 0.0
    %718 = vmatmul.mubr.f32.gmra.mxu0 %v642
    %v719 = vpop.f32.mrf.mxu0
    %v720 = vadd.f32 0.0, %v719
    %v721 = vpop.f32.mrf.mxu0
    %722 = vmatprep.mubr.f32.mxu0 0.0
    %723 = vmatmul.mubr.f32.gmra.mxu0 %v645
    %v724 = vpop.f32.mrf.mxu0
    %v725 = vadd.f32 0.0, %v724
    %v726 = vpop.f32.mrf.mxu0
    %727 = vdwg.mxu0
    %v729 = vsel %vm345, %v546, 0
    %v732 = vsel %vm345, %v552, 0
    %v735 = vsel %vm345, %v548, 0
    %v738 = vsel %vm345, %v554, 0
    %740 = vmatprep.subr.mxu0 0.0
    %741 = vmatpush1.xpose.msra.mxu0 0.0
    %742 = vmatprep.subr.mxu0 0.0
    %743 = vmatpush1.xpose.msra.mxu0 0.0
    %744 = vmatprep.subr.mxu0 0.0
    %745 = vmatpush1.xpose.msra.mxu0 0.0
    %746 = vmatprep.subr.mxu0 0.0
    %747 = vmatpush1.xpose.msra.mxu0 0.0
    %748 = vmatprep.subr.mxu0 0.0
    %749 = vmatpush1.xpose.msra.mxu0 0.0
    %750 = vmatprep.subr.mxu0 0.0
    %751 = vmatpush1.xpose.msra.mxu0 0.0
    %752 = vmatprep.subr.mxu0 0.0
    %753 = vmatpush1.xpose.msra.mxu0 0.0
    %754 = vmatprep.subr.mxu0 0.0
    %755 = vmatpush1.xpose.msra.mxu0 0.0
    %756 = vmatprep.subr.mxu0 0.0
    %757 = vmatpush1.xpose.msra.mxu0 0.0
    %758 = vmatprep.subr.mxu0 0.0
    %759 = vmatpush1.xpose.msra.mxu0 0.0
    %760 = vmatprep.subr.mxu0 0.0
    %761 = vmatpush1.xpose.msra.mxu0 0.0
    %762 = vmatprep.subr.mxu0 0.0
    %763 = vmatpush1.xpose.msra.mxu0 0.0
    %764 = vmatprep.subr.mxu0 0.0
    %765 = vmatpush1.xpose.msra.mxu0 0.0
    %766 = vmatprep.subr.mxu0 0.0
    %767 = vmatpush1.xpose.msra.mxu0 0.0
    %768 = vmatprep.subr.mxu0 0.0
    %769 = vmatpush1.xpose.msra.mxu0 %v738
    %770 = vmatprep.subr.mxu0 0.0
    %771 = vmatpush1.xpose.msra.mxu0 %v735
    %772 = vmatprep.subr.mxu0 0.0
    %773 = vmatpush2.xpose.msra.mxu0 0.0
    %774 = vmatprep.subr.mxu0 0.0
    %775 = vmatpush2.xpose.msra.mxu0 0.0
    %776 = vmatprep.subr.mxu0 0.0
    %777 = vmatpush2.xpose.msra.mxu0 0.0
    %778 = vmatprep.subr.mxu0 0.0
    %779 = vmatpush2.xpose.msra.mxu0 0.0
    %780 = vmatprep.subr.mxu0 0.0
    %781 = vmatpush2.xpose.msra.mxu0 0.0
    %782 = vmatprep.subr.mxu0 0.0
    %783 = vmatpush2.xpose.msra.mxu0 0.0
    %784 = vmatprep.subr.mxu0 0.0
    %785 = vmatpush2.xpose.msra.mxu0 0.0
    %786 = vmatprep.subr.mxu0 0.0
    %787 = vmatpush2.xpose.msra.mxu0 0.0
    %788 = vmatprep.subr.mxu0 0.0
    %789 = vmatpush2.xpose.msra.mxu0 0.0
    %790 = vmatprep.subr.mxu0 0.0
    %791 = vmatpush2.xpose.msra.mxu0 0.0
    %792 = vmatprep.subr.mxu0 0.0
    %793 = vmatpush2.xpose.msra.mxu0 0.0
    %794 = vmatprep.subr.mxu0 0.0
    %795 = vmatpush2.xpose.msra.mxu0 0.0
    %796 = vmatprep.subr.mxu0 0.0
    %797 = vmatpush2.xpose.msra.mxu0 0.0
    %798 = vmatprep.subr.mxu0 0.0
    %799 = vmatpush2.xpose.msra.mxu0 0.0
    %800 = vmatprep.subr.mxu0 0.0
    %801 = vmatpush2.xpose.msra.mxu0 0.0
    %802 = vmatprep.subr.mxu0 0.0
    %803 = vmatpush2.xpose.msra.mxu0 0.0
    %804 = vmatprep.mubr.f32.mxu0 0.0
    %805 = vmatmul.mubr.f32.gmra.mxu0 %v729
    %v806 = vpop.f32.mrf.mxu0
    %v807 = vadd.f32 0.0, %v806
    %v808 = vpop.f32.mrf.mxu0
    %809 = vmatprep.mubr.f32.mxu0 0.0
    %810 = vmatmul.mubr.f32.gmra.mxu0 %v732
    %v811 = vpop.f32.mrf.mxu0
    %v812 = vadd.f32 0.0, %v811
    %v813 = vpop.f32.mrf.mxu0
    %814 = vdwg.mxu0
    %v815 = vmul.f32 %v720, 0.17677669
    %v816 = vmul.f32 %v725, 0.17677669
    %v817 = vmul.f32 %v807, 0.17677669
    %v818 = vmul.f32 %v812, 0.17677669
    %vm819 = vcmask 130048
    %v820 = vsel %vm819, %v815, -inf
    %821 = vmax.xlane.f32.xlu0 %v820
    %v822 = vpop.xlane.xlu0 %821
    %v823 = vsel %vm819, %v816, -inf
    %824 = vmax.xlane.f32.xlu0 %v823
    %v825 = vpop.xlane.xlu0 %824
    %v826 = vsel %vm819, %v817, -inf
    %827 = vmax.xlane.f32.xlu0 %v826
    %v828 = vpop.xlane.xlu0 %827
    %v829 = vsel %vm819, %v818, -inf
    %830 = vmax.xlane.f32.xlu0 %v829
    %v831 = vpop.xlane.xlu0 %830
    %v832 = vsub.f32 %v815, %v822
    %v833 = vsub.f32 %v816, %v825
    %v834 = vsub.f32 %v817, %v828
    %v835 = vsub.f32 %v818, %v831
    %v836 = vmul.f32 %v832, 1.442695
    %v837 = vpow.pop %v836
    %v838 = vmul.f32 %v833, 1.442695
    %v839 = vpow.pop %v838
    %v840 = vmul.f32 %v834, 1.442695
    %v841 = vpow.pop %v840
    %v842 = vmul.f32 %v835, 1.442695
    %v843 = vpow.pop %v842
    %v844 = vsel %vm819, %v837, 0.0
    %845 = vadd.xlane.f32.xlu0 %v844
    %v846 = vpop.xlane.xlu0 %845
    %v847 = vsel %vm819, %v839, 0.0
    %848 = vadd.xlane.f32.xlu0 %v847
    %v849 = vpop.xlane.xlu0 %848
    %v850 = vsel %vm819, %v841, 0.0
    %851 = vadd.xlane.f32.xlu0 %v850
    %v852 = vpop.xlane.xlu0 %851
    %v853 = vsel %vm819, %v843, 0.0
    %854 = vadd.xlane.f32.xlu0 %v853
    %v855 = vpop.xlane.xlu0 %854
    %v856 = vrcp.pop %v846
    %v857 = vrcp.pop %v849
    %v858 = vrcp.pop %v852
    %v859 = vrcp.pop %v855
    %v860 = vmul.f32 %v837, %v856
    %v861 = vmul.f32 %v839, %v857
    %v862 = vmul.f32 %v841, %v858
    %v863 = vmul.f32 %v843, %v859
    %v865 = vsel %vm819, %v860, 0
    %v868 = vsel %vm819, %v861, 0
    %870 = vmatprep.subr.mxu0 0.0
    %871 = vmatpush1.msra.mxu0 0.0
    %872 = vmatprep.subr.mxu0 0.0
    %873 = vmatpush1.msra.mxu0 0.0
    %874 = vmatprep.subr.mxu0 0.0
    %875 = vmatpush1.msra.mxu0 0.0
    %876 = vmatprep.subr.mxu0 0.0
    %877 = vmatpush1.msra.mxu0 0.0
    %878 = vmatprep.subr.mxu0 0.0
    %879 = vmatpush1.msra.mxu0 0.0
    %880 = vmatprep.subr.mxu0 0.0
    %881 = vmatpush1.msra.mxu0 0.0
    %882 = vmatprep.subr.mxu0 0.0
    %883 = vmatpush1.msra.mxu0 0.0
    %884 = vmatprep.subr.mxu0 0.0
    %885 = vmatpush1.msra.mxu0 0.0
    %886 = vmatprep.subr.mxu0 0.0
    %887 = vmatpush1.msra.mxu0 0.0
    %888 = vmatprep.subr.mxu0 0.0
    %889 = vmatpush1.msra.mxu0 0.0
    %890 = vmatprep.subr.mxu0 0.0
    %891 = vmatpush1.msra.mxu0 0.0
    %892 = vmatprep.subr.mxu0 0.0
    %893 = vmatpush1.msra.mxu0 0.0
    %894 = vmatprep.subr.mxu0 0.0
    %895 = vmatpush1.msra.mxu0 0.0
    %896 = vmatprep.subr.mxu0 0.0
    %897 = vmatpush1.msra.mxu0 0.0
    %898 = vmatprep.subr.mxu0 0.0
    %899 = vmatpush1.msra.mxu0 %v628
    %900 = vmatprep.subr.mxu0 0.0
    %901 = vmatpush1.msra.mxu0 %v623
    %902 = vmatprep.subr.mxu0 0.0
    %903 = vmatpush2.msra.mxu0 0.0
    %904 = vmatprep.subr.mxu0 0.0
    %905 = vmatpush2.msra.mxu0 0.0
    %906 = vmatprep.subr.mxu0 0.0
    %907 = vmatpush2.msra.mxu0 0.0
    %908 = vmatprep.subr.mxu0 0.0
    %909 = vmatpush2.msra.mxu0 0.0
    %910 = vmatprep.subr.mxu0 0.0
    %911 = vmatpush2.msra.mxu0 0.0
    %912 = vmatprep.subr.mxu0 0.0
    %913 = vmatpush2.msra.mxu0 0.0
    %914 = vmatprep.subr.mxu0 0.0
    %915 = vmatpush2.msra.mxu0 0.0
    %916 = vmatprep.subr.mxu0 0.0
    %917 = vmatpush2.msra.mxu0 0.0
    %918 = vmatprep.subr.mxu0 0.0
    %919 = vmatpush2.msra.mxu0 0.0
    %920 = vmatprep.subr.mxu0 0.0
    %921 = vmatpush2.msra.mxu0 0.0
    %922 = vmatprep.subr.mxu0 0.0
    %923 = vmatpush2.msra.mxu0 0.0
    %924 = vmatprep.subr.mxu0 0.0
    %925 = vmatpush2.msra.mxu0 0.0
    %926 = vmatprep.subr.mxu0 0.0
    %927 = vmatpush2.msra.mxu0 0.0
    %928 = vmatprep.subr.mxu0 0.0
    %929 = vmatpush2.msra.mxu0 0.0
    %930 = vmatprep.subr.mxu0 0.0
    %931 = vmatpush2.msra.mxu0 0.0
    %932 = vmatprep.subr.mxu0 0.0
    %933 = vmatpush2.msra.mxu0 0.0
    %934 = vmatprep.mubr.f32.mxu0 0.0
    %935 = vmatmul.mubr.f32.gmra.mxu0 %v865
    %v936 = vpop.f32.mrf.mxu0
    %v937 = vadd.f32 0.0, %v936
    %v938 = vpop.f32.mrf.mxu0
    %939 = vmatprep.mubr.f32.mxu0 0.0
    %940 = vmatmul.mubr.f32.gmra.mxu0 %v868
    %v941 = vpop.f32.mrf.mxu0
    %v942 = vadd.f32 0.0, %v941
    %v943 = vpop.f32.mrf.mxu0
    %944 = vdwg.mxu0
    %v946 = vsel %vm819, %v862, 0
    %v949 = vsel %vm819, %v863, 0
    %951 = vmatprep.subr.mxu0 0.0
    %952 = vmatpush1.msra.mxu0 0.0
    %953 = vmatprep.subr.mxu0 0.0
    %954 = vmatpush1.msra.mxu0 0.0
    %955 = vmatprep.subr.mxu0 0.0
    %956 = vmatpush1.msra.mxu0 0.0
    %957 = vmatprep.subr.mxu0 0.0
    %958 = vmatpush1.msra.mxu0 0.0
    %959 = vmatprep.subr.mxu0 0.0
    %960 = vmatpush1.msra.mxu0 0.0
    %961 = vmatprep.subr.mxu0 0.0
    %962 = vmatpush1.msra.mxu0 0.0
    %963 = vmatprep.subr.mxu0 0.0
    %964 = vmatpush1.msra.mxu0 0.0
    %965 = vmatprep.subr.mxu0 0.0
    %966 = vmatpush1.msra.mxu0 0.0
    %967 = vmatprep.subr.mxu0 0.0
    %968 = vmatpush1.msra.mxu0 0.0
    %969 = vmatprep.subr.mxu0 0.0
    %970 = vmatpush1.msra.mxu0 0.0
    %971 = vmatprep.subr.mxu0 0.0
    %972 = vmatpush1.msra.mxu0 0.0
    %973 = vmatprep.subr.mxu0 0.0
    %974 = vmatpush1.msra.mxu0 0.0
    %975 = vmatprep.subr.mxu0 0.0
    %976 = vmatpush1.msra.mxu0 0.0
    %977 = vmatprep.subr.mxu0 0.0
    %978 = vmatpush1.msra.mxu0 0.0
    %979 = vmatprep.subr.mxu0 0.0
    %980 = vmatpush1.msra.mxu0 %v638
    %981 = vmatprep.subr.mxu0 0.0
    %982 = vmatpush1.msra.mxu0 %v633
    %983 = vmatprep.subr.mxu0 0.0
    %984 = vmatpush2.msra.mxu0 0.0
    %985 = vmatprep.subr.mxu0 0.0
    %986 = vmatpush2.msra.mxu0 0.0
    %987 = vmatprep.subr.mxu0 0.0
    %988 = vmatpush2.msra.mxu0 0.0
    %989 = vmatprep.subr.mxu0 0.0
    %990 = vmatpush2.msra.mxu0 0.0
    %991 = vmatprep.subr.mxu0 0.0
    %992 = vmatpush2.msra.mxu0 0.0
    %993 = vmatprep.subr.mxu0 0.0
    %994 = vmatpush2.msra.mxu0 0.0
    %995 = vmatprep.subr.mxu0 0.0
    %996 = vmatpush2.msra.mxu0 0.0
    %997 = vmatprep.subr.mxu0 0.0
    %998 = vmatpush2.msra.mxu0 0.0
    %999 = vmatprep.subr.mxu0 0.0
    %1000 = vmatpush2.msra.mxu0 0.0
    %1001 = vmatprep.subr.mxu0 0.0
    %1002 = vmatpush2.msra.mxu0 0.0
    %1003 = vmatprep.subr.mxu0 0.0
    %1004 = vmatpush2.msra.mxu0 0.0
    %1005 = vmatprep.subr.mxu0 0.0
    %1006 = vmatpush2.msra.mxu0 0.0
    %1007 = vmatprep.subr.mxu0 0.0
    %1008 = vmatpush2.msra.mxu0 0.0
    %1009 = vmatprep.subr.mxu0 0.0
    %1010 = vmatpush2.msra.mxu0 0.0
    %1011 = vmatprep.subr.mxu0 0.0
    %1012 = vmatpush2.msra.mxu0 0.0
    %1013 = vmatprep.subr.mxu0 0.0
    %1014 = vmatpush2.msra.mxu0 0.0
    %1015 = vmatprep.mubr.f32.mxu0 0.0
    %1016 = vmatmul.mubr.f32.gmra.mxu0 %v946
    %v1017 = vpop.f32.mrf.mxu0
    %v1018 = vadd.f32 0.0, %v1017
    %v1019 = vpop.f32.mrf.mxu0
    %1020 = vmatprep.mubr.f32.mxu0 0.0
    %1021 = vmatmul.mubr.f32.gmra.mxu0 %v949
    %v1022 = vpop.f32.mrf.mxu0
    %v1023 = vadd.f32 0.0, %v1022
    %v1024 = vpop.f32.mrf.mxu0
    %1025 = vdwg.mxu0
    %1026 = vst.msk [vmem:[#allocation2] sm:$0xff] %vm345, %v937
    %1027 = vst.msk [vmem:[#allocation2 + $0x8] sm:$0xff] %vm345, %v942
    %1028 = vst.msk [vmem:[#allocation2 + $0x10] sm:$0xff] %vm345, %v1018
    %1029 = vst.msk [vmem:[#allocation2 + $0x18] sm:$0xff] %vm345, %v1023
    %1030 = vrot.lane.b32.xlu0 %v534, 96
    %v1031 = vpop.permute.xlu0 %1030
    %1032 = vrot.lane.b32.xlu0 %v540, 96
    %v1033 = vpop.permute.xlu0 %1032
    %1034 = vrot.lane.b32.xlu0 %v536, 96
    %v1035 = vpop.permute.xlu0 %1034
    %1036 = vrot.lane.b32.xlu0 %v542, 96
    %v1037 = vpop.permute.xlu0 %1036
    %v1038 = vsel %vm345, %v1031, 0
    %v1040 = vsel %vm345, %v1033, 0
    %v1042 = vsel %vm345, %v1035, 0
    %v1044 = vsel %vm345, %v1037, 0
    %1046 = vmatprep.subr.mxu0 0.0
    %1047 = vmatpush1.xpose.msra.mxu0 0.0
    %1048 = vmatprep.subr.mxu0 0.0
    %1049 = vmatpush1.xpose.msra.mxu0 0.0
    %1050 = vmatprep.subr.mxu0 0.0
    %1051 = vmatpush1.xpose.msra.mxu0 0.0
    %1052 = vmatprep.subr.mxu0 0.0
    %1053 = vmatpush1.xpose.msra.mxu0 0.0
    %1054 = vmatprep.subr.mxu0 0.0
    %1055 = vmatpush1.xpose.msra.mxu0 0.0
    %1056 = vmatprep.subr.mxu0 0.0
    %1057 = vmatpush1.xpose.msra.mxu0 0.0
    %1058 = vmatprep.subr.mxu0 0.0
    %1059 = vmatpush1.xpose.msra.mxu0 0.0
    %1060 = vmatprep.subr.mxu0 0.0
    %1061 = vmatpush1.xpose.msra.mxu0 0.0
    %1062 = vmatprep.subr.mxu0 0.0
    %1063 = vmatpush1.xpose.msra.mxu0 0.0
    %1064 = vmatprep.subr.mxu0 0.0
    %1065 = vmatpush1.xpose.msra.mxu0 0.0
    %1066 = vmatprep.subr.mxu0 0.0
    %1067 = vmatpush1.xpose.msra.mxu0 0.0
    %1068 = vmatprep.subr.mxu0 0.0
    %1069 = vmatpush1.xpose.msra.mxu0 0.0
    %1070 = vmatprep.subr.mxu0 0.0
    %1071 = vmatpush1.xpose.msra.mxu0 0.0
    %1072 = vmatprep.subr.mxu0 0.0
    %1073 = vmatpush1.xpose.msra.mxu0 0.0
    %1074 = vmatprep.subr.mxu0 0.0
    %1075 = vmatpush1.xpose.msra.mxu0 %v1044
    %1076 = vmatprep.subr.mxu0 0.0
    %1077 = vmatpush1.xpose.msra.mxu0 %v1042
    %1078 = vmatprep.subr.mxu0 0.0
    %1079 = vmatpush2.xpose.msra.mxu0 0.0
    %1080 = vmatprep.subr.mxu0 0.0
    %1081 = vmatpush2.xpose.msra.mxu0 0.0
    %1082 = vmatprep.subr.mxu0 0.0
    %1083 = vmatpush2.xpose.msra.mxu0 0.0
    %1084 = vmatprep.subr.mxu0 0.0
    %1085 = vmatpush2.xpose.msra.mxu0 0.0
    %1086 = vmatprep.subr.mxu0 0.0
    %1087 = vmatpush2.xpose.msra.mxu0 0.0
    %1088 = vmatprep.subr.mxu0 0.0
    %1089 = vmatpush2.xpose.msra.mxu0 0.0
    %1090 = vmatprep.subr.mxu0 0.0
    %1091 = vmatpush2.xpose.msra.mxu0 0.0
    %1092 = vmatprep.subr.mxu0 0.0
    %1093 = vmatpush2.xpose.msra.mxu0 0.0
    %1094 = vmatprep.subr.mxu0 0.0
    %1095 = vmatpush2.xpose.msra.mxu0 0.0
    %1096 = vmatprep.subr.mxu0 0.0
    %1097 = vmatpush2.xpose.msra.mxu0 0.0
    %1098 = vmatprep.subr.mxu0 0.0
    %1099 = vmatpush2.xpose.msra.mxu0 0.0
    %1100 = vmatprep.subr.mxu0 0.0
    %1101 = vmatpush2.xpose.msra.mxu0 0.0
    %1102 = vmatprep.subr.mxu0 0.0
    %1103 = vmatpush2.xpose.msra.mxu0 0.0
    %1104 = vmatprep.subr.mxu0 0.0
    %1105 = vmatpush2.xpose.msra.mxu0 0.0
    %1106 = vmatprep.subr.mxu0 0.0
    %1107 = vmatpush2.xpose.msra.mxu0 0.0
    %1108 = vmatprep.subr.mxu0 0.0
    %1109 = vmatpush2.xpose.msra.mxu0 0.0
    %1110 = vmatprep.mubr.f32.mxu0 0.0
    %1111 = vmatmul.mubr.f32.gmra.mxu0 %v1038
    %v1112 = vpop.f32.mrf.mxu0
    %v1113 = vadd.f32 0.0, %v1112
    %v1114 = vpop.f32.mrf.mxu0
    %1115 = vmatprep.mubr.f32.mxu0 0.0
    %1116 = vmatmul.mubr.f32.gmra.mxu0 %v1040
    %v1117 = vpop.f32.mrf.mxu0
    %v1118 = vadd.f32 0.0, %v1117
    %v1119 = vpop.f32.mrf.mxu0
    %1120 = vdwg.mxu0
    %1121 = vrot.lane.b32.xlu0 %v546, 96
    %v1122 = vpop.permute.xlu0 %1121
    %1123 = vrot.lane.b32.xlu0 %v552, 96
    %v1124 = vpop.permute.xlu0 %1123
    %1125 = vrot.lane.b32.xlu0 %v548, 96
    %v1126 = vpop.permute.xlu0 %1125
    %1127 = vrot.lane.b32.xlu0 %v554, 96
    %v1128 = vpop.permute.xlu0 %1127
    %v1129 = vsel %vm345, %v1122, 0
    %v1131 = vsel %vm345, %v1124, 0
    %v1133 = vsel %vm345, %v1126, 0
    %v1135 = vsel %vm345, %v1128, 0
    %1137 = vmatprep.subr.mxu0 0.0
    %1138 = vmatpush1.xpose.msra.mxu0 0.0
    %1139 = vmatprep.subr.mxu0 0.0
    %1140 = vmatpush1.xpose.msra.mxu0 0.0
    %1141 = vmatprep.subr.mxu0 0.0
    %1142 = vmatpush1.xpose.msra.mxu0 0.0
    %1143 = vmatprep.subr.mxu0 0.0
    %1144 = vmatpush1.xpose.msra.mxu0 0.0
    %1145 = vmatprep.subr.mxu0 0.0
    %1146 = vmatpush1.xpose.msra.mxu0 0.0
    %1147 = vmatprep.subr.mxu0 0.0
    %1148 = vmatpush1.xpose.msra.mxu0 0.0
    %1149 = vmatprep.subr.mxu0 0.0
    %1150 = vmatpush1.xpose.msra.mxu0 0.0
    %1151 = vmatprep.subr.mxu0 0.0
    %1152 = vmatpush1.xpose.msra.mxu0 0.0
    %1153 = vmatprep.subr.mxu0 0.0
    %1154 = vmatpush1.xpose.msra.mxu0 0.0
    %1155 = vmatprep.subr.mxu0 0.0
    %1156 = vmatpush1.xpose.msra.mxu0 0.0
    %1157 = vmatprep.subr.mxu0 0.0
    %1158 = vmatpush1.xpose.msra.mxu0 0.0
    %1159 = vmatprep.subr.mxu0 0.0
    %1160 = vmatpush1.xpose.msra.mxu0 0.0
    %1161 = vmatprep.subr.mxu0 0.0
    %1162 = vmatpush1.xpose.msra.mxu0 0.0
    %1163 = vmatprep.subr.mxu0 0.0
    %1164 = vmatpush1.xpose.msra.mxu0 0.0
    %1165 = vmatprep.subr.mxu0 0.0
    %1166 = vmatpush1.xpose.msra.mxu0 %v1135
    %1167 = vmatprep.subr.mxu0 0.0
    %1168 = vmatpush1.xpose.msra.mxu0 %v1133
    %1169 = vmatprep.subr.mxu0 0.0
    %1170 = vmatpush2.xpose.msra.mxu0 0.0
    %1171 = vmatprep.subr.mxu0 0.0
    %1172 = vmatpush2.xpose.msra.mxu0 0.0
    %1173 = vmatprep.subr.mxu0 0.0
    %1174 = vmatpush2.xpose.msra.mxu0 0.0
    %1175 = vmatprep.subr.mxu0 0.0
    %1176 = vmatpush2.xpose.msra.mxu0 0.0
    %1177 = vmatprep.subr.mxu0 0.0
    %1178 = vmatpush2.xpose.msra.mxu0 0.0
    %1179 = vmatprep.subr.mxu0 0.0
    %1180 = vmatpush2.xpose.msra.mxu0 0.0
    %1181 = vmatprep.subr.mxu0 0.0
    %1182 = vmatpush2.xpose.msra.mxu0 0.0
    %1183 = vmatprep.subr.mxu0 0.0
    %1184 = vmatpush2.xpose.msra.mxu0 0.0
    %1185 = vmatprep.subr.mxu0 0.0
    %1186 = vmatpush2.xpose.msra.mxu0 0.0
    %1187 = vmatprep.subr.mxu0 0.0
    %1188 = vmatpush2.xpose.msra.mxu0 0.0
    %1189 = vmatprep.subr.mxu0 0.0
    %1190 = vmatpush2.xpose.msra.mxu0 0.0
    %1191 = vmatprep.subr.mxu0 0.0
    %1192 = vmatpush2.xpose.msra.mxu0 0.0
    %1193 = vmatprep.subr.mxu0 0.0
    %1194 = vmatpush2.xpose.msra.mxu0 0.0
    %1195 = vmatprep.subr.mxu0 0.0
    %1196 = vmatpush2.xpose.msra.mxu0 0.0
    %1197 = vmatprep.subr.mxu0 0.0
    %1198 = vmatpush2.xpose.msra.mxu0 0.0
    %1199 = vmatprep.subr.mxu0 0.0
    %1200 = vmatpush2.xpose.msra.mxu0 0.0
    %1201 = vmatprep.mubr.f32.mxu0 0.0
    %1202 = vmatmul.mubr.f32.gmra.mxu0 %v1129
    %v1203 = vpop.f32.mrf.mxu0
    %v1204 = vadd.f32 0.0, %v1203
    %v1205 = vpop.f32.mrf.mxu0
    %1206 = vmatprep.mubr.f32.mxu0 0.0
    %1207 = vmatmul.mubr.f32.gmra.mxu0 %v1131
    %v1208 = vpop.f32.mrf.mxu0
    %v1209 = vadd.f32 0.0, %v1208
    %v1210 = vpop.f32.mrf.mxu0
    %1211 = vdwg.mxu0
    %v1212 = vmul.f32 %v1113, 0.17677669
    %v1213 = vmul.f32 %v1118, 0.17677669
    %v1214 = vmul.f32 %v1204, 0.17677669
    %v1215 = vmul.f32 %v1209, 0.17677669
    %v1216 = vsel %vm819, %v1212, -inf
    %1217 = vmax.xlane.f32.xlu0 %v1216
    %v1218 = vpop.xlane.xlu0 %1217
    %v1219 = vsel %vm819, %v1213, -inf
    %1220 = vmax.xlane.f32.xlu0 %v1219
    %v1221 = vpop.xlane.xlu0 %1220
    %v1222 = vsel %vm819, %v1214, -inf
    %1223 = vmax.xlane.f32.xlu0 %v1222
    %v1224 = vpop.xlane.xlu0 %1223
    %v1225 = vsel %vm819, %v1215, -inf
    %1226 = vmax.xlane.f32.xlu0 %v1225
    %v1227 = vpop.xlane.xlu0 %1226
    %v1228 = vsub.f32 %v1212, %v1218
    %v1229 = vsub.f32 %v1213, %v1221
    %v1230 = vsub.f32 %v1214, %v1224
    %v1231 = vsub.f32 %v1215, %v1227
    %v1232 = vmul.f32 %v1228, 1.442695
    %v1233 = vpow.pop %v1232
    %v1234 = vmul.f32 %v1229, 1.442695
    %v1235 = vpow.pop %v1234
    %v1236 = vmul.f32 %v1230, 1.442695
    %v1237 = vpow.pop %v1236
    %v1238 = vmul.f32 %v1231, 1.442695
    %v1239 = vpow.pop %v1238
    %v1240 = vsel %vm819, %v1233, 0.0
    %1241 = vadd.xlane.f32.xlu0 %v1240
    %v1242 = vpop.xlane.xlu0 %1241
    %v1243 = vsel %vm819, %v1235, 0.0
    %1244 = vadd.xlane.f32.xlu0 %v1243
    %v1245 = vpop.xlane.xlu0 %1244
    %v1246 = vsel %vm819, %v1237, 0.0
    %1247 = vadd.xlane.f32.xlu0 %v1246
    %v1248 = vpop.xlane.xlu0 %1247
    %v1249 = vsel %vm819, %v1239, 0.0
    %1250 = vadd.xlane.f32.xlu0 %v1249
    %v1251 = vpop.xlane.xlu0 %1250
    %v1252 = vrcp.pop %v1242
    %v1253 = vrcp.pop %v1245
    %v1254 = vrcp.pop %v1248
    %v1255 = vrcp.pop %v1251
    %v1256 = vmul.f32 %v1233, %v1252
    %v1257 = vmul.f32 %v1235, %v1253
    %v1258 = vmul.f32 %v1237, %v1254
    %v1259 = vmul.f32 %v1239, %v1255
    %1262 = vrot.lane.b32.xlu0 %v623, 96
    %v1263 = vpop.permute.xlu0 %1262
    %1264 = vrot.lane.b32.xlu0 %v628, 96
    %v1265 = vpop.permute.xlu0 %1264
    %v1269 = vsel %vm819, %v1256, 0
    %v1272 = vsel %vm819, %v1257, 0
    %1274 = vmatprep.subr.mxu0 0.0
    %1275 = vmatpush1.msra.mxu0 0.0
    %1276 = vmatprep.subr.mxu0 0.0
    %1277 = vmatpush1.msra.mxu0 0.0
    %1278 = vmatprep.subr.mxu0 0.0
    %1279 = vmatpush1.msra.mxu0 0.0
    %1280 = vmatprep.subr.mxu0 0.0
    %1281 = vmatpush1.msra.mxu0 0.0
    %1282 = vmatprep.subr.mxu0 0.0
    %1283 = vmatpush1.msra.mxu0 0.0
    %1284 = vmatprep.subr.mxu0 0.0
    %1285 = vmatpush1.msra.mxu0 0.0
    %1286 = vmatprep.subr.mxu0 0.0
    %1287 = vmatpush1.msra.mxu0 0.0
    %1288 = vmatprep.subr.mxu0 0.0
    %1289 = vmatpush1.msra.mxu0 0.0
    %1290 = vmatprep.subr.mxu0 0.0
    %1291 = vmatpush1.msra.mxu0 0.0
    %1292 = vmatprep.subr.mxu0 0.0
    %1293 = vmatpush1.msra.mxu0 0.0
    %1294 = vmatprep.subr.mxu0 0.0
    %1295 = vmatpush1.msra.mxu0 0.0
    %1296 = vmatprep.subr.mxu0 0.0
    %1297 = vmatpush1.msra.mxu0 0.0
    %1298 = vmatprep.subr.mxu0 0.0
    %1299 = vmatpush1.msra.mxu0 0.0
    %1300 = vmatprep.subr.mxu0 0.0
    %1301 = vmatpush1.msra.mxu0 0.0
    %1302 = vmatprep.subr.mxu0 0.0
    %1303 = vmatpush1.msra.mxu0 %v1265
    %1304 = vmatprep.subr.mxu0 0.0
    %1305 = vmatpush1.msra.mxu0 %v1263
    %1306 = vmatprep.subr.mxu0 0.0
    %1307 = vmatpush2.msra.mxu0 0.0
    %1308 = vmatprep.subr.mxu0 0.0
    %1309 = vmatpush2.msra.mxu0 0.0
    %1310 = vmatprep.subr.mxu0 0.0
    %1311 = vmatpush2.msra.mxu0 0.0
    %1312 = vmatprep.subr.mxu0 0.0
    %1313 = vmatpush2.msra.mxu0 0.0
    %1314 = vmatprep.subr.mxu0 0.0
    %1315 = vmatpush2.msra.mxu0 0.0
    %1316 = vmatprep.subr.mxu0 0.0
    %1317 = vmatpush2.msra.mxu0 0.0
    %1318 = vmatprep.subr.mxu0 0.0
    %1319 = vmatpush2.msra.mxu0 0.0
    %1320 = vmatprep.subr.mxu0 0.0
    %1321 = vmatpush2.msra.mxu0 0.0
    %1322 = vmatprep.subr.mxu0 0.0
    %1323 = vmatpush2.msra.mxu0 0.0
    %1324 = vmatprep.subr.mxu0 0.0
    %1325 = vmatpush2.msra.mxu0 0.0
    %1326 = vmatprep.subr.mxu0 0.0
    %1327 = vmatpush2.msra.mxu0 0.0
    %1328 = vmatprep.subr.mxu0 0.0
    %1329 = vmatpush2.msra.mxu0 0.0
    %1330 = vmatprep.subr.mxu0 0.0
    %1331 = vmatpush2.msra.mxu0 0.0
    %1332 = vmatprep.subr.mxu0 0.0
    %1333 = vmatpush2.msra.mxu0 0.0
    %1334 = vmatprep.subr.mxu0 0.0
    %1335 = vmatpush2.msra.mxu0 0.0
    %1336 = vmatprep.subr.mxu0 0.0
    %1337 = vmatpush2.msra.mxu0 0.0
    %1338 = vmatprep.mubr.f32.mxu0 0.0
    %1339 = vmatmul.mubr.f32.gmra.mxu0 %v1269
    %v1340 = vpop.f32.mrf.mxu0
    %v1341 = vadd.f32 0.0, %v1340
    %v1342 = vpop.f32.mrf.mxu0
    %1343 = vmatprep.mubr.f32.mxu0 0.0
    %1344 = vmatmul.mubr.f32.gmra.mxu0 %v1272
    %v1345 = vpop.f32.mrf.mxu0
    %v1346 = vadd.f32 0.0, %v1345
    %v1347 = vpop.f32.mrf.mxu0
    %1348 = vdwg.mxu0
    %1351 = vrot.lane.b32.xlu0 %v633, 96
    %v1352 = vpop.permute.xlu0 %1351
    %1353 = vrot.lane.b32.xlu0 %v638, 96
    %v1354 = vpop.permute.xlu0 %1353
    %v1358 = vsel %vm819, %v1258, 0
    %v1361 = vsel %vm819, %v1259, 0
    %1363 = vmatprep.subr.mxu0 0.0
    %1364 = vmatpush1.msra.mxu0 0.0
    %1365 = vmatprep.subr.mxu0 0.0
    %1366 = vmatpush1.msra.mxu0 0.0
    %1367 = vmatprep.subr.mxu0 0.0
    %1368 = vmatpush1.msra.mxu0 0.0
    %1369 = vmatprep.subr.mxu0 0.0
    %1370 = vmatpush1.msra.mxu0 0.0
    %1371 = vmatprep.subr.mxu0 0.0
    %1372 = vmatpush1.msra.mxu0 0.0
    %1373 = vmatprep.subr.mxu0 0.0
    %1374 = vmatpush1.msra.mxu0 0.0
    %1375 = vmatprep.subr.mxu0 0.0
    %1376 = vmatpush1.msra.mxu0 0.0
    %1377 = vmatprep.subr.mxu0 0.0
    %1378 = vmatpush1.msra.mxu0 0.0
    %1379 = vmatprep.subr.mxu0 0.0
    %1380 = vmatpush1.msra.mxu0 0.0
    %1381 = vmatprep.subr.mxu0 0.0
    %1382 = vmatpush1.msra.mxu0 0.0
    %1383 = vmatprep.subr.mxu0 0.0
    %1384 = vmatpush1.msra.mxu0 0.0
    %1385 = vmatprep.subr.mxu0 0.0
    %1386 = vmatpush1.msra.mxu0 0.0
    %1387 = vmatprep.subr.mxu0 0.0
    %1388 = vmatpush1.msra.mxu0 0.0
    %1389 = vmatprep.subr.mxu0 0.0
    %1390 = vmatpush1.msra.mxu0 0.0
    %1391 = vmatprep.subr.mxu0 0.0
    %1392 = vmatpush1.msra.mxu0 %v1354
    %1393 = vmatprep.subr.mxu0 0.0
    %1394 = vmatpush1.msra.mxu0 %v1352
    %1395 = vmatprep.subr.mxu0 0.0
    %1396 = vmatpush2.msra.mxu0 0.0
    %1397 = vmatprep.subr.mxu0 0.0
    %1398 = vmatpush2.msra.mxu0 0.0
    %1399 = vmatprep.subr.mxu0 0.0
    %1400 = vmatpush2.msra.mxu0 0.0
    %1401 = vmatprep.subr.mxu0 0.0
    %1402 = vmatpush2.msra.mxu0 0.0
    %1403 = vmatprep.subr.mxu0 0.0
    %1404 = vmatpush2.msra.mxu0 0.0
    %1405 = vmatprep.subr.mxu0 0.0
    %1406 = vmatpush2.msra.mxu0 0.0
    %1407 = vmatprep.subr.mxu0 0.0
    %1408 = vmatpush2.msra.mxu0 0.0
    %1409 = vmatprep.subr.mxu0 0.0
    %1410 = vmatpush2.msra.mxu0 0.0
    %1411 = vmatprep.subr.mxu0 0.0
    %1412 = vmatpush2.msra.mxu0 0.0
    %1413 = vmatprep.subr.mxu0 0.0
    %1414 = vmatpush2.msra.mxu0 0.0
    %1415 = vmatprep.subr.mxu0 0.0
    %1416 = vmatpush2.msra.mxu0 0.0
    %1417 = vmatprep.subr.mxu0 0.0
    %1418 = vmatpush2.msra.mxu0 0.0
    %1419 = vmatprep.subr.mxu0 0.0
    %1420 = vmatpush2.msra.mxu0 0.0
    %1421 = vmatprep.subr.mxu0 0.0
    %1422 = vmatpush2.msra.mxu0 0.0
    %1423 = vmatprep.subr.mxu0 0.0
    %1424 = vmatpush2.msra.mxu0 0.0
    %1425 = vmatprep.subr.mxu0 0.0
    %1426 = vmatpush2.msra.mxu0 0.0
    %1427 = vmatprep.mubr.f32.mxu0 0.0
    %1428 = vmatmul.mubr.f32.gmra.mxu0 %v1358
    %v1429 = vpop.f32.mrf.mxu0
    %v1430 = vadd.f32 0.0, %v1429
    %v1431 = vpop.f32.mrf.mxu0
    %1432 = vmatprep.mubr.f32.mxu0 0.0
    %1433 = vmatmul.mubr.f32.gmra.mxu0 %v1361
    %v1434 = vpop.f32.mrf.mxu0
    %v1435 = vadd.f32 0.0, %v1434
    %v1436 = vpop.f32.mrf.mxu0
    %1437 = vdwg.mxu0
    %1442 = vrot.lane.b32.xlu0 %v1341, 32
    %v1443 = vpop.permute.xlu0 %1442
    %1444 = vrot.lane.b32.xlu0 %v1346, 32
    %v1445 = vpop.permute.xlu0 %1444
    %1446 = vrot.lane.b32.xlu0 %v1430, 32
    %v1447 = vpop.permute.xlu0 %1446
    %1448 = vrot.lane.b32.xlu0 %v1435, 32
    %v1449 = vpop.permute.xlu0 %1448
    %vm1454 = vcmask 523520
    %1455 = vst.msk [vmem:[#allocation2] sm:$0xff] %vm1454, %v1443
    %1456 = vst.msk [vmem:[#allocation2 + $0x8] sm:$0xff] %vm1454, %v1445
    %1457 = vst.msk [vmem:[#allocation2 + $0x10] sm:$0xff] %vm1454, %v1447
    %1458 = vst.msk [vmem:[#allocation2 + $0x18] sm:$0xff] %vm1454, %v1449
    %1459 = vrot.lane.b32.xlu0 %v534, 64
    %v1460 = vpop.permute.xlu0 %1459
    %1461 = vrot.lane.b32.xlu0 %v540, 64
    %v1462 = vpop.permute.xlu0 %1461
    %1463 = vrot.lane.b32.xlu0 %v536, 64
    %v1464 = vpop.permute.xlu0 %1463
    %1465 = vrot.lane.b32.xlu0 %v542, 64
    %v1466 = vpop.permute.xlu0 %1465
    %v1467 = vsel %vm345, %v1460, 0
    %v1469 = vsel %vm345, %v1462, 0
    %v1471 = vsel %vm345, %v1464, 0
    %v1473 = vsel %vm345, %v1466, 0
    %1475 = vmatprep.subr.mxu0 0.0
    %1476 = vmatpush1.xpose.msra.mxu0 0.0
    %1477 = vmatprep.subr.mxu0 0.0
    %1478 = vmatpush1.xpose.msra.mxu0 0.0
    %1479 = vmatprep.subr.mxu0 0.0
    %1480 = vmatpush1.xpose.msra.mxu0 0.0
    %1481 = vmatprep.subr.mxu0 0.0
    %1482 = vmatpush1.xpose.msra.mxu0 0.0
    %1483 = vmatprep.subr.mxu0 0.0
    %1484 = vmatpush1.xpose.msra.mxu0 0.0
    %1485 = vmatprep.subr.mxu0 0.0
    %1486 = vmatpush1.xpose.msra.mxu0 0.0
    %1487 = vmatprep.subr.mxu0 0.0
    %1488 = vmatpush1.xpose.msra.mxu0 0.0
    %1489 = vmatprep.subr.mxu0 0.0
    %1490 = vmatpush1.xpose.msra.mxu0 0.0
    %1491 = vmatprep.subr.mxu0 0.0
    %1492 = vmatpush1.xpose.msra.mxu0 0.0
    %1493 = vmatprep.subr.mxu0 0.0
    %1494 = vmatpush1.xpose.msra.mxu0 0.0
    %1495 = vmatprep.subr.mxu0 0.0
    %1496 = vmatpush1.xpose.msra.mxu0 0.0
    %1497 = vmatprep.subr.mxu0 0.0
    %1498 = vmatpush1.xpose.msra.mxu0 0.0
    %1499 = vmatprep.subr.mxu0 0.0
    %1500 = vmatpush1.xpose.msra.mxu0 0.0
    %1501 = vmatprep.subr.mxu0 0.0
    %1502 = vmatpush1.xpose.msra.mxu0 0.0
    %1503 = vmatprep.subr.mxu0 0.0
    %1504 = vmatpush1.xpose.msra.mxu0 %v1473
    %1505 = vmatprep.subr.mxu0 0.0
    %1506 = vmatpush1.xpose.msra.mxu0 %v1471
    %1507 = vmatprep.subr.mxu0 0.0
    %1508 = vmatpush2.xpose.msra.mxu0 0.0
    %1509 = vmatprep.subr.mxu0 0.0
    %1510 = vmatpush2.xpose.msra.mxu0 0.0
    %1511 = vmatprep.subr.mxu0 0.0
    %1512 = vmatpush2.xpose.msra.mxu0 0.0
    %1513 = vmatprep.subr.mxu0 0.0
    %1514 = vmatpush2.xpose.msra.mxu0 0.0
    %1515 = vmatprep.subr.mxu0 0.0
    %1516 = vmatpush2.xpose.msra.mxu0 0.0
    %1517 = vmatprep.subr.mxu0 0.0
    %1518 = vmatpush2.xpose.msra.mxu0 0.0
    %1519 = vmatprep.subr.mxu0 0.0
    %1520 = vmatpush2.xpose.msra.mxu0 0.0
    %1521 = vmatprep.subr.mxu0 0.0
    %1522 = vmatpush2.xpose.msra.mxu0 0.0
    %1523 = vmatprep.subr.mxu0 0.0
    %1524 = vmatpush2.xpose.msra.mxu0 0.0
    %1525 = vmatprep.subr.mxu0 0.0
    %1526 = vmatpush2.xpose.msra.mxu0 0.0
    %1527 = vmatprep.subr.mxu0 0.0
    %1528 = vmatpush2.xpose.msra.mxu0 0.0
    %1529 = vmatprep.subr.mxu0 0.0
    %1530 = vmatpush2.xpose.msra.mxu0 0.0
    %1531 = vmatprep.subr.mxu0 0.0
    %1532 = vmatpush2.xpose.msra.mxu0 0.0
    %1533 = vmatprep.subr.mxu0 0.0
    %1534 = vmatpush2.xpose.msra.mxu0 0.0
    %1535 = vmatprep.subr.mxu0 0.0
    %1536 = vmatpush2.xpose.msra.mxu0 0.0
    %1537 = vmatprep.subr.mxu0 0.0
    %1538 = vmatpush2.xpose.msra.mxu0 0.0
    %1539 = vmatprep.mubr.f32.mxu0 0.0
    %1540 = vmatmul.mubr.f32.gmra.mxu0 %v1467
    %v1541 = vpop.f32.mrf.mxu0
    %v1542 = vadd.f32 0.0, %v1541
    %v1543 = vpop.f32.mrf.mxu0
    %1544 = vmatprep.mubr.f32.mxu0 0.0
    %1545 = vmatmul.mubr.f32.gmra.mxu0 %v1469
    %v1546 = vpop.f32.mrf.mxu0
    %v1547 = vadd.f32 0.0, %v1546
    %v1548 = vpop.f32.mrf.mxu0
    %1549 = vdwg.mxu0
    %1550 = vrot.lane.b32.xlu0 %v546, 64
    %v1551 = vpop.permute.xlu0 %1550
    %1552 = vrot.lane.b32.xlu0 %v552, 64
    %v1553 = vpop.permute.xlu0 %1552
    %1554 = vrot.lane.b32.xlu0 %v548, 64
    %v1555 = vpop.permute.xlu0 %1554
    %1556 = vrot.lane.b32.xlu0 %v554, 64
    %v1557 = vpop.permute.xlu0 %1556
    %v1558 = vsel %vm345, %v1551, 0
    %v1560 = vsel %vm345, %v1553, 0
    %v1562 = vsel %vm345, %v1555, 0
    %v1564 = vsel %vm345, %v1557, 0
    %1566 = vmatprep.subr.mxu0 0.0
    %1567 = vmatpush1.xpose.msra.mxu0 0.0
    %1568 = vmatprep.subr.mxu0 0.0
    %1569 = vmatpush1.xpose.msra.mxu0 0.0
    %1570 = vmatprep.subr.mxu0 0.0
    %1571 = vmatpush1.xpose.msra.mxu0 0.0
    %1572 = vmatprep.subr.mxu0 0.0
    %1573 = vmatpush1.xpose.msra.mxu0 0.0
    %1574 = vmatprep.subr.mxu0 0.0
    %1575 = vmatpush1.xpose.msra.mxu0 0.0
    %1576 = vmatprep.subr.mxu0 0.0
    %1577 = vmatpush1.xpose.msra.mxu0 0.0
    %1578 = vmatprep.subr.mxu0 0.0
    %1579 = vmatpush1.xpose.msra.mxu0 0.0
    %1580 = vmatprep.subr.mxu0 0.0
    %1581 = vmatpush1.xpose.msra.mxu0 0.0
    %1582 = vmatprep.subr.mxu0 0.0
    %1583 = vmatpush1.xpose.msra.mxu0 0.0
    %1584 = vmatprep.subr.mxu0 0.0
    %1585 = vmatpush1.xpose.msra.mxu0 0.0
    %1586 = vmatprep.subr.mxu0 0.0
    %1587 = vmatpush1.xpose.msra.mxu0 0.0
    %1588 = vmatprep.subr.mxu0 0.0
    %1589 = vmatpush1.xpose.msra.mxu0 0.0
    %1590 = vmatprep.subr.mxu0 0.0
    %1591 = vmatpush1.xpose.msra.mxu0 0.0
    %1592 = vmatprep.subr.mxu0 0.0
    %1593 = vmatpush1.xpose.msra.mxu0 0.0
    %1594 = vmatprep.subr.mxu0 0.0
    %1595 = vmatpush1.xpose.msra.mxu0 %v1564
    %1596 = vmatprep.subr.mxu0 0.0
    %1597 = vmatpush1.xpose.msra.mxu0 %v1562
    %1598 = vmatprep.subr.mxu0 0.0
    %1599 = vmatpush2.xpose.msra.mxu0 0.0
    %1600 = vmatprep.subr.mxu0 0.0
    %1601 = vmatpush2.xpose.msra.mxu0 0.0
    %1602 = vmatprep.subr.mxu0 0.0
    %1603 = vmatpush2.xpose.msra.mxu0 0.0
    %1604 = vmatprep.subr.mxu0 0.0
    %1605 = vmatpush2.xpose.msra.mxu0 0.0
    %1606 = vmatprep.subr.mxu0 0.0
    %1607 = vmatpush2.xpose.msra.mxu0 0.0
    %1608 = vmatprep.subr.mxu0 0.0
    %1609 = vmatpush2.xpose.msra.mxu0 0.0
    %1610 = vmatprep.subr.mxu0 0.0
    %1611 = vmatpush2.xpose.msra.mxu0 0.0
    %1612 = vmatprep.subr.mxu0 0.0
    %1613 = vmatpush2.xpose.msra.mxu0 0.0
    %1614 = vmatprep.subr.mxu0 0.0
    %1615 = vmatpush2.xpose.msra.mxu0 0.0
    %1616 = vmatprep.subr.mxu0 0.0
    %1617 = vmatpush2.xpose.msra.mxu0 0.0
    %1618 = vmatprep.subr.mxu0 0.0
    %1619 = vmatpush2.xpose.msra.mxu0 0.0
    %1620 = vmatprep.subr.mxu0 0.0
    %1621 = vmatpush2.xpose.msra.mxu0 0.0
    %1622 = vmatprep.subr.mxu0 0.0
    %1623 = vmatpush2.xpose.msra.mxu0 0.0
    %1624 = vmatprep.subr.mxu0 0.0
    %1625 = vmatpush2.xpose.msra.mxu0 0.0
    %1626 = vmatprep.subr.mxu0 0.0
    %1627 = vmatpush2.xpose.msra.mxu0 0.0
    %1628 = vmatprep.subr.mxu0 0.0
    %1629 = vmatpush2.xpose.msra.mxu0 0.0
    %1630 = vmatprep.mubr.f32.mxu0 0.0
    %1631 = vmatmul.mubr.f32.gmra.mxu0 %v1558
    %v1632 = vpop.f32.mrf.mxu0
    %v1633 = vadd.f32 0.0, %v1632
    %v1634 = vpop.f32.mrf.mxu0
    %1635 = vmatprep.mubr.f32.mxu0 0.0
    %1636 = vmatmul.mubr.f32.gmra.mxu0 %v1560
    %v1637 = vpop.f32.mrf.mxu0
    %v1638 = vadd.f32 0.0, %v1637
    %v1639 = vpop.f32.mrf.mxu0
    %1640 = vdwg.mxu0
    %v1641 = vmul.f32 %v1542, 0.17677669
    %v1642 = vmul.f32 %v1547, 0.17677669
    %v1643 = vmul.f32 %v1633, 0.17677669
    %v1644 = vmul.f32 %v1638, 0.17677669
    %v1645 = vsel %vm819, %v1641, -inf
    %1646 = vmax.xlane.f32.xlu0 %v1645
    %v1647 = vpop.xlane.xlu0 %1646
    %v1648 = vsel %vm819, %v1642, -inf
    %1649 = vmax.xlane.f32.xlu0 %v1648
    %v1650 = vpop.xlane.xlu0 %1649
    %v1651 = vsel %vm819, %v1643, -inf
    %1652 = vmax.xlane.f32.xlu0 %v1651
    %v1653 = vpop.xlane.xlu0 %1652
    %v1654 = vsel %vm819, %v1644, -inf
    %1655 = vmax.xlane.f32.xlu0 %v1654
    %v1656 = vpop.xlane.xlu0 %1655
    %v1657 = vsub.f32 %v1641, %v1647
    %v1658 = vsub.f32 %v1642, %v1650
    %v1659 = vsub.f32 %v1643, %v1653
    %v1660 = vsub.f32 %v1644, %v1656
    %v1661 = vmul.f32 %v1657, 1.442695
    %v1662 = vpow.pop %v1661
    %v1663 = vmul.f32 %v1658, 1.442695
    %v1664 = vpow.pop %v1663
    %v1665 = vmul.f32 %v1659, 1.442695
    %v1666 = vpow.pop %v1665
    %v1667 = vmul.f32 %v1660, 1.442695
    %v1668 = vpow.pop %v1667
    %v1669 = vsel %vm819, %v1662, 0.0
    %1670 = vadd.xlane.f32.xlu0 %v1669
    %v1671 = vpop.xlane.xlu0 %1670
    %v1672 = vsel %vm819, %v1664, 0.0
    %1673 = vadd.xlane.f32.xlu0 %v1672
    %v1674 = vpop.xlane.xlu0 %1673
    %v1675 = vsel %vm819, %v1666, 0.0
    %1676 = vadd.xlane.f32.xlu0 %v1675
    %v1677 = vpop.xlane.xlu0 %1676
    %v1678 = vsel %vm819, %v1668, 0.0
    %1679 = vadd.xlane.f32.xlu0 %v1678
    %v1680 = vpop.xlane.xlu0 %1679
    %v1681 = vrcp.pop %v1671
    %v1682 = vrcp.pop %v1674
    %v1683 = vrcp.pop %v1677
    %v1684 = vrcp.pop %v1680
    %v1685 = vmul.f32 %v1662, %v1681
    %v1686 = vmul.f32 %v1664, %v1682
    %v1687 = vmul.f32 %v1666, %v1683
    %v1688 = vmul.f32 %v1668, %v1684
    %1689 = vrot.lane.b32.xlu0 %v623, 64
    %v1690 = vpop.permute.xlu0 %1689
    %1691 = vrot.lane.b32.xlu0 %v628, 64
    %v1692 = vpop.permute.xlu0 %1691
    %v1696 = vsel %vm819, %v1685, 0
    %v1699 = vsel %vm819, %v1686, 0
    %1701 = vmatprep.subr.mxu0 0.0
    %1702 = vmatpush1.msra.mxu0 0.0
    %1703 = vmatprep.subr.mxu0 0.0
    %1704 = vmatpush1.msra.mxu0 0.0
    %1705 = vmatprep.subr.mxu0 0.0
    %1706 = vmatpush1.msra.mxu0 0.0
    %1707 = vmatprep.subr.mxu0 0.0
    %1708 = vmatpush1.msra.mxu0 0.0
    %1709 = vmatprep.subr.mxu0 0.0
    %1710 = vmatpush1.msra.mxu0 0.0
    %1711 = vmatprep.subr.mxu0 0.0
    %1712 = vmatpush1.msra.mxu0 0.0
    %1713 = vmatprep.subr.mxu0 0.0
    %1714 = vmatpush1.msra.mxu0 0.0
    %1715 = vmatprep.subr.mxu0 0.0
    %1716 = vmatpush1.msra.mxu0 0.0
    %1717 = vmatprep.subr.mxu0 0.0
    %1718 = vmatpush1.msra.mxu0 0.0
    %1719 = vmatprep.subr.mxu0 0.0
    %1720 = vmatpush1.msra.mxu0 0.0
    %1721 = vmatprep.subr.mxu0 0.0
    %1722 = vmatpush1.msra.mxu0 0.0
    %1723 = vmatprep.subr.mxu0 0.0
    %1724 = vmatpush1.msra.mxu0 0.0
    %1725 = vmatprep.subr.mxu0 0.0
    %1726 = vmatpush1.msra.mxu0 0.0
    %1727 = vmatprep.subr.mxu0 0.0
    %1728 = vmatpush1.msra.mxu0 0.0
    %1729 = vmatprep.subr.mxu0 0.0
    %1730 = vmatpush1.msra.mxu0 %v1692
    %1731 = vmatprep.subr.mxu0 0.0
    %1732 = vmatpush1.msra.mxu0 %v1690
    %1733 = vmatprep.subr.mxu0 0.0
    %1734 = vmatpush2.msra.mxu0 0.0
    %1735 = vmatprep.subr.mxu0 0.0
    %1736 = vmatpush2.msra.mxu0 0.0
    %1737 = vmatprep.subr.mxu0 0.0
    %1738 = vmatpush2.msra.mxu0 0.0
    %1739 = vmatprep.subr.mxu0 0.0
    %1740 = vmatpush2.msra.mxu0 0.0
    %1741 = vmatprep.subr.mxu0 0.0
    %1742 = vmatpush2.msra.mxu0 0.0
    %1743 = vmatprep.subr.mxu0 0.0
    %1744 = vmatpush2.msra.mxu0 0.0
    %1745 = vmatprep.subr.mxu0 0.0
    %1746 = vmatpush2.msra.mxu0 0.0
    %1747 = vmatprep.subr.mxu0 0.0
    %1748 = vmatpush2.msra.mxu0 0.0
    %1749 = vmatprep.subr.mxu0 0.0
    %1750 = vmatpush2.msra.mxu0 0.0
    %1751 = vmatprep.subr.mxu0 0.0
    %1752 = vmatpush2.msra.mxu0 0.0
    %1753 = vmatprep.subr.mxu0 0.0
    %1754 = vmatpush2.msra.mxu0 0.0
    %1755 = vmatprep.subr.mxu0 0.0
    %1756 = vmatpush2.msra.mxu0 0.0
    %1757 = vmatprep.subr.mxu0 0.0
    %1758 = vmatpush2.msra.mxu0 0.0
    %1759 = vmatprep.subr.mxu0 0.0
    %1760 = vmatpush2.msra.mxu0 0.0
    %1761 = vmatprep.subr.mxu0 0.0
    %1762 = vmatpush2.msra.mxu0 0.0
    %1763 = vmatprep.subr.mxu0 0.0
    %1764 = vmatpush2.msra.mxu0 0.0
    %1765 = vmatprep.mubr.f32.mxu0 0.0
    %1766 = vmatmul.mubr.f32.gmra.mxu0 %v1696
    %v1767 = vpop.f32.mrf.mxu0
    %v1768 = vadd.f32 0.0, %v1767
    %v1769 = vpop.f32.mrf.mxu0
    %1770 = vmatprep.mubr.f32.mxu0 0.0
    %1771 = vmatmul.mubr.f32.gmra.mxu0 %v1699
    %v1772 = vpop.f32.mrf.mxu0
    %v1773 = vadd.f32 0.0, %v1772
    %v1774 = vpop.f32.mrf.mxu0
    %1775 = vdwg.mxu0
    %1776 = vrot.lane.b32.xlu0 %v633, 64
    %v1777 = vpop.permute.xlu0 %1776
    %1778 = vrot.lane.b32.xlu0 %v638, 64
    %v1779 = vpop.permute.xlu0 %1778
    %v1783 = vsel %vm819, %v1687, 0
    %v1786 = vsel %vm819, %v1688, 0
    %1788 = vmatprep.subr.mxu0 0.0
    %1789 = vmatpush1.msra.mxu0 0.0
    %1790 = vmatprep.subr.mxu0 0.0
    %1791 = vmatpush1.msra.mxu0 0.0
    %1792 = vmatprep.subr.mxu0 0.0
    %1793 = vmatpush1.msra.mxu0 0.0
    %1794 = vmatprep.subr.mxu0 0.0
    %1795 = vmatpush1.msra.mxu0 0.0
    %1796 = vmatprep.subr.mxu0 0.0
    %1797 = vmatpush1.msra.mxu0 0.0
    %1798 = vmatprep.subr.mxu0 0.0
    %1799 = vmatpush1.msra.mxu0 0.0
    %1800 = vmatprep.subr.mxu0 0.0
    %1801 = vmatpush1.msra.mxu0 0.0
    %1802 = vmatprep.subr.mxu0 0.0
    %1803 = vmatpush1.msra.mxu0 0.0
    %1804 = vmatprep.subr.mxu0 0.0
    %1805 = vmatpush1.msra.mxu0 0.0
    %1806 = vmatprep.subr.mxu0 0.0
    %1807 = vmatpush1.msra.mxu0 0.0
    %1808 = vmatprep.subr.mxu0 0.0
    %1809 = vmatpush1.msra.mxu0 0.0
    %1810 = vmatprep.subr.mxu0 0.0
    %1811 = vmatpush1.msra.mxu0 0.0
    %1812 = vmatprep.subr.mxu0 0.0
    %1813 = vmatpush1.msra.mxu0 0.0
    %1814 = vmatprep.subr.mxu0 0.0
    %1815 = vmatpush1.msra.mxu0 0.0
    %1816 = vmatprep.subr.mxu0 0.0
    %1817 = vmatpush1.msra.mxu0 %v1779
    %1818 = vmatprep.subr.mxu0 0.0
    %1819 = vmatpush1.msra.mxu0 %v1777
    %1820 = vmatprep.subr.mxu0 0.0
    %1821 = vmatpush2.msra.mxu0 0.0
    %1822 = vmatprep.subr.mxu0 0.0
    %1823 = vmatpush2.msra.mxu0 0.0
    %1824 = vmatprep.subr.mxu0 0.0
    %1825 = vmatpush2.msra.mxu0 0.0
    %1826 = vmatprep.subr.mxu0 0.0
    %1827 = vmatpush2.msra.mxu0 0.0
    %1828 = vmatprep.subr.mxu0 0.0
    %1829 = vmatpush2.msra.mxu0 0.0
    %1830 = vmatprep.subr.mxu0 0.0
    %1831 = vmatpush2.msra.mxu0 0.0
    %1832 = vmatprep.subr.mxu0 0.0
    %1833 = vmatpush2.msra.mxu0 0.0
    %1834 = vmatprep.subr.mxu0 0.0
    %1835 = vmatpush2.msra.mxu0 0.0
    %1836 = vmatprep.subr.mxu0 0.0
    %1837 = vmatpush2.msra.mxu0 0.0
    %1838 = vmatprep.subr.mxu0 0.0
    %1839 = vmatpush2.msra.mxu0 0.0
    %1840 = vmatprep.subr.mxu0 0.0
    %1841 = vmatpush2.msra.mxu0 0.0
    %1842 = vmatprep.subr.mxu0 0.0
    %1843 = vmatpush2.msra.mxu0 0.0
    %1844 = vmatprep.subr.mxu0 0.0
    %1845 = vmatpush2.msra.mxu0 0.0
    %1846 = vmatprep.subr.mxu0 0.0
    %1847 = vmatpush2.msra.mxu0 0.0
    %1848 = vmatprep.subr.mxu0 0.0
    %1849 = vmatpush2.msra.mxu0 0.0
    %1850 = vmatprep.subr.mxu0 0.0
    %1851 = vmatpush2.msra.mxu0 0.0
    %1852 = vmatprep.mubr.f32.mxu0 0.0
    %1853 = vmatmul.mubr.f32.gmra.mxu0 %v1783
    %v1854 = vpop.f32.mrf.mxu0
    %v1855 = vadd.f32 0.0, %v1854
    %v1856 = vpop.f32.mrf.mxu0
    %1857 = vmatprep.mubr.f32.mxu0 0.0
    %1858 = vmatmul.mubr.f32.gmra.mxu0 %v1786
    %v1859 = vpop.f32.mrf.mxu0
    %v1860 = vadd.f32 0.0, %v1859
    %v1861 = vpop.f32.mrf.mxu0
    %1862 = vdwg.mxu0
    %1867 = vrot.lane.b32.xlu0 %v1768, 64
    %v1868 = vpop.permute.xlu0 %1867
    %1869 = vrot.lane.b32.xlu0 %v1773, 64
    %v1870 = vpop.permute.xlu0 %1869
    %1871 = vrot.lane.b32.xlu0 %v1855, 64
    %v1872 = vpop.permute.xlu0 %1871
    %1873 = vrot.lane.b32.xlu0 %v1860, 64
    %v1874 = vpop.permute.xlu0 %1873
    %vm1879 = vcmask 785920
    %1880 = vst.msk [vmem:[#allocation2] sm:$0xff] %vm1879, %v1868
    %1881 = vst.msk [vmem:[#allocation2 + $0x8] sm:$0xff] %vm1879, %v1870
    %1882 = vst.msk [vmem:[#allocation2 + $0x10] sm:$0xff] %vm1879, %v1872
    %1883 = vst.msk [vmem:[#allocation2 + $0x18] sm:$0xff] %vm1879, %v1874
    %1884 = vrot.lane.b32.xlu0 %v534, 32
    %v1885 = vpop.permute.xlu0 %1884
    %1886 = vrot.lane.b32.xlu0 %v540, 32
    %v1887 = vpop.permute.xlu0 %1886
    %1888 = vrot.lane.b32.xlu0 %v536, 32
    %v1889 = vpop.permute.xlu0 %1888
    %1890 = vrot.lane.b32.xlu0 %v542, 32
    %v1891 = vpop.permute.xlu0 %1890
    %v1892 = vsel %vm345, %v1885, 0
    %v1894 = vsel %vm345, %v1887, 0
    %v1896 = vsel %vm345, %v1889, 0
    %v1898 = vsel %vm345, %v1891, 0
    %1900 = vmatprep.subr.mxu0 0.0
    %1901 = vmatpush1.xpose.msra.mxu0 0.0
    %1902 = vmatprep.subr.mxu0 0.0
    %1903 = vmatpush1.xpose.msra.mxu0 0.0
    %1904 = vmatprep.subr.mxu0 0.0
    %1905 = vmatpush1.xpose.msra.mxu0 0.0
    %1906 = vmatprep.subr.mxu0 0.0
    %1907 = vmatpush1.xpose.msra.mxu0 0.0
    %1908 = vmatprep.subr.mxu0 0.0
    %1909 = vmatpush1.xpose.msra.mxu0 0.0
    %1910 = vmatprep.subr.mxu0 0.0
    %1911 = vmatpush1.xpose.msra.mxu0 0.0
    %1912 = vmatprep.subr.mxu0 0.0
    %1913 = vmatpush1.xpose.msra.mxu0 0.0
    %1914 = vmatprep.subr.mxu0 0.0
    %1915 = vmatpush1.xpose.msra.mxu0 0.0
    %1916 = vmatprep.subr.mxu0 0.0
    %1917 = vmatpush1.xpose.msra.mxu0 0.0
    %1918 = vmatprep.subr.mxu0 0.0
    %1919 = vmatpush1.xpose.msra.mxu0 0.0
    %1920 = vmatprep.subr.mxu0 0.0
    %1921 = vmatpush1.xpose.msra.mxu0 0.0
    %1922 = vmatprep.subr.mxu0 0.0
    %1923 = vmatpush1.xpose.msra.mxu0 0.0
    %1924 = vmatprep.subr.mxu0 0.0
    %1925 = vmatpush1.xpose.msra.mxu0 0.0
    %1926 = vmatprep.subr.mxu0 0.0
    %1927 = vmatpush1.xpose.msra.mxu0 0.0
    %1928 = vmatprep.subr.mxu0 0.0
    %1929 = vmatpush1.xpose.msra.mxu0 %v1898
    %1930 = vmatprep.subr.mxu0 0.0
    %1931 = vmatpush1.xpose.msra.mxu0 %v1896
    %1932 = vmatprep.subr.mxu0 0.0
    %1933 = vmatpush2.xpose.msra.mxu0 0.0
    %1934 = vmatprep.subr.mxu0 0.0
    %1935 = vmatpush2.xpose.msra.mxu0 0.0
    %1936 = vmatprep.subr.mxu0 0.0
    %1937 = vmatpush2.xpose.msra.mxu0 0.0
    %1938 = vmatprep.subr.mxu0 0.0
    %1939 = vmatpush2.xpose.msra.mxu0 0.0
    %1940 = vmatprep.subr.mxu0 0.0
    %1941 = vmatpush2.xpose.msra.mxu0 0.0
    %1942 = vmatprep.subr.mxu0 0.0
    %1943 = vmatpush2.xpose.msra.mxu0 0.0
    %1944 = vmatprep.subr.mxu0 0.0
    %1945 = vmatpush2.xpose.msra.mxu0 0.0
    %1946 = vmatprep.subr.mxu0 0.0
    %1947 = vmatpush2.xpose.msra.mxu0 0.0
    %1948 = vmatprep.subr.mxu0 0.0
    %1949 = vmatpush2.xpose.msra.mxu0 0.0
    %1950 = vmatprep.subr.mxu0 0.0
    %1951 = vmatpush2.xpose.msra.mxu0 0.0
    %1952 = vmatprep.subr.mxu0 0.0
    %1953 = vmatpush2.xpose.msra.mxu0 0.0
    %1954 = vmatprep.subr.mxu0 0.0
    %1955 = vmatpush2.xpose.msra.mxu0 0.0
    %1956 = vmatprep.subr.mxu0 0.0
    %1957 = vmatpush2.xpose.msra.mxu0 0.0
    %1958 = vmatprep.subr.mxu0 0.0
    %1959 = vmatpush2.xpose.msra.mxu0 0.0
    %1960 = vmatprep.subr.mxu0 0.0
    %1961 = vmatpush2.xpose.msra.mxu0 0.0
    %1962 = vmatprep.subr.mxu0 0.0
    %1963 = vmatpush2.xpose.msra.mxu0 0.0
    %1964 = vmatprep.mubr.f32.mxu0 0.0
    %1965 = vmatmul.mubr.f32.gmra.mxu0 %v1892
    %v1966 = vpop.f32.mrf.mxu0
    %v1967 = vadd.f32 0.0, %v1966
    %v1968 = vpop.f32.mrf.mxu0
    %1969 = vmatprep.mubr.f32.mxu0 0.0
    %1970 = vmatmul.mubr.f32.gmra.mxu0 %v1894
    %v1971 = vpop.f32.mrf.mxu0
    %v1972 = vadd.f32 0.0, %v1971
    %v1973 = vpop.f32.mrf.mxu0
    %1974 = vdwg.mxu0
    %1975 = vrot.lane.b32.xlu0 %v546, 32
    %v1976 = vpop.permute.xlu0 %1975
    %1977 = vrot.lane.b32.xlu0 %v552, 32
    %v1978 = vpop.permute.xlu0 %1977
    %1979 = vrot.lane.b32.xlu0 %v548, 32
    %v1980 = vpop.permute.xlu0 %1979
    %1981 = vrot.lane.b32.xlu0 %v554, 32
    %v1982 = vpop.permute.xlu0 %1981
    %v1983 = vsel %vm345, %v1976, 0
    %v1985 = vsel %vm345, %v1978, 0
    %v1987 = vsel %vm345, %v1980, 0
    %v1989 = vsel %vm345, %v1982, 0
    %1991 = vmatprep.subr.mxu0 0.0
    %1992 = vmatpush1.xpose.msra.mxu0 0.0
    %1993 = vmatprep.subr.mxu0 0.0
    %1994 = vmatpush1.xpose.msra.mxu0 0.0
    %1995 = vmatprep.subr.mxu0 0.0
    %1996 = vmatpush1.xpose.msra.mxu0 0.0
    %1997 = vmatprep.subr.mxu0 0.0
    %1998 = vmatpush1.xpose.msra.mxu0 0.0
    %1999 = vmatprep.subr.mxu0 0.0
    %2000 = vmatpush1.xpose.msra.mxu0 0.0
    %2001 = vmatprep.subr.mxu0 0.0
    %2002 = vmatpush1.xpose.msra.mxu0 0.0
    %2003 = vmatprep.subr.mxu0 0.0
    %2004 = vmatpush1.xpose.msra.mxu0 0.0
    %2005 = vmatprep.subr.mxu0 0.0
    %2006 = vmatpush1.xpose.msra.mxu0 0.0
    %2007 = vmatprep.subr.mxu0 0.0
    %2008 = vmatpush1.xpose.msra.mxu0 0.0
    %2009 = vmatprep.subr.mxu0 0.0
    %2010 = vmatpush1.xpose.msra.mxu0 0.0
    %2011 = vmatprep.subr.mxu0 0.0
    %2012 = vmatpush1.xpose.msra.mxu0 0.0
    %2013 = vmatprep.subr.mxu0 0.0
    %2014 = vmatpush1.xpose.msra.mxu0 0.0
    %2015 = vmatprep.subr.mxu0 0.0
    %2016 = vmatpush1.xpose.msra.mxu0 0.0
    %2017 = vmatprep.subr.mxu0 0.0
    %2018 = vmatpush1.xpose.msra.mxu0 0.0
    %2019 = vmatprep.subr.mxu0 0.0
    %2020 = vmatpush1.xpose.msra.mxu0 %v1989
    %2021 = vmatprep.subr.mxu0 0.0
    %2022 = vmatpush1.xpose.msra.mxu0 %v1987
    %2023 = vmatprep.subr.mxu0 0.0
    %2024 = vmatpush2.xpose.msra.mxu0 0.0
    %2025 = vmatprep.subr.mxu0 0.0
    %2026 = vmatpush2.xpose.msra.mxu0 0.0
    %2027 = vmatprep.subr.mxu0 0.0
    %2028 = vmatpush2.xpose.msra.mxu0 0.0
    %2029 = vmatprep.subr.mxu0 0.0
    %2030 = vmatpush2.xpose.msra.mxu0 0.0
    %2031 = vmatprep.subr.mxu0 0.0
    %2032 = vmatpush2.xpose.msra.mxu0 0.0
    %2033 = vmatprep.subr.mxu0 0.0
    %2034 = vmatpush2.xpose.msra.mxu0 0.0
    %2035 = vmatprep.subr.mxu0 0.0
    %2036 = vmatpush2.xpose.msra.mxu0 0.0
    %2037 = vmatprep.subr.mxu0 0.0
    %2038 = vmatpush2.xpose.msra.mxu0 0.0
    %2039 = vmatprep.subr.mxu0 0.0
    %2040 = vmatpush2.xpose.msra.mxu0 0.0
    %2041 = vmatprep.subr.mxu0 0.0
    %2042 = vmatpush2.xpose.msra.mxu0 0.0
    %2043 = vmatprep.subr.mxu0 0.0
    %2044 = vmatpush2.xpose.msra.mxu0 0.0
    %2045 = vmatprep.subr.mxu0 0.0
    %2046 = vmatpush2.xpose.msra.mxu0 0.0
    %2047 = vmatprep.subr.mxu0 0.0
    %2048 = vmatpush2.xpose.msra.mxu0 0.0
    %2049 = vmatprep.subr.mxu0 0.0
    %2050 = vmatpush2.xpose.msra.mxu0 0.0
    %2051 = vmatprep.subr.mxu0 0.0
    %2052 = vmatpush2.xpose.msra.mxu0 0.0
    %2053 = vmatprep.subr.mxu0 0.0
    %2054 = vmatpush2.xpose.msra.mxu0 0.0
    %2055 = vmatprep.mubr.f32.mxu0 0.0
    %2056 = vmatmul.mubr.f32.gmra.mxu0 %v1983
    %v2057 = vpop.f32.mrf.mxu0
    %v2058 = vadd.f32 0.0, %v2057
    %v2059 = vpop.f32.mrf.mxu0
    %2060 = vmatprep.mubr.f32.mxu0 0.0
    %2061 = vmatmul.mubr.f32.gmra.mxu0 %v1985
    %v2062 = vpop.f32.mrf.mxu0
    %v2063 = vadd.f32 0.0, %v2062
    %v2064 = vpop.f32.mrf.mxu0
    %2065 = vdwg.mxu0
    %v2066 = vmul.f32 %v1967, 0.17677669
    %v2067 = vmul.f32 %v1972, 0.17677669
    %v2068 = vmul.f32 %v2058, 0.17677669
    %v2069 = vmul.f32 %v2063, 0.17677669
    %v2070 = vsel %vm819, %v2066, -inf
    %2071 = vmax.xlane.f32.xlu0 %v2070
    %v2072 = vpop.xlane.xlu0 %2071
    %v2073 = vsel %vm819, %v2067, -inf
    %2074 = vmax.xlane.f32.xlu0 %v2073
    %v2075 = vpop.xlane.xlu0 %2074
    %v2076 = vsel %vm819, %v2068, -inf
    %2077 = vmax.xlane.f32.xlu0 %v2076
    %v2078 = vpop.xlane.xlu0 %2077
    %v2079 = vsel %vm819, %v2069, -inf
    %2080 = vmax.xlane.f32.xlu0 %v2079
    %v2081 = vpop.xlane.xlu0 %2080
    %v2082 = vsub.f32 %v2066, %v2072
    %v2083 = vsub.f32 %v2067, %v2075
    %v2084 = vsub.f32 %v2068, %v2078
    %v2085 = vsub.f32 %v2069, %v2081
    %v2086 = vmul.f32 %v2082, 1.442695
    %v2087 = vpow.pop %v2086
    %v2088 = vmul.f32 %v2083, 1.442695
    %v2089 = vpow.pop %v2088
    %v2090 = vmul.f32 %v2084, 1.442695
    %v2091 = vpow.pop %v2090
    %v2092 = vmul.f32 %v2085, 1.442695
    %v2093 = vpow.pop %v2092
    %v2094 = vsel %vm819, %v2087, 0.0
    %2095 = vadd.xlane.f32.xlu0 %v2094
    %v2096 = vpop.xlane.xlu0 %2095
    %v2097 = vsel %vm819, %v2089, 0.0
    %2098 = vadd.xlane.f32.xlu0 %v2097
    %v2099 = vpop.xlane.xlu0 %2098
    %v2100 = vsel %vm819, %v2091, 0.0
    %2101 = vadd.xlane.f32.xlu0 %v2100
    %v2102 = vpop.xlane.xlu0 %2101
    %v2103 = vsel %vm819, %v2093, 0.0
    %2104 = vadd.xlane.f32.xlu0 %v2103
    %v2105 = vpop.xlane.xlu0 %2104
    %v2106 = vrcp.pop %v2096
    %v2107 = vrcp.pop %v2099
    %v2108 = vrcp.pop %v2102
    %v2109 = vrcp.pop %v2105
    %v2110 = vmul.f32 %v2087, %v2106
    %v2111 = vmul.f32 %v2089, %v2107
    %v2112 = vmul.f32 %v2091, %v2108
    %v2113 = vmul.f32 %v2093, %v2109
    %2114 = vrot.lane.b32.xlu0 %v623, 32
    %v2115 = vpop.permute.xlu0 %2114
    %2116 = vrot.lane.b32.xlu0 %v628, 32
    %v2117 = vpop.permute.xlu0 %2116
    %v2121 = vsel %vm819, %v2110, 0
    %v2124 = vsel %vm819, %v2111, 0
    %2126 = vmatprep.subr.mxu0 0.0
    %2127 = vmatpush1.msra.mxu0 0.0
    %2128 = vmatprep.subr.mxu0 0.0
    %2129 = vmatpush1.msra.mxu0 0.0
    %2130 = vmatprep.subr.mxu0 0.0
    %2131 = vmatpush1.msra.mxu0 0.0
    %2132 = vmatprep.subr.mxu0 0.0
    %2133 = vmatpush1.msra.mxu0 0.0
    %2134 = vmatprep.subr.mxu0 0.0
    %2135 = vmatpush1.msra.mxu0 0.0
    %2136 = vmatprep.subr.mxu0 0.0
    %2137 = vmatpush1.msra.mxu0 0.0
    %2138 = vmatprep.subr.mxu0 0.0
    %2139 = vmatpush1.msra.mxu0 0.0
    %2140 = vmatprep.subr.mxu0 0.0
    %2141 = vmatpush1.msra.mxu0 0.0
    %2142 = vmatprep.subr.mxu0 0.0
    %2143 = vmatpush1.msra.mxu0 0.0
    %2144 = vmatprep.subr.mxu0 0.0
    %2145 = vmatpush1.msra.mxu0 0.0
    %2146 = vmatprep.subr.mxu0 0.0
    %2147 = vmatpush1.msra.mxu0 0.0
    %2148 = vmatprep.subr.mxu0 0.0
    %2149 = vmatpush1.msra.mxu0 0.0
    %2150 = vmatprep.subr.mxu0 0.0
    %2151 = vmatpush1.msra.mxu0 0.0
    %2152 = vmatprep.subr.mxu0 0.0
    %2153 = vmatpush1.msra.mxu0 0.0
    %2154 = vmatprep.subr.mxu0 0.0
    %2155 = vmatpush1.msra.mxu0 %v2117
    %2156 = vmatprep.subr.mxu0 0.0
    %2157 = vmatpush1.msra.mxu0 %v2115
    %2158 = vmatprep.subr.mxu0 0.0
    %2159 = vmatpush2.msra.mxu0 0.0
    %2160 = vmatprep.subr.mxu0 0.0
    %2161 = vmatpush2.msra.mxu0 0.0
    %2162 = vmatprep.subr.mxu0 0.0
    %2163 = vmatpush2.msra.mxu0 0.0
    %2164 = vmatprep.subr.mxu0 0.0
    %2165 = vmatpush2.msra.mxu0 0.0
    %2166 = vmatprep.subr.mxu0 0.0
    %2167 = vmatpush2.msra.mxu0 0.0
    %2168 = vmatprep.subr.mxu0 0.0
    %2169 = vmatpush2.msra.mxu0 0.0
    %2170 = vmatprep.subr.mxu0 0.0
    %2171 = vmatpush2.msra.mxu0 0.0
    %2172 = vmatprep.subr.mxu0 0.0
    %2173 = vmatpush2.msra.mxu0 0.0
    %2174 = vmatprep.subr.mxu0 0.0
    %2175 = vmatpush2.msra.mxu0 0.0
    %2176 = vmatprep.subr.mxu0 0.0
    %2177 = vmatpush2.msra.mxu0 0.0
    %2178 = vmatprep.subr.mxu0 0.0
    %2179 = vmatpush2.msra.mxu0 0.0
    %2180 = vmatprep.subr.mxu0 0.0
    %2181 = vmatpush2.msra.mxu0 0.0
    %2182 = vmatprep.subr.mxu0 0.0
    %2183 = vmatpush2.msra.mxu0 0.0
    %2184 = vmatprep.subr.mxu0 0.0
    %2185 = vmatpush2.msra.mxu0 0.0
    %2186 = vmatprep.subr.mxu0 0.0
    %2187 = vmatpush2.msra.mxu0 0.0
    %2188 = vmatprep.subr.mxu0 0.0
    %2189 = vmatpush2.msra.mxu0 0.0
    %2190 = vmatprep.mubr.f32.mxu0 0.0
    %2191 = vmatmul.mubr.f32.gmra.mxu0 %v2121
    %v2192 = vpop.f32.mrf.mxu0
    %v2193 = vadd.f32 0.0, %v2192
    %v2194 = vpop.f32.mrf.mxu0
    %2195 = vmatprep.mubr.f32.mxu0 0.0
    %2196 = vmatmul.mubr.f32.gmra.mxu0 %v2124
    %v2197 = vpop.f32.mrf.mxu0
    %v2198 = vadd.f32 0.0, %v2197
    %v2199 = vpop.f32.mrf.mxu0
    %2200 = vdwg.mxu0
    %2201 = vrot.lane.b32.xlu0 %v633, 32
    %v2202 = vpop.permute.xlu0 %2201
    %2203 = vrot.lane.b32.xlu0 %v638, 32
    %v2204 = vpop.permute.xlu0 %2203
    %v2208 = vsel %vm819, %v2112, 0
    %v2211 = vsel %vm819, %v2113, 0
    %2213 = vmatprep.subr.mxu0 0.0
    %2214 = vmatpush1.msra.mxu0 0.0
    %2215 = vmatprep.subr.mxu0 0.0
    %2216 = vmatpush1.msra.mxu0 0.0
    %2217 = vmatprep.subr.mxu0 0.0
    %2218 = vmatpush1.msra.mxu0 0.0
    %2219 = vmatprep.subr.mxu0 0.0
    %2220 = vmatpush1.msra.mxu0 0.0
    %2221 = vmatprep.subr.mxu0 0.0
    %2222 = vmatpush1.msra.mxu0 0.0
    %2223 = vmatprep.subr.mxu0 0.0
    %2224 = vmatpush1.msra.mxu0 0.0
    %2225 = vmatprep.subr.mxu0 0.0
    %2226 = vmatpush1.msra.mxu0 0.0
    %2227 = vmatprep.subr.mxu0 0.0
    %2228 = vmatpush1.msra.mxu0 0.0
    %2229 = vmatprep.subr.mxu0 0.0
    %2230 = vmatpush1.msra.mxu0 0.0
    %2231 = vmatprep.subr.mxu0 0.0
    %2232 = vmatpush1.msra.mxu0 0.0
    %2233 = vmatprep.subr.mxu0 0.0
    %2234 = vmatpush1.msra.mxu0 0.0
    %2235 = vmatprep.subr.mxu0 0.0
    %2236 = vmatpush1.msra.mxu0 0.0
    %2237 = vmatprep.subr.mxu0 0.0
    %2238 = vmatpush1.msra.mxu0 0.0
    %2239 = vmatprep.subr.mxu0 0.0
    %2240 = vmatpush1.msra.mxu0 0.0
    %2241 = vmatprep.subr.mxu0 0.0
    %2242 = vmatpush1.msra.mxu0 %v2204
    %2243 = vmatprep.subr.mxu0 0.0
    %2244 = vmatpush1.msra.mxu0 %v2202
    %2245 = vmatprep.subr.mxu0 0.0
    %2246 = vmatpush2.msra.mxu0 0.0
    %2247 = vmatprep.subr.mxu0 0.0
    %2248 = vmatpush2.msra.mxu0 0.0
    %2249 = vmatprep.subr.mxu0 0.0
    %2250 = vmatpush2.msra.mxu0 0.0
    %2251 = vmatprep.subr.mxu0 0.0
    %2252 = vmatpush2.msra.mxu0 0.0
    %2253 = vmatprep.subr.mxu0 0.0
    %2254 = vmatpush2.msra.mxu0 0.0
    %2255 = vmatprep.subr.mxu0 0.0
    %2256 = vmatpush2.msra.mxu0 0.0
    %2257 = vmatprep.subr.mxu0 0.0
    %2258 = vmatpush2.msra.mxu0 0.0
    %2259 = vmatprep.subr.mxu0 0.0
    %2260 = vmatpush2.msra.mxu0 0.0
    %2261 = vmatprep.subr.mxu0 0.0
    %2262 = vmatpush2.msra.mxu0 0.0
    %2263 = vmatprep.subr.mxu0 0.0
    %2264 = vmatpush2.msra.mxu0 0.0
    %2265 = vmatprep.subr.mxu0 0.0
    %2266 = vmatpush2.msra.mxu0 0.0
    %2267 = vmatprep.subr.mxu0 0.0
    %2268 = vmatpush2.msra.mxu0 0.0
    %2269 = vmatprep.subr.mxu0 0.0
    %2270 = vmatpush2.msra.mxu0 0.0
    %2271 = vmatprep.subr.mxu0 0.0
    %2272 = vmatpush2.msra.mxu0 0.0
    %2273 = vmatprep.subr.mxu0 0.0
    %2274 = vmatpush2.msra.mxu0 0.0
    %2275 = vmatprep.subr.mxu0 0.0
    %2276 = vmatpush2.msra.mxu0 0.0
    %2277 = vmatprep.mubr.f32.mxu0 0.0
    %2278 = vmatmul.mubr.f32.gmra.mxu0 %v2208
    %v2279 = vpop.f32.mrf.mxu0
    %v2280 = vadd.f32 0.0, %v2279
    %v2281 = vpop.f32.mrf.mxu0
    %2282 = vmatprep.mubr.f32.mxu0 0.0
    %2283 = vmatmul.mubr.f32.gmra.mxu0 %v2211
    %v2284 = vpop.f32.mrf.mxu0
    %v2285 = vadd.f32 0.0, %v2284
    %v2286 = vpop.f32.mrf.mxu0
    %2287 = vdwg.mxu0
    %2292 = vrot.lane.b32.xlu0 %v2193, 96
    %v2293 = vpop.permute.xlu0 %2292
    %2294 = vrot.lane.b32.xlu0 %v2198, 96
    %v2295 = vpop.permute.xlu0 %2294
    %2296 = vrot.lane.b32.xlu0 %v2280, 96
    %v2297 = vpop.permute.xlu0 %2296
    %2298 = vrot.lane.b32.xlu0 %v2285, 96
    %v2299 = vpop.permute.xlu0 %2298
    %vm2304 = vcmask 1048320
    %2305 = vst.msk [vmem:[#allocation2] sm:$0xff] %vm2304, %v2293
    %2306 = vst.msk [vmem:[#allocation2 + $0x8] sm:$0xff] %vm2304, %v2295
    %2307 = vst.msk [vmem:[#allocation2 + $0x10] sm:$0xff] %vm2304, %v2297
    %2308 = vst.msk [vmem:[#allocation2 + $0x18] sm:$0xff] %vm2304, %v2299
    %v2309 = vld [vmem:[#allocation2] sm:$0xff]
    %v2310 = vld [vmem:[#allocation2 + $0x8] sm:$0xff]
    %v2311 = vld [vmem:[#allocation2 + $0x10] sm:$0xff]
    %v2312 = vld [vmem:[#allocation2 + $0x18] sm:$0xff]
    %v2313 = vld [vmem:[#allocation12] sm:$0x1]
    %v2314 = vld [vmem:[#allocation13] sm:$0x1]
    %2315 = vadd.xlane.f32.xlu0 %v2309
    %v2316 = vpop.xlane.xlu0 %2315
    %2317 = vadd.xlane.f32.xlu0 %v2310
    %v2318 = vpop.xlane.xlu0 %2317
    %2319 = vadd.xlane.f32.xlu0 %v2311
    %v2320 = vpop.xlane.xlu0 %2319
    %2321 = vadd.xlane.f32.xlu0 %v2312
    %v2322 = vpop.xlane.xlu0 %2321
    %v2323 = vrcp.pop 128.0
    %v2324 = vmul.f32 %v2316, %v2323
    %v2325 = vmul.f32 %v2318, %v2323
    %v2326 = vmul.f32 %v2320, %v2323
    %v2327 = vmul.f32 %v2322, %v2323
    %v2328 = vsub.f32 %v2309, %v2324
    %v2329 = vsub.f32 %v2310, %v2325
    %v2330 = vsub.f32 %v2311, %v2326
    %v2331 = vsub.f32 %v2312, %v2327
    %v2332 = vmul.f32 %v2328, %v2328
    %v2333 = vmul.f32 %v2329, %v2329
    %v2334 = vmul.f32 %v2330, %v2330
    %v2335 = vmul.f32 %v2331, %v2331
    %2336 = vadd.xlane.f32.xlu0 %v2332
    %v2337 = vpop.xlane.xlu0 %2336
    %2338 = vadd.xlane.f32.xlu0 %v2333
    %v2339 = vpop.xlane.xlu0 %2338
    %2340 = vadd.xlane.f32.xlu0 %v2334
    %v2341 = vpop.xlane.xlu0 %2340
    %2342 = vadd.xlane.f32.xlu0 %v2335
    %v2343 = vpop.xlane.xlu0 %2342
    %v2344 = vmul.f32 %v2337, %v2323
    %v2345 = vmul.f32 %v2339, %v2323
    %v2346 = vmul.f32 %v2341, %v2323
    %v2347 = vmul.f32 %v2343, %v2323
    %v2348 = vadd.f32 %v2344, 1e-05
    %v2349 = vadd.f32 %v2345, 1e-05
    %v2350 = vadd.f32 %v2346, 1e-05
    %v2351 = vadd.f32 %v2347, 1e-05
    %v2352 = vrsqrt.pop %v2348
    %v2353 = vrsqrt.pop %v2349
    %v2354 = vrsqrt.pop %v2350
    %v2355 = vrsqrt.pop %v2351
    %v2356 = vmul.f32 %v2328, %v2352
    %v2357 = vmul.f32 %v2329, %v2353
    %v2358 = vmul.f32 %v2330, %v2354
    %v2359 = vmul.f32 %v2331, %v2355
    %v2361 = vlaneseq
    %v2362 = vshrl.u32 %v2361, 7
    %v2363 = vsub.s32 0, %v2362
    %v2364 = vrot.slane %v2313, %v2363
    %v2366 = vmul.f32 %v2356, %v2364
    %v2367 = vmul.f32 %v2357, %v2364
    %v2368 = vmul.f32 %v2358, %v2364
    %v2369 = vmul.f32 %v2359, %v2364
    %v2371 = vlaneseq
    %v2372 = vshrl.u32 %v2371, 7
    %v2373 = vsub.s32 0, %v2372
    %v2374 = vrot.slane %v2314, %v2373
    %v2376 = vadd.f32 %v2366, %v2374
    %v2377 = vadd.f32 %v2367, %v2374
    %v2378 = vadd.f32 %v2368, %v2374
    %v2379 = vadd.f32 %v2369, %v2374
    %v2380 = vld [vmem:[%s17] sm:$0xff]
    %v2381 = vld [vmem:[%s17 + $0x8] sm:$0xff]
    %v2382 = vld [vmem:[%s17 + $0x10] sm:$0xff]
    %v2383 = vld [vmem:[%s17 + $0x18] sm:$0xff]
    %v2384 = vld [vmem:[%s17 + $0x20] sm:$0xff]
    %v2385 = vld [vmem:[%s17 + $0x28] sm:$0xff]
    %v2386 = vld [vmem:[%s17 + $0x30] sm:$0xff]
    %v2387 = vld [vmem:[%s17 + $0x38] sm:$0xff]
    %v2388 = vld [vmem:[%s17 + $0x40] sm:$0xff]
    %v2389 = vld [vmem:[%s17 + $0x48] sm:$0xff]
    %v2390 = vld [vmem:[%s17 + $0x50] sm:$0xff]
    %v2391 = vld [vmem:[%s17 + $0x58] sm:$0xff]
    %v2392 = vld [vmem:[%s17 + $0x60] sm:$0xff]
    %v2393 = vld [vmem:[%s17 + $0x68] sm:$0xff]
    %v2394 = vld [vmem:[%s17 + $0x70] sm:$0xff]
    %v2395 = vld [vmem:[%s17 + $0x78] sm:$0xff]
    %v2396 = vld [vmem:[#allocation15] sm:$0x1]
    %v2397 = vld [vmem:[#allocation16] sm:$0x1]
    %v2399 = vlaneseq
    %v2400 = vshrl.u32 %v2399, 7
    %v2401 = vsub.s32 0, %v2400
    %v2402 = vrot.slane %v2396, %v2401
    %2404 = vmatprep.subr.mxu0 0.0
    %2405 = vmatpush1.msra.mxu0 %v2395
    %2406 = vmatprep.subr.mxu0 0.0
    %2407 = vmatpush1.msra.mxu0 %v2394
    %2408 = vmatprep.subr.mxu0 0.0
    %2409 = vmatpush1.msra.mxu0 %v2393
    %2410 = vmatprep.subr.mxu0 0.0
    %2411 = vmatpush1.msra.mxu0 %v2392
    %2412 = vmatprep.subr.mxu0 0.0
    %2413 = vmatpush1.msra.mxu0 %v2391
    %2414 = vmatprep.subr.mxu0 0.0
    %2415 = vmatpush1.msra.mxu0 %v2390
    %2416 = vmatprep.subr.mxu0 0.0
    %2417 = vmatpush1.msra.mxu0 %v2389
    %2418 = vmatprep.subr.mxu0 0.0
    %2419 = vmatpush1.msra.mxu0 %v2388
    %2420 = vmatprep.subr.mxu0 0.0
    %2421 = vmatpush1.msra.mxu0 %v2387
    %2422 = vmatprep.subr.mxu0 0.0
    %2423 = vmatpush1.msra.mxu0 %v2386
    %2424 = vmatprep.subr.mxu0 0.0
    %2425 = vmatpush1.msra.mxu0 %v2385
    %2426 = vmatprep.subr.mxu0 0.0
    %2427 = vmatpush1.msra.mxu0 %v2384
    %2428 = vmatprep.subr.mxu0 0.0
    %2429 = vmatpush1.msra.mxu0 %v2383
    %2430 = vmatprep.subr.mxu0 0.0
    %2431 = vmatpush1.msra.mxu0 %v2382
    %2432 = vmatprep.subr.mxu0 0.0
    %2433 = vmatpush1.msra.mxu0 %v2381
    %2434 = vmatprep.subr.mxu0 0.0
    %2435 = vmatpush1.msra.mxu0 %v2380
    %2436 = vmatprep.subr.mxu0 0.0
    %2437 = vmatpush2.msra.mxu0 0.0
    %2438 = vmatprep.subr.mxu0 0.0
    %2439 = vmatpush2.msra.mxu0 0.0
    %2440 = vmatprep.subr.mxu0 0.0
    %2441 = vmatpush2.msra.mxu0 0.0
    %2442 = vmatprep.subr.mxu0 0.0
    %2443 = vmatpush2.msra.mxu0 0.0
    %2444 = vmatprep.subr.mxu0 0.0
    %2445 = vmatpush2.msra.mxu0 0.0
    %2446 = vmatprep.subr.mxu0 0.0
    %2447 = vmatpush2.msra.mxu0 0.0
    %2448 = vmatprep.subr.mxu0 0.0
    %2449 = vmatpush2.msra.mxu0 0.0
    %2450 = vmatprep.subr.mxu0 0.0
    %2451 = vmatpush2.msra.mxu0 0.0
    %2452 = vmatprep.subr.mxu0 0.0
    %2453 = vmatpush2.msra.mxu0 0.0
    %2454 = vmatprep.subr.mxu0 0.0
    %2455 = vmatpush2.msra.mxu0 0.0
    %2456 = vmatprep.subr.mxu0 0.0
    %2457 = vmatpush2.msra.mxu0 0.0
    %2458 = vmatprep.subr.mxu0 0.0
    %2459 = vmatpush2.msra.mxu0 0.0
    %2460 = vmatprep.subr.mxu0 0.0
    %2461 = vmatpush2.msra.mxu0 0.0
    %2462 = vmatprep.subr.mxu0 0.0
    %2463 = vmatpush2.msra.mxu0 0.0
    %2464 = vmatprep.subr.mxu0 0.0
    %2465 = vmatpush2.msra.mxu0 0.0
    %2466 = vmatprep.subr.mxu0 0.0
    %2467 = vmatpush2.msra.mxu0 0.0
    %2468 = vmatprep.mubr.f32.mxu0 0.0
    %2469 = vmatmul.mubr.f32.gmra.mxu0 %v2376
    %v2470 = vpop.f32.mrf.mxu0
    %v2471 = vadd.f32 %v2402, %v2470
    %v2472 = vpop.f32.mrf.mxu0
    %2473 = vmatprep.mubr.f32.mxu0 0.0
    %2474 = vmatmul.mubr.f32.gmra.mxu0 %v2377
    %v2475 = vpop.f32.mrf.mxu0
    %v2476 = vadd.f32 %v2402, %v2475
    %v2477 = vpop.f32.mrf.mxu0
    %2478 = vmatprep.mubr.f32.mxu0 0.0
    %2479 = vmatmul.mubr.f32.gmra.mxu0 %v2378
    %v2480 = vpop.f32.mrf.mxu0
    %v2481 = vadd.f32 %v2402, %v2480
    %v2482 = vpop.f32.mrf.mxu0
    %2483 = vmatprep.mubr.f32.mxu0 0.0
    %2484 = vmatmul.mubr.f32.gmra.mxu0 %v2379
    %v2485 = vpop.f32.mrf.mxu0
    %v2486 = vadd.f32 %v2402, %v2485
    %v2487 = vpop.f32.mrf.mxu0
    %2488 = vdwg.mxu0
    %v2489 = vtanh.pop %v2471
    %v2490 = vtanh.pop %v2476
    %v2491 = vtanh.pop %v2481
    %v2492 = vtanh.pop %v2486
    %v2494 = vlaneseq
    %v2495 = vshrl.u32 %v2494, 7
    %v2496 = vsub.s32 0, %v2495
    %v2497 = vrot.slane %v2397, %v2496
    %v2499 = vmul.f32 %v2489, %v2497
    %v2500 = vmul.f32 %v2490, %v2497
    %v2501 = vmul.f32 %v2491, %v2497
    %v2502 = vmul.f32 %v2492, %v2497
    %v2503 = vsel %vm345, %v2499, 0.0
    %2504 = vadd.xlane.f32.xlu0 %v2503
    %v2505 = vpop.xlane.xlu0 %2504
    %v2506 = vsel %vm345, %v2500, 0.0
    %2507 = vadd.xlane.f32.xlu0 %v2506
    %v2508 = vpop.xlane.xlu0 %2507
    %v2509 = vsel %vm345, %v2501, 0.0
    %2510 = vadd.xlane.f32.xlu0 %v2509
    %v2511 = vpop.xlane.xlu0 %2510
    %v2512 = vsel %vm345, %v2502, 0.0
    %2513 = vadd.xlane.f32.xlu0 %v2512
    %v2514 = vpop.xlane.xlu0 %2513
    %v2519 = vlaneseq
    %v2520 = vand.u32 %v2519, 127
    %v2521 = vlaneseq
    %v2522 = vshrl.u32 %v2521, 7
    %v2523 = vsub.s32 %v2520, %v2522
    %v2524 = vrot.slane %v2505, %v2523
    %v2525 = vadd.s32 %v2520, 4294967288
    %v2526 = vlaneseq
    %v2527 = vshrl.u32 %v2526, 7
    %v2528 = vsub.s32 %v2525, %v2527
    %v2529 = vrot.slane %v2508, %v2528
    %vm2530 = vcmask 130112
    %v2531 = vsel %vm2530, %v2529, %v2524
    %v2532 = vlaneseq
    %v2533 = vshrl.u32 %v2532, 7
    %v2534 = vsub.s32 %v2520, %v2533
    %v2535 = vrot.slane %v2511, %v2534
    %v2536 = vlaneseq
    %v2537 = vshrl.u32 %v2536, 7
    %v2538 = vsub.s32 %v2525, %v2537
    %v2539 = vrot.slane %v2514, %v2538
    %v2540 = vsel %vm2530, %v2539, %v2535
    %vm2541 = vcmask 1041409
    %v2542 = vsel %vm2541, %v2540, %v2531
    %vm2544 = vcmask 123904
    %v2545 = vsel %vm2544, %v2542, -inf
    %2546 = vmax.xlane.f32.xlu0 %v2545
    %v2547 = vpop.xlane.xlu0 %2546
    %v2549 = vlaneseq
    %v2550 = vshrl.u32 %v2549, 7
    %v2551 = vsub.s32 0, %v2550
    %v2552 = vrot.slane %v2547, %v2551
    %v2553 = vlaneseq
    %v2554 = vshrl.u32 %v2553, 7
    %v2555 = vsub.s32 1, %v2554
    %v2556 = vrot.slane %v2547, %v2555
    %v2559 = vsub.f32 %v2505, %v2552
    %v2560 = vsub.f32 %v2508, %v2552
    %v2561 = vsub.f32 %v2511, %v2556
    %v2562 = vsub.f32 %v2514, %v2556
    %v2563 = vmul.f32 %v2559, 1.442695
    %v2564 = vpow.pop %v2563
    %v2565 = vmul.f32 %v2560, 1.442695
    %v2566 = vpow.pop %v2565
    %v2567 = vmul.f32 %v2561, 1.442695
    %v2568 = vpow.pop %v2567
    %v2569 = vmul.f32 %v2562, 1.442695
    %v2570 = vpow.pop %v2569
    %2575 = vset.pattern.permute.xlu0 0
    %2576 = vperm.xlu0 %2575, %v2564
    %v2577 = vpop.permute.xlu0 %2576
    %2578 = vset.pattern.permute.xlu0 0
    %2579 = vperm.xlu0 %2578, %v2566
    %v2580 = vpop.permute.xlu0 %2579
    %2581 = vset.pattern.permute.xlu0 0
    %2582 = vperm.xlu0 %2581, %v2568
    %v2583 = vpop.permute.xlu0 %2582
    %2584 = vset.pattern.permute.xlu0 0
    %2585 = vperm.xlu0 %2584, %v2570
    %v2586 = vpop.permute.xlu0 %2585
    %v2587 = vlaneseq
    %v2588 = vshrl.u32 %v2587, 7
    %v2589 = vsub.s32 %v2520, %v2588
    %v2590 = vrot.slane %v2577, %v2589
    %v2591 = vlaneseq
    %v2592 = vshrl.u32 %v2591, 7
    %v2593 = vsub.s32 %v2525, %v2592
    %v2594 = vrot.slane %v2580, %v2593
    %v2595 = vsel %vm2530, %v2594, %v2590
    %v2596 = vlaneseq
    %v2597 = vshrl.u32 %v2596, 7
    %v2598 = vsub.s32 %v2520, %v2597
    %v2599 = vrot.slane %v2583, %v2598
    %v2600 = vlaneseq
    %v2601 = vshrl.u32 %v2600, 7
    %v2602 = vsub.s32 %v2525, %v2601
    %v2603 = vrot.slane %v2586, %v2602
    %v2604 = vsel %vm2530, %v2603, %v2599
    %v2605 = vsel %vm2541, %v2604, %v2595
    %v2607 = vsel %vm2544, %v2605, 0.0
    %2608 = vadd.xlane.f32.xlu0 %v2607
    %v2609 = vpop.xlane.xlu0 %2608
    %v2610 = vrcp.pop %v2609
    %v2612 = vlaneseq
    %v2613 = vshrl.u32 %v2612, 7
    %v2614 = vsub.s32 0, %v2613
    %v2615 = vrot.slane %v2610, %v2614
    %v2616 = vlaneseq
    %v2617 = vshrl.u32 %v2616, 7
    %v2618 = vsub.s32 1, %v2617
    %v2619 = vrot.slane %v2610, %v2618
    %v2622 = vmul.f32 %v2564, %v2615
    %v2623 = vmul.f32 %v2566, %v2615
    %v2624 = vmul.f32 %v2568, %v2619
    %v2625 = vmul.f32 %v2570, %v2619
    %2628 = vset.pattern.permute.xlu0 0
    %2629 = vperm.xlu0 %2628, %v2622
    %v2630 = vpop.permute.xlu0 %2629
    %2631 = vset.pattern.permute.xlu0 0
    %2632 = vperm.xlu0 %2631, %v2623
    %v2633 = vpop.permute.xlu0 %2632
    %v2634 = vlaneseq
    %v2635 = vshrl.u32 %v2634, 7
    %v2636 = vsub.s32 %v2520, %v2635
    %v2637 = vrot.slane %v2630, %v2636
    %v2638 = vlaneseq
    %v2639 = vshrl.u32 %v2638, 7
    %v2640 = vsub.s32 %v2525, %v2639
    %v2641 = vrot.slane %v2633, %v2640
    %v2642 = vsel %vm2530, %v2641, %v2637
    %v2643 = vsel %vm819, %v2642, 0
    %2645 = vmatprep.subr.mxu0 0.0
    %2646 = vmatpush1.msra.mxu0 0.0
    %2647 = vmatprep.subr.mxu0 0.0
    %2648 = vmatpush1.msra.mxu0 0.0
    %2649 = vmatprep.subr.mxu0 0.0
    %2650 = vmatpush1.msra.mxu0 0.0
    %2651 = vmatprep.subr.mxu0 0.0
    %2652 = vmatpush1.msra.mxu0 0.0
    %2653 = vmatprep.subr.mxu0 0.0
    %2654 = vmatpush1.msra.mxu0 0.0
    %2655 = vmatprep.subr.mxu0 0.0
    %2656 = vmatpush1.msra.mxu0 0.0
    %2657 = vmatprep.subr.mxu0 0.0
    %2658 = vmatpush1.msra.mxu0 0.0
    %2659 = vmatprep.subr.mxu0 0.0
    %2660 = vmatpush1.msra.mxu0 0.0
    %2661 = vmatprep.subr.mxu0 0.0
    %2662 = vmatpush1.msra.mxu0 0.0
    %2663 = vmatprep.subr.mxu0 0.0
    %2664 = vmatpush1.msra.mxu0 0.0
    %2665 = vmatprep.subr.mxu0 0.0
    %2666 = vmatpush1.msra.mxu0 0.0
    %2667 = vmatprep.subr.mxu0 0.0
    %2668 = vmatpush1.msra.mxu0 0.0
    %2669 = vmatprep.subr.mxu0 0.0
    %2670 = vmatpush1.msra.mxu0 0.0
    %2671 = vmatprep.subr.mxu0 0.0
    %2672 = vmatpush1.msra.mxu0 0.0
    %2673 = vmatprep.subr.mxu0 0.0
    %2674 = vmatpush1.msra.mxu0 %v2377
    %2675 = vmatprep.subr.mxu0 0.0
    %2676 = vmatpush1.msra.mxu0 %v2376
    %2677 = vmatprep.subr.mxu0 0.0
    %2678 = vmatpush2.msra.mxu0 0.0
    %2679 = vmatprep.subr.mxu0 0.0
    %2680 = vmatpush2.msra.mxu0 0.0
    %2681 = vmatprep.subr.mxu0 0.0
    %2682 = vmatpush2.msra.mxu0 0.0
    %2683 = vmatprep.subr.mxu0 0.0
    %2684 = vmatpush2.msra.mxu0 0.0
    %2685 = vmatprep.subr.mxu0 0.0
    %2686 = vmatpush2.msra.mxu0 0.0
    %2687 = vmatprep.subr.mxu0 0.0
    %2688 = vmatpush2.msra.mxu0 0.0
    %2689 = vmatprep.subr.mxu0 0.0
    %2690 = vmatpush2.msra.mxu0 0.0
    %2691 = vmatprep.subr.mxu0 0.0
    %2692 = vmatpush2.msra.mxu0 0.0
    %2693 = vmatprep.subr.mxu0 0.0
    %2694 = vmatpush2.msra.mxu0 0.0
    %2695 = vmatprep.subr.mxu0 0.0
    %2696 = vmatpush2.msra.mxu0 0.0
    %2697 = vmatprep.subr.mxu0 0.0
    %2698 = vmatpush2.msra.mxu0 0.0
    %2699 = vmatprep.subr.mxu0 0.0
    %2700 = vmatpush2.msra.mxu0 0.0
    %2701 = vmatprep.subr.mxu0 0.0
    %2702 = vmatpush2.msra.mxu0 0.0
    %2703 = vmatprep.subr.mxu0 0.0
    %2704 = vmatpush2.msra.mxu0 0.0
    %2705 = vmatprep.subr.mxu0 0.0
    %2706 = vmatpush2.msra.mxu0 0.0
    %2707 = vmatprep.subr.mxu0 0.0
    %2708 = vmatpush2.msra.mxu0 0.0
    %2709 = vmatprep.mubr.f32.mxu0 0.0
    %2710 = vmatmul.mubr.f32.gmra.mxu0 %v2643
    %v2711 = vpop.f32.mrf.mxu0
    %v2712 = vadd.f32 0.0, %v2711
    %v2713 = vpop.f32.mrf.mxu0
    %2714 = vdwg.mxu0
    %2717 = vset.pattern.permute.xlu0 0
    %2718 = vperm.xlu0 %2717, %v2624
    %v2719 = vpop.permute.xlu0 %2718
    %2720 = vset.pattern.permute.xlu0 0
    %2721 = vperm.xlu0 %2720, %v2625
    %v2722 = vpop.permute.xlu0 %2721
    %v2723 = vlaneseq
    %v2724 = vshrl.u32 %v2723, 7
    %v2725 = vsub.s32 %v2520, %v2724
    %v2726 = vrot.slane %v2719, %v2725
    %v2727 = vlaneseq
    %v2728 = vshrl.u32 %v2727, 7
    %v2729 = vsub.s32 %v2525, %v2728
    %v2730 = vrot.slane %v2722, %v2729
    %v2731 = vsel %vm2530, %v2730, %v2726
    %v2732 = vsel %vm819, %v2731, 0
    %2734 = vmatprep.subr.mxu0 0.0
    %2735 = vmatpush1.msra.mxu0 0.0
    %2736 = vmatprep.subr.mxu0 0.0
    %2737 = vmatpush1.msra.mxu0 0.0
    %2738 = vmatprep.subr.mxu0 0.0
    %2739 = vmatpush1.msra.mxu0 0.0
    %2740 = vmatprep.subr.mxu0 0.0
    %2741 = vmatpush1.msra.mxu0 0.0
    %2742 = vmatprep.subr.mxu0 0.0
    %2743 = vmatpush1.msra.mxu0 0.0
    %2744 = vmatprep.subr.mxu0 0.0
    %2745 = vmatpush1.msra.mxu0 0.0
    %2746 = vmatprep.subr.mxu0 0.0
    %2747 = vmatpush1.msra.mxu0 0.0
    %2748 = vmatprep.subr.mxu0 0.0
    %2749 = vmatpush1.msra.mxu0 0.0
    %2750 = vmatprep.subr.mxu0 0.0
    %2751 = vmatpush1.msra.mxu0 0.0
    %2752 = vmatprep.subr.mxu0 0.0
    %2753 = vmatpush1.msra.mxu0 0.0
    %2754 = vmatprep.subr.mxu0 0.0
    %2755 = vmatpush1.msra.mxu0 0.0
    %2756 = vmatprep.subr.mxu0 0.0
    %2757 = vmatpush1.msra.mxu0 0.0
    %2758 = vmatprep.subr.mxu0 0.0
    %2759 = vmatpush1.msra.mxu0 0.0
    %2760 = vmatprep.subr.mxu0 0.0
    %2761 = vmatpush1.msra.mxu0 0.0
    %2762 = vmatprep.subr.mxu0 0.0
    %2763 = vmatpush1.msra.mxu0 %v2379
    %2764 = vmatprep.subr.mxu0 0.0
    %2765 = vmatpush1.msra.mxu0 %v2378
    %2766 = vmatprep.subr.mxu0 0.0
    %2767 = vmatpush2.msra.mxu0 0.0
    %2768 = vmatprep.subr.mxu0 0.0
    %2769 = vmatpush2.msra.mxu0 0.0
    %2770 = vmatprep.subr.mxu0 0.0
    %2771 = vmatpush2.msra.mxu0 0.0
    %2772 = vmatprep.subr.mxu0 0.0
    %2773 = vmatpush2.msra.mxu0 0.0
    %2774 = vmatprep.subr.mxu0 0.0
    %2775 = vmatpush2.msra.mxu0 0.0
    %2776 = vmatprep.subr.mxu0 0.0
    %2777 = vmatpush2.msra.mxu0 0.0
    %2778 = vmatprep.subr.mxu0 0.0
    %2779 = vmatpush2.msra.mxu0 0.0
    %2780 = vmatprep.subr.mxu0 0.0
    %2781 = vmatpush2.msra.mxu0 0.0
    %2782 = vmatprep.subr.mxu0 0.0
    %2783 = vmatpush2.msra.mxu0 0.0
    %2784 = vmatprep.subr.mxu0 0.0
    %2785 = vmatpush2.msra.mxu0 0.0
    %2786 = vmatprep.subr.mxu0 0.0
    %2787 = vmatpush2.msra.mxu0 0.0
    %2788 = vmatprep.subr.mxu0 0.0
    %2789 = vmatpush2.msra.mxu0 0.0
    %2790 = vmatprep.subr.mxu0 0.0
    %2791 = vmatpush2.msra.mxu0 0.0
    %2792 = vmatprep.subr.mxu0 0.0
    %2793 = vmatpush2.msra.mxu0 0.0
    %2794 = vmatprep.subr.mxu0 0.0
    %2795 = vmatpush2.msra.mxu0 0.0
    %2796 = vmatprep.subr.mxu0 0.0
    %2797 = vmatpush2.msra.mxu0 0.0
    %2798 = vmatprep.mubr.f32.mxu0 0.0
    %2799 = vmatmul.mubr.f32.gmra.mxu0 %v2732
    %v2800 = vpop.f32.mrf.mxu0
    %v2801 = vadd.f32 0.0, %v2800
    %v2802 = vpop.f32.mrf.mxu0
    %2803 = vdwg.mxu0
    %v2804 = vtanh.pop %v2712
    %v2805 = vtanh.pop %v2801
    %v2806 = vld [vmem:[#allocation7] sm:$0xff]
    %v2807 = vld [vmem:[#allocation7 + $0x8] sm:$0xff]
    %v2808 = vld [vmem:[%s5] sm:$0xff]
    %v2809 = vld [vmem:[%s5 + $0x8] sm:$0xff]
    %v2810 = vld [vmem:[%s5 + $0x10] sm:$0xff]
    %v2811 = vld [vmem:[%s5 + $0x18] sm:$0xff]
    %v2812 = vld [vmem:[%s5 + $0x20] sm:$0xff]
    %v2813 = vld [vmem:[%s5 + $0x28] sm:$0xff]
    %v2814 = vld [vmem:[%s5 + $0x30] sm:$0xff]
    %v2815 = vld [vmem:[%s5 + $0x38] sm:$0xff]
    %v2816 = vld [vmem:[%s5 + $0x40] sm:$0xff]
    %v2817 = vld [vmem:[%s5 + $0x48] sm:$0xff]
    %v2818 = vld [vmem:[%s5 + $0x50] sm:$0xff]
    %v2819 = vld [vmem:[%s5 + $0x58] sm:$0xff]
    %v2820 = vld [vmem:[%s5 + $0x60] sm:$0xff]
    %v2821 = vld [vmem:[%s5 + $0x68] sm:$0xff]
    %v2822 = vld [vmem:[%s5 + $0x70] sm:$0xff]
    %v2823 = vld [vmem:[%s5 + $0x78] sm:$0xff]
    %v2824 = vld [vmem:[%s5 + $0x80] sm:$0xff]
    %v2825 = vld [vmem:[%s5 + $0x88] sm:$0xff]
    %v2826 = vld [vmem:[%s5 + $0x90] sm:$0xff]
    %v2827 = vld [vmem:[%s5 + $0x98] sm:$0xff]
    %v2828 = vld [vmem:[%s25] sm:$0xff]
    %v2829 = vld [vmem:[%s25 + $0x8] sm:$0xff]
    %v2830 = vld [vmem:[%s25 + $0x10] sm:$0xff]
    %v2831 = vld [vmem:[%s25 + $0x18] sm:$0xff]
    %v2832 = vld [vmem:[%s25 + $0x20] sm:$0xff]
    %v2833 = vld [vmem:[%s25 + $0x28] sm:$0xff]
    %v2834 = vld [vmem:[%s25 + $0x30] sm:$0xff]
    %v2835 = vld [vmem:[%s25 + $0x38] sm:$0xff]
    %v2836 = vld [vmem:[%s25 + $0x40] sm:$0xff]
    %v2837 = vld [vmem:[%s25 + $0x48] sm:$0xff]
    %v2838 = vld [vmem:[%s25 + $0x50] sm:$0xff]
    %v2839 = vld [vmem:[%s25 + $0x58] sm:$0xff]
    %v2840 = vld [vmem:[%s25 + $0x60] sm:$0xff]
    %v2841 = vld [vmem:[%s25 + $0x68] sm:$0xff]
    %v2842 = vld [vmem:[%s25 + $0x70] sm:$0xff]
    %v2843 = vld [vmem:[%s25 + $0x78] sm:$0xff]
    %v2844 = vld [vmem:[%s25 + $0x80] sm:$0xff]
    %v2845 = vld [vmem:[%s25 + $0x88] sm:$0xff]
    %v2846 = vld [vmem:[%s25 + $0x90] sm:$0xff]
    %v2847 = vld [vmem:[%s25 + $0x98] sm:$0xff]
    %v2848 = vld [vmem:[%s25 + $0xa0] sm:$0xff]
    %v2849 = vld [vmem:[%s25 + $0xa8] sm:$0xff]
    %v2850 = vld [vmem:[%s25 + $0xb0] sm:$0xff]
    %v2851 = vld [vmem:[%s25 + $0xb8] sm:$0xff]
    %v2852 = vld [vmem:[%s25 + $0xc0] sm:$0xff]
    %v2853 = vld [vmem:[%s25 + $0xc8] sm:$0xff]
    %v2854 = vld [vmem:[%s25 + $0xd0] sm:$0xff]
    %v2855 = vld [vmem:[%s25 + $0xd8] sm:$0xff]
    %v2856 = vld [vmem:[%s25 + $0xe0] sm:$0xff]
    %v2857 = vld [vmem:[%s25 + $0xe8] sm:$0xff]
    %v2858 = vld [vmem:[%s25 + $0xf0] sm:$0xff]
    %v2859 = vld [vmem:[%s25 + $0xf8] sm:$0xff]
    %v2860 = vld [vmem:[#allocation19] sm:$0x1]
    %v2862 = vlaneseq
    %v2863 = vshrl.u32 %v2862, 7
    %v2864 = vsub.s32 0, %v2863
    %v2865 = vrot.slane %v2860, %v2864
    %2867 = vmatprep.subr.mxu0 0.0
    %2868 = vmatpush1.msra.mxu0 %v2843
    %2869 = vmatprep.subr.mxu0 0.0
    %2870 = vmatpush1.msra.mxu0 %v2842
    %2871 = vmatprep.subr.mxu0 0.0
    %2872 = vmatpush1.msra.mxu0 %v2841
    %2873 = vmatprep.subr.mxu0 0.0
    %2874 = vmatpush1.msra.mxu0 %v2840
    %2875 = vmatprep.subr.mxu0 0.0
    %2876 = vmatpush1.msra.mxu0 %v2839
    %2877 = vmatprep.subr.mxu0 0.0
    %2878 = vmatpush1.msra.mxu0 %v2838
    %2879 = vmatprep.subr.mxu0 0.0
    %2880 = vmatpush1.msra.mxu0 %v2837
    %2881 = vmatprep.subr.mxu0 0.0
    %2882 = vmatpush1.msra.mxu0 %v2836
    %2883 = vmatprep.subr.mxu0 0.0
    %2884 = vmatpush1.msra.mxu0 %v2835
    %2885 = vmatprep.subr.mxu0 0.0
    %2886 = vmatpush1.msra.mxu0 %v2834
    %2887 = vmatprep.subr.mxu0 0.0
    %2888 = vmatpush1.msra.mxu0 %v2833
    %2889 = vmatprep.subr.mxu0 0.0
    %2890 = vmatpush1.msra.mxu0 %v2832
    %2891 = vmatprep.subr.mxu0 0.0
    %2892 = vmatpush1.msra.mxu0 %v2831
    %2893 = vmatprep.subr.mxu0 0.0
    %2894 = vmatpush1.msra.mxu0 %v2830
    %2895 = vmatprep.subr.mxu0 0.0
    %2896 = vmatpush1.msra.mxu0 %v2829
    %2897 = vmatprep.subr.mxu0 0.0
    %2898 = vmatpush1.msra.mxu0 %v2828
    %2899 = vmatprep.subr.mxu0 0.0
    %2900 = vmatpush2.msra.mxu0 %v2859
    %2901 = vmatprep.subr.mxu0 0.0
    %2902 = vmatpush2.msra.mxu0 %v2858
    %2903 = vmatprep.subr.mxu0 0.0
    %2904 = vmatpush2.msra.mxu0 %v2857
    %2905 = vmatprep.subr.mxu0 0.0
    %2906 = vmatpush2.msra.mxu0 %v2856
    %2907 = vmatprep.subr.mxu0 0.0
    %2908 = vmatpush2.msra.mxu0 %v2855
    %2909 = vmatprep.subr.mxu0 0.0
    %2910 = vmatpush2.msra.mxu0 %v2854
    %2911 = vmatprep.subr.mxu0 0.0
    %2912 = vmatpush2.msra.mxu0 %v2853
    %2913 = vmatprep.subr.mxu0 0.0
    %2914 = vmatpush2.msra.mxu0 %v2852
    %2915 = vmatprep.subr.mxu0 0.0
    %2916 = vmatpush2.msra.mxu0 %v2851
    %2917 = vmatprep.subr.mxu0 0.0
    %2918 = vmatpush2.msra.mxu0 %v2850
    %2919 = vmatprep.subr.mxu0 0.0
    %2920 = vmatpush2.msra.mxu0 %v2849
    %2921 = vmatprep.subr.mxu0 0.0
    %2922 = vmatpush2.msra.mxu0 %v2848
    %2923 = vmatprep.subr.mxu0 0.0
    %2924 = vmatpush2.msra.mxu0 %v2847
    %2925 = vmatprep.subr.mxu0 0.0
    %2926 = vmatpush2.msra.mxu0 %v2846
    %2927 = vmatprep.subr.mxu0 0.0
    %2928 = vmatpush2.msra.mxu0 %v2845
    %2929 = vmatprep.subr.mxu0 0.0
    %2930 = vmatpush2.msra.mxu0 %v2844
    %2931 = vmatprep.mubr.f32.mxu0 %v2809
    %2932 = vmatmul.mubr.f32.gmra.mxu0 %v2808
    %v2933 = vpop.f32.mrf.mxu0
    %v2934 = vadd.f32 %v2865, %v2933
    %v2935 = vpop.f32.mrf.mxu0
    %2936 = vmatprep.mubr.f32.mxu0 %v2811
    %2937 = vmatmul.mubr.f32.gmra.mxu0 %v2810
    %v2938 = vpop.f32.mrf.mxu0
    %v2939 = vadd.f32 %v2865, %v2938
    %v2940 = vpop.f32.mrf.mxu0
    %2941 = vmatprep.mubr.f32.mxu0 %v2813
    %2942 = vmatmul.mubr.f32.gmra.mxu0 %v2812
    %v2943 = vpop.f32.mrf.mxu0
    %v2944 = vadd.f32 %v2865, %v2943
    %v2945 = vpop.f32.mrf.mxu0
    %2946 = vmatprep.mubr.f32.mxu0 %v2815
    %2947 = vmatmul.mubr.f32.gmra.mxu0 %v2814
    %v2948 = vpop.f32.mrf.mxu0
    %v2949 = vadd.f32 %v2865, %v2948
    %v2950 = vpop.f32.mrf.mxu0
    %2951 = vmatprep.mubr.f32.mxu0 %v2817
    %2952 = vmatmul.mubr.f32.gmra.mxu0 %v2816
    %v2953 = vpop.f32.mrf.mxu0
    %v2954 = vadd.f32 %v2865, %v2953
    %v2955 = vpop.f32.mrf.mxu0
    %2956 = vmatprep.mubr.f32.mxu0 %v2819
    %2957 = vmatmul.mubr.f32.gmra.mxu0 %v2818
    %v2958 = vpop.f32.mrf.mxu0
    %v2959 = vadd.f32 %v2865, %v2958
    %v2960 = vpop.f32.mrf.mxu0
    %2961 = vmatprep.mubr.f32.mxu0 %v2821
    %2962 = vmatmul.mubr.f32.gmra.mxu0 %v2820
    %v2963 = vpop.f32.mrf.mxu0
    %v2964 = vadd.f32 %v2865, %v2963
    %v2965 = vpop.f32.mrf.mxu0
    %2966 = vmatprep.mubr.f32.mxu0 %v2823
    %2967 = vmatmul.mubr.f32.gmra.mxu0 %v2822
    %v2968 = vpop.f32.mrf.mxu0
    %v2969 = vadd.f32 %v2865, %v2968
    %v2970 = vpop.f32.mrf.mxu0
    %2971 = vmatprep.mubr.f32.mxu0 %v2825
    %2972 = vmatmul.mubr.f32.gmra.mxu0 %v2824
    %v2973 = vpop.f32.mrf.mxu0
    %v2974 = vadd.f32 %v2865, %v2973
    %v2975 = vpop.f32.mrf.mxu0
    %2976 = vmatprep.mubr.f32.mxu0 %v2827
    %2977 = vmatmul.mubr.f32.gmra.mxu0 %v2826
    %v2978 = vpop.f32.mrf.mxu0
    %v2979 = vadd.f32 %v2865, %v2978
    %v2980 = vpop.f32.mrf.mxu0
    %2981 = vdwg.mxu0
    %v2982 = vld [vmem:[#allocation18] sm:$0xff]
    %v2983 = vld [vmem:[#allocation18 + $0x8] sm:$0xff]
    %v2984 = vld [vmem:[#allocation18 + $0x10] sm:$0xff]
    %v2985 = vld [vmem:[#allocation18 + $0x18] sm:$0xff]
    %v2986 = vld [vmem:[#allocation18 + $0x20] sm:$0xff]
    %v2987 = vld [vmem:[#allocation18 + $0x28] sm:$0xff]
    %v2988 = vld [vmem:[#allocation18 + $0x30] sm:$0xff]
    %v2989 = vld [vmem:[#allocation18 + $0x38] sm:$0xff]
    %v2990 = vld [vmem:[#allocation18 + $0x40] sm:$0xff]
    %v2991 = vld [vmem:[#allocation18 + $0x48] sm:$0xff]
    %v2992 = vld [vmem:[#allocation18 + $0x50] sm:$0xff]
    %v2993 = vld [vmem:[#allocation18 + $0x58] sm:$0xff]
    %v2994 = vld [vmem:[#allocation18 + $0x60] sm:$0xff]
    %v2995 = vld [vmem:[#allocation18 + $0x68] sm:$0xff]
    %v2996 = vld [vmem:[#allocation18 + $0x70] sm:$0xff]
    %v2997 = vld [vmem:[#allocation18 + $0x78] sm:$0xff]
    %2998 = vmatprep.subr.mxu0 0.0
    %2999 = vmatpush1.msra.mxu0 %v2997
    %3000 = vmatprep.subr.mxu0 0.0
    %3001 = vmatpush1.msra.mxu0 %v2996
    %3002 = vmatprep.subr.mxu0 0.0
    %3003 = vmatpush1.msra.mxu0 %v2995
    %3004 = vmatprep.subr.mxu0 0.0
    %3005 = vmatpush1.msra.mxu0 %v2994
    %3006 = vmatprep.subr.mxu0 0.0
    %3007 = vmatpush1.msra.mxu0 %v2993
    %3008 = vmatprep.subr.mxu0 0.0
    %3009 = vmatpush1.msra.mxu0 %v2992
    %3010 = vmatprep.subr.mxu0 0.0
    %3011 = vmatpush1.msra.mxu0 %v2991
    %3012 = vmatprep.subr.mxu0 0.0
    %3013 = vmatpush1.msra.mxu0 %v2990
    %3014 = vmatprep.subr.mxu0 0.0
    %3015 = vmatpush1.msra.mxu0 %v2989
    %3016 = vmatprep.subr.mxu0 0.0
    %3017 = vmatpush1.msra.mxu0 %v2988
    %3018 = vmatprep.subr.mxu0 0.0
    %3019 = vmatpush1.msra.mxu0 %v2987
    %3020 = vmatprep.subr.mxu0 0.0
    %3021 = vmatpush1.msra.mxu0 %v2986
    %3022 = vmatprep.subr.mxu0 0.0
    %3023 = vmatpush1.msra.mxu0 %v2985
    %3024 = vmatprep.subr.mxu0 0.0
    %3025 = vmatpush1.msra.mxu0 %v2984
    %3026 = vmatprep.subr.mxu0 0.0
    %3027 = vmatpush1.msra.mxu0 %v2983
    %3028 = vmatprep.subr.mxu0 0.0
    %3029 = vmatpush1.msra.mxu0 %v2982
    %3030 = vmatprep.subr.mxu0 0.0
    %3031 = vmatpush2.msra.mxu0 0.0
    %3032 = vmatprep.subr.mxu0 0.0
    %3033 = vmatpush2.msra.mxu0 0.0
    %3034 = vmatprep.subr.mxu0 0.0
    %3035 = vmatpush2.msra.mxu0 0.0
    %3036 = vmatprep.subr.mxu0 0.0
    %3037 = vmatpush2.msra.mxu0 0.0
    %3038 = vmatprep.subr.mxu0 0.0
    %3039 = vmatpush2.msra.mxu0 0.0
    %3040 = vmatprep.subr.mxu0 0.0
    %3041 = vmatpush2.msra.mxu0 0.0
    %3042 = vmatprep.subr.mxu0 0.0
    %3043 = vmatpush2.msra.mxu0 0.0
    %3044 = vmatprep.subr.mxu0 0.0
    %3045 = vmatpush2.msra.mxu0 0.0
    %3046 = vmatprep.subr.mxu0 0.0
    %3047 = vmatpush2.msra.mxu0 0.0
    %3048 = vmatprep.subr.mxu0 0.0
    %3049 = vmatpush2.msra.mxu0 0.0
    %3050 = vmatprep.subr.mxu0 0.0
    %3051 = vmatpush2.msra.mxu0 0.0
    %3052 = vmatprep.subr.mxu0 0.0
    %3053 = vmatpush2.msra.mxu0 0.0
    %3054 = vmatprep.subr.mxu0 0.0
    %3055 = vmatpush2.msra.mxu0 0.0
    %3056 = vmatprep.subr.mxu0 0.0
    %3057 = vmatpush2.msra.mxu0 0.0
    %3058 = vmatprep.subr.mxu0 0.0
    %3059 = vmatpush2.msra.mxu0 0.0
    %3060 = vmatprep.subr.mxu0 0.0
    %3061 = vmatpush2.msra.mxu0 0.0
    %3062 = vmatprep.mubr.f32.mxu0 0.0
    %3063 = vmatmul.mubr.f32.gmra.mxu0 %v2806
    %v3064 = vpop.f32.mrf.mxu0
    %v3065 = vadd.f32 0.0, %v3064
    %v3066 = vpop.f32.mrf.mxu0
    %3067 = vmatprep.mubr.f32.mxu0 0.0
    %3068 = vmatmul.mubr.f32.gmra.mxu0 %v2807
    %v3069 = vpop.f32.mrf.mxu0
    %v3070 = vadd.f32 0.0, %v3069
    %v3071 = vpop.f32.mrf.mxu0
    %3072 = vdwg.mxu0
    %v3083 = vcombine.high %v2934, %v2934
    %v3085 = vunpack.c.l.s4 1966171168
    %v3086 = vunpack.c.0.s8 %v3085
    %v3087 = vlaneseq
    %v3088 = vshrl.u32 %v3087, 7
    %v3089 = vsub.s32 %v3086, %v3088
    %v3090 = vrot.slane %v2934, %v3089
    %v3092 = vunpack.c.l.s4 1966171168
    %v3093 = vunpack.c.0.s8 %v3092
    %v3094 = vlaneseq
    %v3095 = vshrl.u32 %v3094, 7
    %v3096 = vsub.s32 %v3093, %v3095
    %v3097 = vrot.slane %v3083, %v3096
    %v3098 = vcombine.high %v3090, %v3090
    %v3099 = vcombine.high %v3097, %v3097
    %v3101 = vunpack.c.l.s4 1966171168
    %v3102 = vunpack.c.0.s8 %v3101
    %v3103 = vlaneseq
    %v3104 = vshrl.u32 %v3103, 7
    %v3105 = vsub.s32 %v3102, %v3104
    %v3106 = vrot.slane %v3090, %v3105
    %v3108 = vunpack.c.l.s4 1966171168
    %v3109 = vunpack.c.0.s8 %v3108
    %v3110 = vlaneseq
    %v3111 = vshrl.u32 %v3110, 7
    %v3112 = vsub.s32 %v3109, %v3111
    %v3113 = vrot.slane %v3097, %v3112
    %v3115 = vunpack.c.l.s4 1966171168
    %v3116 = vunpack.c.0.s8 %v3115
    %v3117 = vlaneseq
    %v3118 = vshrl.u32 %v3117, 7
    %v3119 = vsub.s32 %v3116, %v3118
    %v3120 = vrot.slane %v3098, %v3119
    %v3122 = vunpack.c.l.s4 1966171168
    %v3123 = vunpack.c.0.s8 %v3122
    %v3124 = vlaneseq
    %v3125 = vshrl.u32 %v3124, 7
    %v3126 = vsub.s32 %v3123, %v3125
    %v3127 = vrot.slane %v3099, %v3126
    %v3128 = vcombine.high %v3106, %v3106
    %v3129 = vcombine.high %v3113, %v3113
    %v3130 = vcombine.high %v3120, %v3120
    %v3131 = vcombine.high %v3127, %v3127
    %v3132 = vcombine.high %v2939, %v2939
    %v3134 = vunpack.c.l.s4 1966171168
    %v3135 = vunpack.c.0.s8 %v3134
    %v3136 = vlaneseq
    %v3137 = vshrl.u32 %v3136, 7
    %v3138 = vsub.s32 %v3135, %v3137
    %v3139 = vrot.slane %v2939, %v3138
    %v3141 = vunpack.c.l.s4 1966171168
    %v3142 = vunpack.c.0.s8 %v3141
    %v3143 = vlaneseq
    %v3144 = vshrl.u32 %v3143, 7
    %v3145 = vsub.s32 %v3142, %v3144
    %v3146 = vrot.slane %v3132, %v3145
    %v3147 = vcombine.high %v3139, %v3139
    %v3148 = vcombine.high %v3146, %v3146
    %v3150 = vunpack.c.l.s4 1966171168
    %v3151 = vunpack.c.0.s8 %v3150
    %v3152 = vlaneseq
    %v3153 = vshrl.u32 %v3152, 7
    %v3154 = vsub.s32 %v3151, %v3153
    %v3155 = vrot.slane %v3139, %v3154
    %v3157 = vunpack.c.l.s4 1966171168
    %v3158 = vunpack.c.0.s8 %v3157
    %v3159 = vlaneseq
    %v3160 = vshrl.u32 %v3159, 7
    %v3161 = vsub.s32 %v3158, %v3160
    %v3162 = vrot.slane %v3146, %v3161
    %v3164 = vunpack.c.l.s4 1966171168
    %v3165 = vunpack.c.0.s8 %v3164
    %v3166 = vlaneseq
    %v3167 = vshrl.u32 %v3166, 7
    %v3168 = vsub.s32 %v3165, %v3167
    %v3169 = vrot.slane %v3147, %v3168
    %v3171 = vunpack.c.l.s4 1966171168
    %v3172 = vunpack.c.0.s8 %v3171
    %v3173 = vlaneseq
    %v3174 = vshrl.u32 %v3173, 7
    %v3175 = vsub.s32 %v3172, %v3174
    %v3176 = vrot.slane %v3148, %v3175
    %v3177 = vcombine.high %v3155, %v3155
    %v3178 = vcombine.high %v3162, %v3162
    %v3179 = vcombine.high %v3169, %v3169
    %v3180 = vcombine.high %v3176, %v3176
    %v3181 = vcombine.high %v2944, %v2944
    %v3183 = vunpack.c.l.s4 1966171168
    %v3184 = vunpack.c.0.s8 %v3183
    %v3185 = vlaneseq
    %v3186 = vshrl.u32 %v3185, 7
    %v3187 = vsub.s32 %v3184, %v3186
    %v3188 = vrot.slane %v2944, %v3187
    %v3190 = vunpack.c.l.s4 1966171168
    %v3191 = vunpack.c.0.s8 %v3190
    %v3192 = vlaneseq
    %v3193 = vshrl.u32 %v3192, 7
    %v3194 = vsub.s32 %v3191, %v3193
    %v3195 = vrot.slane %v3181, %v3194
    %v3196 = vcombine.high %v3188, %v3188
    %v3197 = vcombine.high %v3195, %v3195
    %v3199 = vunpack.c.l.s4 1966171168
    %v3200 = vunpack.c.0.s8 %v3199
    %v3201 = vlaneseq
    %v3202 = vshrl.u32 %v3201, 7
    %v3203 = vsub.s32 %v3200, %v3202
    %v3204 = vrot.slane %v3188, %v3203
    %v3206 = vunpack.c.l.s4 1966171168
    %v3207 = vunpack.c.0.s8 %v3206
    %v3208 = vlaneseq
    %v3209 = vshrl.u32 %v3208, 7
    %v3210 = vsub.s32 %v3207, %v3209
    %v3211 = vrot.slane %v3195, %v3210
    %v3213 = vunpack.c.l.s4 1966171168
    %v3214 = vunpack.c.0.s8 %v3213
    %v3215 = vlaneseq
    %v3216 = vshrl.u32 %v3215, 7
    %v3217 = vsub.s32 %v3214, %v3216
    %v3218 = vrot.slane %v3196, %v3217
    %v3220 = vunpack.c.l.s4 1966171168
    %v3221 = vunpack.c.0.s8 %v3220
    %v3222 = vlaneseq
    %v3223 = vshrl.u32 %v3222, 7
    %v3224 = vsub.s32 %v3221, %v3223
    %v3225 = vrot.slane %v3197, %v3224
    %v3226 = vcombine.high %v3204, %v3204
    %v3227 = vcombine.high %v3211, %v3211
    %v3228 = vcombine.high %v3218, %v3218
    %v3229 = vcombine.high %v3225, %v3225
    %v3230 = vcombine.high %v2949, %v2949
    %v3232 = vunpack.c.l.s4 1966171168
    %v3233 = vunpack.c.0.s8 %v3232
    %v3234 = vlaneseq
    %v3235 = vshrl.u32 %v3234, 7
    %v3236 = vsub.s32 %v3233, %v3235
    %v3237 = vrot.slane %v2949, %v3236
    %v3239 = vunpack.c.l.s4 1966171168
    %v3240 = vunpack.c.0.s8 %v3239
    %v3241 = vlaneseq
    %v3242 = vshrl.u32 %v3241, 7
    %v3243 = vsub.s32 %v3240, %v3242
    %v3244 = vrot.slane %v3230, %v3243
    %v3245 = vcombine.high %v3237, %v3237
    %v3246 = vcombine.high %v3244, %v3244
    %v3248 = vunpack.c.l.s4 1966171168
    %v3249 = vunpack.c.0.s8 %v3248
    %v3250 = vlaneseq
    %v3251 = vshrl.u32 %v3250, 7
    %v3252 = vsub.s32 %v3249, %v3251
    %v3253 = vrot.slane %v3237, %v3252
    %v3255 = vunpack.c.l.s4 1966171168
    %v3256 = vunpack.c.0.s8 %v3255
    %v3257 = vlaneseq
    %v3258 = vshrl.u32 %v3257, 7
    %v3259 = vsub.s32 %v3256, %v3258
    %v3260 = vrot.slane %v3244, %v3259
    %v3262 = vunpack.c.l.s4 1966171168
    %v3263 = vunpack.c.0.s8 %v3262
    %v3264 = vlaneseq
    %v3265 = vshrl.u32 %v3264, 7
    %v3266 = vsub.s32 %v3263, %v3265
    %v3267 = vrot.slane %v3245, %v3266
    %v3269 = vunpack.c.l.s4 1966171168
    %v3270 = vunpack.c.0.s8 %v3269
    %v3271 = vlaneseq
    %v3272 = vshrl.u32 %v3271, 7
    %v3273 = vsub.s32 %v3270, %v3272
    %v3274 = vrot.slane %v3246, %v3273
    %v3275 = vcombine.high %v3253, %v3253
    %v3276 = vcombine.high %v3260, %v3260
    %v3277 = vcombine.high %v3267, %v3267
    %v3278 = vcombine.high %v3274, %v3274
    %v3279 = vcombine.high %v2954, %v2954
    %v3281 = vunpack.c.l.s4 1966171168
    %v3282 = vunpack.c.0.s8 %v3281
    %v3283 = vlaneseq
    %v3284 = vshrl.u32 %v3283, 7
    %v3285 = vsub.s32 %v3282, %v3284
    %v3286 = vrot.slane %v2954, %v3285
    %v3288 = vunpack.c.l.s4 1966171168
    %v3289 = vunpack.c.0.s8 %v3288
    %v3290 = vlaneseq
    %v3291 = vshrl.u32 %v3290, 7
    %v3292 = vsub.s32 %v3289, %v3291
    %v3293 = vrot.slane %v3279, %v3292
    %v3294 = vcombine.high %v3286, %v3286
    %v3295 = vcombine.high %v3293, %v3293
    %v3297 = vunpack.c.l.s4 1966171168
    %v3298 = vunpack.c.0.s8 %v3297
    %v3299 = vlaneseq
    %v3300 = vshrl.u32 %v3299, 7
    %v3301 = vsub.s32 %v3298, %v3300
    %v3302 = vrot.slane %v3286, %v3301
    %v3304 = vunpack.c.l.s4 1966171168
    %v3305 = vunpack.c.0.s8 %v3304
    %v3306 = vlaneseq
    %v3307 = vshrl.u32 %v3306, 7
    %v3308 = vsub.s32 %v3305, %v3307
    %v3309 = vrot.slane %v3293, %v3308
    %v3311 = vunpack.c.l.s4 1966171168
    %v3312 = vunpack.c.0.s8 %v3311
    %v3313 = vlaneseq
    %v3314 = vshrl.u32 %v3313, 7
    %v3315 = vsub.s32 %v3312, %v3314
    %v3316 = vrot.slane %v3294, %v3315
    %v3318 = vunpack.c.l.s4 1966171168
    %v3319 = vunpack.c.0.s8 %v3318
    %v3320 = vlaneseq
    %v3321 = vshrl.u32 %v3320, 7
    %v3322 = vsub.s32 %v3319, %v3321
    %v3323 = vrot.slane %v3295, %v3322
    %v3324 = vcombine.high %v3302, %v3302
    %v3325 = vcombine.high %v3309, %v3309
    %v3326 = vcombine.high %v3316, %v3316
    %v3327 = vcombine.high %v3323, %v3323
    %v3328 = vcombine.high %v2959, %v2959
    %v3330 = vunpack.c.l.s4 1966171168
    %v3331 = vunpack.c.0.s8 %v3330
    %v3332 = vlaneseq
    %v3333 = vshrl.u32 %v3332, 7
    %v3334 = vsub.s32 %v3331, %v3333
    %v3335 = vrot.slane %v2959, %v3334
    %v3337 = vunpack.c.l.s4 1966171168
    %v3338 = vunpack.c.0.s8 %v3337
    %v3339 = vlaneseq
    %v3340 = vshrl.u32 %v3339, 7
    %v3341 = vsub.s32 %v3338, %v3340
    %v3342 = vrot.slane %v3328, %v3341
    %v3343 = vcombine.high %v3335, %v3335
    %v3344 = vcombine.high %v3342, %v3342
    %v3346 = vunpack.c.l.s4 1966171168
    %v3347 = vunpack.c.0.s8 %v3346
    %v3348 = vlaneseq
    %v3349 = vshrl.u32 %v3348, 7
    %v3350 = vsub.s32 %v3347, %v3349
    %v3351 = vrot.slane %v3335, %v3350
    %v3353 = vunpack.c.l.s4 1966171168
    %v3354 = vunpack.c.0.s8 %v3353
    %v3355 = vlaneseq
    %v3356 = vshrl.u32 %v3355, 7
    %v3357 = vsub.s32 %v3354, %v3356
    %v3358 = vrot.slane %v3342, %v3357
    %v3360 = vunpack.c.l.s4 1966171168
    %v3361 = vunpack.c.0.s8 %v3360
    %v3362 = vlaneseq
    %v3363 = vshrl.u32 %v3362, 7
    %v3364 = vsub.s32 %v3361, %v3363
    %v3365 = vrot.slane %v3343, %v3364
    %v3367 = vunpack.c.l.s4 1966171168
    %v3368 = vunpack.c.0.s8 %v3367
    %v3369 = vlaneseq
    %v3370 = vshrl.u32 %v3369, 7
    %v3371 = vsub.s32 %v3368, %v3370
    %v3372 = vrot.slane %v3344, %v3371
    %v3373 = vcombine.high %v3351, %v3351
    %v3374 = vcombine.high %v3358, %v3358
    %v3375 = vcombine.high %v3365, %v3365
    %v3376 = vcombine.high %v3372, %v3372
    %v3377 = vcombine.high %v2964, %v2964
    %v3379 = vunpack.c.l.s4 1966171168
    %v3380 = vunpack.c.0.s8 %v3379
    %v3381 = vlaneseq
    %v3382 = vshrl.u32 %v3381, 7
    %v3383 = vsub.s32 %v3380, %v3382
    %v3384 = vrot.slane %v2964, %v3383
    %v3386 = vunpack.c.l.s4 1966171168
    %v3387 = vunpack.c.0.s8 %v3386
    %v3388 = vlaneseq
    %v3389 = vshrl.u32 %v3388, 7
    %v3390 = vsub.s32 %v3387, %v3389
    %v3391 = vrot.slane %v3377, %v3390
    %v3392 = vcombine.high %v3384, %v3384
    %v3393 = vcombine.high %v3391, %v3391
    %v3395 = vunpack.c.l.s4 1966171168
    %v3396 = vunpack.c.0.s8 %v3395
    %v3397 = vlaneseq
    %v3398 = vshrl.u32 %v3397, 7
    %v3399 = vsub.s32 %v3396, %v3398
    %v3400 = vrot.slane %v3384, %v3399
    %v3402 = vunpack.c.l.s4 1966171168
    %v3403 = vunpack.c.0.s8 %v3402
    %v3404 = vlaneseq
    %v3405 = vshrl.u32 %v3404, 7
    %v3406 = vsub.s32 %v3403, %v3405
    %v3407 = vrot.slane %v3391, %v3406
    %v3409 = vunpack.c.l.s4 1966171168
    %v3410 = vunpack.c.0.s8 %v3409
    %v3411 = vlaneseq
    %v3412 = vshrl.u32 %v3411, 7
    %v3413 = vsub.s32 %v3410, %v3412
    %v3414 = vrot.slane %v3392, %v3413
    %v3416 = vunpack.c.l.s4 1966171168
    %v3417 = vunpack.c.0.s8 %v3416
    %v3418 = vlaneseq
    %v3419 = vshrl.u32 %v3418, 7
    %v3420 = vsub.s32 %v3417, %v3419
    %v3421 = vrot.slane %v3393, %v3420
    %v3422 = vcombine.high %v3400, %v3400
    %v3423 = vcombine.high %v3407, %v3407
    %v3424 = vcombine.high %v3414, %v3414
    %v3425 = vcombine.high %v3421, %v3421
    %v3426 = vcombine.high %v2969, %v2969
    %v3428 = vunpack.c.l.s4 1966171168
    %v3429 = vunpack.c.0.s8 %v3428
    %v3430 = vlaneseq
    %v3431 = vshrl.u32 %v3430, 7
    %v3432 = vsub.s32 %v3429, %v3431
    %v3433 = vrot.slane %v2969, %v3432
    %v3435 = vunpack.c.l.s4 1966171168
    %v3436 = vunpack.c.0.s8 %v3435
    %v3437 = vlaneseq
    %v3438 = vshrl.u32 %v3437, 7
    %v3439 = vsub.s32 %v3436, %v3438
    %v3440 = vrot.slane %v3426, %v3439
    %v3441 = vcombine.high %v3433, %v3433
    %v3442 = vcombine.high %v3440, %v3440
    %v3444 = vunpack.c.l.s4 1966171168
    %v3445 = vunpack.c.0.s8 %v3444
    %v3446 = vlaneseq
    %v3447 = vshrl.u32 %v3446, 7
    %v3448 = vsub.s32 %v3445, %v3447
    %v3449 = vrot.slane %v3433, %v3448
    %v3451 = vunpack.c.l.s4 1966171168
    %v3452 = vunpack.c.0.s8 %v3451
    %v3453 = vlaneseq
    %v3454 = vshrl.u32 %v3453, 7
    %v3455 = vsub.s32 %v3452, %v3454
    %v3456 = vrot.slane %v3440, %v3455
    %v3458 = vunpack.c.l.s4 1966171168
    %v3459 = vunpack.c.0.s8 %v3458
    %v3460 = vlaneseq
    %v3461 = vshrl.u32 %v3460, 7
    %v3462 = vsub.s32 %v3459, %v3461
    %v3463 = vrot.slane %v3441, %v3462
    %v3465 = vunpack.c.l.s4 1966171168
    %v3466 = vunpack.c.0.s8 %v3465
    %v3467 = vlaneseq
    %v3468 = vshrl.u32 %v3467, 7
    %v3469 = vsub.s32 %v3466, %v3468
    %v3470 = vrot.slane %v3442, %v3469
    %v3471 = vcombine.high %v3449, %v3449
    %v3472 = vcombine.high %v3456, %v3456
    %v3473 = vcombine.high %v3463, %v3463
    %v3474 = vcombine.high %v3470, %v3470
    %v3475 = vcombine.high %v2974, %v2974
    %v3477 = vunpack.c.l.s4 1966171168
    %v3478 = vunpack.c.0.s8 %v3477
    %v3479 = vlaneseq
    %v3480 = vshrl.u32 %v3479, 7
    %v3481 = vsub.s32 %v3478, %v3480
    %v3482 = vrot.slane %v2974, %v3481
    %v3484 = vunpack.c.l.s4 1966171168
    %v3485 = vunpack.c.0.s8 %v3484
    %v3486 = vlaneseq
    %v3487 = vshrl.u32 %v3486, 7
    %v3488 = vsub.s32 %v3485, %v3487
    %v3489 = vrot.slane %v3475, %v3488
    %v3490 = vcombine.high %v3482, %v3482
    %v3491 = vcombine.high %v3489, %v3489
    %v3493 = vunpack.c.l.s4 1966171168
    %v3494 = vunpack.c.0.s8 %v3493
    %v3495 = vlaneseq
    %v3496 = vshrl.u32 %v3495, 7
    %v3497 = vsub.s32 %v3494, %v3496
    %v3498 = vrot.slane %v3482, %v3497
    %v3500 = vunpack.c.l.s4 1966171168
    %v3501 = vunpack.c.0.s8 %v3500
    %v3502 = vlaneseq
    %v3503 = vshrl.u32 %v3502, 7
    %v3504 = vsub.s32 %v3501, %v3503
    %v3505 = vrot.slane %v3489, %v3504
    %v3507 = vunpack.c.l.s4 1966171168
    %v3508 = vunpack.c.0.s8 %v3507
    %v3509 = vlaneseq
    %v3510 = vshrl.u32 %v3509, 7
    %v3511 = vsub.s32 %v3508, %v3510
    %v3512 = vrot.slane %v3490, %v3511
    %v3514 = vunpack.c.l.s4 1966171168
    %v3515 = vunpack.c.0.s8 %v3514
    %v3516 = vlaneseq
    %v3517 = vshrl.u32 %v3516, 7
    %v3518 = vsub.s32 %v3515, %v3517
    %v3519 = vrot.slane %v3491, %v3518
    %v3520 = vcombine.high %v3498, %v3498
    %v3521 = vcombine.high %v3505, %v3505
    %v3522 = vcombine.high %v3512, %v3512
    %v3523 = vcombine.high %v3519, %v3519
    %v3524 = vcombine.high %v2979, %v2979
    %v3526 = vunpack.c.l.s4 1966171168
    %v3527 = vunpack.c.0.s8 %v3526
    %v3528 = vlaneseq
    %v3529 = vshrl.u32 %v3528, 7
    %v3530 = vsub.s32 %v3527, %v3529
    %v3531 = vrot.slane %v2979, %v3530
    %v3533 = vunpack.c.l.s4 1966171168
    %v3534 = vunpack.c.0.s8 %v3533
    %v3535 = vlaneseq
    %v3536 = vshrl.u32 %v3535, 7
    %v3537 = vsub.s32 %v3534, %v3536
    %v3538 = vrot.slane %v3524, %v3537
    %v3539 = vcombine.high %v3531, %v3531
    %v3540 = vcombine.high %v3538, %v3538
    %v3542 = vunpack.c.l.s4 1966171168
    %v3543 = vunpack.c.0.s8 %v3542
    %v3544 = vlaneseq
    %v3545 = vshrl.u32 %v3544, 7
    %v3546 = vsub.s32 %v3543, %v3545
    %v3547 = vrot.slane %v3531, %v3546
    %v3549 = vunpack.c.l.s4 1966171168
    %v3550 = vunpack.c.0.s8 %v3549
    %v3551 = vlaneseq
    %v3552 = vshrl.u32 %v3551, 7
    %v3553 = vsub.s32 %v3550, %v3552
    %v3554 = vrot.slane %v3538, %v3553
    %v3556 = vunpack.c.l.s4 1966171168
    %v3557 = vunpack.c.0.s8 %v3556
    %v3558 = vlaneseq
    %v3559 = vshrl.u32 %v3558, 7
    %v3560 = vsub.s32 %v3557, %v3559
    %v3561 = vrot.slane %v3539, %v3560
    %v3563 = vunpack.c.l.s4 1966171168
    %v3564 = vunpack.c.0.s8 %v3563
    %v3565 = vlaneseq
    %v3566 = vshrl.u32 %v3565, 7
    %v3567 = vsub.s32 %v3564, %v3566
    %v3568 = vrot.slane %v3540, %v3567
    %v3569 = vcombine.high %v3547, %v3547
    %v3570 = vcombine.high %v3554, %v3554
    %v3571 = vcombine.high %v3561, %v3561
    %v3572 = vcombine.high %v3568, %v3568
    %v3655 = vcombine.high %v3065, %v3065
    %v3657 = vunpack.c.l.s4 1966171168
    %v3658 = vunpack.c.0.s8 %v3657
    %v3659 = vlaneseq
    %v3660 = vshrl.u32 %v3659, 7
    %v3661 = vsub.s32 %v3658, %v3660
    %v3662 = vrot.slane %v3065, %v3661
    %v3664 = vunpack.c.l.s4 1966171168
    %v3665 = vunpack.c.0.s8 %v3664
    %v3666 = vlaneseq
    %v3667 = vshrl.u32 %v3666, 7
    %v3668 = vsub.s32 %v3665, %v3667
    %v3669 = vrot.slane %v3655, %v3668
    %v3670 = vcombine.high %v3662, %v3662
    %v3671 = vcombine.high %v3669, %v3669
    %v3673 = vunpack.c.l.s4 1966171168
    %v3674 = vunpack.c.0.s8 %v3673
    %v3675 = vlaneseq
    %v3676 = vshrl.u32 %v3675, 7
    %v3677 = vsub.s32 %v3674, %v3676
    %v3678 = vrot.slane %v3662, %v3677
    %v3680 = vunpack.c.l.s4 1966171168
    %v3681 = vunpack.c.0.s8 %v3680
    %v3682 = vlaneseq
    %v3683 = vshrl.u32 %v3682, 7
    %v3684 = vsub.s32 %v3681, %v3683
    %v3685 = vrot.slane %v3669, %v3684
    %v3687 = vunpack.c.l.s4 1966171168
    %v3688 = vunpack.c.0.s8 %v3687
    %v3689 = vlaneseq
    %v3690 = vshrl.u32 %v3689, 7
    %v3691 = vsub.s32 %v3688, %v3690
    %v3692 = vrot.slane %v3670, %v3691
    %v3694 = vunpack.c.l.s4 1966171168
    %v3695 = vunpack.c.0.s8 %v3694
    %v3696 = vlaneseq
    %v3697 = vshrl.u32 %v3696, 7
    %v3698 = vsub.s32 %v3695, %v3697
    %v3699 = vrot.slane %v3671, %v3698
    %v3700 = vcombine.high %v3678, %v3678
    %v3701 = vcombine.high %v3685, %v3685
    %v3702 = vcombine.high %v3692, %v3692
    %v3703 = vcombine.high %v3699, %v3699
    %v3704 = vcombine.high %v3070, %v3070
    %v3706 = vunpack.c.l.s4 1966171168
    %v3707 = vunpack.c.0.s8 %v3706
    %v3708 = vlaneseq
    %v3709 = vshrl.u32 %v3708, 7
    %v3710 = vsub.s32 %v3707, %v3709
    %v3711 = vrot.slane %v3070, %v3710
    %v3713 = vunpack.c.l.s4 1966171168
    %v3714 = vunpack.c.0.s8 %v3713
    %v3715 = vlaneseq
    %v3716 = vshrl.u32 %v3715, 7
    %v3717 = vsub.s32 %v3714, %v3716
    %v3718 = vrot.slane %v3704, %v3717
    %v3719 = vcombine.high %v3711, %v3711
    %v3720 = vcombine.high %v3718, %v3718
    %v3722 = vunpack.c.l.s4 1966171168
    %v3723 = vunpack.c.0.s8 %v3722
    %v3724 = vlaneseq
    %v3725 = vshrl.u32 %v3724, 7
    %v3726 = vsub.s32 %v3723, %v3725
    %v3727 = vrot.slane %v3711, %v3726
    %v3729 = vunpack.c.l.s4 1966171168
    %v3730 = vunpack.c.0.s8 %v3729
    %v3731 = vlaneseq
    %v3732 = vshrl.u32 %v3731, 7
    %v3733 = vsub.s32 %v3730, %v3732
    %v3734 = vrot.slane %v3718, %v3733
    %v3736 = vunpack.c.l.s4 1966171168
    %v3737 = vunpack.c.0.s8 %v3736
    %v3738 = vlaneseq
    %v3739 = vshrl.u32 %v3738, 7
    %v3740 = vsub.s32 %v3737, %v3739
    %v3741 = vrot.slane %v3719, %v3740
    %v3743 = vunpack.c.l.s4 1966171168
    %v3744 = vunpack.c.0.s8 %v3743
    %v3745 = vlaneseq
    %v3746 = vshrl.u32 %v3745, 7
    %v3747 = vsub.s32 %v3744, %v3746
    %v3748 = vrot.slane %v3720, %v3747
    %v3749 = vcombine.high %v3727, %v3727
    %v3750 = vcombine.high %v3734, %v3734
    %v3751 = vcombine.high %v3741, %v3741
    %v3752 = vcombine.high %v3748, %v3748
    %v3753 = vlaneseq
    %v3754 = vshrl.u32 %v3753, 7
    %v3755 = vsub.s32 0, %v3754
    %v3756 = vrot.slane %v3678, %v3755
    %v3757 = vlaneseq
    %v3758 = vshrl.u32 %v3757, 7
    %v3759 = vsub.s32 0, %v3758
    %v3760 = vrot.slane %v3692, %v3759
    %v3761 = vlaneseq
    %v3762 = vshrl.u32 %v3761, 7
    %v3763 = vsub.s32 0, %v3762
    %v3764 = vrot.slane %v3700, %v3763
    %v3765 = vlaneseq
    %v3766 = vshrl.u32 %v3765, 7
    %v3767 = vsub.s32 0, %v3766
    %v3768 = vrot.slane %v3702, %v3767
    %v3769 = vlaneseq
    %v3770 = vshrl.u32 %v3769, 7
    %v3771 = vsub.s32 0, %v3770
    %v3772 = vrot.slane %v3685, %v3771
    %v3773 = vlaneseq
    %v3774 = vshrl.u32 %v3773, 7
    %v3775 = vsub.s32 0, %v3774
    %v3776 = vrot.slane %v3699, %v3775
    %v3777 = vlaneseq
    %v3778 = vshrl.u32 %v3777, 7
    %v3779 = vsub.s32 0, %v3778
    %v3780 = vrot.slane %v3701, %v3779
    %v3781 = vlaneseq
    %v3782 = vshrl.u32 %v3781, 7
    %v3783 = vsub.s32 0, %v3782
    %v3784 = vrot.slane %v3703, %v3783
    %v3785 = vlaneseq
    %v3786 = vshrl.u32 %v3785, 7
    %v3787 = vsub.s32 0, %v3786
    %v3788 = vrot.slane %v3727, %v3787
    %v3789 = vlaneseq
    %v3790 = vshrl.u32 %v3789, 7
    %v3791 = vsub.s32 0, %v3790
    %v3792 = vrot.slane %v3741, %v3791
    %v3793 = vlaneseq
    %v3794 = vshrl.u32 %v3793, 7
    %v3795 = vsub.s32 0, %v3794
    %v3796 = vrot.slane %v3749, %v3795
    %v3797 = vlaneseq
    %v3798 = vshrl.u32 %v3797, 7
    %v3799 = vsub.s32 0, %v3798
    %v3800 = vrot.slane %v3751, %v3799
    %v3801 = vlaneseq
    %v3802 = vshrl.u32 %v3801, 7
    %v3803 = vsub.s32 0, %v3802
    %v3804 = vrot.slane %v3734, %v3803
    %v3805 = vlaneseq
    %v3806 = vshrl.u32 %v3805, 7
    %v3807 = vsub.s32 0, %v3806
    %v3808 = vrot.slane %v3748, %v3807
    %v3809 = vlaneseq
    %v3810 = vshrl.u32 %v3809, 7
    %v3811 = vsub.s32 0, %v3810
    %v3812 = vrot.slane %v3750, %v3811
    %v3813 = vlaneseq
    %v3814 = vshrl.u32 %v3813, 7
    %v3815 = vsub.s32 0, %v3814
    %v3816 = vrot.slane %v3752, %v3815
    %v3817 = vcombine.high %v3756, %v3756
    %v3819 = vunpack.c.l.s4 1966171168
    %v3820 = vunpack.c.0.s8 %v3819
    %v3821 = vlaneseq
    %v3822 = vshrl.u32 %v3821, 7
    %v3823 = vsub.s32 %v3820, %v3822
    %v3824 = vrot.slane %v3756, %v3823
    %v3826 = vunpack.c.l.s4 1966171168
    %v3827 = vunpack.c.0.s8 %v3826
    %v3828 = vlaneseq
    %v3829 = vshrl.u32 %v3828, 7
    %v3830 = vsub.s32 %v3827, %v3829
    %v3831 = vrot.slane %v3817, %v3830
    %v3832 = vcombine.high %v3824, %v3824
    %v3834 = vunpack.c.l.s4 1966171168
    %v3835 = vunpack.c.0.s8 %v3834
    %v3836 = vlaneseq
    %v3837 = vshrl.u32 %v3836, 7
    %v3838 = vsub.s32 %v3835, %v3837
    %v3839 = vrot.slane %v3824, %v3838
    %v3841 = vunpack.c.l.s4 1966171168
    %v3842 = vunpack.c.0.s8 %v3841
    %v3843 = vlaneseq
    %v3844 = vshrl.u32 %v3843, 7
    %v3845 = vsub.s32 %v3842, %v3844
    %v3846 = vrot.slane %v3831, %v3845
    %v3848 = vunpack.c.l.s4 1966171168
    %v3849 = vunpack.c.0.s8 %v3848
    %v3850 = vlaneseq
    %v3851 = vshrl.u32 %v3850, 7
    %v3852 = vsub.s32 %v3849, %v3851
    %v3853 = vrot.slane %v3832, %v3852
    %v3854 = vcombine.high %v3839, %v3839
    %v3855 = vcombine.high %v3853, %v3853
    %v3856 = vcombine.high %v3760, %v3760
    %v3858 = vunpack.c.l.s4 1966171168
    %v3859 = vunpack.c.0.s8 %v3858
    %v3860 = vlaneseq
    %v3861 = vshrl.u32 %v3860, 7
    %v3862 = vsub.s32 %v3859, %v3861
    %v3863 = vrot.slane %v3760, %v3862
    %v3865 = vunpack.c.l.s4 1966171168
    %v3866 = vunpack.c.0.s8 %v3865
    %v3867 = vlaneseq
    %v3868 = vshrl.u32 %v3867, 7
    %v3869 = vsub.s32 %v3866, %v3868
    %v3870 = vrot.slane %v3856, %v3869
    %v3871 = vcombine.high %v3863, %v3863
    %v3873 = vunpack.c.l.s4 1966171168
    %v3874 = vunpack.c.0.s8 %v3873
    %v3875 = vlaneseq
    %v3876 = vshrl.u32 %v3875, 7
    %v3877 = vsub.s32 %v3874, %v3876
    %v3878 = vrot.slane %v3863, %v3877
    %v3880 = vunpack.c.l.s4 1966171168
    %v3881 = vunpack.c.0.s8 %v3880
    %v3882 = vlaneseq
    %v3883 = vshrl.u32 %v3882, 7
    %v3884 = vsub.s32 %v3881, %v3883
    %v3885 = vrot.slane %v3870, %v3884
    %v3887 = vunpack.c.l.s4 1966171168
    %v3888 = vunpack.c.0.s8 %v3887
    %v3889 = vlaneseq
    %v3890 = vshrl.u32 %v3889, 7
    %v3891 = vsub.s32 %v3888, %v3890
    %v3892 = vrot.slane %v3871, %v3891
    %v3893 = vcombine.high %v3878, %v3878
    %v3894 = vcombine.high %v3892, %v3892
    %v3895 = vcombine.high %v3764, %v3764
    %v3897 = vunpack.c.l.s4 1966171168
    %v3898 = vunpack.c.0.s8 %v3897
    %v3899 = vlaneseq
    %v3900 = vshrl.u32 %v3899, 7
    %v3901 = vsub.s32 %v3898, %v3900
    %v3902 = vrot.slane %v3764, %v3901
    %v3904 = vunpack.c.l.s4 1966171168
    %v3905 = vunpack.c.0.s8 %v3904
    %v3906 = vlaneseq
    %v3907 = vshrl.u32 %v3906, 7
    %v3908 = vsub.s32 %v3905, %v3907
    %v3909 = vrot.slane %v3895, %v3908
    %v3910 = vcombine.high %v3902, %v3902
    %v3912 = vunpack.c.l.s4 1966171168
    %v3913 = vunpack.c.0.s8 %v3912
    %v3914 = vlaneseq
    %v3915 = vshrl.u32 %v3914, 7
    %v3916 = vsub.s32 %v3913, %v3915
    %v3917 = vrot.slane %v3902, %v3916
    %v3919 = vunpack.c.l.s4 1966171168
    %v3920 = vunpack.c.0.s8 %v3919
    %v3921 = vlaneseq
    %v3922 = vshrl.u32 %v3921, 7
    %v3923 = vsub.s32 %v3920, %v3922
    %v3924 = vrot.slane %v3909, %v3923
    %v3926 = vunpack.c.l.s4 1966171168
    %v3927 = vunpack.c.0.s8 %v3926
    %v3928 = vlaneseq
    %v3929 = vshrl.u32 %v3928, 7
    %v3930 = vsub.s32 %v3927, %v3929
    %v3931 = vrot.slane %v3910, %v3930
    %v3932 = vcombine.high %v3917, %v3917
    %v3933 = vcombine.high %v3931, %v3931
    %v3934 = vcombine.high %v3768, %v3768
    %v3936 = vunpack.c.l.s4 1966171168
    %v3937 = vunpack.c.0.s8 %v3936
    %v3938 = vlaneseq
    %v3939 = vshrl.u32 %v3938, 7
    %v3940 = vsub.s32 %v3937, %v3939
    %v3941 = vrot.slane %v3768, %v3940
    %v3943 = vunpack.c.l.s4 1966171168
    %v3944 = vunpack.c.0.s8 %v3943
    %v3945 = vlaneseq
    %v3946 = vshrl.u32 %v3945, 7
    %v3947 = vsub.s32 %v3944, %v3946
    %v3948 = vrot.slane %v3934, %v3947
    %v3949 = vcombine.high %v3941, %v3941
    %v3951 = vunpack.c.l.s4 1966171168
    %v3952 = vunpack.c.0.s8 %v3951
    %v3953 = vlaneseq
    %v3954 = vshrl.u32 %v3953, 7
    %v3955 = vsub.s32 %v3952, %v3954
    %v3956 = vrot.slane %v3941, %v3955
    %v3958 = vunpack.c.l.s4 1966171168
    %v3959 = vunpack.c.0.s8 %v3958
    %v3960 = vlaneseq
    %v3961 = vshrl.u32 %v3960, 7
    %v3962 = vsub.s32 %v3959, %v3961
    %v3963 = vrot.slane %v3948, %v3962
    %v3965 = vunpack.c.l.s4 1966171168
    %v3966 = vunpack.c.0.s8 %v3965
    %v3967 = vlaneseq
    %v3968 = vshrl.u32 %v3967, 7
    %v3969 = vsub.s32 %v3966, %v3968
    %v3970 = vrot.slane %v3949, %v3969
    %v3971 = vcombine.high %v3956, %v3956
    %v3972 = vcombine.high %v3970, %v3970
    %v3973 = vcombine.high %v3772, %v3772
    %v3975 = vunpack.c.l.s4 1966171168
    %v3976 = vunpack.c.0.s8 %v3975
    %v3977 = vlaneseq
    %v3978 = vshrl.u32 %v3977, 7
    %v3979 = vsub.s32 %v3976, %v3978
    %v3980 = vrot.slane %v3772, %v3979
    %v3982 = vunpack.c.l.s4 1966171168
    %v3983 = vunpack.c.0.s8 %v3982
    %v3984 = vlaneseq
    %v3985 = vshrl.u32 %v3984, 7
    %v3986 = vsub.s32 %v3983, %v3985
    %v3987 = vrot.slane %v3973, %v3986
    %v3988 = vcombine.high %v3980, %v3980
    %v3990 = vunpack.c.l.s4 1966171168
    %v3991 = vunpack.c.0.s8 %v3990
    %v3992 = vlaneseq
    %v3993 = vshrl.u32 %v3992, 7
    %v3994 = vsub.s32 %v3991, %v3993
    %v3995 = vrot.slane %v3980, %v3994
    %v3997 = vunpack.c.l.s4 1966171168
    %v3998 = vunpack.c.0.s8 %v3997
    %v3999 = vlaneseq
    %v4000 = vshrl.u32 %v3999, 7
    %v4001 = vsub.s32 %v3998, %v4000
    %v4002 = vrot.slane %v3987, %v4001
    %v4004 = vunpack.c.l.s4 1966171168
    %v4005 = vunpack.c.0.s8 %v4004
    %v4006 = vlaneseq
    %v4007 = vshrl.u32 %v4006, 7
    %v4008 = vsub.s32 %v4005, %v4007
    %v4009 = vrot.slane %v3988, %v4008
    %v4010 = vcombine.high %v3995, %v3995
    %v4011 = vcombine.high %v4009, %v4009
    %v4012 = vcombine.high %v3776, %v3776
    %v4014 = vunpack.c.l.s4 1966171168
    %v4015 = vunpack.c.0.s8 %v4014
    %v4016 = vlaneseq
    %v4017 = vshrl.u32 %v4016, 7
    %v4018 = vsub.s32 %v4015, %v4017
    %v4019 = vrot.slane %v3776, %v4018
    %v4021 = vunpack.c.l.s4 1966171168
    %v4022 = vunpack.c.0.s8 %v4021
    %v4023 = vlaneseq
    %v4024 = vshrl.u32 %v4023, 7
    %v4025 = vsub.s32 %v4022, %v4024
    %v4026 = vrot.slane %v4012, %v4025
    %v4027 = vcombine.high %v4019, %v4019
    %v4029 = vunpack.c.l.s4 1966171168
    %v4030 = vunpack.c.0.s8 %v4029
    %v4031 = vlaneseq
    %v4032 = vshrl.u32 %v4031, 7
    %v4033 = vsub.s32 %v4030, %v4032
    %v4034 = vrot.slane %v4019, %v4033
    %v4036 = vunpack.c.l.s4 1966171168
    %v4037 = vunpack.c.0.s8 %v4036
    %v4038 = vlaneseq
    %v4039 = vshrl.u32 %v4038, 7
    %v4040 = vsub.s32 %v4037, %v4039
    %v4041 = vrot.slane %v4026, %v4040
    %v4043 = vunpack.c.l.s4 1966171168
    %v4044 = vunpack.c.0.s8 %v4043
    %v4045 = vlaneseq
    %v4046 = vshrl.u32 %v4045, 7
    %v4047 = vsub.s32 %v4044, %v4046
    %v4048 = vrot.slane %v4027, %v4047
    %v4049 = vcombine.high %v4034, %v4034
    %v4050 = vcombine.high %v4048, %v4048
    %v4051 = vcombine.high %v3780, %v3780
    %v4053 = vunpack.c.l.s4 1966171168
    %v4054 = vunpack.c.0.s8 %v4053
    %v4055 = vlaneseq
    %v4056 = vshrl.u32 %v4055, 7
    %v4057 = vsub.s32 %v4054, %v4056
    %v4058 = vrot.slane %v3780, %v4057
    %v4060 = vunpack.c.l.s4 1966171168
    %v4061 = vunpack.c.0.s8 %v4060
    %v4062 = vlaneseq
    %v4063 = vshrl.u32 %v4062, 7
    %v4064 = vsub.s32 %v4061, %v4063
    %v4065 = vrot.slane %v4051, %v4064
    %v4066 = vcombine.high %v4058, %v4058
    %v4068 = vunpack.c.l.s4 1966171168
    %v4069 = vunpack.c.0.s8 %v4068
    %v4070 = vlaneseq
    %v4071 = vshrl.u32 %v4070, 7
    %v4072 = vsub.s32 %v4069, %v4071
    %v4073 = vrot.slane %v4058, %v4072
    %v4075 = vunpack.c.l.s4 1966171168
    %v4076 = vunpack.c.0.s8 %v4075
    %v4077 = vlaneseq
    %v4078 = vshrl.u32 %v4077, 7
    %v4079 = vsub.s32 %v4076, %v4078
    %v4080 = vrot.slane %v4065, %v4079
    %v4082 = vunpack.c.l.s4 1966171168
    %v4083 = vunpack.c.0.s8 %v4082
    %v4084 = vlaneseq
    %v4085 = vshrl.u32 %v4084, 7
    %v4086 = vsub.s32 %v4083, %v4085
    %v4087 = vrot.slane %v4066, %v4086
    %v4088 = vcombine.high %v4073, %v4073
    %v4089 = vcombine.high %v4087, %v4087
    %v4090 = vcombine.high %v3784, %v3784
    %v4092 = vunpack.c.l.s4 1966171168
    %v4093 = vunpack.c.0.s8 %v4092
    %v4094 = vlaneseq
    %v4095 = vshrl.u32 %v4094, 7
    %v4096 = vsub.s32 %v4093, %v4095
    %v4097 = vrot.slane %v3784, %v4096
    %v4099 = vunpack.c.l.s4 1966171168
    %v4100 = vunpack.c.0.s8 %v4099
    %v4101 = vlaneseq
    %v4102 = vshrl.u32 %v4101, 7
    %v4103 = vsub.s32 %v4100, %v4102
    %v4104 = vrot.slane %v4090, %v4103
    %v4105 = vcombine.high %v4097, %v4097
    %v4107 = vunpack.c.l.s4 1966171168
    %v4108 = vunpack.c.0.s8 %v4107
    %v4109 = vlaneseq
    %v4110 = vshrl.u32 %v4109, 7
    %v4111 = vsub.s32 %v4108, %v4110
    %v4112 = vrot.slane %v4097, %v4111
    %v4114 = vunpack.c.l.s4 1966171168
    %v4115 = vunpack.c.0.s8 %v4114
    %v4116 = vlaneseq
    %v4117 = vshrl.u32 %v4116, 7
    %v4118 = vsub.s32 %v4115, %v4117
    %v4119 = vrot.slane %v4104, %v4118
    %v4121 = vunpack.c.l.s4 1966171168
    %v4122 = vunpack.c.0.s8 %v4121
    %v4123 = vlaneseq
    %v4124 = vshrl.u32 %v4123, 7
    %v4125 = vsub.s32 %v4122, %v4124
    %v4126 = vrot.slane %v4105, %v4125
    %v4127 = vcombine.high %v4112, %v4112
    %v4128 = vcombine.high %v4126, %v4126
    %v4129 = vcombine.high %v3788, %v3788
    %v4131 = vunpack.c.l.s4 1966171168
    %v4132 = vunpack.c.0.s8 %v4131
    %v4133 = vlaneseq
    %v4134 = vshrl.u32 %v4133, 7
    %v4135 = vsub.s32 %v4132, %v4134
    %v4136 = vrot.slane %v3788, %v4135
    %v4138 = vunpack.c.l.s4 1966171168
    %v4139 = vunpack.c.0.s8 %v4138
    %v4140 = vlaneseq
    %v4141 = vshrl.u32 %v4140, 7
    %v4142 = vsub.s32 %v4139, %v4141
    %v4143 = vrot.slane %v4129, %v4142
    %v4144 = vcombine.high %v4136, %v4136
    %v4146 = vunpack.c.l.s4 1966171168
    %v4147 = vunpack.c.0.s8 %v4146
    %v4148 = vlaneseq
    %v4149 = vshrl.u32 %v4148, 7
    %v4150 = vsub.s32 %v4147, %v4149
    %v4151 = vrot.slane %v4136, %v4150
    %v4153 = vunpack.c.l.s4 1966171168
    %v4154 = vunpack.c.0.s8 %v4153
    %v4155 = vlaneseq
    %v4156 = vshrl.u32 %v4155, 7
    %v4157 = vsub.s32 %v4154, %v4156
    %v4158 = vrot.slane %v4143, %v4157
    %v4160 = vunpack.c.l.s4 1966171168
    %v4161 = vunpack.c.0.s8 %v4160
    %v4162 = vlaneseq
    %v4163 = vshrl.u32 %v4162, 7
    %v4164 = vsub.s32 %v4161, %v4163
    %v4165 = vrot.slane %v4144, %v4164
    %v4166 = vcombine.high %v4151, %v4151
    %v4167 = vcombine.high %v4165, %v4165
    %v4168 = vcombine.high %v3792, %v3792
    %v4170 = vunpack.c.l.s4 1966171168
    %v4171 = vunpack.c.0.s8 %v4170
    %v4172 = vlaneseq
    %v4173 = vshrl.u32 %v4172, 7
    %v4174 = vsub.s32 %v4171, %v4173
    %v4175 = vrot.slane %v3792, %v4174
    %v4177 = vunpack.c.l.s4 1966171168
    %v4178 = vunpack.c.0.s8 %v4177
    %v4179 = vlaneseq
    %v4180 = vshrl.u32 %v4179, 7
    %v4181 = vsub.s32 %v4178, %v4180
    %v4182 = vrot.slane %v4168, %v4181
    %v4183 = vcombine.high %v4175, %v4175
    %v4185 = vunpack.c.l.s4 1966171168
    %v4186 = vunpack.c.0.s8 %v4185
    %v4187 = vlaneseq
    %v4188 = vshrl.u32 %v4187, 7
    %v4189 = vsub.s32 %v4186, %v4188
    %v4190 = vrot.slane %v4175, %v4189
    %v4192 = vunpack.c.l.s4 1966171168
    %v4193 = vunpack.c.0.s8 %v4192
    %v4194 = vlaneseq
    %v4195 = vshrl.u32 %v4194, 7
    %v4196 = vsub.s32 %v4193, %v4195
    %v4197 = vrot.slane %v4182, %v4196
    %v4199 = vunpack.c.l.s4 1966171168
    %v4200 = vunpack.c.0.s8 %v4199
    %v4201 = vlaneseq
    %v4202 = vshrl.u32 %v4201, 7
    %v4203 = vsub.s32 %v4200, %v4202
    %v4204 = vrot.slane %v4183, %v4203
    %v4205 = vcombine.high %v4190, %v4190
    %v4206 = vcombine.high %v4204, %v4204
    %v4207 = vcombine.high %v3796, %v3796
    %v4209 = vunpack.c.l.s4 1966171168
    %v4210 = vunpack.c.0.s8 %v4209
    %v4211 = vlaneseq
    %v4212 = vshrl.u32 %v4211, 7
    %v4213 = vsub.s32 %v4210, %v4212
    %v4214 = vrot.slane %v3796, %v4213
    %v4216 = vunpack.c.l.s4 1966171168
    %v4217 = vunpack.c.0.s8 %v4216
    %v4218 = vlaneseq
    %v4219 = vshrl.u32 %v4218, 7
    %v4220 = vsub.s32 %v4217, %v4219
    %v4221 = vrot.slane %v4207, %v4220
    %v4222 = vcombine.high %v4214, %v4214
    %v4224 = vunpack.c.l.s4 1966171168
    %v4225 = vunpack.c.0.s8 %v4224
    %v4226 = vlaneseq
    %v4227 = vshrl.u32 %v4226, 7
    %v4228 = vsub.s32 %v4225, %v4227
    %v4229 = vrot.slane %v4214, %v4228
    %v4231 = vunpack.c.l.s4 1966171168
    %v4232 = vunpack.c.0.s8 %v4231
    %v4233 = vlaneseq
    %v4234 = vshrl.u32 %v4233, 7
    %v4235 = vsub.s32 %v4232, %v4234
    %v4236 = vrot.slane %v4221, %v4235
    %v4238 = vunpack.c.l.s4 1966171168
    %v4239 = vunpack.c.0.s8 %v4238
    %v4240 = vlaneseq
    %v4241 = vshrl.u32 %v4240, 7
    %v4242 = vsub.s32 %v4239, %v4241
    %v4243 = vrot.slane %v4222, %v4242
    %v4244 = vcombine.high %v4229, %v4229
    %v4245 = vcombine.high %v4243, %v4243
    %v4246 = vcombine.high %v3800, %v3800
    %v4248 = vunpack.c.l.s4 1966171168
    %v4249 = vunpack.c.0.s8 %v4248
    %v4250 = vlaneseq
    %v4251 = vshrl.u32 %v4250, 7
    %v4252 = vsub.s32 %v4249, %v4251
    %v4253 = vrot.slane %v3800, %v4252
    %v4255 = vunpack.c.l.s4 1966171168
    %v4256 = vunpack.c.0.s8 %v4255
    %v4257 = vlaneseq
    %v4258 = vshrl.u32 %v4257, 7
    %v4259 = vsub.s32 %v4256, %v4258
    %v4260 = vrot.slane %v4246, %v4259
    %v4261 = vcombine.high %v4253, %v4253
    %v4263 = vunpack.c.l.s4 1966171168
    %v4264 = vunpack.c.0.s8 %v4263
    %v4265 = vlaneseq
    %v4266 = vshrl.u32 %v4265, 7
    %v4267 = vsub.s32 %v4264, %v4266
    %v4268 = vrot.slane %v4253, %v4267
    %v4270 = vunpack.c.l.s4 1966171168
    %v4271 = vunpack.c.0.s8 %v4270
    %v4272 = vlaneseq
    %v4273 = vshrl.u32 %v4272, 7
    %v4274 = vsub.s32 %v4271, %v4273
    %v4275 = vrot.slane %v4260, %v4274
    %v4277 = vunpack.c.l.s4 1966171168
    %v4278 = vunpack.c.0.s8 %v4277
    %v4279 = vlaneseq
    %v4280 = vshrl.u32 %v4279, 7
    %v4281 = vsub.s32 %v4278, %v4280
    %v4282 = vrot.slane %v4261, %v4281
    %v4283 = vcombine.high %v4268, %v4268
    %v4284 = vcombine.high %v4282, %v4282
    %v4285 = vcombine.high %v3804, %v3804
    %v4287 = vunpack.c.l.s4 1966171168
    %v4288 = vunpack.c.0.s8 %v4287
    %v4289 = vlaneseq
    %v4290 = vshrl.u32 %v4289, 7
    %v4291 = vsub.s32 %v4288, %v4290
    %v4292 = vrot.slane %v3804, %v4291
    %v4294 = vunpack.c.l.s4 1966171168
    %v4295 = vunpack.c.0.s8 %v4294
    %v4296 = vlaneseq
    %v4297 = vshrl.u32 %v4296, 7
    %v4298 = vsub.s32 %v4295, %v4297
    %v4299 = vrot.slane %v4285, %v4298
    %v4300 = vcombine.high %v4292, %v4292
    %v4302 = vunpack.c.l.s4 1966171168
    %v4303 = vunpack.c.0.s8 %v4302
    %v4304 = vlaneseq
    %v4305 = vshrl.u32 %v4304, 7
    %v4306 = vsub.s32 %v4303, %v4305
    %v4307 = vrot.slane %v4292, %v4306
    %v4309 = vunpack.c.l.s4 1966171168
    %v4310 = vunpack.c.0.s8 %v4309
    %v4311 = vlaneseq
    %v4312 = vshrl.u32 %v4311, 7
    %v4313 = vsub.s32 %v4310, %v4312
    %v4314 = vrot.slane %v4299, %v4313
    %v4316 = vunpack.c.l.s4 1966171168
    %v4317 = vunpack.c.0.s8 %v4316
    %v4318 = vlaneseq
    %v4319 = vshrl.u32 %v4318, 7
    %v4320 = vsub.s32 %v4317, %v4319
    %v4321 = vrot.slane %v4300, %v4320
    %v4322 = vcombine.high %v4307, %v4307
    %v4323 = vcombine.high %v4321, %v4321
    %v4324 = vcombine.high %v3808, %v3808
    %v4326 = vunpack.c.l.s4 1966171168
    %v4327 = vunpack.c.0.s8 %v4326
    %v4328 = vlaneseq
    %v4329 = vshrl.u32 %v4328, 7
    %v4330 = vsub.s32 %v4327, %v4329
    %v4331 = vrot.slane %v3808, %v4330
    %v4333 = vunpack.c.l.s4 1966171168
    %v4334 = vunpack.c.0.s8 %v4333
    %v4335 = vlaneseq
    %v4336 = vshrl.u32 %v4335, 7
    %v4337 = vsub.s32 %v4334, %v4336
    %v4338 = vrot.slane %v4324, %v4337
    %v4339 = vcombine.high %v4331, %v4331
    %v4341 = vunpack.c.l.s4 1966171168
    %v4342 = vunpack.c.0.s8 %v4341
    %v4343 = vlaneseq
    %v4344 = vshrl.u32 %v4343, 7
    %v4345 = vsub.s32 %v4342, %v4344
    %v4346 = vrot.slane %v4331, %v4345
    %v4348 = vunpack.c.l.s4 1966171168
    %v4349 = vunpack.c.0.s8 %v4348
    %v4350 = vlaneseq
    %v4351 = vshrl.u32 %v4350, 7
    %v4352 = vsub.s32 %v4349, %v4351
    %v4353 = vrot.slane %v4338, %v4352
    %v4355 = vunpack.c.l.s4 1966171168
    %v4356 = vunpack.c.0.s8 %v4355
    %v4357 = vlaneseq
    %v4358 = vshrl.u32 %v4357, 7
    %v4359 = vsub.s32 %v4356, %v4358
    %v4360 = vrot.slane %v4339, %v4359
    %v4361 = vcombine.high %v4346, %v4346
    %v4362 = vcombine.high %v4360, %v4360
    %v4363 = vcombine.high %v3812, %v3812
    %v4365 = vunpack.c.l.s4 1966171168
    %v4366 = vunpack.c.0.s8 %v4365
    %v4367 = vlaneseq
    %v4368 = vshrl.u32 %v4367, 7
    %v4369 = vsub.s32 %v4366, %v4368
    %v4370 = vrot.slane %v3812, %v4369
    %v4372 = vunpack.c.l.s4 1966171168
    %v4373 = vunpack.c.0.s8 %v4372
    %v4374 = vlaneseq
    %v4375 = vshrl.u32 %v4374, 7
    %v4376 = vsub.s32 %v4373, %v4375
    %v4377 = vrot.slane %v4363, %v4376
    %v4378 = vcombine.high %v4370, %v4370
    %v4380 = vunpack.c.l.s4 1966171168
    %v4381 = vunpack.c.0.s8 %v4380
    %v4382 = vlaneseq
    %v4383 = vshrl.u32 %v4382, 7
    %v4384 = vsub.s32 %v4381, %v4383
    %v4385 = vrot.slane %v4370, %v4384
    %v4387 = vunpack.c.l.s4 1966171168
    %v4388 = vunpack.c.0.s8 %v4387
    %v4389 = vlaneseq
    %v4390 = vshrl.u32 %v4389, 7
    %v4391 = vsub.s32 %v4388, %v4390
    %v4392 = vrot.slane %v4377, %v4391
    %v4394 = vunpack.c.l.s4 1966171168
    %v4395 = vunpack.c.0.s8 %v4394
    %v4396 = vlaneseq
    %v4397 = vshrl.u32 %v4396, 7
    %v4398 = vsub.s32 %v4395, %v4397
    %v4399 = vrot.slane %v4378, %v4398
    %v4400 = vcombine.high %v4385, %v4385
    %v4401 = vcombine.high %v4399, %v4399
    %v4402 = vcombine.high %v3816, %v3816
    %v4404 = vunpack.c.l.s4 1966171168
    %v4405 = vunpack.c.0.s8 %v4404
    %v4406 = vlaneseq
    %v4407 = vshrl.u32 %v4406, 7
    %v4408 = vsub.s32 %v4405, %v4407
    %v4409 = vrot.slane %v3816, %v4408
    %v4411 = vunpack.c.l.s4 1966171168
    %v4412 = vunpack.c.0.s8 %v4411
    %v4413 = vlaneseq
    %v4414 = vshrl.u32 %v4413, 7
    %v4415 = vsub.s32 %v4412, %v4414
    %v4416 = vrot.slane %v4402, %v4415
    %v4417 = vcombine.high %v4409, %v4409
    %v4419 = vunpack.c.l.s4 1966171168
    %v4420 = vunpack.c.0.s8 %v4419
    %v4421 = vlaneseq
    %v4422 = vshrl.u32 %v4421, 7
    %v4423 = vsub.s32 %v4420, %v4422
    %v4424 = vrot.slane %v4409, %v4423
    %v4426 = vunpack.c.l.s4 1966171168
    %v4427 = vunpack.c.0.s8 %v4426
    %v4428 = vlaneseq
    %v4429 = vshrl.u32 %v4428, 7
    %v4430 = vsub.s32 %v4427, %v4429
    %v4431 = vrot.slane %v4416, %v4430
    %v4433 = vunpack.c.l.s4 1966171168
    %v4434 = vunpack.c.0.s8 %v4433
    %v4435 = vlaneseq
    %v4436 = vshrl.u32 %v4435, 7
    %v4437 = vsub.s32 %v4434, %v4436
    %v4438 = vrot.slane %v4417, %v4437
    %v4439 = vcombine.high %v4424, %v4424
    %v4440 = vcombine.high %v4438, %v4438
    %v4521 = vadd.f32 %v3106, %v3839
    %v4522 = vadd.f32 %v3120, %v3853
    %v4523 = vadd.f32 %v3128, %v3854
    %v4524 = vadd.f32 %v3130, %v3855
    %v4525 = vadd.f32 %v3113, %v3846
    %v4526 = vadd.f32 %v3127, %v3878
    %v4527 = vadd.f32 %v3129, %v3892
    %v4528 = vadd.f32 %v3131, %v3893
    %v4529 = vadd.f32 %v3155, %v3894
    %v4530 = vadd.f32 %v3169, %v3885
    %v4531 = vadd.f32 %v3177, %v3917
    %v4532 = vadd.f32 %v3179, %v3931
    %v4533 = vadd.f32 %v3162, %v3932
    %v4534 = vadd.f32 %v3176, %v3933
    %v4535 = vadd.f32 %v3178, %v3924
    %v4536 = vadd.f32 %v3180, %v3956
    %v4537 = vadd.f32 %v3204, %v3970
    %v4538 = vadd.f32 %v3218, %v3971
    %v4539 = vadd.f32 %v3226, %v3972
    %v4540 = vadd.f32 %v3228, %v3963
    %v4541 = vadd.f32 %v3211, %v3995
    %v4542 = vadd.f32 %v3225, %v4009
    %v4543 = vadd.f32 %v3227, %v4010
    %v4544 = vadd.f32 %v3229, %v4011
    %v4545 = vadd.f32 %v3253, %v4002
    %v4546 = vadd.f32 %v3267, %v4034
    %v4547 = vadd.f32 %v3275, %v4048
    %v4548 = vadd.f32 %v3277, %v4049
    %v4549 = vadd.f32 %v3260, %v4050
    %v4550 = vadd.f32 %v3274, %v4041
    %v4551 = vadd.f32 %v3276, %v4073
    %v4552 = vadd.f32 %v3278, %v4087
    %v4553 = vadd.f32 %v3302, %v4088
    %v4554 = vadd.f32 %v3316, %v4089
    %v4555 = vadd.f32 %v3324, %v4080
    %v4556 = vadd.f32 %v3326, %v4112
    %v4557 = vadd.f32 %v3309, %v4126
    %v4558 = vadd.f32 %v3323, %v4127
    %v4559 = vadd.f32 %v3325, %v4128
    %v4560 = vadd.f32 %v3327, %v4119
    %v4561 = vadd.f32 %v3351, %v4151
    %v4562 = vadd.f32 %v3365, %v4165
    %v4563 = vadd.f32 %v3373, %v4166
    %v4564 = vadd.f32 %v3375, %v4167
    %v4565 = vadd.f32 %v3358, %v4158
    %v4566 = vadd.f32 %v3372, %v4190
    %v4567 = vadd.f32 %v3374, %v4204
    %v4568 = vadd.f32 %v3376, %v4205
    %v4569 = vadd.f32 %v3400, %v4206
    %v4570 = vadd.f32 %v3414, %v4197
    %v4571 = vadd.f32 %v3422, %v4229
    %v4572 = vadd.f32 %v3424, %v4243
    %v4573 = vadd.f32 %v3407, %v4244
    %v4574 = vadd.f32 %v3421, %v4245
    %v4575 = vadd.f32 %v3423, %v4236
    %v4576 = vadd.f32 %v3425, %v4268
    %v4577 = vadd.f32 %v3449, %v4282
    %v4578 = vadd.f32 %v3463, %v4283
    %v4579 = vadd.f32 %v3471, %v4284
    %v4580 = vadd.f32 %v3473, %v4275
    %v4581 = vadd.f32 %v3456, %v4307
    %v4582 = vadd.f32 %v3470, %v4321
    %v4583 = vadd.f32 %v3472, %v4322
    %v4584 = vadd.f32 %v3474, %v4323
    %v4585 = vadd.f32 %v3498, %v4314
    %v4586 = vadd.f32 %v3512, %v4346
    %v4587 = vadd.f32 %v3520, %v4360
    %v4588 = vadd.f32 %v3522, %v4361
    %v4589 = vadd.f32 %v3505, %v4362
    %v4590 = vadd.f32 %v3519, %v4353
    %v4591 = vadd.f32 %v3521, %v4385
    %v4592 = vadd.f32 %v3523, %v4399
    %v4593 = vadd.f32 %v3547, %v4400
    %v4594 = vadd.f32 %v3561, %v4401
    %v4595 = vadd.f32 %v3569, %v4392
    %v4596 = vadd.f32 %v3571, %v4424
    %v4597 = vadd.f32 %v3554, %v4438
    %v4598 = vadd.f32 %v3568, %v4439
    %v4599 = vadd.f32 %v3570, %v4440
    %v4600 = vadd.f32 %v3572, %v4431
    %v4601 = vmax.f32 %v4521, 0.0
    %v4602 = vmax.f32 %v4522, 0.0
    %v4603 = vmax.f32 %v4523, 0.0
    %v4604 = vmax.f32 %v4524, 0.0
    %v4605 = vmax.f32 %v4525, 0.0
    %v4606 = vmax.f32 %v4526, 0.0
    %v4607 = vmax.f32 %v4527, 0.0
    %v4608 = vmax.f32 %v4528, 0.0
    %v4609 = vmax.f32 %v4529, 0.0
    %v4610 = vmax.f32 %v4530, 0.0
    %v4611 = vmax.f32 %v4531, 0.0
    %v4612 = vmax.f32 %v4532, 0.0
    %v4613 = vmax.f32 %v4533, 0.0
    %v4614 = vmax.f32 %v4534, 0.0
    %v4615 = vmax.f32 %v4535, 0.0
    %v4616 = vmax.f32 %v4536, 0.0
    %v4617 = vmax.f32 %v4537, 0.0
    %v4618 = vmax.f32 %v4538, 0.0
    %v4619 = vmax.f32 %v4539, 0.0
    %v4620 = vmax.f32 %v4540, 0.0
    %v4621 = vmax.f32 %v4541, 0.0
    %v4622 = vmax.f32 %v4542, 0.0
    %v4623 = vmax.f32 %v4543, 0.0
    %v4624 = vmax.f32 %v4544, 0.0
    %v4625 = vmax.f32 %v4545, 0.0
    %v4626 = vmax.f32 %v4546, 0.0
    %v4627 = vmax.f32 %v4547, 0.0
    %v4628 = vmax.f32 %v4548, 0.0
    %v4629 = vmax.f32 %v4549, 0.0
    %v4630 = vmax.f32 %v4550, 0.0
    %v4631 = vmax.f32 %v4551, 0.0
    %v4632 = vmax.f32 %v4552, 0.0
    %v4633 = vmax.f32 %v4553, 0.0
    %v4634 = vmax.f32 %v4554, 0.0
    %v4635 = vmax.f32 %v4555, 0.0
    %v4636 = vmax.f32 %v4556, 0.0
    %v4637 = vmax.f32 %v4557, 0.0
    %v4638 = vmax.f32 %v4558, 0.0
    %v4639 = vmax.f32 %v4559, 0.0
    %v4640 = vmax.f32 %v4560, 0.0
    %v4641 = vmax.f32 %v4561, 0.0
    %v4642 = vmax.f32 %v4562, 0.0
    %v4643 = vmax.f32 %v4563, 0.0
    %v4644 = vmax.f32 %v4564, 0.0
    %v4645 = vmax.f32 %v4565, 0.0
    %v4646 = vmax.f32 %v4566, 0.0
    %v4647 = vmax.f32 %v4567, 0.0
    %v4648 = vmax.f32 %v4568, 0.0
    %v4649 = vmax.f32 %v4569, 0.0
    %v4650 = vmax.f32 %v4570, 0.0
    %v4651 = vmax.f32 %v4571, 0.0
    %v4652 = vmax.f32 %v4572, 0.0
    %v4653 = vmax.f32 %v4573, 0.0
    %v4654 = vmax.f32 %v4574, 0.0
    %v4655 = vmax.f32 %v4575, 0.0
    %v4656 = vmax.f32 %v4576, 0.0
    %v4657 = vmax.f32 %v4577, 0.0
    %v4658 = vmax.f32 %v4578, 0.0
    %v4659 = vmax.f32 %v4579, 0.0
    %v4660 = vmax.f32 %v4580, 0.0
    %v4661 = vmax.f32 %v4581, 0.0
    %v4662 = vmax.f32 %v4582, 0.0
    %v4663 = vmax.f32 %v4583, 0.0
    %v4664 = vmax.f32 %v4584, 0.0
    %v4665 = vmax.f32 %v4585, 0.0
    %v4666 = vmax.f32 %v4586, 0.0
    %v4667 = vmax.f32 %v4587, 0.0
    %v4668 = vmax.f32 %v4588, 0.0
    %v4669 = vmax.f32 %v4589, 0.0
    %v4670 = vmax.f32 %v4590, 0.0
    %v4671 = vmax.f32 %v4591, 0.0
    %v4672 = vmax.f32 %v4592, 0.0
    %v4673 = vmax.f32 %v4593, 0.0
    %v4674 = vmax.f32 %v4594, 0.0
    %v4675 = vmax.f32 %v4595, 0.0
    %v4676 = vmax.f32 %v4596, 0.0
    %v4677 = vmax.f32 %v4597, 0.0
    %v4678 = vmax.f32 %v4598, 0.0
    %v4679 = vmax.f32 %v4599, 0.0
    %v4680 = vmax.f32 %v4600, 0.0
    %v4681 = vld [vmem:[#allocation21] sm:$0x1]
    %v4683 = vlaneseq
    %v4684 = vshrl.u32 %v4683, 7
    %v4685 = vsub.s32 0, %v4684
    %v4686 = vrot.slane %v4681, %v4685
    %v4687 = vcombine.high %v4686, %v4686
    %v4689 = vunpack.c.l.s4 1966171168
    %v4690 = vunpack.c.0.s8 %v4689
    %v4691 = vlaneseq
    %v4692 = vshrl.u32 %v4691, 7
    %v4693 = vsub.s32 %v4690, %v4692
    %v4694 = vrot.slane %v4686, %v4693
    %v4696 = vunpack.c.l.s4 1966171168
    %v4697 = vunpack.c.0.s8 %v4696
    %v4698 = vlaneseq
    %v4699 = vshrl.u32 %v4698, 7
    %v4700 = vsub.s32 %v4697, %v4699
    %v4701 = vrot.slane %v4687, %v4700
    %v4702 = vcombine.high %v4694, %v4694
    %v4704 = vunpack.c.l.s4 1966171168
    %v4705 = vunpack.c.0.s8 %v4704
    %v4706 = vlaneseq
    %v4707 = vshrl.u32 %v4706, 7
    %v4708 = vsub.s32 %v4705, %v4707
    %v4709 = vrot.slane %v4694, %v4708
    %v4711 = vunpack.c.l.s4 1966171168
    %v4712 = vunpack.c.0.s8 %v4711
    %v4713 = vlaneseq
    %v4714 = vshrl.u32 %v4713, 7
    %v4715 = vsub.s32 %v4712, %v4714
    %v4716 = vrot.slane %v4701, %v4715
    %v4718 = vunpack.c.l.s4 1966171168
    %v4719 = vunpack.c.0.s8 %v4718
    %v4720 = vlaneseq
    %v4721 = vshrl.u32 %v4720, 7
    %v4722 = vsub.s32 %v4719, %v4721
    %v4723 = vrot.slane %v4702, %v4722
    %v4724 = vcombine.high %v4709, %v4709
    %v4725 = vcombine.high %v4723, %v4723
    %v4731 = vmul.f32 %v4601, %v4709
    %v4732 = vmul.f32 %v4602, %v4723
    %v4733 = vmul.f32 %v4603, %v4724
    %v4734 = vmul.f32 %v4604, %v4725
    %v4735 = vmul.f32 %v4605, %v4716
    %v4736 = vmul.f32 %v4606, %v4709
    %v4737 = vmul.f32 %v4607, %v4723
    %v4738 = vmul.f32 %v4608, %v4724
    %v4739 = vmul.f32 %v4609, %v4725
    %v4740 = vmul.f32 %v4610, %v4716
    %v4741 = vmul.f32 %v4611, %v4709
    %v4742 = vmul.f32 %v4612, %v4723
    %v4743 = vmul.f32 %v4613, %v4724
    %v4744 = vmul.f32 %v4614, %v4725
    %v4745 = vmul.f32 %v4615, %v4716
    %v4746 = vmul.f32 %v4616, %v4709
    %v4747 = vmul.f32 %v4617, %v4723
    %v4748 = vmul.f32 %v4618, %v4724
    %v4749 = vmul.f32 %v4619, %v4725
    %v4750 = vmul.f32 %v4620, %v4716
    %v4751 = vmul.f32 %v4621, %v4709
    %v4752 = vmul.f32 %v4622, %v4723
    %v4753 = vmul.f32 %v4623, %v4724
    %v4754 = vmul.f32 %v4624, %v4725
    %v4755 = vmul.f32 %v4625, %v4716
    %v4756 = vmul.f32 %v4626, %v4709
    %v4757 = vmul.f32 %v4627, %v4723
    %v4758 = vmul.f32 %v4628, %v4724
    %v4759 = vmul.f32 %v4629, %v4725
    %v4760 = vmul.f32 %v4630, %v4716
    %v4761 = vmul.f32 %v4631, %v4709
    %v4762 = vmul.f32 %v4632, %v4723
    %v4763 = vmul.f32 %v4633, %v4724
    %v4764 = vmul.f32 %v4634, %v4725
    %v4765 = vmul.f32 %v4635, %v4716
    %v4766 = vmul.f32 %v4636, %v4709
    %v4767 = vmul.f32 %v4637, %v4723
    %v4768 = vmul.f32 %v4638, %v4724
    %v4769 = vmul.f32 %v4639, %v4725
    %v4770 = vmul.f32 %v4640, %v4716
    %v4771 = vmul.f32 %v4641, %v4709
    %v4772 = vmul.f32 %v4642, %v4723
    %v4773 = vmul.f32 %v4643, %v4724
    %v4774 = vmul.f32 %v4644, %v4725
    %v4775 = vmul.f32 %v4645, %v4716
    %v4776 = vmul.f32 %v4646, %v4709
    %v4777 = vmul.f32 %v4647, %v4723
    %v4778 = vmul.f32 %v4648, %v4724
    %v4779 = vmul.f32 %v4649, %v4725
    %v4780 = vmul.f32 %v4650, %v4716
    %v4781 = vmul.f32 %v4651, %v4709
    %v4782 = vmul.f32 %v4652, %v4723
    %v4783 = vmul.f32 %v4653, %v4724
    %v4784 = vmul.f32 %v4654, %v4725
    %v4785 = vmul.f32 %v4655, %v4716
    %v4786 = vmul.f32 %v4656, %v4709
    %v4787 = vmul.f32 %v4657, %v4723
    %v4788 = vmul.f32 %v4658, %v4724
    %v4789 = vmul.f32 %v4659, %v4725
    %v4790 = vmul.f32 %v4660, %v4716
    %v4791 = vmul.f32 %v4661, %v4709
    %v4792 = vmul.f32 %v4662, %v4723
    %v4793 = vmul.f32 %v4663, %v4724
    %v4794 = vmul.f32 %v4664, %v4725
    %v4795 = vmul.f32 %v4665, %v4716
    %v4796 = vmul.f32 %v4666, %v4709
    %v4797 = vmul.f32 %v4667, %v4723
    %v4798 = vmul.f32 %v4668, %v4724
    %v4799 = vmul.f32 %v4669, %v4725
    %v4800 = vmul.f32 %v4670, %v4716
    %v4801 = vmul.f32 %v4671, %v4709
    %v4802 = vmul.f32 %v4672, %v4723
    %v4803 = vmul.f32 %v4673, %v4724
    %v4804 = vmul.f32 %v4674, %v4725
    %v4805 = vmul.f32 %v4675, %v4716
    %v4806 = vmul.f32 %v4676, %v4709
    %v4807 = vmul.f32 %v4677, %v4723
    %v4808 = vmul.f32 %v4678, %v4724
    %v4809 = vmul.f32 %v4679, %v4725
    %v4810 = vmul.f32 %v4680, %v4716
    %v4891 = vcombine.low %v4731, %v4732
    %v4892 = vcombine.low %v4733, %v4734
    %v4894 = vunpack.c.l.s4 1966171168
    %v4895 = vunpack.c.0.s8 %v4894
    %v4896 = vlaneseq
    %v4897 = vshrl.u32 %v4896, 7
    %v4898 = vsub.s32 %v4895, %v4897
    %v4899 = vrot.slane %v4891, %v4898
    %v4901 = vunpack.c.l.s4 1966171168
    %v4902 = vunpack.c.0.s8 %v4901
    %v4903 = vlaneseq
    %v4904 = vshrl.u32 %v4903, 7
    %v4905 = vsub.s32 %v4902, %v4904
    %v4906 = vrot.slane %v4892, %v4905
    %v4908 = vunpack.c.l.s4 1966171168
    %v4909 = vunpack.c.0.s8 %v4908
    %v4910 = vlaneseq
    %v4911 = vshrl.u32 %v4910, 7
    %v4912 = vsub.s32 %v4909, %v4911
    %v4913 = vrot.slane %v4735, %v4912
    %v4914 = vcombine.low %v4899, %v4906
    %v4916 = vunpack.c.l.s4 1966171168
    %v4917 = vunpack.c.0.s8 %v4916
    %v4918 = vlaneseq
    %v4919 = vshrl.u32 %v4918, 7
    %v4920 = vsub.s32 %v4917, %v4919
    %v4921 = vrot.slane %v4914, %v4920
    %v4923 = vunpack.c.l.s4 1966171168
    %v4924 = vunpack.c.0.s8 %v4923
    %v4925 = vlaneseq
    %v4926 = vshrl.u32 %v4925, 7
    %v4927 = vsub.s32 %v4924, %v4926
    %v4928 = vrot.slane %v4913, %v4927
    %v4929 = vcombine.low %v4921, %v4928
    %v4930 = vcombine.low %v4736, %v4737
    %v4931 = vcombine.low %v4738, %v4739
    %v4933 = vunpack.c.l.s4 1966171168
    %v4934 = vunpack.c.0.s8 %v4933
    %v4935 = vlaneseq
    %v4936 = vshrl.u32 %v4935, 7
    %v4937 = vsub.s32 %v4934, %v4936
    %v4938 = vrot.slane %v4930, %v4937
    %v4940 = vunpack.c.l.s4 1966171168
    %v4941 = vunpack.c.0.s8 %v4940
    %v4942 = vlaneseq
    %v4943 = vshrl.u32 %v4942, 7
    %v4944 = vsub.s32 %v4941, %v4943
    %v4945 = vrot.slane %v4931, %v4944
    %v4947 = vunpack.c.l.s4 1966171168
    %v4948 = vunpack.c.0.s8 %v4947
    %v4949 = vlaneseq
    %v4950 = vshrl.u32 %v4949, 7
    %v4951 = vsub.s32 %v4948, %v4950
    %v4952 = vrot.slane %v4740, %v4951
    %v4953 = vcombine.low %v4938, %v4945
    %v4955 = vunpack.c.l.s4 1966171168
    %v4956 = vunpack.c.0.s8 %v4955
    %v4957 = vlaneseq
    %v4958 = vshrl.u32 %v4957, 7
    %v4959 = vsub.s32 %v4956, %v4958
    %v4960 = vrot.slane %v4953, %v4959
    %v4962 = vunpack.c.l.s4 1966171168
    %v4963 = vunpack.c.0.s8 %v4962
    %v4964 = vlaneseq
    %v4965 = vshrl.u32 %v4964, 7
    %v4966 = vsub.s32 %v4963, %v4965
    %v4967 = vrot.slane %v4952, %v4966
    %v4968 = vcombine.low %v4960, %v4967
    %v4969 = vcombine.low %v4741, %v4742
    %v4970 = vcombine.low %v4743, %v4744
    %v4972 = vunpack.c.l.s4 1966171168
    %v4973 = vunpack.c.0.s8 %v4972
    %v4974 = vlaneseq
    %v4975 = vshrl.u32 %v4974, 7
    %v4976 = vsub.s32 %v4973, %v4975
    %v4977 = vrot.slane %v4969, %v4976
    %v4979 = vunpack.c.l.s4 1966171168
    %v4980 = vunpack.c.0.s8 %v4979
    %v4981 = vlaneseq
    %v4982 = vshrl.u32 %v4981, 7
    %v4983 = vsub.s32 %v4980, %v4982
    %v4984 = vrot.slane %v4970, %v4983
    %v4986 = vunpack.c.l.s4 1966171168
    %v4987 = vunpack.c.0.s8 %v4986
    %v4988 = vlaneseq
    %v4989 = vshrl.u32 %v4988, 7
    %v4990 = vsub.s32 %v4987, %v4989
    %v4991 = vrot.slane %v4745, %v4990
    %v4992 = vcombine.low %v4977, %v4984
    %v4994 = vunpack.c.l.s4 1966171168
    %v4995 = vunpack.c.0.s8 %v4994
    %v4996 = vlaneseq
    %v4997 = vshrl.u32 %v4996, 7
    %v4998 = vsub.s32 %v4995, %v4997
    %v4999 = vrot.slane %v4992, %v4998
    %v5001 = vunpack.c.l.s4 1966171168
    %v5002 = vunpack.c.0.s8 %v5001
    %v5003 = vlaneseq
    %v5004 = vshrl.u32 %v5003, 7
    %v5005 = vsub.s32 %v5002, %v5004
    %v5006 = vrot.slane %v4991, %v5005
    %v5007 = vcombine.low %v4999, %v5006
    %v5008 = vcombine.low %v4746, %v4747
    %v5009 = vcombine.low %v4748, %v4749
    %v5011 = vunpack.c.l.s4 1966171168
    %v5012 = vunpack.c.0.s8 %v5011
    %v5013 = vlaneseq
    %v5014 = vshrl.u32 %v5013, 7
    %v5015 = vsub.s32 %v5012, %v5014
    %v5016 = vrot.slane %v5008, %v5015
    %v5018 = vunpack.c.l.s4 1966171168
    %v5019 = vunpack.c.0.s8 %v5018
    %v5020 = vlaneseq
    %v5021 = vshrl.u32 %v5020, 7
    %v5022 = vsub.s32 %v5019, %v5021
    %v5023 = vrot.slane %v5009, %v5022
    %v5025 = vunpack.c.l.s4 1966171168
    %v5026 = vunpack.c.0.s8 %v5025
    %v5027 = vlaneseq
    %v5028 = vshrl.u32 %v5027, 7
    %v5029 = vsub.s32 %v5026, %v5028
    %v5030 = vrot.slane %v4750, %v5029
    %v5031 = vcombine.low %v5016, %v5023
    %v5033 = vunpack.c.l.s4 1966171168
    %v5034 = vunpack.c.0.s8 %v5033
    %v5035 = vlaneseq
    %v5036 = vshrl.u32 %v5035, 7
    %v5037 = vsub.s32 %v5034, %v5036
    %v5038 = vrot.slane %v5031, %v5037
    %v5040 = vunpack.c.l.s4 1966171168
    %v5041 = vunpack.c.0.s8 %v5040
    %v5042 = vlaneseq
    %v5043 = vshrl.u32 %v5042, 7
    %v5044 = vsub.s32 %v5041, %v5043
    %v5045 = vrot.slane %v5030, %v5044
    %v5046 = vcombine.low %v5038, %v5045
    %v5047 = vcombine.low %v4751, %v4752
    %v5048 = vcombine.low %v4753, %v4754
    %v5050 = vunpack.c.l.s4 1966171168
    %v5051 = vunpack.c.0.s8 %v5050
    %v5052 = vlaneseq
    %v5053 = vshrl.u32 %v5052, 7
    %v5054 = vsub.s32 %v5051, %v5053
    %v5055 = vrot.slane %v5047, %v5054
    %v5057 = vunpack.c.l.s4 1966171168
    %v5058 = vunpack.c.0.s8 %v5057
    %v5059 = vlaneseq
    %v5060 = vshrl.u32 %v5059, 7
    %v5061 = vsub.s32 %v5058, %v5060
    %v5062 = vrot.slane %v5048, %v5061
    %v5064 = vunpack.c.l.s4 1966171168
    %v5065 = vunpack.c.0.s8 %v5064
    %v5066 = vlaneseq
    %v5067 = vshrl.u32 %v5066, 7
    %v5068 = vsub.s32 %v5065, %v5067
    %v5069 = vrot.slane %v4755, %v5068
    %v5070 = vcombine.low %v5055, %v5062
    %v5072 = vunpack.c.l.s4 1966171168
    %v5073 = vunpack.c.0.s8 %v5072
    %v5074 = vlaneseq
    %v5075 = vshrl.u32 %v5074, 7
    %v5076 = vsub.s32 %v5073, %v5075
    %v5077 = vrot.slane %v5070, %v5076
    %v5079 = vunpack.c.l.s4 1966171168
    %v5080 = vunpack.c.0.s8 %v5079
    %v5081 = vlaneseq
    %v5082 = vshrl.u32 %v5081, 7
    %v5083 = vsub.s32 %v5080, %v5082
    %v5084 = vrot.slane %v5069, %v5083
    %v5085 = vcombine.low %v5077, %v5084
    %v5086 = vcombine.low %v4756, %v4757
    %v5087 = vcombine.low %v4758, %v4759
    %v5089 = vunpack.c.l.s4 1966171168
    %v5090 = vunpack.c.0.s8 %v5089
    %v5091 = vlaneseq
    %v5092 = vshrl.u32 %v5091, 7
    %v5093 = vsub.s32 %v5090, %v5092
    %v5094 = vrot.slane %v5086, %v5093
    %v5096 = vunpack.c.l.s4 1966171168
    %v5097 = vunpack.c.0.s8 %v5096
    %v5098 = vlaneseq
    %v5099 = vshrl.u32 %v5098, 7
    %v5100 = vsub.s32 %v5097, %v5099
    %v5101 = vrot.slane %v5087, %v5100
    %v5103 = vunpack.c.l.s4 1966171168
    %v5104 = vunpack.c.0.s8 %v5103
    %v5105 = vlaneseq
    %v5106 = vshrl.u32 %v5105, 7
    %v5107 = vsub.s32 %v5104, %v5106
    %v5108 = vrot.slane %v4760, %v5107
    %v5109 = vcombine.low %v5094, %v5101
    %v5111 = vunpack.c.l.s4 1966171168
    %v5112 = vunpack.c.0.s8 %v5111
    %v5113 = vlaneseq
    %v5114 = vshrl.u32 %v5113, 7
    %v5115 = vsub.s32 %v5112, %v5114
    %v5116 = vrot.slane %v5109, %v5115
    %v5118 = vunpack.c.l.s4 1966171168
    %v5119 = vunpack.c.0.s8 %v5118
    %v5120 = vlaneseq
    %v5121 = vshrl.u32 %v5120, 7
    %v5122 = vsub.s32 %v5119, %v5121
    %v5123 = vrot.slane %v5108, %v5122
    %v5124 = vcombine.low %v5116, %v5123
    %v5125 = vcombine.low %v4761, %v4762
    %v5126 = vcombine.low %v4763, %v4764
    %v5128 = vunpack.c.l.s4 1966171168
    %v5129 = vunpack.c.0.s8 %v5128
    %v5130 = vlaneseq
    %v5131 = vshrl.u32 %v5130, 7
    %v5132 = vsub.s32 %v5129, %v5131
    %v5133 = vrot.slane %v5125, %v5132
    %v5135 = vunpack.c.l.s4 1966171168
    %v5136 = vunpack.c.0.s8 %v5135
    %v5137 = vlaneseq
    %v5138 = vshrl.u32 %v5137, 7
    %v5139 = vsub.s32 %v5136, %v5138
    %v5140 = vrot.slane %v5126, %v5139
    %v5142 = vunpack.c.l.s4 1966171168
    %v5143 = vunpack.c.0.s8 %v5142
    %v5144 = vlaneseq
    %v5145 = vshrl.u32 %v5144, 7
    %v5146 = vsub.s32 %v5143, %v5145
    %v5147 = vrot.slane %v4765, %v5146
    %v5148 = vcombine.low %v5133, %v5140
    %v5150 = vunpack.c.l.s4 1966171168
    %v5151 = vunpack.c.0.s8 %v5150
    %v5152 = vlaneseq
    %v5153 = vshrl.u32 %v5152, 7
    %v5154 = vsub.s32 %v5151, %v5153
    %v5155 = vrot.slane %v5148, %v5154
    %v5157 = vunpack.c.l.s4 1966171168
    %v5158 = vunpack.c.0.s8 %v5157
    %v5159 = vlaneseq
    %v5160 = vshrl.u32 %v5159, 7
    %v5161 = vsub.s32 %v5158, %v5160
    %v5162 = vrot.slane %v5147, %v5161
    %v5163 = vcombine.low %v5155, %v5162
    %v5164 = vcombine.low %v4766, %v4767
    %v5165 = vcombine.low %v4768, %v4769
    %v5167 = vunpack.c.l.s4 1966171168
    %v5168 = vunpack.c.0.s8 %v5167
    %v5169 = vlaneseq
    %v5170 = vshrl.u32 %v5169, 7
    %v5171 = vsub.s32 %v5168, %v5170
    %v5172 = vrot.slane %v5164, %v5171
    %v5174 = vunpack.c.l.s4 1966171168
    %v5175 = vunpack.c.0.s8 %v5174
    %v5176 = vlaneseq
    %v5177 = vshrl.u32 %v5176, 7
    %v5178 = vsub.s32 %v5175, %v5177
    %v5179 = vrot.slane %v5165, %v5178
    %v5181 = vunpack.c.l.s4 1966171168
    %v5182 = vunpack.c.0.s8 %v5181
    %v5183 = vlaneseq
    %v5184 = vshrl.u32 %v5183, 7
    %v5185 = vsub.s32 %v5182, %v5184
    %v5186 = vrot.slane %v4770, %v5185
    %v5187 = vcombine.low %v5172, %v5179
    %v5189 = vunpack.c.l.s4 1966171168
    %v5190 = vunpack.c.0.s8 %v5189
    %v5191 = vlaneseq
    %v5192 = vshrl.u32 %v5191, 7
    %v5193 = vsub.s32 %v5190, %v5192
    %v5194 = vrot.slane %v5187, %v5193
    %v5196 = vunpack.c.l.s4 1966171168
    %v5197 = vunpack.c.0.s8 %v5196
    %v5198 = vlaneseq
    %v5199 = vshrl.u32 %v5198, 7
    %v5200 = vsub.s32 %v5197, %v5199
    %v5201 = vrot.slane %v5186, %v5200
    %v5202 = vcombine.low %v5194, %v5201
    %v5203 = vcombine.low %v4771, %v4772
    %v5204 = vcombine.low %v4773, %v4774
    %v5206 = vunpack.c.l.s4 1966171168
    %v5207 = vunpack.c.0.s8 %v5206
    %v5208 = vlaneseq
    %v5209 = vshrl.u32 %v5208, 7
    %v5210 = vsub.s32 %v5207, %v5209
    %v5211 = vrot.slane %v5203, %v5210
    %v5213 = vunpack.c.l.s4 1966171168
    %v5214 = vunpack.c.0.s8 %v5213
    %v5215 = vlaneseq
    %v5216 = vshrl.u32 %v5215, 7
    %v5217 = vsub.s32 %v5214, %v5216
    %v5218 = vrot.slane %v5204, %v5217
    %v5220 = vunpack.c.l.s4 1966171168
    %v5221 = vunpack.c.0.s8 %v5220
    %v5222 = vlaneseq
    %v5223 = vshrl.u32 %v5222, 7
    %v5224 = vsub.s32 %v5221, %v5223
    %v5225 = vrot.slane %v4775, %v5224
    %v5226 = vcombine.low %v5211, %v5218
    %v5228 = vunpack.c.l.s4 1966171168
    %v5229 = vunpack.c.0.s8 %v5228
    %v5230 = vlaneseq
    %v5231 = vshrl.u32 %v5230, 7
    %v5232 = vsub.s32 %v5229, %v5231
    %v5233 = vrot.slane %v5226, %v5232
    %v5235 = vunpack.c.l.s4 1966171168
    %v5236 = vunpack.c.0.s8 %v5235
    %v5237 = vlaneseq
    %v5238 = vshrl.u32 %v5237, 7
    %v5239 = vsub.s32 %v5236, %v5238
    %v5240 = vrot.slane %v5225, %v5239
    %v5241 = vcombine.low %v5233, %v5240
    %v5242 = vcombine.low %v4776, %v4777
    %v5243 = vcombine.low %v4778, %v4779
    %v5245 = vunpack.c.l.s4 1966171168
    %v5246 = vunpack.c.0.s8 %v5245
    %v5247 = vlaneseq
    %v5248 = vshrl.u32 %v5247, 7
    %v5249 = vsub.s32 %v5246, %v5248
    %v5250 = vrot.slane %v5242, %v5249
    %v5252 = vunpack.c.l.s4 1966171168
    %v5253 = vunpack.c.0.s8 %v5252
    %v5254 = vlaneseq
    %v5255 = vshrl.u32 %v5254, 7
    %v5256 = vsub.s32 %v5253, %v5255
    %v5257 = vrot.slane %v5243, %v5256
    %v5259 = vunpack.c.l.s4 1966171168
    %v5260 = vunpack.c.0.s8 %v5259
    %v5261 = vlaneseq
    %v5262 = vshrl.u32 %v5261, 7
    %v5263 = vsub.s32 %v5260, %v5262
    %v5264 = vrot.slane %v4780, %v5263
    %v5265 = vcombine.low %v5250, %v5257
    %v5267 = vunpack.c.l.s4 1966171168
    %v5268 = vunpack.c.0.s8 %v5267
    %v5269 = vlaneseq
    %v5270 = vshrl.u32 %v5269, 7
    %v5271 = vsub.s32 %v5268, %v5270
    %v5272 = vrot.slane %v5265, %v5271
    %v5274 = vunpack.c.l.s4 1966171168
    %v5275 = vunpack.c.0.s8 %v5274
    %v5276 = vlaneseq
    %v5277 = vshrl.u32 %v5276, 7
    %v5278 = vsub.s32 %v5275, %v5277
    %v5279 = vrot.slane %v5264, %v5278
    %v5280 = vcombine.low %v5272, %v5279
    %v5281 = vcombine.low %v4781, %v4782
    %v5282 = vcombine.low %v4783, %v4784
    %v5284 = vunpack.c.l.s4 1966171168
    %v5285 = vunpack.c.0.s8 %v5284
    %v5286 = vlaneseq
    %v5287 = vshrl.u32 %v5286, 7
    %v5288 = vsub.s32 %v5285, %v5287
    %v5289 = vrot.slane %v5281, %v5288
    %v5291 = vunpack.c.l.s4 1966171168
    %v5292 = vunpack.c.0.s8 %v5291
    %v5293 = vlaneseq
    %v5294 = vshrl.u32 %v5293, 7
    %v5295 = vsub.s32 %v5292, %v5294
    %v5296 = vrot.slane %v5282, %v5295
    %v5298 = vunpack.c.l.s4 1966171168
    %v5299 = vunpack.c.0.s8 %v5298
    %v5300 = vlaneseq
    %v5301 = vshrl.u32 %v5300, 7
    %v5302 = vsub.s32 %v5299, %v5301
    %v5303 = vrot.slane %v4785, %v5302
    %v5304 = vcombine.low %v5289, %v5296
    %v5306 = vunpack.c.l.s4 1966171168
    %v5307 = vunpack.c.0.s8 %v5306
    %v5308 = vlaneseq
    %v5309 = vshrl.u32 %v5308, 7
    %v5310 = vsub.s32 %v5307, %v5309
    %v5311 = vrot.slane %v5304, %v5310
    %v5313 = vunpack.c.l.s4 1966171168
    %v5314 = vunpack.c.0.s8 %v5313
    %v5315 = vlaneseq
    %v5316 = vshrl.u32 %v5315, 7
    %v5317 = vsub.s32 %v5314, %v5316
    %v5318 = vrot.slane %v5303, %v5317
    %v5319 = vcombine.low %v5311, %v5318
    %v5320 = vcombine.low %v4786, %v4787
    %v5321 = vcombine.low %v4788, %v4789
    %v5323 = vunpack.c.l.s4 1966171168
    %v5324 = vunpack.c.0.s8 %v5323
    %v5325 = vlaneseq
    %v5326 = vshrl.u32 %v5325, 7
    %v5327 = vsub.s32 %v5324, %v5326
    %v5328 = vrot.slane %v5320, %v5327
    %v5330 = vunpack.c.l.s4 1966171168
    %v5331 = vunpack.c.0.s8 %v5330
    %v5332 = vlaneseq
    %v5333 = vshrl.u32 %v5332, 7
    %v5334 = vsub.s32 %v5331, %v5333
    %v5335 = vrot.slane %v5321, %v5334
    %v5337 = vunpack.c.l.s4 1966171168
    %v5338 = vunpack.c.0.s8 %v5337
    %v5339 = vlaneseq
    %v5340 = vshrl.u32 %v5339, 7
    %v5341 = vsub.s32 %v5338, %v5340
    %v5342 = vrot.slane %v4790, %v5341
    %v5343 = vcombine.low %v5328, %v5335
    %v5345 = vunpack.c.l.s4 1966171168
    %v5346 = vunpack.c.0.s8 %v5345
    %v5347 = vlaneseq
    %v5348 = vshrl.u32 %v5347, 7
    %v5349 = vsub.s32 %v5346, %v5348
    %v5350 = vrot.slane %v5343, %v5349
    %v5352 = vunpack.c.l.s4 1966171168
    %v5353 = vunpack.c.0.s8 %v5352
    %v5354 = vlaneseq
    %v5355 = vshrl.u32 %v5354, 7
    %v5356 = vsub.s32 %v5353, %v5355
    %v5357 = vrot.slane %v5342, %v5356
    %v5358 = vcombine.low %v5350, %v5357
    %v5359 = vcombine.low %v4791, %v4792
    %v5360 = vcombine.low %v4793, %v4794
    %v5362 = vunpack.c.l.s4 1966171168
    %v5363 = vunpack.c.0.s8 %v5362
    %v5364 = vlaneseq
    %v5365 = vshrl.u32 %v5364, 7
    %v5366 = vsub.s32 %v5363, %v5365
    %v5367 = vrot.slane %v5359, %v5366
    %v5369 = vunpack.c.l.s4 1966171168
    %v5370 = vunpack.c.0.s8 %v5369
    %v5371 = vlaneseq
    %v5372 = vshrl.u32 %v5371, 7
    %v5373 = vsub.s32 %v5370, %v5372
    %v5374 = vrot.slane %v5360, %v5373
    %v5376 = vunpack.c.l.s4 1966171168
    %v5377 = vunpack.c.0.s8 %v5376
    %v5378 = vlaneseq
    %v5379 = vshrl.u32 %v5378, 7
    %v5380 = vsub.s32 %v5377, %v5379
    %v5381 = vrot.slane %v4795, %v5380
    %v5382 = vcombine.low %v5367, %v5374
    %v5384 = vunpack.c.l.s4 1966171168
    %v5385 = vunpack.c.0.s8 %v5384
    %v5386 = vlaneseq
    %v5387 = vshrl.u32 %v5386, 7
    %v5388 = vsub.s32 %v5385, %v5387
    %v5389 = vrot.slane %v5382, %v5388
    %v5391 = vunpack.c.l.s4 1966171168
    %v5392 = vunpack.c.0.s8 %v5391
    %v5393 = vlaneseq
    %v5394 = vshrl.u32 %v5393, 7
    %v5395 = vsub.s32 %v5392, %v5394
    %v5396 = vrot.slane %v5381, %v5395
    %v5397 = vcombine.low %v5389, %v5396
    %v5398 = vcombine.low %v4796, %v4797
    %v5399 = vcombine.low %v4798, %v4799
    %v5401 = vunpack.c.l.s4 1966171168
    %v5402 = vunpack.c.0.s8 %v5401
    %v5403 = vlaneseq
    %v5404 = vshrl.u32 %v5403, 7
    %v5405 = vsub.s32 %v5402, %v5404
    %v5406 = vrot.slane %v5398, %v5405
    %v5408 = vunpack.c.l.s4 1966171168
    %v5409 = vunpack.c.0.s8 %v5408
    %v5410 = vlaneseq
    %v5411 = vshrl.u32 %v5410, 7
    %v5412 = vsub.s32 %v5409, %v5411
    %v5413 = vrot.slane %v5399, %v5412
    %v5415 = vunpack.c.l.s4 1966171168
    %v5416 = vunpack.c.0.s8 %v5415
    %v5417 = vlaneseq
    %v5418 = vshrl.u32 %v5417, 7
    %v5419 = vsub.s32 %v5416, %v5418
    %v5420 = vrot.slane %v4800, %v5419
    %v5421 = vcombine.low %v5406, %v5413
    %v5423 = vunpack.c.l.s4 1966171168
    %v5424 = vunpack.c.0.s8 %v5423
    %v5425 = vlaneseq
    %v5426 = vshrl.u32 %v5425, 7
    %v5427 = vsub.s32 %v5424, %v5426
    %v5428 = vrot.slane %v5421, %v5427
    %v5430 = vunpack.c.l.s4 1966171168
    %v5431 = vunpack.c.0.s8 %v5430
    %v5432 = vlaneseq
    %v5433 = vshrl.u32 %v5432, 7
    %v5434 = vsub.s32 %v5431, %v5433
    %v5435 = vrot.slane %v5420, %v5434
    %v5436 = vcombine.low %v5428, %v5435
    %v5437 = vcombine.low %v4801, %v4802
    %v5438 = vcombine.low %v4803, %v4804
    %v5440 = vunpack.c.l.s4 1966171168
    %v5441 = vunpack.c.0.s8 %v5440
    %v5442 = vlaneseq
    %v5443 = vshrl.u32 %v5442, 7
    %v5444 = vsub.s32 %v5441, %v5443
    %v5445 = vrot.slane %v5437, %v5444
    %v5447 = vunpack.c.l.s4 1966171168
    %v5448 = vunpack.c.0.s8 %v5447
    %v5449 = vlaneseq
    %v5450 = vshrl.u32 %v5449, 7
    %v5451 = vsub.s32 %v5448, %v5450
    %v5452 = vrot.slane %v5438, %v5451
    %v5454 = vunpack.c.l.s4 1966171168
    %v5455 = vunpack.c.0.s8 %v5454
    %v5456 = vlaneseq
    %v5457 = vshrl.u32 %v5456, 7
    %v5458 = vsub.s32 %v5455, %v5457
    %v5459 = vrot.slane %v4805, %v5458
    %v5460 = vcombine.low %v5445, %v5452
    %v5462 = vunpack.c.l.s4 1966171168
    %v5463 = vunpack.c.0.s8 %v5462
    %v5464 = vlaneseq
    %v5465 = vshrl.u32 %v5464, 7
    %v5466 = vsub.s32 %v5463, %v5465
    %v5467 = vrot.slane %v5460, %v5466
    %v5469 = vunpack.c.l.s4 1966171168
    %v5470 = vunpack.c.0.s8 %v5469
    %v5471 = vlaneseq
    %v5472 = vshrl.u32 %v5471, 7
    %v5473 = vsub.s32 %v5470, %v5472
    %v5474 = vrot.slane %v5459, %v5473
    %v5475 = vcombine.low %v5467, %v5474
    %v5476 = vcombine.low %v4806, %v4807
    %v5477 = vcombine.low %v4808, %v4809
    %v5479 = vunpack.c.l.s4 1966171168
    %v5480 = vunpack.c.0.s8 %v5479
    %v5481 = vlaneseq
    %v5482 = vshrl.u32 %v5481, 7
    %v5483 = vsub.s32 %v5480, %v5482
    %v5484 = vrot.slane %v5476, %v5483
    %v5486 = vunpack.c.l.s4 1966171168
    %v5487 = vunpack.c.0.s8 %v5486
    %v5488 = vlaneseq
    %v5489 = vshrl.u32 %v5488, 7
    %v5490 = vsub.s32 %v5487, %v5489
    %v5491 = vrot.slane %v5477, %v5490
    %v5493 = vunpack.c.l.s4 1966171168
    %v5494 = vunpack.c.0.s8 %v5493
    %v5495 = vlaneseq
    %v5496 = vshrl.u32 %v5495, 7
    %v5497 = vsub.s32 %v5494, %v5496
    %v5498 = vrot.slane %v4810, %v5497
    %v5499 = vcombine.low %v5484, %v5491
    %v5501 = vunpack.c.l.s4 1966171168
    %v5502 = vunpack.c.0.s8 %v5501
    %v5503 = vlaneseq
    %v5504 = vshrl.u32 %v5503, 7
    %v5505 = vsub.s32 %v5502, %v5504
    %v5506 = vrot.slane %v5499, %v5505
    %v5508 = vunpack.c.l.s4 1966171168
    %v5509 = vunpack.c.0.s8 %v5508
    %v5510 = vlaneseq
    %v5511 = vshrl.u32 %v5510, 7
    %v5512 = vsub.s32 %v5509, %v5511
    %v5513 = vrot.slane %v5498, %v5512
    %v5514 = vcombine.low %v5506, %v5513
    %vm5531 = vcmask 1044480
    %v5532 = vsel %vm5531, %v4929, 0.0
    %5533 = vadd.xlane.f32.xlu0 %v5532
    %v5534 = vpop.xlane.xlu0 %5533
    %v5535 = vsel %vm5531, %v4968, 0.0
    %5536 = vadd.xlane.f32.xlu0 %v5535
    %v5537 = vpop.xlane.xlu0 %5536
    %v5538 = vsel %vm5531, %v5007, 0.0
    %5539 = vadd.xlane.f32.xlu0 %v5538
    %v5540 = vpop.xlane.xlu0 %5539
    %v5541 = vsel %vm5531, %v5046, 0.0
    %5542 = vadd.xlane.f32.xlu0 %v5541
    %v5543 = vpop.xlane.xlu0 %5542
    %v5544 = vsel %vm5531, %v5085, 0.0
    %5545 = vadd.xlane.f32.xlu0 %v5544
    %v5546 = vpop.xlane.xlu0 %5545
    %v5547 = vsel %vm5531, %v5124, 0.0
    %5548 = vadd.xlane.f32.xlu0 %v5547
    %v5549 = vpop.xlane.xlu0 %5548
    %v5550 = vsel %vm5531, %v5163, 0.0
    %5551 = vadd.xlane.f32.xlu0 %v5550
    %v5552 = vpop.xlane.xlu0 %5551
    %v5553 = vsel %vm5531, %v5202, 0.0
    %5554 = vadd.xlane.f32.xlu0 %v5553
    %v5555 = vpop.xlane.xlu0 %5554
    %v5556 = vsel %vm5531, %v5241, 0.0
    %5557 = vadd.xlane.f32.xlu0 %v5556
    %v5558 = vpop.xlane.xlu0 %5557
    %v5559 = vsel %vm5531, %v5280, 0.0
    %5560 = vadd.xlane.f32.xlu0 %v5559
    %v5561 = vpop.xlane.xlu0 %5560
    %v5562 = vsel %vm5531, %v5319, 0.0
    %5563 = vadd.xlane.f32.xlu0 %v5562
    %v5564 = vpop.xlane.xlu0 %5563
    %v5565 = vsel %vm5531, %v5358, 0.0
    %5566 = vadd.xlane.f32.xlu0 %v5565
    %v5567 = vpop.xlane.xlu0 %5566
    %v5568 = vsel %vm5531, %v5397, 0.0
    %5569 = vadd.xlane.f32.xlu0 %v5568
    %v5570 = vpop.xlane.xlu0 %5569
    %v5571 = vsel %vm5531, %v5436, 0.0
    %5572 = vadd.xlane.f32.xlu0 %v5571
    %v5573 = vpop.xlane.xlu0 %5572
    %v5574 = vsel %vm5531, %v5475, 0.0
    %5575 = vadd.xlane.f32.xlu0 %v5574
    %v5576 = vpop.xlane.xlu0 %5575
    %v5577 = vsel %vm5531, %v5514, 0.0
    %5578 = vadd.xlane.f32.xlu0 %v5577
    %v5579 = vpop.xlane.xlu0 %5578
    %v5580 = vld [vmem:[#allocation3] sm:$0x1]
    %v5582 = vlaneseq
    %v5583 = vshrl.u32 %v5582, 7
    %v5584 = vsub.s32 0, %v5583
    %v5585 = vrot.slane %v5580, %v5584
    %5586 = vset.pattern.permute.xlu0 0
    %5587 = vperm.xlu0 %5586, %v5585
    %v5588 = vpop.permute.xlu0 %5587
    %v5590 = vadd.f32 %v5534, %v5588
    %v5591 = vadd.f32 %v5537, %v5588
    %v5592 = vadd.f32 %v5540, %v5588
    %v5593 = vadd.f32 %v5543, %v5588
    %v5594 = vadd.f32 %v5546, %v5588
    %v5595 = vadd.f32 %v5549, %v5588
    %v5596 = vadd.f32 %v5552, %v5588
    %v5597 = vadd.f32 %v5555, %v5588
    %v5598 = vadd.f32 %v5558, %v5588
    %v5599 = vadd.f32 %v5561, %v5588
    %v5600 = vadd.f32 %v5564, %v5588
    %v5601 = vadd.f32 %v5567, %v5588
    %v5602 = vadd.f32 %v5570, %v5588
    %v5603 = vadd.f32 %v5573, %v5588
    %v5604 = vadd.f32 %v5576, %v5588
    %v5605 = vadd.f32 %v5579, %v5588
    %v5616 = vcombine.high %v2808, %v2808
    %v5618 = vunpack.c.l.s4 1966171168
    %v5619 = vunpack.c.0.s8 %v5618
    %v5620 = vlaneseq
    %v5621 = vshrl.u32 %v5620, 7
    %v5622 = vsub.s32 %v5619, %v5621
    %v5623 = vrot.slane %v2808, %v5622
    %v5625 = vunpack.c.l.s4 1966171168
    %v5626 = vunpack.c.0.s8 %v5625
    %v5627 = vlaneseq
    %v5628 = vshrl.u32 %v5627, 7
    %v5629 = vsub.s32 %v5626, %v5628
    %v5630 = vrot.slane %v5616, %v5629
    %v5631 = vcombine.high %v5623, %v5623
    %v5632 = vcombine.high %v5630, %v5630
    %v5634 = vunpack.c.l.s4 1966171168
    %v5635 = vunpack.c.0.s8 %v5634
    %v5636 = vlaneseq
    %v5637 = vshrl.u32 %v5636, 7
    %v5638 = vsub.s32 %v5635, %v5637
    %v5639 = vrot.slane %v5623, %v5638
    %v5641 = vunpack.c.l.s4 1966171168
    %v5642 = vunpack.c.0.s8 %v5641
    %v5643 = vlaneseq
    %v5644 = vshrl.u32 %v5643, 7
    %v5645 = vsub.s32 %v5642, %v5644
    %v5646 = vrot.slane %v5630, %v5645
    %v5648 = vunpack.c.l.s4 1966171168
    %v5649 = vunpack.c.0.s8 %v5648
    %v5650 = vlaneseq
    %v5651 = vshrl.u32 %v5650, 7
    %v5652 = vsub.s32 %v5649, %v5651
    %v5653 = vrot.slane %v5631, %v5652
    %v5655 = vunpack.c.l.s4 1966171168
    %v5656 = vunpack.c.0.s8 %v5655
    %v5657 = vlaneseq
    %v5658 = vshrl.u32 %v5657, 7
    %v5659 = vsub.s32 %v5656, %v5658
    %v5660 = vrot.slane %v5632, %v5659
    %v5661 = vcombine.high %v5639, %v5639
    %v5662 = vcombine.high %v5646, %v5646
    %v5663 = vcombine.high %v5653, %v5653
    %v5664 = vcombine.high %v5660, %v5660
    %v5665 = vcombine.high %v2810, %v2810
    %v5667 = vunpack.c.l.s4 1966171168
    %v5668 = vunpack.c.0.s8 %v5667
    %v5669 = vlaneseq
    %v5670 = vshrl.u32 %v5669, 7
    %v5671 = vsub.s32 %v5668, %v5670
    %v5672 = vrot.slane %v2810, %v5671
    %v5674 = vunpack.c.l.s4 1966171168
    %v5675 = vunpack.c.0.s8 %v5674
    %v5676 = vlaneseq
    %v5677 = vshrl.u32 %v5676, 7
    %v5678 = vsub.s32 %v5675, %v5677
    %v5679 = vrot.slane %v5665, %v5678
    %v5680 = vcombine.high %v5672, %v5672
    %v5681 = vcombine.high %v5679, %v5679
    %v5683 = vunpack.c.l.s4 1966171168
    %v5684 = vunpack.c.0.s8 %v5683
    %v5685 = vlaneseq
    %v5686 = vshrl.u32 %v5685, 7
    %v5687 = vsub.s32 %v5684, %v5686
    %v5688 = vrot.slane %v5672, %v5687
    %v5690 = vunpack.c.l.s4 1966171168
    %v5691 = vunpack.c.0.s8 %v5690
    %v5692 = vlaneseq
    %v5693 = vshrl.u32 %v5692, 7
    %v5694 = vsub.s32 %v5691, %v5693
    %v5695 = vrot.slane %v5679, %v5694
    %v5697 = vunpack.c.l.s4 1966171168
    %v5698 = vunpack.c.0.s8 %v5697
    %v5699 = vlaneseq
    %v5700 = vshrl.u32 %v5699, 7
    %v5701 = vsub.s32 %v5698, %v5700
    %v5702 = vrot.slane %v5680, %v5701
    %v5704 = vunpack.c.l.s4 1966171168
    %v5705 = vunpack.c.0.s8 %v5704
    %v5706 = vlaneseq
    %v5707 = vshrl.u32 %v5706, 7
    %v5708 = vsub.s32 %v5705, %v5707
    %v5709 = vrot.slane %v5681, %v5708
    %v5710 = vcombine.high %v5688, %v5688
    %v5711 = vcombine.high %v5695, %v5695
    %v5712 = vcombine.high %v5702, %v5702
    %v5713 = vcombine.high %v5709, %v5709
    %v5714 = vcombine.high %v2812, %v2812
    %v5716 = vunpack.c.l.s4 1966171168
    %v5717 = vunpack.c.0.s8 %v5716
    %v5718 = vlaneseq
    %v5719 = vshrl.u32 %v5718, 7
    %v5720 = vsub.s32 %v5717, %v5719
    %v5721 = vrot.slane %v2812, %v5720
    %v5723 = vunpack.c.l.s4 1966171168
    %v5724 = vunpack.c.0.s8 %v5723
    %v5725 = vlaneseq
    %v5726 = vshrl.u32 %v5725, 7
    %v5727 = vsub.s32 %v5724, %v5726
    %v5728 = vrot.slane %v5714, %v5727
    %v5729 = vcombine.high %v5721, %v5721
    %v5730 = vcombine.high %v5728, %v5728
    %v5732 = vunpack.c.l.s4 1966171168
    %v5733 = vunpack.c.0.s8 %v5732
    %v5734 = vlaneseq
    %v5735 = vshrl.u32 %v5734, 7
    %v5736 = vsub.s32 %v5733, %v5735
    %v5737 = vrot.slane %v5721, %v5736
    %v5739 = vunpack.c.l.s4 1966171168
    %v5740 = vunpack.c.0.s8 %v5739
    %v5741 = vlaneseq
    %v5742 = vshrl.u32 %v5741, 7
    %v5743 = vsub.s32 %v5740, %v5742
    %v5744 = vrot.slane %v5728, %v5743
    %v5746 = vunpack.c.l.s4 1966171168
    %v5747 = vunpack.c.0.s8 %v5746
    %v5748 = vlaneseq
    %v5749 = vshrl.u32 %v5748, 7
    %v5750 = vsub.s32 %v5747, %v5749
    %v5751 = vrot.slane %v5729, %v5750
    %v5753 = vunpack.c.l.s4 1966171168
    %v5754 = vunpack.c.0.s8 %v5753
    %v5755 = vlaneseq
    %v5756 = vshrl.u32 %v5755, 7
    %v5757 = vsub.s32 %v5754, %v5756
    %v5758 = vrot.slane %v5730, %v5757
    %v5759 = vcombine.high %v5737, %v5737
    %v5760 = vcombine.high %v5744, %v5744
    %v5761 = vcombine.high %v5751, %v5751
    %v5762 = vcombine.high %v5758, %v5758
    %v5763 = vcombine.high %v2814, %v2814
    %v5765 = vunpack.c.l.s4 1966171168
    %v5766 = vunpack.c.0.s8 %v5765
    %v5767 = vlaneseq
    %v5768 = vshrl.u32 %v5767, 7
    %v5769 = vsub.s32 %v5766, %v5768
    %v5770 = vrot.slane %v2814, %v5769
    %v5772 = vunpack.c.l.s4 1966171168
    %v5773 = vunpack.c.0.s8 %v5772
    %v5774 = vlaneseq
    %v5775 = vshrl.u32 %v5774, 7
    %v5776 = vsub.s32 %v5773, %v5775
    %v5777 = vrot.slane %v5763, %v5776
    %v5778 = vcombine.high %v5770, %v5770
    %v5779 = vcombine.high %v5777, %v5777
    %v5781 = vunpack.c.l.s4 1966171168
    %v5782 = vunpack.c.0.s8 %v5781
    %v5783 = vlaneseq
    %v5784 = vshrl.u32 %v5783, 7
    %v5785 = vsub.s32 %v5782, %v5784
    %v5786 = vrot.slane %v5770, %v5785
    %v5788 = vunpack.c.l.s4 1966171168
    %v5789 = vunpack.c.0.s8 %v5788
    %v5790 = vlaneseq
    %v5791 = vshrl.u32 %v5790, 7
    %v5792 = vsub.s32 %v5789, %v5791
    %v5793 = vrot.slane %v5777, %v5792
    %v5795 = vunpack.c.l.s4 1966171168
    %v5796 = vunpack.c.0.s8 %v5795
    %v5797 = vlaneseq
    %v5798 = vshrl.u32 %v5797, 7
    %v5799 = vsub.s32 %v5796, %v5798
    %v5800 = vrot.slane %v5778, %v5799
    %v5802 = vunpack.c.l.s4 1966171168
    %v5803 = vunpack.c.0.s8 %v5802
    %v5804 = vlaneseq
    %v5805 = vshrl.u32 %v5804, 7
    %v5806 = vsub.s32 %v5803, %v5805
    %v5807 = vrot.slane %v5779, %v5806
    %v5808 = vcombine.high %v5786, %v5786
    %v5809 = vcombine.high %v5793, %v5793
    %v5810 = vcombine.high %v5800, %v5800
    %v5811 = vcombine.high %v5807, %v5807
    %v5812 = vcombine.high %v2816, %v2816
    %v5814 = vunpack.c.l.s4 1966171168
    %v5815 = vunpack.c.0.s8 %v5814
    %v5816 = vlaneseq
    %v5817 = vshrl.u32 %v5816, 7
    %v5818 = vsub.s32 %v5815, %v5817
    %v5819 = vrot.slane %v2816, %v5818
    %v5821 = vunpack.c.l.s4 1966171168
    %v5822 = vunpack.c.0.s8 %v5821
    %v5823 = vlaneseq
    %v5824 = vshrl.u32 %v5823, 7
    %v5825 = vsub.s32 %v5822, %v5824
    %v5826 = vrot.slane %v5812, %v5825
    %v5827 = vcombine.high %v5819, %v5819
    %v5828 = vcombine.high %v5826, %v5826
    %v5830 = vunpack.c.l.s4 1966171168
    %v5831 = vunpack.c.0.s8 %v5830
    %v5832 = vlaneseq
    %v5833 = vshrl.u32 %v5832, 7
    %v5834 = vsub.s32 %v5831, %v5833
    %v5835 = vrot.slane %v5819, %v5834
    %v5837 = vunpack.c.l.s4 1966171168
    %v5838 = vunpack.c.0.s8 %v5837
    %v5839 = vlaneseq
    %v5840 = vshrl.u32 %v5839, 7
    %v5841 = vsub.s32 %v5838, %v5840
    %v5842 = vrot.slane %v5826, %v5841
    %v5844 = vunpack.c.l.s4 1966171168
    %v5845 = vunpack.c.0.s8 %v5844
    %v5846 = vlaneseq
    %v5847 = vshrl.u32 %v5846, 7
    %v5848 = vsub.s32 %v5845, %v5847
    %v5849 = vrot.slane %v5827, %v5848
    %v5851 = vunpack.c.l.s4 1966171168
    %v5852 = vunpack.c.0.s8 %v5851
    %v5853 = vlaneseq
    %v5854 = vshrl.u32 %v5853, 7
    %v5855 = vsub.s32 %v5852, %v5854
    %v5856 = vrot.slane %v5828, %v5855
    %v5857 = vcombine.high %v5835, %v5835
    %v5858 = vcombine.high %v5842, %v5842
    %v5859 = vcombine.high %v5849, %v5849
    %v5860 = vcombine.high %v5856, %v5856
    %v5861 = vcombine.high %v2818, %v2818
    %v5863 = vunpack.c.l.s4 1966171168
    %v5864 = vunpack.c.0.s8 %v5863
    %v5865 = vlaneseq
    %v5866 = vshrl.u32 %v5865, 7
    %v5867 = vsub.s32 %v5864, %v5866
    %v5868 = vrot.slane %v2818, %v5867
    %v5870 = vunpack.c.l.s4 1966171168
    %v5871 = vunpack.c.0.s8 %v5870
    %v5872 = vlaneseq
    %v5873 = vshrl.u32 %v5872, 7
    %v5874 = vsub.s32 %v5871, %v5873
    %v5875 = vrot.slane %v5861, %v5874
    %v5876 = vcombine.high %v5868, %v5868
    %v5877 = vcombine.high %v5875, %v5875
    %v5879 = vunpack.c.l.s4 1966171168
    %v5880 = vunpack.c.0.s8 %v5879
    %v5881 = vlaneseq
    %v5882 = vshrl.u32 %v5881, 7
    %v5883 = vsub.s32 %v5880, %v5882
    %v5884 = vrot.slane %v5868, %v5883
    %v5886 = vunpack.c.l.s4 1966171168
    %v5887 = vunpack.c.0.s8 %v5886
    %v5888 = vlaneseq
    %v5889 = vshrl.u32 %v5888, 7
    %v5890 = vsub.s32 %v5887, %v5889
    %v5891 = vrot.slane %v5875, %v5890
    %v5893 = vunpack.c.l.s4 1966171168
    %v5894 = vunpack.c.0.s8 %v5893
    %v5895 = vlaneseq
    %v5896 = vshrl.u32 %v5895, 7
    %v5897 = vsub.s32 %v5894, %v5896
    %v5898 = vrot.slane %v5876, %v5897
    %v5900 = vunpack.c.l.s4 1966171168
    %v5901 = vunpack.c.0.s8 %v5900
    %v5902 = vlaneseq
    %v5903 = vshrl.u32 %v5902, 7
    %v5904 = vsub.s32 %v5901, %v5903
    %v5905 = vrot.slane %v5877, %v5904
    %v5906 = vcombine.high %v5884, %v5884
    %v5907 = vcombine.high %v5891, %v5891
    %v5908 = vcombine.high %v5898, %v5898
    %v5909 = vcombine.high %v5905, %v5905
    %v5910 = vcombine.high %v2820, %v2820
    %v5912 = vunpack.c.l.s4 1966171168
    %v5913 = vunpack.c.0.s8 %v5912
    %v5914 = vlaneseq
    %v5915 = vshrl.u32 %v5914, 7
    %v5916 = vsub.s32 %v5913, %v5915
    %v5917 = vrot.slane %v2820, %v5916
    %v5919 = vunpack.c.l.s4 1966171168
    %v5920 = vunpack.c.0.s8 %v5919
    %v5921 = vlaneseq
    %v5922 = vshrl.u32 %v5921, 7
    %v5923 = vsub.s32 %v5920, %v5922
    %v5924 = vrot.slane %v5910, %v5923
    %v5925 = vcombine.high %v5917, %v5917
    %v5926 = vcombine.high %v5924, %v5924
    %v5928 = vunpack.c.l.s4 1966171168
    %v5929 = vunpack.c.0.s8 %v5928
    %v5930 = vlaneseq
    %v5931 = vshrl.u32 %v5930, 7
    %v5932 = vsub.s32 %v5929, %v5931
    %v5933 = vrot.slane %v5917, %v5932
    %v5935 = vunpack.c.l.s4 1966171168
    %v5936 = vunpack.c.0.s8 %v5935
    %v5937 = vlaneseq
    %v5938 = vshrl.u32 %v5937, 7
    %v5939 = vsub.s32 %v5936, %v5938
    %v5940 = vrot.slane %v5924, %v5939
    %v5942 = vunpack.c.l.s4 1966171168
    %v5943 = vunpack.c.0.s8 %v5942
    %v5944 = vlaneseq
    %v5945 = vshrl.u32 %v5944, 7
    %v5946 = vsub.s32 %v5943, %v5945
    %v5947 = vrot.slane %v5925, %v5946
    %v5949 = vunpack.c.l.s4 1966171168
    %v5950 = vunpack.c.0.s8 %v5949
    %v5951 = vlaneseq
    %v5952 = vshrl.u32 %v5951, 7
    %v5953 = vsub.s32 %v5950, %v5952
    %v5954 = vrot.slane %v5926, %v5953
    %v5955 = vcombine.high %v5933, %v5933
    %v5956 = vcombine.high %v5940, %v5940
    %v5957 = vcombine.high %v5947, %v5947
    %v5958 = vcombine.high %v5954, %v5954
    %v5959 = vcombine.high %v2822, %v2822
    %v5961 = vunpack.c.l.s4 1966171168
    %v5962 = vunpack.c.0.s8 %v5961
    %v5963 = vlaneseq
    %v5964 = vshrl.u32 %v5963, 7
    %v5965 = vsub.s32 %v5962, %v5964
    %v5966 = vrot.slane %v2822, %v5965
    %v5968 = vunpack.c.l.s4 1966171168
    %v5969 = vunpack.c.0.s8 %v5968
    %v5970 = vlaneseq
    %v5971 = vshrl.u32 %v5970, 7
    %v5972 = vsub.s32 %v5969, %v5971
    %v5973 = vrot.slane %v5959, %v5972
    %v5974 = vcombine.high %v5966, %v5966
    %v5975 = vcombine.high %v5973, %v5973
    %v5977 = vunpack.c.l.s4 1966171168
    %v5978 = vunpack.c.0.s8 %v5977
    %v5979 = vlaneseq
    %v5980 = vshrl.u32 %v5979, 7
    %v5981 = vsub.s32 %v5978, %v5980
    %v5982 = vrot.slane %v5966, %v5981
    %v5984 = vunpack.c.l.s4 1966171168
    %v5985 = vunpack.c.0.s8 %v5984
    %v5986 = vlaneseq
    %v5987 = vshrl.u32 %v5986, 7
    %v5988 = vsub.s32 %v5985, %v5987
    %v5989 = vrot.slane %v5973, %v5988
    %v5991 = vunpack.c.l.s4 1966171168
    %v5992 = vunpack.c.0.s8 %v5991
    %v5993 = vlaneseq
    %v5994 = vshrl.u32 %v5993, 7
    %v5995 = vsub.s32 %v5992, %v5994
    %v5996 = vrot.slane %v5974, %v5995
    %v5998 = vunpack.c.l.s4 1966171168
    %v5999 = vunpack.c.0.s8 %v5998
    %v6000 = vlaneseq
    %v6001 = vshrl.u32 %v6000, 7
    %v6002 = vsub.s32 %v5999, %v6001
    %v6003 = vrot.slane %v5975, %v6002
    %v6004 = vcombine.high %v5982, %v5982
    %v6005 = vcombine.high %v5989, %v5989
    %v6006 = vcombine.high %v5996, %v5996
    %v6007 = vcombine.high %v6003, %v6003
    %v6008 = vcombine.high %v2824, %v2824
    %v6010 = vunpack.c.l.s4 1966171168
    %v6011 = vunpack.c.0.s8 %v6010
    %v6012 = vlaneseq
    %v6013 = vshrl.u32 %v6012, 7
    %v6014 = vsub.s32 %v6011, %v6013
    %v6015 = vrot.slane %v2824, %v6014
    %v6017 = vunpack.c.l.s4 1966171168
    %v6018 = vunpack.c.0.s8 %v6017
    %v6019 = vlaneseq
    %v6020 = vshrl.u32 %v6019, 7
    %v6021 = vsub.s32 %v6018, %v6020
    %v6022 = vrot.slane %v6008, %v6021
    %v6023 = vcombine.high %v6015, %v6015
    %v6024 = vcombine.high %v6022, %v6022
    %v6026 = vunpack.c.l.s4 1966171168
    %v6027 = vunpack.c.0.s8 %v6026
    %v6028 = vlaneseq
    %v6029 = vshrl.u32 %v6028, 7
    %v6030 = vsub.s32 %v6027, %v6029
    %v6031 = vrot.slane %v6015, %v6030
    %v6033 = vunpack.c.l.s4 1966171168
    %v6034 = vunpack.c.0.s8 %v6033
    %v6035 = vlaneseq
    %v6036 = vshrl.u32 %v6035, 7
    %v6037 = vsub.s32 %v6034, %v6036
    %v6038 = vrot.slane %v6022, %v6037
    %v6040 = vunpack.c.l.s4 1966171168
    %v6041 = vunpack.c.0.s8 %v6040
    %v6042 = vlaneseq
    %v6043 = vshrl.u32 %v6042, 7
    %v6044 = vsub.s32 %v6041, %v6043
    %v6045 = vrot.slane %v6023, %v6044
    %v6047 = vunpack.c.l.s4 1966171168
    %v6048 = vunpack.c.0.s8 %v6047
    %v6049 = vlaneseq
    %v6050 = vshrl.u32 %v6049, 7
    %v6051 = vsub.s32 %v6048, %v6050
    %v6052 = vrot.slane %v6024, %v6051
    %v6053 = vcombine.high %v6031, %v6031
    %v6054 = vcombine.high %v6038, %v6038
    %v6055 = vcombine.high %v6045, %v6045
    %v6056 = vcombine.high %v6052, %v6052
    %v6057 = vcombine.high %v2826, %v2826
    %v6059 = vunpack.c.l.s4 1966171168
    %v6060 = vunpack.c.0.s8 %v6059
    %v6061 = vlaneseq
    %v6062 = vshrl.u32 %v6061, 7
    %v6063 = vsub.s32 %v6060, %v6062
    %v6064 = vrot.slane %v2826, %v6063
    %v6066 = vunpack.c.l.s4 1966171168
    %v6067 = vunpack.c.0.s8 %v6066
    %v6068 = vlaneseq
    %v6069 = vshrl.u32 %v6068, 7
    %v6070 = vsub.s32 %v6067, %v6069
    %v6071 = vrot.slane %v6057, %v6070
    %v6072 = vcombine.high %v6064, %v6064
    %v6073 = vcombine.high %v6071, %v6071
    %v6075 = vunpack.c.l.s4 1966171168
    %v6076 = vunpack.c.0.s8 %v6075
    %v6077 = vlaneseq
    %v6078 = vshrl.u32 %v6077, 7
    %v6079 = vsub.s32 %v6076, %v6078
    %v6080 = vrot.slane %v6064, %v6079
    %v6082 = vunpack.c.l.s4 1966171168
    %v6083 = vunpack.c.0.s8 %v6082
    %v6084 = vlaneseq
    %v6085 = vshrl.u32 %v6084, 7
    %v6086 = vsub.s32 %v6083, %v6085
    %v6087 = vrot.slane %v6071, %v6086
    %v6089 = vunpack.c.l.s4 1966171168
    %v6090 = vunpack.c.0.s8 %v6089
    %v6091 = vlaneseq
    %v6092 = vshrl.u32 %v6091, 7
    %v6093 = vsub.s32 %v6090, %v6092
    %v6094 = vrot.slane %v6072, %v6093
    %v6096 = vunpack.c.l.s4 1966171168
    %v6097 = vunpack.c.0.s8 %v6096
    %v6098 = vlaneseq
    %v6099 = vshrl.u32 %v6098, 7
    %v6100 = vsub.s32 %v6097, %v6099
    %v6101 = vrot.slane %v6073, %v6100
    %v6102 = vcombine.high %v6080, %v6080
    %v6103 = vcombine.high %v6087, %v6087
    %v6104 = vcombine.high %v6094, %v6094
    %v6105 = vcombine.high %v6101, %v6101
    %v6122 = vlaneseq
    %v6123 = vshrl.u32 %v6122, 7
    %v6124 = vsub.s32 %v2520, %v6123
    %v6125 = vrot.slane %v5590, %v6124
    %v6126 = vlaneseq
    %v6127 = vshrl.u32 %v6126, 7
    %v6128 = vsub.s32 %v2520, %v6127
    %v6129 = vrot.slane %v5591, %v6128
    %v6130 = vlaneseq
    %v6131 = vshrl.u32 %v6130, 7
    %v6132 = vsub.s32 %v2520, %v6131
    %v6133 = vrot.slane %v5592, %v6132
    %v6134 = vlaneseq
    %v6135 = vshrl.u32 %v6134, 7
    %v6136 = vsub.s32 %v2520, %v6135
    %v6137 = vrot.slane %v5593, %v6136
    %v6138 = vlaneseq
    %v6139 = vshrl.u32 %v6138, 7
    %v6140 = vsub.s32 %v2520, %v6139
    %v6141 = vrot.slane %v5594, %v6140
    %v6142 = vlaneseq
    %v6143 = vshrl.u32 %v6142, 7
    %v6144 = vsub.s32 %v2520, %v6143
    %v6145 = vrot.slane %v5595, %v6144
    %v6146 = vlaneseq
    %v6147 = vshrl.u32 %v6146, 7
    %v6148 = vsub.s32 %v2520, %v6147
    %v6149 = vrot.slane %v5596, %v6148
    %v6150 = vlaneseq
    %v6151 = vshrl.u32 %v6150, 7
    %v6152 = vsub.s32 %v2520, %v6151
    %v6153 = vrot.slane %v5597, %v6152
    %v6154 = vlaneseq
    %v6155 = vshrl.u32 %v6154, 7
    %v6156 = vsub.s32 %v2520, %v6155
    %v6157 = vrot.slane %v5598, %v6156
    %v6158 = vlaneseq
    %v6159 = vshrl.u32 %v6158, 7
    %v6160 = vsub.s32 %v2520, %v6159
    %v6161 = vrot.slane %v5599, %v6160
    %v6162 = vlaneseq
    %v6163 = vshrl.u32 %v6162, 7
    %v6164 = vsub.s32 %v2520, %v6163
    %v6165 = vrot.slane %v5600, %v6164
    %v6166 = vlaneseq
    %v6167 = vshrl.u32 %v6166, 7
    %v6168 = vsub.s32 %v2520, %v6167
    %v6169 = vrot.slane %v5601, %v6168
    %v6170 = vlaneseq
    %v6171 = vshrl.u32 %v6170, 7
    %v6172 = vsub.s32 %v2520, %v6171
    %v6173 = vrot.slane %v5602, %v6172
    %v6174 = vlaneseq
    %v6175 = vshrl.u32 %v6174, 7
    %v6176 = vsub.s32 %v2520, %v6175
    %v6177 = vrot.slane %v5603, %v6176
    %v6178 = vlaneseq
    %v6179 = vshrl.u32 %v6178, 7
    %v6180 = vsub.s32 %v2520, %v6179
    %v6181 = vrot.slane %v5604, %v6180
    %v6182 = vlaneseq
    %v6183 = vshrl.u32 %v6182, 7
    %v6184 = vsub.s32 %v2520, %v6183
    %v6185 = vrot.slane %v5605, %v6184
    %v6186 = vsel %vm2541, %v6129, %v6125
    %vm6187 = vcmask 1042434
    %v6188 = vsel %vm6187, %v6133, %v6186
    %vm6189 = vcmask 1043459
    %v6190 = vsel %vm6189, %v6137, %v6188
    %vm6191 = vcmask 1044484
    %v6192 = vsel %vm6191, %v6141, %v6190
    %vm6193 = vcmask 1045509
    %v6194 = vsel %vm6193, %v6145, %v6192
    %vm6195 = vcmask 1046534
    %v6196 = vsel %vm6195, %v6149, %v6194
    %vm6197 = vcmask 1047559
    %v6198 = vsel %vm6197, %v6153, %v6196
    %v6199 = vsel %vm2541, %v6161, %v6157
    %v6200 = vsel %vm6187, %v6165, %v6199
    %v6201 = vsel %vm6189, %v6169, %v6200
    %v6202 = vsel %vm6191, %v6173, %v6201
    %v6203 = vsel %vm6193, %v6177, %v6202
    %v6204 = vsel %vm6195, %v6181, %v6203
    %v6205 = vsel %vm6197, %v6185, %v6204
    %vm6208 = vcmask 39936
    %v6209 = vsel %vm6208, %v6198, -inf
    %6210 = vmax.xlane.f32.xlu0 %v6209
    %v6211 = vpop.xlane.xlu0 %6210
    %v6212 = vsel %vm6208, %v6205, -inf
    %6213 = vmax.xlane.f32.xlu0 %v6212
    %v6214 = vpop.xlane.xlu0 %6213
    %v6217 = vlaneseq
    %v6218 = vshrl.u32 %v6217, 7
    %v6219 = vsub.s32 0, %v6218
    %v6220 = vrot.slane %v6211, %v6219
    %v6221 = vlaneseq
    %v6222 = vshrl.u32 %v6221, 7
    %v6223 = vsub.s32 1, %v6222
    %v6224 = vrot.slane %v6211, %v6223
    %v6225 = vlaneseq
    %v6226 = vshrl.u32 %v6225, 7
    %v6227 = vsub.s32 2, %v6226
    %v6228 = vrot.slane %v6211, %v6227
    %v6229 = vlaneseq
    %v6230 = vshrl.u32 %v6229, 7
    %v6231 = vsub.s32 3, %v6230
    %v6232 = vrot.slane %v6211, %v6231
    %v6233 = vlaneseq
    %v6234 = vshrl.u32 %v6233, 7
    %v6235 = vsub.s32 4, %v6234
    %v6236 = vrot.slane %v6211, %v6235
    %v6237 = vlaneseq
    %v6238 = vshrl.u32 %v6237, 7
    %v6239 = vsub.s32 5, %v6238
    %v6240 = vrot.slane %v6211, %v6239
    %v6241 = vlaneseq
    %v6242 = vshrl.u32 %v6241, 7
    %v6243 = vsub.s32 6, %v6242
    %v6244 = vrot.slane %v6211, %v6243
    %v6245 = vlaneseq
    %v6246 = vshrl.u32 %v6245, 7
    %v6247 = vsub.s32 7, %v6246
    %v6248 = vrot.slane %v6211, %v6247
    %v6249 = vlaneseq
    %v6250 = vshrl.u32 %v6249, 7
    %v6251 = vsub.s32 0, %v6250
    %v6252 = vrot.slane %v6214, %v6251
    %v6253 = vlaneseq
    %v6254 = vshrl.u32 %v6253, 7
    %v6255 = vsub.s32 1, %v6254
    %v6256 = vrot.slane %v6214, %v6255
    %v6257 = vlaneseq
    %v6258 = vshrl.u32 %v6257, 7
    %v6259 = vsub.s32 2, %v6258
    %v6260 = vrot.slane %v6214, %v6259
    %v6261 = vlaneseq
    %v6262 = vshrl.u32 %v6261, 7
    %v6263 = vsub.s32 3, %v6262
    %v6264 = vrot.slane %v6214, %v6263
    %v6265 = vlaneseq
    %v6266 = vshrl.u32 %v6265, 7
    %v6267 = vsub.s32 4, %v6266
    %v6268 = vrot.slane %v6214, %v6267
    %v6269 = vlaneseq
    %v6270 = vshrl.u32 %v6269, 7
    %v6271 = vsub.s32 5, %v6270
    %v6272 = vrot.slane %v6214, %v6271
    %v6273 = vlaneseq
    %v6274 = vshrl.u32 %v6273, 7
    %v6275 = vsub.s32 6, %v6274
    %v6276 = vrot.slane %v6214, %v6275
    %v6277 = vlaneseq
    %v6278 = vshrl.u32 %v6277, 7
    %v6279 = vsub.s32 7, %v6278
    %v6280 = vrot.slane %v6214, %v6279
    %v6297 = vsub.f32 %v5590, %v6220
    %v6298 = vsub.f32 %v5591, %v6224
    %v6299 = vsub.f32 %v5592, %v6228
    %v6300 = vsub.f32 %v5593, %v6232
    %v6301 = vsub.f32 %v5594, %v6236
    %v6302 = vsub.f32 %v5595, %v6240
    %v6303 = vsub.f32 %v5596, %v6244
    %v6304 = vsub.f32 %v5597, %v6248
    %v6305 = vsub.f32 %v5598, %v6252
    %v6306 = vsub.f32 %v5599, %v6256
    %v6307 = vsub.f32 %v5600, %v6260
    %v6308 = vsub.f32 %v5601, %v6264
    %v6309 = vsub.f32 %v5602, %v6268
    %v6310 = vsub.f32 %v5603, %v6272
    %v6311 = vsub.f32 %v5604, %v6276
    %v6312 = vsub.f32 %v5605, %v6280
    %v6313 = vmul.f32 %v6297, 1.442695
    %v6314 = vpow.pop %v6313
    %v6315 = vmul.f32 %v6298, 1.442695
    %v6316 = vpow.pop %v6315
    %v6317 = vmul.f32 %v6299, 1.442695
    %v6318 = vpow.pop %v6317
    %v6319 = vmul.f32 %v6300, 1.442695
    %v6320 = vpow.pop %v6319
    %v6321 = vmul.f32 %v6301, 1.442695
    %v6322 = vpow.pop %v6321
    %v6323 = vmul.f32 %v6302, 1.442695
    %v6324 = vpow.pop %v6323
    %v6325 = vmul.f32 %v6303, 1.442695
    %v6326 = vpow.pop %v6325
    %v6327 = vmul.f32 %v6304, 1.442695
    %v6328 = vpow.pop %v6327
    %v6329 = vmul.f32 %v6305, 1.442695
    %v6330 = vpow.pop %v6329
    %v6331 = vmul.f32 %v6306, 1.442695
    %v6332 = vpow.pop %v6331
    %v6333 = vmul.f32 %v6307, 1.442695
    %v6334 = vpow.pop %v6333
    %v6335 = vmul.f32 %v6308, 1.442695
    %v6336 = vpow.pop %v6335
    %v6337 = vmul.f32 %v6309, 1.442695
    %v6338 = vpow.pop %v6337
    %v6339 = vmul.f32 %v6310, 1.442695
    %v6340 = vpow.pop %v6339
    %v6341 = vmul.f32 %v6311, 1.442695
    %v6342 = vpow.pop %v6341
    %v6343 = vmul.f32 %v6312, 1.442695
    %v6344 = vpow.pop %v6343
    %6361 = vset.pattern.permute.xlu0 0
    %6362 = vperm.xlu0 %6361, %v6314
    %v6363 = vpop.permute.xlu0 %6362
    %6364 = vset.pattern.permute.xlu0 0
    %6365 = vperm.xlu0 %6364, %v6316
    %v6366 = vpop.permute.xlu0 %6365
    %6367 = vset.pattern.permute.xlu0 0
    %6368 = vperm.xlu0 %6367, %v6318
    %v6369 = vpop.permute.xlu0 %6368
    %6370 = vset.pattern.permute.xlu0 0
    %6371 = vperm.xlu0 %6370, %v6320
    %v6372 = vpop.permute.xlu0 %6371
    %6373 = vset.pattern.permute.xlu0 0
    %6374 = vperm.xlu0 %6373, %v6322
    %v6375 = vpop.permute.xlu0 %6374
    %6376 = vset.pattern.permute.xlu0 0
    %6377 = vperm.xlu0 %6376, %v6324
    %v6378 = vpop.permute.xlu0 %6377
    %6379 = vset.pattern.permute.xlu0 0
    %6380 = vperm.xlu0 %6379, %v6326
    %v6381 = vpop.permute.xlu0 %6380
    %6382 = vset.pattern.permute.xlu0 0
    %6383 = vperm.xlu0 %6382, %v6328
    %v6384 = vpop.permute.xlu0 %6383
    %6385 = vset.pattern.permute.xlu0 0
    %6386 = vperm.xlu0 %6385, %v6330
    %v6387 = vpop.permute.xlu0 %6386
    %6388 = vset.pattern.permute.xlu0 0
    %6389 = vperm.xlu0 %6388, %v6332
    %v6390 = vpop.permute.xlu0 %6389
    %6391 = vset.pattern.permute.xlu0 0
    %6392 = vperm.xlu0 %6391, %v6334
    %v6393 = vpop.permute.xlu0 %6392
    %6394 = vset.pattern.permute.xlu0 0
    %6395 = vperm.xlu0 %6394, %v6336
    %v6396 = vpop.permute.xlu0 %6395
    %6397 = vset.pattern.permute.xlu0 0
    %6398 = vperm.xlu0 %6397, %v6338
    %v6399 = vpop.permute.xlu0 %6398
    %6400 = vset.pattern.permute.xlu0 0
    %6401 = vperm.xlu0 %6400, %v6340
    %v6402 = vpop.permute.xlu0 %6401
    %6403 = vset.pattern.permute.xlu0 0
    %6404 = vperm.xlu0 %6403, %v6342
    %v6405 = vpop.permute.xlu0 %6404
    %6406 = vset.pattern.permute.xlu0 0
    %6407 = vperm.xlu0 %6406, %v6344
    %v6408 = vpop.permute.xlu0 %6407
    %v6409 = vlaneseq
    %v6410 = vshrl.u32 %v6409, 7
    %v6411 = vsub.s32 %v2520, %v6410
    %v6412 = vrot.slane %v6363, %v6411
    %v6413 = vlaneseq
    %v6414 = vshrl.u32 %v6413, 7
    %v6415 = vsub.s32 %v2520, %v6414
    %v6416 = vrot.slane %v6366, %v6415
    %v6417 = vlaneseq
    %v6418 = vshrl.u32 %v6417, 7
    %v6419 = vsub.s32 %v2520, %v6418
    %v6420 = vrot.slane %v6369, %v6419
    %v6421 = vlaneseq
    %v6422 = vshrl.u32 %v6421, 7
    %v6423 = vsub.s32 %v2520, %v6422
    %v6424 = vrot.slane %v6372, %v6423
    %v6425 = vlaneseq
    %v6426 = vshrl.u32 %v6425, 7
    %v6427 = vsub.s32 %v2520, %v6426
    %v6428 = vrot.slane %v6375, %v6427
    %v6429 = vlaneseq
    %v6430 = vshrl.u32 %v6429, 7
    %v6431 = vsub.s32 %v2520, %v6430
    %v6432 = vrot.slane %v6378, %v6431
    %v6433 = vlaneseq
    %v6434 = vshrl.u32 %v6433, 7
    %v6435 = vsub.s32 %v2520, %v6434
    %v6436 = vrot.slane %v6381, %v6435
    %v6437 = vlaneseq
    %v6438 = vshrl.u32 %v6437, 7
    %v6439 = vsub.s32 %v2520, %v6438
    %v6440 = vrot.slane %v6384, %v6439
    %v6441 = vlaneseq
    %v6442 = vshrl.u32 %v6441, 7
    %v6443 = vsub.s32 %v2520, %v6442
    %v6444 = vrot.slane %v6387, %v6443
    %v6445 = vlaneseq
    %v6446 = vshrl.u32 %v6445, 7
    %v6447 = vsub.s32 %v2520, %v6446
    %v6448 = vrot.slane %v6390, %v6447
    %v6449 = vlaneseq
    %v6450 = vshrl.u32 %v6449, 7
    %v6451 = vsub.s32 %v2520, %v6450
    %v6452 = vrot.slane %v6393, %v6451
    %v6453 = vlaneseq
    %v6454 = vshrl.u32 %v6453, 7
    %v6455 = vsub.s32 %v2520, %v6454
    %v6456 = vrot.slane %v6396, %v6455
    %v6457 = vlaneseq
    %v6458 = vshrl.u32 %v6457, 7
    %v6459 = vsub.s32 %v2520, %v6458
    %v6460 = vrot.slane %v6399, %v6459
    %v6461 = vlaneseq
    %v6462 = vshrl.u32 %v6461, 7
    %v6463 = vsub.s32 %v2520, %v6462
    %v6464 = vrot.slane %v6402, %v6463
    %v6465 = vlaneseq
    %v6466 = vshrl.u32 %v6465, 7
    %v6467 = vsub.s32 %v2520, %v6466
    %v6468 = vrot.slane %v6405, %v6467
    %v6469 = vlaneseq
    %v6470 = vshrl.u32 %v6469, 7
    %v6471 = vsub.s32 %v2520, %v6470
    %v6472 = vrot.slane %v6408, %v6471
    %v6473 = vsel %vm2541, %v6416, %v6412
    %v6474 = vsel %vm6187, %v6420, %v6473
    %v6475 = vsel %vm6189, %v6424, %v6474
    %v6476 = vsel %vm6191, %v6428, %v6475
    %v6477 = vsel %vm6193, %v6432, %v6476
    %v6478 = vsel %vm6195, %v6436, %v6477
    %v6479 = vsel %vm6197, %v6440, %v6478
    %v6480 = vsel %vm2541, %v6448, %v6444
    %v6481 = vsel %vm6187, %v6452, %v6480
    %v6482 = vsel %vm6189, %v6456, %v6481
    %v6483 = vsel %vm6191, %v6460, %v6482
    %v6484 = vsel %vm6193, %v6464, %v6483
    %v6485 = vsel %vm6195, %v6468, %v6484
    %v6486 = vsel %vm6197, %v6472, %v6485
    %v6489 = vsel %vm6208, %v6479, 0.0
    %6490 = vadd.xlane.f32.xlu0 %v6489
    %v6491 = vpop.xlane.xlu0 %6490
    %v6492 = vsel %vm6208, %v6486, 0.0
    %6493 = vadd.xlane.f32.xlu0 %v6492
    %v6494 = vpop.xlane.xlu0 %6493
    %v6495 = vrcp.pop %v6491
    %v6496 = vrcp.pop %v6494
    %v6499 = vlaneseq
    %v6500 = vshrl.u32 %v6499, 7
    %v6501 = vsub.s32 0, %v6500
    %v6502 = vrot.slane %v6495, %v6501
    %v6503 = vlaneseq
    %v6504 = vshrl.u32 %v6503, 7
    %v6505 = vsub.s32 1, %v6504
    %v6506 = vrot.slane %v6495, %v6505
    %v6507 = vlaneseq
    %v6508 = vshrl.u32 %v6507, 7
    %v6509 = vsub.s32 2, %v6508
    %v6510 = vrot.slane %v6495, %v6509
    %v6511 = vlaneseq
    %v6512 = vshrl.u32 %v6511, 7
    %v6513 = vsub.s32 3, %v6512
    %v6514 = vrot.slane %v6495, %v6513
    %v6515 = vlaneseq
    %v6516 = vshrl.u32 %v6515, 7
    %v6517 = vsub.s32 4, %v6516
    %v6518 = vrot.slane %v6495, %v6517
    %v6519 = vlaneseq
    %v6520 = vshrl.u32 %v6519, 7
    %v6521 = vsub.s32 5, %v6520
    %v6522 = vrot.slane %v6495, %v6521
    %v6523 = vlaneseq
    %v6524 = vshrl.u32 %v6523, 7
    %v6525 = vsub.s32 6, %v6524
    %v6526 = vrot.slane %v6495, %v6525
    %v6527 = vlaneseq
    %v6528 = vshrl.u32 %v6527, 7
    %v6529 = vsub.s32 7, %v6528
    %v6530 = vrot.slane %v6495, %v6529
    %v6531 = vlaneseq
    %v6532 = vshrl.u32 %v6531, 7
    %v6533 = vsub.s32 0, %v6532
    %v6534 = vrot.slane %v6496, %v6533
    %v6535 = vlaneseq
    %v6536 = vshrl.u32 %v6535, 7
    %v6537 = vsub.s32 1, %v6536
    %v6538 = vrot.slane %v6496, %v6537
    %v6539 = vlaneseq
    %v6540 = vshrl.u32 %v6539, 7
    %v6541 = vsub.s32 2, %v6540
    %v6542 = vrot.slane %v6496, %v6541
    %v6543 = vlaneseq
    %v6544 = vshrl.u32 %v6543, 7
    %v6545 = vsub.s32 3, %v6544
    %v6546 = vrot.slane %v6496, %v6545
    %v6547 = vlaneseq
    %v6548 = vshrl.u32 %v6547, 7
    %v6549 = vsub.s32 4, %v6548
    %v6550 = vrot.slane %v6496, %v6549
    %v6551 = vlaneseq
    %v6552 = vshrl.u32 %v6551, 7
    %v6553 = vsub.s32 5, %v6552
    %v6554 = vrot.slane %v6496, %v6553
    %v6555 = vlaneseq
    %v6556 = vshrl.u32 %v6555, 7
    %v6557 = vsub.s32 6, %v6556
    %v6558 = vrot.slane %v6496, %v6557
    %v6559 = vlaneseq
    %v6560 = vshrl.u32 %v6559, 7
    %v6561 = vsub.s32 7, %v6560
    %v6562 = vrot.slane %v6496, %v6561
    %v6579 = vmul.f32 %v6314, %v6502
    %v6580 = vmul.f32 %v6316, %v6506
    %v6581 = vmul.f32 %v6318, %v6510
    %v6582 = vmul.f32 %v6320, %v6514
    %v6583 = vmul.f32 %v6322, %v6518
    %v6584 = vmul.f32 %v6324, %v6522
    %v6585 = vmul.f32 %v6326, %v6526
    %v6586 = vmul.f32 %v6328, %v6530
    %v6587 = vmul.f32 %v6330, %v6534
    %v6588 = vmul.f32 %v6332, %v6538
    %v6589 = vmul.f32 %v6334, %v6542
    %v6590 = vmul.f32 %v6336, %v6546
    %v6591 = vmul.f32 %v6338, %v6550
    %v6592 = vmul.f32 %v6340, %v6554
    %v6593 = vmul.f32 %v6342, %v6558
    %v6594 = vmul.f32 %v6344, %v6562
    %6596 = vset.pattern.permute.xlu0 0
    %6597 = vperm.xlu0 %6596, %v6579
    %v6598 = vpop.permute.xlu0 %6597
    %v6599 = vlaneseq
    %v6600 = vshrl.u32 %v6599, 7
    %v6601 = vsub.s32 %v2520, %v6600
    %v6602 = vrot.slane %v6598, %v6601
    %v6603 = vcombine.low %v5639, %v5653
    %v6604 = vcombine.low %v5661, %v5663
    %v6606 = vunpack.c.l.s4 1966171168
    %v6607 = vunpack.c.0.s8 %v6606
    %v6608 = vlaneseq
    %v6609 = vshrl.u32 %v6608, 7
    %v6610 = vsub.s32 %v6607, %v6609
    %v6611 = vrot.slane %v6603, %v6610
    %v6613 = vunpack.c.l.s4 1966171168
    %v6614 = vunpack.c.0.s8 %v6613
    %v6615 = vlaneseq
    %v6616 = vshrl.u32 %v6615, 7
    %v6617 = vsub.s32 %v6614, %v6616
    %v6618 = vrot.slane %v6604, %v6617
    %v6620 = vunpack.c.l.s4 1966171168
    %v6621 = vunpack.c.0.s8 %v6620
    %v6622 = vlaneseq
    %v6623 = vshrl.u32 %v6622, 7
    %v6624 = vsub.s32 %v6621, %v6623
    %v6625 = vrot.slane %v5646, %v6624
    %v6626 = vcombine.low %v6611, %v6618
    %v6628 = vunpack.c.l.s4 1966171168
    %v6629 = vunpack.c.0.s8 %v6628
    %v6630 = vlaneseq
    %v6631 = vshrl.u32 %v6630, 7
    %v6632 = vsub.s32 %v6629, %v6631
    %v6633 = vrot.slane %v6626, %v6632
    %v6635 = vunpack.c.l.s4 1966171168
    %v6636 = vunpack.c.0.s8 %v6635
    %v6637 = vlaneseq
    %v6638 = vshrl.u32 %v6637, 7
    %v6639 = vsub.s32 %v6636, %v6638
    %v6640 = vrot.slane %v6625, %v6639
    %v6641 = vcombine.low %v6633, %v6640
    %v6642 = vsel %vm6208, %v6602, 0
    %v6644 = vsel %vm5531, %v6641, 0
    %6646 = vmatprep.subr.mxu0 0.0
    %6647 = vmatpush1.msra.mxu0 0.0
    %6648 = vmatprep.subr.mxu0 0.0
    %6649 = vmatpush1.msra.mxu0 0.0
    %6650 = vmatprep.subr.mxu0 0.0
    %6651 = vmatpush1.msra.mxu0 0.0
    %6652 = vmatprep.subr.mxu0 0.0
    %6653 = vmatpush1.msra.mxu0 0.0
    %6654 = vmatprep.subr.mxu0 0.0
    %6655 = vmatpush1.msra.mxu0 0.0
    %6656 = vmatprep.subr.mxu0 0.0
    %6657 = vmatpush1.msra.mxu0 0.0
    %6658 = vmatprep.subr.mxu0 0.0
    %6659 = vmatpush1.msra.mxu0 0.0
    %6660 = vmatprep.subr.mxu0 0.0
    %6661 = vmatpush1.msra.mxu0 0.0
    %6662 = vmatprep.subr.mxu0 0.0
    %6663 = vmatpush1.msra.mxu0 0.0
    %6664 = vmatprep.subr.mxu0 0.0
    %6665 = vmatpush1.msra.mxu0 0.0
    %6666 = vmatprep.subr.mxu0 0.0
    %6667 = vmatpush1.msra.mxu0 0.0
    %6668 = vmatprep.subr.mxu0 0.0
    %6669 = vmatpush1.msra.mxu0 0.0
    %6670 = vmatprep.subr.mxu0 0.0
    %6671 = vmatpush1.msra.mxu0 0.0
    %6672 = vmatprep.subr.mxu0 0.0
    %6673 = vmatpush1.msra.mxu0 0.0
    %6674 = vmatprep.subr.mxu0 0.0
    %6675 = vmatpush1.msra.mxu0 0.0
    %6676 = vmatprep.subr.mxu0 0.0
    %6677 = vmatpush1.msra.mxu0 %v6644
    %6678 = vmatprep.subr.mxu0 0.0
    %6679 = vmatpush2.msra.mxu0 0.0
    %6680 = vmatprep.subr.mxu0 0.0
    %6681 = vmatpush2.msra.mxu0 0.0
    %6682 = vmatprep.subr.mxu0 0.0
    %6683 = vmatpush2.msra.mxu0 0.0
    %6684 = vmatprep.subr.mxu0 0.0
    %6685 = vmatpush2.msra.mxu0 0.0
    %6686 = vmatprep.subr.mxu0 0.0
    %6687 = vmatpush2.msra.mxu0 0.0
    %6688 = vmatprep.subr.mxu0 0.0
    %6689 = vmatpush2.msra.mxu0 0.0
    %6690 = vmatprep.subr.mxu0 0.0
    %6691 = vmatpush2.msra.mxu0 0.0
    %6692 = vmatprep.subr.mxu0 0.0
    %6693 = vmatpush2.msra.mxu0 0.0
    %6694 = vmatprep.subr.mxu0 0.0
    %6695 = vmatpush2.msra.mxu0 0.0
    %6696 = vmatprep.subr.mxu0 0.0
    %6697 = vmatpush2.msra.mxu0 0.0
    %6698 = vmatprep.subr.mxu0 0.0
    %6699 = vmatpush2.msra.mxu0 0.0
    %6700 = vmatprep.subr.mxu0 0.0
    %6701 = vmatpush2.msra.mxu0 0.0
    %6702 = vmatprep.subr.mxu0 0.0
    %6703 = vmatpush2.msra.mxu0 0.0
    %6704 = vmatprep.subr.mxu0 0.0
    %6705 = vmatpush2.msra.mxu0 0.0
    %6706 = vmatprep.subr.mxu0 0.0
    %6707 = vmatpush2.msra.mxu0 0.0
    %6708 = vmatprep.subr.mxu0 0.0
    %6709 = vmatpush2.msra.mxu0 0.0
    %6710 = vmatprep.mubr.f32.mxu0 0.0
    %6711 = vmatmul.mubr.f32.gmra.mxu0 %v6642
    %v6712 = vpop.f32.mrf.mxu0
    %v6713 = vadd.f32 0.0, %v6712
    %v6714 = vpop.f32.mrf.mxu0
    %6715 = vdwg.mxu0
    %6717 = vset.pattern.permute.xlu0 0
    %6718 = vperm.xlu0 %6717, %v6580
    %v6719 = vpop.permute.xlu0 %6718
    %v6720 = vlaneseq
    %v6721 = vshrl.u32 %v6720, 7
    %v6722 = vsub.s32 %v2520, %v6721
    %v6723 = vrot.slane %v6719, %v6722
    %v6724 = vcombine.low %v5660, %v5662
    %v6725 = vcombine.low %v5664, %v5688
    %v6727 = vunpack.c.l.s4 1966171168
    %v6728 = vunpack.c.0.s8 %v6727
    %v6729 = vlaneseq
    %v6730 = vshrl.u32 %v6729, 7
    %v6731 = vsub.s32 %v6728, %v6730
    %v6732 = vrot.slane %v6724, %v6731
    %v6734 = vunpack.c.l.s4 1966171168
    %v6735 = vunpack.c.0.s8 %v6734
    %v6736 = vlaneseq
    %v6737 = vshrl.u32 %v6736, 7
    %v6738 = vsub.s32 %v6735, %v6737
    %v6739 = vrot.slane %v6725, %v6738
    %v6741 = vunpack.c.l.s4 1966171168
    %v6742 = vunpack.c.0.s8 %v6741
    %v6743 = vlaneseq
    %v6744 = vshrl.u32 %v6743, 7
    %v6745 = vsub.s32 %v6742, %v6744
    %v6746 = vrot.slane %v5702, %v6745
    %v6747 = vcombine.low %v6732, %v6739
    %v6749 = vunpack.c.l.s4 1966171168
    %v6750 = vunpack.c.0.s8 %v6749
    %v6751 = vlaneseq
    %v6752 = vshrl.u32 %v6751, 7
    %v6753 = vsub.s32 %v6750, %v6752
    %v6754 = vrot.slane %v6747, %v6753
    %v6756 = vunpack.c.l.s4 1966171168
    %v6757 = vunpack.c.0.s8 %v6756
    %v6758 = vlaneseq
    %v6759 = vshrl.u32 %v6758, 7
    %v6760 = vsub.s32 %v6757, %v6759
    %v6761 = vrot.slane %v6746, %v6760
    %v6762 = vcombine.low %v6754, %v6761
    %v6763 = vsel %vm6208, %v6723, 0
    %v6765 = vsel %vm5531, %v6762, 0
    %6767 = vmatprep.subr.mxu0 0.0
    %6768 = vmatpush1.msra.mxu0 0.0
    %6769 = vmatprep.subr.mxu0 0.0
    %6770 = vmatpush1.msra.mxu0 0.0
    %6771 = vmatprep.subr.mxu0 0.0
    %6772 = vmatpush1.msra.mxu0 0.0
    %6773 = vmatprep.subr.mxu0 0.0
    %6774 = vmatpush1.msra.mxu0 0.0
    %6775 = vmatprep.subr.mxu0 0.0
    %6776 = vmatpush1.msra.mxu0 0.0
    %6777 = vmatprep.subr.mxu0 0.0
    %6778 = vmatpush1.msra.mxu0 0.0
    %6779 = vmatprep.subr.mxu0 0.0
    %6780 = vmatpush1.msra.mxu0 0.0
    %6781 = vmatprep.subr.mxu0 0.0
    %6782 = vmatpush1.msra.mxu0 0.0
    %6783 = vmatprep.subr.mxu0 0.0
    %6784 = vmatpush1.msra.mxu0 0.0
    %6785 = vmatprep.subr.mxu0 0.0
    %6786 = vmatpush1.msra.mxu0 0.0
    %6787 = vmatprep.subr.mxu0 0.0
    %6788 = vmatpush1.msra.mxu0 0.0
    %6789 = vmatprep.subr.mxu0 0.0
    %6790 = vmatpush1.msra.mxu0 0.0
    %6791 = vmatprep.subr.mxu0 0.0
    %6792 = vmatpush1.msra.mxu0 0.0
    %6793 = vmatprep.subr.mxu0 0.0
    %6794 = vmatpush1.msra.mxu0 0.0
    %6795 = vmatprep.subr.mxu0 0.0
    %6796 = vmatpush1.msra.mxu0 0.0
    %6797 = vmatprep.subr.mxu0 0.0
    %6798 = vmatpush1.msra.mxu0 %v6765
    %6799 = vmatprep.subr.mxu0 0.0
    %6800 = vmatpush2.msra.mxu0 0.0
    %6801 = vmatprep.subr.mxu0 0.0
    %6802 = vmatpush2.msra.mxu0 0.0
    %6803 = vmatprep.subr.mxu0 0.0
    %6804 = vmatpush2.msra.mxu0 0.0
    %6805 = vmatprep.subr.mxu0 0.0
    %6806 = vmatpush2.msra.mxu0 0.0
    %6807 = vmatprep.subr.mxu0 0.0
    %6808 = vmatpush2.msra.mxu0 0.0
    %6809 = vmatprep.subr.mxu0 0.0
    %6810 = vmatpush2.msra.mxu0 0.0
    %6811 = vmatprep.subr.mxu0 0.0
    %6812 = vmatpush2.msra.mxu0 0.0
    %6813 = vmatprep.subr.mxu0 0.0
    %6814 = vmatpush2.msra.mxu0 0.0
    %6815 = vmatprep.subr.mxu0 0.0
    %6816 = vmatpush2.msra.mxu0 0.0
    %6817 = vmatprep.subr.mxu0 0.0
    %6818 = vmatpush2.msra.mxu0 0.0
    %6819 = vmatprep.subr.mxu0 0.0
    %6820 = vmatpush2.msra.mxu0 0.0
    %6821 = vmatprep.subr.mxu0 0.0
    %6822 = vmatpush2.msra.mxu0 0.0
    %6823 = vmatprep.subr.mxu0 0.0
    %6824 = vmatpush2.msra.mxu0 0.0
    %6825 = vmatprep.subr.mxu0 0.0
    %6826 = vmatpush2.msra.mxu0 0.0
    %6827 = vmatprep.subr.mxu0 0.0
    %6828 = vmatpush2.msra.mxu0 0.0
    %6829 = vmatprep.subr.mxu0 0.0
    %6830 = vmatpush2.msra.mxu0 0.0
    %6831 = vmatprep.mubr.f32.mxu0 0.0
    %6832 = vmatmul.mubr.f32.gmra.mxu0 %v6763
    %v6833 = vpop.f32.mrf.mxu0
    %v6834 = vadd.f32 0.0, %v6833
    %v6835 = vpop.f32.mrf.mxu0
    %6836 = vdwg.mxu0
    %6838 = vset.pattern.permute.xlu0 0
    %6839 = vperm.xlu0 %6838, %v6581
    %v6840 = vpop.permute.xlu0 %6839
    %v6841 = vlaneseq
    %v6842 = vshrl.u32 %v6841, 7
    %v6843 = vsub.s32 %v2520, %v6842
    %v6844 = vrot.slane %v6840, %v6843
    %v6845 = vcombine.low %v5710, %v5712
    %v6846 = vcombine.low %v5695, %v5709
    %v6848 = vunpack.c.l.s4 1966171168
    %v6849 = vunpack.c.0.s8 %v6848
    %v6850 = vlaneseq
    %v6851 = vshrl.u32 %v6850, 7
    %v6852 = vsub.s32 %v6849, %v6851
    %v6853 = vrot.slane %v6845, %v6852
    %v6855 = vunpack.c.l.s4 1966171168
    %v6856 = vunpack.c.0.s8 %v6855
    %v6857 = vlaneseq
    %v6858 = vshrl.u32 %v6857, 7
    %v6859 = vsub.s32 %v6856, %v6858
    %v6860 = vrot.slane %v6846, %v6859
    %v6862 = vunpack.c.l.s4 1966171168
    %v6863 = vunpack.c.0.s8 %v6862
    %v6864 = vlaneseq
    %v6865 = vshrl.u32 %v6864, 7
    %v6866 = vsub.s32 %v6863, %v6865
    %v6867 = vrot.slane %v5711, %v6866
    %v6868 = vcombine.low %v6853, %v6860
    %v6870 = vunpack.c.l.s4 1966171168
    %v6871 = vunpack.c.0.s8 %v6870
    %v6872 = vlaneseq
    %v6873 = vshrl.u32 %v6872, 7
    %v6874 = vsub.s32 %v6871, %v6873
    %v6875 = vrot.slane %v6868, %v6874
    %v6877 = vunpack.c.l.s4 1966171168
    %v6878 = vunpack.c.0.s8 %v6877
    %v6879 = vlaneseq
    %v6880 = vshrl.u32 %v6879, 7
    %v6881 = vsub.s32 %v6878, %v6880
    %v6882 = vrot.slane %v6867, %v6881
    %v6883 = vcombine.low %v6875, %v6882
    %v6884 = vsel %vm6208, %v6844, 0
    %v6886 = vsel %vm5531, %v6883, 0
    %6888 = vmatprep.subr.mxu0 0.0
    %6889 = vmatpush1.msra.mxu0 0.0
    %6890 = vmatprep.subr.mxu0 0.0
    %6891 = vmatpush1.msra.mxu0 0.0
    %6892 = vmatprep.subr.mxu0 0.0
    %6893 = vmatpush1.msra.mxu0 0.0
    %6894 = vmatprep.subr.mxu0 0.0
    %6895 = vmatpush1.msra.mxu0 0.0
    %6896 = vmatprep.subr.mxu0 0.0
    %6897 = vmatpush1.msra.mxu0 0.0
    %6898 = vmatprep.subr.mxu0 0.0
    %6899 = vmatpush1.msra.mxu0 0.0
    %6900 = vmatprep.subr.mxu0 0.0
    %6901 = vmatpush1.msra.mxu0 0.0
    %6902 = vmatprep.subr.mxu0 0.0
    %6903 = vmatpush1.msra.mxu0 0.0
    %6904 = vmatprep.subr.mxu0 0.0
    %6905 = vmatpush1.msra.mxu0 0.0
    %6906 = vmatprep.subr.mxu0 0.0
    %6907 = vmatpush1.msra.mxu0 0.0
    %6908 = vmatprep.subr.mxu0 0.0
    %6909 = vmatpush1.msra.mxu0 0.0
    %6910 = vmatprep.subr.mxu0 0.0
    %6911 = vmatpush1.msra.mxu0 0.0
    %6912 = vmatprep.subr.mxu0 0.0
    %6913 = vmatpush1.msra.mxu0 0.0
    %6914 = vmatprep.subr.mxu0 0.0
    %6915 = vmatpush1.msra.mxu0 0.0
    %6916 = vmatprep.subr.mxu0 0.0
    %6917 = vmatpush1.msra.mxu0 0.0
    %6918 = vmatprep.subr.mxu0 0.0
    %6919 = vmatpush1.msra.mxu0 %v6886
    %6920 = vmatprep.subr.mxu0 0.0
    %6921 = vmatpush2.msra.mxu0 0.0
    %6922 = vmatprep.subr.mxu0 0.0
    %6923 = vmatpush2.msra.mxu0 0.0
    %6924 = vmatprep.subr.mxu0 0.0
    %6925 = vmatpush2.msra.mxu0 0.0
    %6926 = vmatprep.subr.mxu0 0.0
    %6927 = vmatpush2.msra.mxu0 0.0
    %6928 = vmatprep.subr.mxu0 0.0
    %6929 = vmatpush2.msra.mxu0 0.0
    %6930 = vmatprep.subr.mxu0 0.0
    %6931 = vmatpush2.msra.mxu0 0.0
    %6932 = vmatprep.subr.mxu0 0.0
    %6933 = vmatpush2.msra.mxu0 0.0
    %6934 = vmatprep.subr.mxu0 0.0
    %6935 = vmatpush2.msra.mxu0 0.0
    %6936 = vmatprep.subr.mxu0 0.0
    %6937 = vmatpush2.msra.mxu0 0.0
    %6938 = vmatprep.subr.mxu0 0.0
    %6939 = vmatpush2.msra.mxu0 0.0
    %6940 = vmatprep.subr.mxu0 0.0
    %6941 = vmatpush2.msra.mxu0 0.0
    %6942 = vmatprep.subr.mxu0 0.0
    %6943 = vmatpush2.msra.mxu0 0.0
    %6944 = vmatprep.subr.mxu0 0.0
    %6945 = vmatpush2.msra.mxu0 0.0
    %6946 = vmatprep.subr.mxu0 0.0
    %6947 = vmatpush2.msra.mxu0 0.0
    %6948 = vmatprep.subr.mxu0 0.0
    %6949 = vmatpush2.msra.mxu0 0.0
    %6950 = vmatprep.subr.mxu0 0.0
    %6951 = vmatpush2.msra.mxu0 0.0
    %6952 = vmatprep.mubr.f32.mxu0 0.0
    %6953 = vmatmul.mubr.f32.gmra.mxu0 %v6884
    %v6954 = vpop.f32.mrf.mxu0
    %v6955 = vadd.f32 0.0, %v6954
    %v6956 = vpop.f32.mrf.mxu0
    %6957 = vdwg.mxu0
    %6959 = vset.pattern.permute.xlu0 0
    %6960 = vperm.xlu0 %6959, %v6582
    %v6961 = vpop.permute.xlu0 %6960
    %v6962 = vlaneseq
    %v6963 = vshrl.u32 %v6962, 7
    %v6964 = vsub.s32 %v2520, %v6963
    %v6965 = vrot.slane %v6961, %v6964
    %v6966 = vcombine.low %v5713, %v5737
    %v6967 = vcombine.low %v5751, %v5759
    %v6969 = vunpack.c.l.s4 1966171168
    %v6970 = vunpack.c.0.s8 %v6969
    %v6971 = vlaneseq
    %v6972 = vshrl.u32 %v6971, 7
    %v6973 = vsub.s32 %v6970, %v6972
    %v6974 = vrot.slane %v6966, %v6973
    %v6976 = vunpack.c.l.s4 1966171168
    %v6977 = vunpack.c.0.s8 %v6976
    %v6978 = vlaneseq
    %v6979 = vshrl.u32 %v6978, 7
    %v6980 = vsub.s32 %v6977, %v6979
    %v6981 = vrot.slane %v6967, %v6980
    %v6983 = vunpack.c.l.s4 1966171168
    %v6984 = vunpack.c.0.s8 %v6983
    %v6985 = vlaneseq
    %v6986 = vshrl.u32 %v6985, 7
    %v6987 = vsub.s32 %v6984, %v6986
    %v6988 = vrot.slane %v5761, %v6987
    %v6989 = vcombine.low %v6974, %v6981
    %v6991 = vunpack.c.l.s4 1966171168
    %v6992 = vunpack.c.0.s8 %v6991
    %v6993 = vlaneseq
    %v6994 = vshrl.u32 %v6993, 7
    %v6995 = vsub.s32 %v6992, %v6994
    %v6996 = vrot.slane %v6989, %v6995
    %v6998 = vunpack.c.l.s4 1966171168
    %v6999 = vunpack.c.0.s8 %v6998
    %v7000 = vlaneseq
    %v7001 = vshrl.u32 %v7000, 7
    %v7002 = vsub.s32 %v6999, %v7001
    %v7003 = vrot.slane %v6988, %v7002
    %v7004 = vcombine.low %v6996, %v7003
    %v7005 = vsel %vm6208, %v6965, 0
    %v7007 = vsel %vm5531, %v7004, 0
    %7009 = vmatprep.subr.mxu0 0.0
    %7010 = vmatpush1.msra.mxu0 0.0
    %7011 = vmatprep.subr.mxu0 0.0
    %7012 = vmatpush1.msra.mxu0 0.0
    %7013 = vmatprep.subr.mxu0 0.0
    %7014 = vmatpush1.msra.mxu0 0.0
    %7015 = vmatprep.subr.mxu0 0.0
    %7016 = vmatpush1.msra.mxu0 0.0
    %7017 = vmatprep.subr.mxu0 0.0
    %7018 = vmatpush1.msra.mxu0 0.0
    %7019 = vmatprep.subr.mxu0 0.0
    %7020 = vmatpush1.msra.mxu0 0.0
    %7021 = vmatprep.subr.mxu0 0.0
    %7022 = vmatpush1.msra.mxu0 0.0
    %7023 = vmatprep.subr.mxu0 0.0
    %7024 = vmatpush1.msra.mxu0 0.0
    %7025 = vmatprep.subr.mxu0 0.0
    %7026 = vmatpush1.msra.mxu0 0.0
    %7027 = vmatprep.subr.mxu0 0.0
    %7028 = vmatpush1.msra.mxu0 0.0
    %7029 = vmatprep.subr.mxu0 0.0
    %7030 = vmatpush1.msra.mxu0 0.0
    %7031 = vmatprep.subr.mxu0 0.0
    %7032 = vmatpush1.msra.mxu0 0.0
    %7033 = vmatprep.subr.mxu0 0.0
    %7034 = vmatpush1.msra.mxu0 0.0
    %7035 = vmatprep.subr.mxu0 0.0
    %7036 = vmatpush1.msra.mxu0 0.0
    %7037 = vmatprep.subr.mxu0 0.0
    %7038 = vmatpush1.msra.mxu0 0.0
    %7039 = vmatprep.subr.mxu0 0.0
    %7040 = vmatpush1.msra.mxu0 %v7007
    %7041 = vmatprep.subr.mxu0 0.0
    %7042 = vmatpush2.msra.mxu0 0.0
    %7043 = vmatprep.subr.mxu0 0.0
    %7044 = vmatpush2.msra.mxu0 0.0
    %7045 = vmatprep.subr.mxu0 0.0
    %7046 = vmatpush2.msra.mxu0 0.0
    %7047 = vmatprep.subr.mxu0 0.0
    %7048 = vmatpush2.msra.mxu0 0.0
    %7049 = vmatprep.subr.mxu0 0.0
    %7050 = vmatpush2.msra.mxu0 0.0
    %7051 = vmatprep.subr.mxu0 0.0
    %7052 = vmatpush2.msra.mxu0 0.0
    %7053 = vmatprep.subr.mxu0 0.0
    %7054 = vmatpush2.msra.mxu0 0.0
    %7055 = vmatprep.subr.mxu0 0.0
    %7056 = vmatpush2.msra.mxu0 0.0
    %7057 = vmatprep.subr.mxu0 0.0
    %7058 = vmatpush2.msra.mxu0 0.0
    %7059 = vmatprep.subr.mxu0 0.0
    %7060 = vmatpush2.msra.mxu0 0.0
    %7061 = vmatprep.subr.mxu0 0.0
    %7062 = vmatpush2.msra.mxu0 0.0
    %7063 = vmatprep.subr.mxu0 0.0
    %7064 = vmatpush2.msra.mxu0 0.0
    %7065 = vmatprep.subr.mxu0 0.0
    %7066 = vmatpush2.msra.mxu0 0.0
    %7067 = vmatprep.subr.mxu0 0.0
    %7068 = vmatpush2.msra.mxu0 0.0
    %7069 = vmatprep.subr.mxu0 0.0
    %7070 = vmatpush2.msra.mxu0 0.0
    %7071 = vmatprep.subr.mxu0 0.0
    %7072 = vmatpush2.msra.mxu0 0.0
    %7073 = vmatprep.mubr.f32.mxu0 0.0
    %7074 = vmatmul.mubr.f32.gmra.mxu0 %v7005
    %v7075 = vpop.f32.mrf.mxu0
    %v7076 = vadd.f32 0.0, %v7075
    %v7077 = vpop.f32.mrf.mxu0
    %7078 = vdwg.mxu0
    %7080 = vset.pattern.permute.xlu0 0
    %7081 = vperm.xlu0 %7080, %v6583
    %v7082 = vpop.permute.xlu0 %7081
    %v7083 = vlaneseq
    %v7084 = vshrl.u32 %v7083, 7
    %v7085 = vsub.s32 %v2520, %v7084
    %v7086 = vrot.slane %v7082, %v7085
    %v7087 = vcombine.low %v5744, %v5758
    %v7088 = vcombine.low %v5760, %v5762
    %v7090 = vunpack.c.l.s4 1966171168
    %v7091 = vunpack.c.0.s8 %v7090
    %v7092 = vlaneseq
    %v7093 = vshrl.u32 %v7092, 7
    %v7094 = vsub.s32 %v7091, %v7093
    %v7095 = vrot.slane %v7087, %v7094
    %v7097 = vunpack.c.l.s4 1966171168
    %v7098 = vunpack.c.0.s8 %v7097
    %v7099 = vlaneseq
    %v7100 = vshrl.u32 %v7099, 7
    %v7101 = vsub.s32 %v7098, %v7100
    %v7102 = vrot.slane %v7088, %v7101
    %v7104 = vunpack.c.l.s4 1966171168
    %v7105 = vunpack.c.0.s8 %v7104
    %v7106 = vlaneseq
    %v7107 = vshrl.u32 %v7106, 7
    %v7108 = vsub.s32 %v7105, %v7107
    %v7109 = vrot.slane %v5786, %v7108
    %v7110 = vcombine.low %v7095, %v7102
    %v7112 = vunpack.c.l.s4 1966171168
    %v7113 = vunpack.c.0.s8 %v7112
    %v7114 = vlaneseq
    %v7115 = vshrl.u32 %v7114, 7
    %v7116 = vsub.s32 %v7113, %v7115
    %v7117 = vrot.slane %v7110, %v7116
    %v7119 = vunpack.c.l.s4 1966171168
    %v7120 = vunpack.c.0.s8 %v7119
    %v7121 = vlaneseq
    %v7122 = vshrl.u32 %v7121, 7
    %v7123 = vsub.s32 %v7120, %v7122
    %v7124 = vrot.slane %v7109, %v7123
    %v7125 = vcombine.low %v7117, %v7124
    %v7126 = vsel %vm6208, %v7086, 0
    %v7128 = vsel %vm5531, %v7125, 0
    %7130 = vmatprep.subr.mxu0 0.0
    %7131 = vmatpush1.msra.mxu0 0.0
    %7132 = vmatprep.subr.mxu0 0.0
    %7133 = vmatpush1.msra.mxu0 0.0
    %7134 = vmatprep.subr.mxu0 0.0
    %7135 = vmatpush1.msra.mxu0 0.0
    %7136 = vmatprep.subr.mxu0 0.0
    %7137 = vmatpush1.msra.mxu0 0.0
    %7138 = vmatprep.subr.mxu0 0.0
    %7139 = vmatpush1.msra.mxu0 0.0
    %7140 = vmatprep.subr.mxu0 0.0
    %7141 = vmatpush1.msra.mxu0 0.0
    %7142 = vmatprep.subr.mxu0 0.0
    %7143 = vmatpush1.msra.mxu0 0.0
    %7144 = vmatprep.subr.mxu0 0.0
    %7145 = vmatpush1.msra.mxu0 0.0
    %7146 = vmatprep.subr.mxu0 0.0
    %7147 = vmatpush1.msra.mxu0 0.0
    %7148 = vmatprep.subr.mxu0 0.0
    %7149 = vmatpush1.msra.mxu0 0.0
    %7150 = vmatprep.subr.mxu0 0.0
    %7151 = vmatpush1.msra.mxu0 0.0
    %7152 = vmatprep.subr.mxu0 0.0
    %7153 = vmatpush1.msra.mxu0 0.0
    %7154 = vmatprep.subr.mxu0 0.0
    %7155 = vmatpush1.msra.mxu0 0.0
    %7156 = vmatprep.subr.mxu0 0.0
    %7157 = vmatpush1.msra.mxu0 0.0
    %7158 = vmatprep.subr.mxu0 0.0
    %7159 = vmatpush1.msra.mxu0 0.0
    %7160 = vmatprep.subr.mxu0 0.0
    %7161 = vmatpush1.msra.mxu0 %v7128
    %7162 = vmatprep.subr.mxu0 0.0
    %7163 = vmatpush2.msra.mxu0 0.0
    %7164 = vmatprep.subr.mxu0 0.0
    %7165 = vmatpush2.msra.mxu0 0.0
    %7166 = vmatprep.subr.mxu0 0.0
    %7167 = vmatpush2.msra.mxu0 0.0
    %7168 = vmatprep.subr.mxu0 0.0
    %7169 = vmatpush2.msra.mxu0 0.0
    %7170 = vmatprep.subr.mxu0 0.0
    %7171 = vmatpush2.msra.mxu0 0.0
    %7172 = vmatprep.subr.mxu0 0.0
    %7173 = vmatpush2.msra.mxu0 0.0
    %7174 = vmatprep.subr.mxu0 0.0
    %7175 = vmatpush2.msra.mxu0 0.0
    %7176 = vmatprep.subr.mxu0 0.0
    %7177 = vmatpush2.msra.mxu0 0.0
    %7178 = vmatprep.subr.mxu0 0.0
    %7179 = vmatpush2.msra.mxu0 0.0
    %7180 = vmatprep.subr.mxu0 0.0
    %7181 = vmatpush2.msra.mxu0 0.0
    %7182 = vmatprep.subr.mxu0 0.0
    %7183 = vmatpush2.msra.mxu0 0.0
    %7184 = vmatprep.subr.mxu0 0.0
    %7185 = vmatpush2.msra.mxu0 0.0
    %7186 = vmatprep.subr.mxu0 0.0
    %7187 = vmatpush2.msra.mxu0 0.0
    %7188 = vmatprep.subr.mxu0 0.0
    %7189 = vmatpush2.msra.mxu0 0.0
    %7190 = vmatprep.subr.mxu0 0.0
    %7191 = vmatpush2.msra.mxu0 0.0
    %7192 = vmatprep.subr.mxu0 0.0
    %7193 = vmatpush2.msra.mxu0 0.0
    %7194 = vmatprep.mubr.f32.mxu0 0.0
    %7195 = vmatmul.mubr.f32.gmra.mxu0 %v7126
    %v7196 = vpop.f32.mrf.mxu0
    %v7197 = vadd.f32 0.0, %v7196
    %v7198 = vpop.f32.mrf.mxu0
    %7199 = vdwg.mxu0
    %7201 = vset.pattern.permute.xlu0 0
    %7202 = vperm.xlu0 %7201, %v6584
    %v7203 = vpop.permute.xlu0 %7202
    %v7204 = vlaneseq
    %v7205 = vshrl.u32 %v7204, 7
    %v7206 = vsub.s32 %v2520, %v7205
    %v7207 = vrot.slane %v7203, %v7206
    %v7208 = vcombine.low %v5800, %v5808
    %v7209 = vcombine.low %v5810, %v5793
    %v7211 = vunpack.c.l.s4 1966171168
    %v7212 = vunpack.c.0.s8 %v7211
    %v7213 = vlaneseq
    %v7214 = vshrl.u32 %v7213, 7
    %v7215 = vsub.s32 %v7212, %v7214
    %v7216 = vrot.slane %v7208, %v7215
    %v7218 = vunpack.c.l.s4 1966171168
    %v7219 = vunpack.c.0.s8 %v7218
    %v7220 = vlaneseq
    %v7221 = vshrl.u32 %v7220, 7
    %v7222 = vsub.s32 %v7219, %v7221
    %v7223 = vrot.slane %v7209, %v7222
    %v7225 = vunpack.c.l.s4 1966171168
    %v7226 = vunpack.c.0.s8 %v7225
    %v7227 = vlaneseq
    %v7228 = vshrl.u32 %v7227, 7
    %v7229 = vsub.s32 %v7226, %v7228
    %v7230 = vrot.slane %v5807, %v7229
    %v7231 = vcombine.low %v7216, %v7223
    %v7233 = vunpack.c.l.s4 1966171168
    %v7234 = vunpack.c.0.s8 %v7233
    %v7235 = vlaneseq
    %v7236 = vshrl.u32 %v7235, 7
    %v7237 = vsub.s32 %v7234, %v7236
    %v7238 = vrot.slane %v7231, %v7237
    %v7240 = vunpack.c.l.s4 1966171168
    %v7241 = vunpack.c.0.s8 %v7240
    %v7242 = vlaneseq
    %v7243 = vshrl.u32 %v7242, 7
    %v7244 = vsub.s32 %v7241, %v7243
    %v7245 = vrot.slane %v7230, %v7244
    %v7246 = vcombine.low %v7238, %v7245
    %v7247 = vsel %vm6208, %v7207, 0
    %v7249 = vsel %vm5531, %v7246, 0
    %7251 = vmatprep.subr.mxu0 0.0
    %7252 = vmatpush1.msra.mxu0 0.0
    %7253 = vmatprep.subr.mxu0 0.0
    %7254 = vmatpush1.msra.mxu0 0.0
    %7255 = vmatprep.subr.mxu0 0.0
    %7256 = vmatpush1.msra.mxu0 0.0
    %7257 = vmatprep.subr.mxu0 0.0
    %7258 = vmatpush1.msra.mxu0 0.0
    %7259 = vmatprep.subr.mxu0 0.0
    %7260 = vmatpush1.msra.mxu0 0.0
    %7261 = vmatprep.subr.mxu0 0.0
    %7262 = vmatpush1.msra.mxu0 0.0
    %7263 = vmatprep.subr.mxu0 0.0
    %7264 = vmatpush1.msra.mxu0 0.0
    %7265 = vmatprep.subr.mxu0 0.0
    %7266 = vmatpush1.msra.mxu0 0.0
    %7267 = vmatprep.subr.mxu0 0.0
    %7268 = vmatpush1.msra.mxu0 0.0
    %7269 = vmatprep.subr.mxu0 0.0
    %7270 = vmatpush1.msra.mxu0 0.0
    %7271 = vmatprep.subr.mxu0 0.0
    %7272 = vmatpush1.msra.mxu0 0.0
    %7273 = vmatprep.subr.mxu0 0.0
    %7274 = vmatpush1.msra.mxu0 0.0
    %7275 = vmatprep.subr.mxu0 0.0
    %7276 = vmatpush1.msra.mxu0 0.0
    %7277 = vmatprep.subr.mxu0 0.0
    %7278 = vmatpush1.msra.mxu0 0.0
    %7279 = vmatprep.subr.mxu0 0.0
    %7280 = vmatpush1.msra.mxu0 0.0
    %7281 = vmatprep.subr.mxu0 0.0
    %7282 = vmatpush1.msra.mxu0 %v7249
    %7283 = vmatprep.subr.mxu0 0.0
    %7284 = vmatpush2.msra.mxu0 0.0
    %7285 = vmatprep.subr.mxu0 0.0
    %7286 = vmatpush2.msra.mxu0 0.0
    %7287 = vmatprep.subr.mxu0 0.0
    %7288 = vmatpush2.msra.mxu0 0.0
    %7289 = vmatprep.subr.mxu0 0.0
    %7290 = vmatpush2.msra.mxu0 0.0
    %7291 = vmatprep.subr.mxu0 0.0
    %7292 = vmatpush2.msra.mxu0 0.0
    %7293 = vmatprep.subr.mxu0 0.0
    %7294 = vmatpush2.msra.mxu0 0.0
    %7295 = vmatprep.subr.mxu0 0.0
    %7296 = vmatpush2.msra.mxu0 0.0
    %7297 = vmatprep.subr.mxu0 0.0
    %7298 = vmatpush2.msra.mxu0 0.0
    %7299 = vmatprep.subr.mxu0 0.0
    %7300 = vmatpush2.msra.mxu0 0.0
    %7301 = vmatprep.subr.mxu0 0.0
    %7302 = vmatpush2.msra.mxu0 0.0
    %7303 = vmatprep.subr.mxu0 0.0
    %7304 = vmatpush2.msra.mxu0 0.0
    %7305 = vmatprep.subr.mxu0 0.0
    %7306 = vmatpush2.msra.mxu0 0.0
    %7307 = vmatprep.subr.mxu0 0.0
    %7308 = vmatpush2.msra.mxu0 0.0
    %7309 = vmatprep.subr.mxu0 0.0
    %7310 = vmatpush2.msra.mxu0 0.0
    %7311 = vmatprep.subr.mxu0 0.0
    %7312 = vmatpush2.msra.mxu0 0.0
    %7313 = vmatprep.subr.mxu0 0.0
    %7314 = vmatpush2.msra.mxu0 0.0
    %7315 = vmatprep.mubr.f32.mxu0 0.0
    %7316 = vmatmul.mubr.f32.gmra.mxu0 %v7247
    %v7317 = vpop.f32.mrf.mxu0
    %v7318 = vadd.f32 0.0, %v7317
    %v7319 = vpop.f32.mrf.mxu0
    %7320 = vdwg.mxu0
    %7322 = vset.pattern.permute.xlu0 0
    %7323 = vperm.xlu0 %7322, %v6585
    %v7324 = vpop.permute.xlu0 %7323
    %v7325 = vlaneseq
    %v7326 = vshrl.u32 %v7325, 7
    %v7327 = vsub.s32 %v2520, %v7326
    %v7328 = vrot.slane %v7324, %v7327
    %v7329 = vcombine.low %v5809, %v5811
    %v7330 = vcombine.low %v5835, %v5849
    %v7332 = vunpack.c.l.s4 1966171168
    %v7333 = vunpack.c.0.s8 %v7332
    %v7334 = vlaneseq
    %v7335 = vshrl.u32 %v7334, 7
    %v7336 = vsub.s32 %v7333, %v7335
    %v7337 = vrot.slane %v7329, %v7336
    %v7339 = vunpack.c.l.s4 1966171168
    %v7340 = vunpack.c.0.s8 %v7339
    %v7341 = vlaneseq
    %v7342 = vshrl.u32 %v7341, 7
    %v7343 = vsub.s32 %v7340, %v7342
    %v7344 = vrot.slane %v7330, %v7343
    %v7346 = vunpack.c.l.s4 1966171168
    %v7347 = vunpack.c.0.s8 %v7346
    %v7348 = vlaneseq
    %v7349 = vshrl.u32 %v7348, 7
    %v7350 = vsub.s32 %v7347, %v7349
    %v7351 = vrot.slane %v5857, %v7350
    %v7352 = vcombine.low %v7337, %v7344
    %v7354 = vunpack.c.l.s4 1966171168
    %v7355 = vunpack.c.0.s8 %v7354
    %v7356 = vlaneseq
    %v7357 = vshrl.u32 %v7356, 7
    %v7358 = vsub.s32 %v7355, %v7357
    %v7359 = vrot.slane %v7352, %v7358
    %v7361 = vunpack.c.l.s4 1966171168
    %v7362 = vunpack.c.0.s8 %v7361
    %v7363 = vlaneseq
    %v7364 = vshrl.u32 %v7363, 7
    %v7365 = vsub.s32 %v7362, %v7364
    %v7366 = vrot.slane %v7351, %v7365
    %v7367 = vcombine.low %v7359, %v7366
    %v7368 = vsel %vm6208, %v7328, 0
    %v7370 = vsel %vm5531, %v7367, 0
    %7372 = vmatprep.subr.mxu0 0.0
    %7373 = vmatpush1.msra.mxu0 0.0
    %7374 = vmatprep.subr.mxu0 0.0
    %7375 = vmatpush1.msra.mxu0 0.0
    %7376 = vmatprep.subr.mxu0 0.0
    %7377 = vmatpush1.msra.mxu0 0.0
    %7378 = vmatprep.subr.mxu0 0.0
    %7379 = vmatpush1.msra.mxu0 0.0
    %7380 = vmatprep.subr.mxu0 0.0
    %7381 = vmatpush1.msra.mxu0 0.0
    %7382 = vmatprep.subr.mxu0 0.0
    %7383 = vmatpush1.msra.mxu0 0.0
    %7384 = vmatprep.subr.mxu0 0.0
    %7385 = vmatpush1.msra.mxu0 0.0
    %7386 = vmatprep.subr.mxu0 0.0
    %7387 = vmatpush1.msra.mxu0 0.0
    %7388 = vmatprep.subr.mxu0 0.0
    %7389 = vmatpush1.msra.mxu0 0.0
    %7390 = vmatprep.subr.mxu0 0.0
    %7391 = vmatpush1.msra.mxu0 0.0
    %7392 = vmatprep.subr.mxu0 0.0
    %7393 = vmatpush1.msra.mxu0 0.0
    %7394 = vmatprep.subr.mxu0 0.0
    %7395 = vmatpush1.msra.mxu0 0.0
    %7396 = vmatprep.subr.mxu0 0.0
    %7397 = vmatpush1.msra.mxu0 0.0
    %7398 = vmatprep.subr.mxu0 0.0
    %7399 = vmatpush1.msra.mxu0 0.0
    %7400 = vmatprep.subr.mxu0 0.0
    %7401 = vmatpush1.msra.mxu0 0.0
    %7402 = vmatprep.subr.mxu0 0.0
    %7403 = vmatpush1.msra.mxu0 %v7370
    %7404 = vmatprep.subr.mxu0 0.0
    %7405 = vmatpush2.msra.mxu0 0.0
    %7406 = vmatprep.subr.mxu0 0.0
    %7407 = vmatpush2.msra.mxu0 0.0
    %7408 = vmatprep.subr.mxu0 0.0
    %7409 = vmatpush2.msra.mxu0 0.0
    %7410 = vmatprep.subr.mxu0 0.0
    %7411 = vmatpush2.msra.mxu0 0.0
    %7412 = vmatprep.subr.mxu0 0.0
    %7413 = vmatpush2.msra.mxu0 0.0
    %7414 = vmatprep.subr.mxu0 0.0
    %7415 = vmatpush2.msra.mxu0 0.0
    %7416 = vmatprep.subr.mxu0 0.0
    %7417 = vmatpush2.msra.mxu0 0.0
    %7418 = vmatprep.subr.mxu0 0.0
    %7419 = vmatpush2.msra.mxu0 0.0
    %7420 = vmatprep.subr.mxu0 0.0
    %7421 = vmatpush2.msra.mxu0 0.0
    %7422 = vmatprep.subr.mxu0 0.0
    %7423 = vmatpush2.msra.mxu0 0.0
    %7424 = vmatprep.subr.mxu0 0.0
    %7425 = vmatpush2.msra.mxu0 0.0
    %7426 = vmatprep.subr.mxu0 0.0
    %7427 = vmatpush2.msra.mxu0 0.0
    %7428 = vmatprep.subr.mxu0 0.0
    %7429 = vmatpush2.msra.mxu0 0.0
    %7430 = vmatprep.subr.mxu0 0.0
    %7431 = vmatpush2.msra.mxu0 0.0
    %7432 = vmatprep.subr.mxu0 0.0
    %7433 = vmatpush2.msra.mxu0 0.0
    %7434 = vmatprep.subr.mxu0 0.0
    %7435 = vmatpush2.msra.mxu0 0.0
    %7436 = vmatprep.mubr.f32.mxu0 0.0
    %7437 = vmatmul.mubr.f32.gmra.mxu0 %v7368
    %v7438 = vpop.f32.mrf.mxu0
    %v7439 = vadd.f32 0.0, %v7438
    %v7440 = vpop.f32.mrf.mxu0
    %7441 = vdwg.mxu0
    %7443 = vset.pattern.permute.xlu0 0
    %7444 = vperm.xlu0 %7443, %v6586
    %v7445 = vpop.permute.xlu0 %7444
    %v7446 = vlaneseq
    %v7447 = vshrl.u32 %v7446, 7
    %v7448 = vsub.s32 %v2520, %v7447
    %v7449 = vrot.slane %v7445, %v7448
    %v7450 = vcombine.low %v5859, %v5842
    %v7451 = vcombine.low %v5856, %v5858
    %v7453 = vunpack.c.l.s4 1966171168
    %v7454 = vunpack.c.0.s8 %v7453
    %v7455 = vlaneseq
    %v7456 = vshrl.u32 %v7455, 7
    %v7457 = vsub.s32 %v7454, %v7456
    %v7458 = vrot.slane %v7450, %v7457
    %v7460 = vunpack.c.l.s4 1966171168
    %v7461 = vunpack.c.0.s8 %v7460
    %v7462 = vlaneseq
    %v7463 = vshrl.u32 %v7462, 7
    %v7464 = vsub.s32 %v7461, %v7463
    %v7465 = vrot.slane %v7451, %v7464
    %v7467 = vunpack.c.l.s4 1966171168
    %v7468 = vunpack.c.0.s8 %v7467
    %v7469 = vlaneseq
    %v7470 = vshrl.u32 %v7469, 7
    %v7471 = vsub.s32 %v7468, %v7470
    %v7472 = vrot.slane %v5860, %v7471
    %v7473 = vcombine.low %v7458, %v7465
    %v7475 = vunpack.c.l.s4 1966171168
    %v7476 = vunpack.c.0.s8 %v7475
    %v7477 = vlaneseq
    %v7478 = vshrl.u32 %v7477, 7
    %v7479 = vsub.s32 %v7476, %v7478
    %v7480 = vrot.slane %v7473, %v7479
    %v7482 = vunpack.c.l.s4 1966171168
    %v7483 = vunpack.c.0.s8 %v7482
    %v7484 = vlaneseq
    %v7485 = vshrl.u32 %v7484, 7
    %v7486 = vsub.s32 %v7483, %v7485
    %v7487 = vrot.slane %v7472, %v7486
    %v7488 = vcombine.low %v7480, %v7487
    %v7489 = vsel %vm6208, %v7449, 0
    %v7491 = vsel %vm5531, %v7488, 0
    %7493 = vmatprep.subr.mxu0 0.0
    %7494 = vmatpush1.msra.mxu0 0.0
    %7495 = vmatprep.subr.mxu0 0.0
    %7496 = vmatpush1.msra.mxu0 0.0
    %7497 = vmatprep.subr.mxu0 0.0
    %7498 = vmatpush1.msra.mxu0 0.0
    %7499 = vmatprep.subr.mxu0 0.0
    %7500 = vmatpush1.msra.mxu0 0.0
    %7501 = vmatprep.subr.mxu0 0.0
    %7502 = vmatpush1.msra.mxu0 0.0
    %7503 = vmatprep.subr.mxu0 0.0
    %7504 = vmatpush1.msra.mxu0 0.0
    %7505 = vmatprep.subr.mxu0 0.0
    %7506 = vmatpush1.msra.mxu0 0.0
    %7507 = vmatprep.subr.mxu0 0.0
    %7508 = vmatpush1.msra.mxu0 0.0
    %7509 = vmatprep.subr.mxu0 0.0
    %7510 = vmatpush1.msra.mxu0 0.0
    %7511 = vmatprep.subr.mxu0 0.0
    %7512 = vmatpush1.msra.mxu0 0.0
    %7513 = vmatprep.subr.mxu0 0.0
    %7514 = vmatpush1.msra.mxu0 0.0
    %7515 = vmatprep.subr.mxu0 0.0
    %7516 = vmatpush1.msra.mxu0 0.0
    %7517 = vmatprep.subr.mxu0 0.0
    %7518 = vmatpush1.msra.mxu0 0.0
    %7519 = vmatprep.subr.mxu0 0.0
    %7520 = vmatpush1.msra.mxu0 0.0
    %7521 = vmatprep.subr.mxu0 0.0
    %7522 = vmatpush1.msra.mxu0 0.0
    %7523 = vmatprep.subr.mxu0 0.0
    %7524 = vmatpush1.msra.mxu0 %v7491
    %7525 = vmatprep.subr.mxu0 0.0
    %7526 = vmatpush2.msra.mxu0 0.0
    %7527 = vmatprep.subr.mxu0 0.0
    %7528 = vmatpush2.msra.mxu0 0.0
    %7529 = vmatprep.subr.mxu0 0.0
    %7530 = vmatpush2.msra.mxu0 0.0
    %7531 = vmatprep.subr.mxu0 0.0
    %7532 = vmatpush2.msra.mxu0 0.0
    %7533 = vmatprep.subr.mxu0 0.0
    %7534 = vmatpush2.msra.mxu0 0.0
    %7535 = vmatprep.subr.mxu0 0.0
    %7536 = vmatpush2.msra.mxu0 0.0
    %7537 = vmatprep.subr.mxu0 0.0
    %7538 = vmatpush2.msra.mxu0 0.0
    %7539 = vmatprep.subr.mxu0 0.0
    %7540 = vmatpush2.msra.mxu0 0.0
    %7541 = vmatprep.subr.mxu0 0.0
    %7542 = vmatpush2.msra.mxu0 0.0
    %7543 = vmatprep.subr.mxu0 0.0
    %7544 = vmatpush2.msra.mxu0 0.0
    %7545 = vmatprep.subr.mxu0 0.0
    %7546 = vmatpush2.msra.mxu0 0.0
    %7547 = vmatprep.subr.mxu0 0.0
    %7548 = vmatpush2.msra.mxu0 0.0
    %7549 = vmatprep.subr.mxu0 0.0
    %7550 = vmatpush2.msra.mxu0 0.0
    %7551 = vmatprep.subr.mxu0 0.0
    %7552 = vmatpush2.msra.mxu0 0.0
    %7553 = vmatprep.subr.mxu0 0.0
    %7554 = vmatpush2.msra.mxu0 0.0
    %7555 = vmatprep.subr.mxu0 0.0
    %7556 = vmatpush2.msra.mxu0 0.0
    %7557 = vmatprep.mubr.f32.mxu0 0.0
    %7558 = vmatmul.mubr.f32.gmra.mxu0 %v7489
    %v7559 = vpop.f32.mrf.mxu0
    %v7560 = vadd.f32 0.0, %v7559
    %v7561 = vpop.f32.mrf.mxu0
    %7562 = vdwg.mxu0
    %7564 = vset.pattern.permute.xlu0 0
    %7565 = vperm.xlu0 %7564, %v6587
    %v7566 = vpop.permute.xlu0 %7565
    %v7567 = vlaneseq
    %v7568 = vshrl.u32 %v7567, 7
    %v7569 = vsub.s32 %v2520, %v7568
    %v7570 = vrot.slane %v7566, %v7569
    %v7571 = vcombine.low %v5884, %v5898
    %v7572 = vcombine.low %v5906, %v5908
    %v7574 = vunpack.c.l.s4 1966171168
    %v7575 = vunpack.c.0.s8 %v7574
    %v7576 = vlaneseq
    %v7577 = vshrl.u32 %v7576, 7
    %v7578 = vsub.s32 %v7575, %v7577
    %v7579 = vrot.slane %v7571, %v7578
    %v7581 = vunpack.c.l.s4 1966171168
    %v7582 = vunpack.c.0.s8 %v7581
    %v7583 = vlaneseq
    %v7584 = vshrl.u32 %v7583, 7
    %v7585 = vsub.s32 %v7582, %v7584
    %v7586 = vrot.slane %v7572, %v7585
    %v7588 = vunpack.c.l.s4 1966171168
    %v7589 = vunpack.c.0.s8 %v7588
    %v7590 = vlaneseq
    %v7591 = vshrl.u32 %v7590, 7
    %v7592 = vsub.s32 %v7589, %v7591
    %v7593 = vrot.slane %v5891, %v7592
    %v7594 = vcombine.low %v7579, %v7586
    %v7596 = vunpack.c.l.s4 1966171168
    %v7597 = vunpack.c.0.s8 %v7596
    %v7598 = vlaneseq
    %v7599 = vshrl.u32 %v7598, 7
    %v7600 = vsub.s32 %v7597, %v7599
    %v7601 = vrot.slane %v7594, %v7600
    %v7603 = vunpack.c.l.s4 1966171168
    %v7604 = vunpack.c.0.s8 %v7603
    %v7605 = vlaneseq
    %v7606 = vshrl.u32 %v7605, 7
    %v7607 = vsub.s32 %v7604, %v7606
    %v7608 = vrot.slane %v7593, %v7607
    %v7609 = vcombine.low %v7601, %v7608
    %v7610 = vsel %vm6208, %v7570, 0
    %v7612 = vsel %vm5531, %v7609, 0
    %7614 = vmatprep.subr.mxu0 0.0
    %7615 = vmatpush1.msra.mxu0 0.0
    %7616 = vmatprep.subr.mxu0 0.0
    %7617 = vmatpush1.msra.mxu0 0.0
    %7618 = vmatprep.subr.mxu0 0.0
    %7619 = vmatpush1.msra.mxu0 0.0
    %7620 = vmatprep.subr.mxu0 0.0
    %7621 = vmatpush1.msra.mxu0 0.0
    %7622 = vmatprep.subr.mxu0 0.0
    %7623 = vmatpush1.msra.mxu0 0.0
    %7624 = vmatprep.subr.mxu0 0.0
    %7625 = vmatpush1.msra.mxu0 0.0
    %7626 = vmatprep.subr.mxu0 0.0
    %7627 = vmatpush1.msra.mxu0 0.0
    %7628 = vmatprep.subr.mxu0 0.0
    %7629 = vmatpush1.msra.mxu0 0.0
    %7630 = vmatprep.subr.mxu0 0.0
    %7631 = vmatpush1.msra.mxu0 0.0
    %7632 = vmatprep.subr.mxu0 0.0
    %7633 = vmatpush1.msra.mxu0 0.0
    %7634 = vmatprep.subr.mxu0 0.0
    %7635 = vmatpush1.msra.mxu0 0.0
    %7636 = vmatprep.subr.mxu0 0.0
    %7637 = vmatpush1.msra.mxu0 0.0
    %7638 = vmatprep.subr.mxu0 0.0
    %7639 = vmatpush1.msra.mxu0 0.0
    %7640 = vmatprep.subr.mxu0 0.0
    %7641 = vmatpush1.msra.mxu0 0.0
    %7642 = vmatprep.subr.mxu0 0.0
    %7643 = vmatpush1.msra.mxu0 0.0
    %7644 = vmatprep.subr.mxu0 0.0
    %7645 = vmatpush1.msra.mxu0 %v7612
    %7646 = vmatprep.subr.mxu0 0.0
    %7647 = vmatpush2.msra.mxu0 0.0
    %7648 = vmatprep.subr.mxu0 0.0
    %7649 = vmatpush2.msra.mxu0 0.0
    %7650 = vmatprep.subr.mxu0 0.0
    %7651 = vmatpush2.msra.mxu0 0.0
    %7652 = vmatprep.subr.mxu0 0.0
    %7653 = vmatpush2.msra.mxu0 0.0
    %7654 = vmatprep.subr.mxu0 0.0
    %7655 = vmatpush2.msra.mxu0 0.0
    %7656 = vmatprep.subr.mxu0 0.0
    %7657 = vmatpush2.msra.mxu0 0.0
    %7658 = vmatprep.subr.mxu0 0.0
    %7659 = vmatpush2.msra.mxu0 0.0
    %7660 = vmatprep.subr.mxu0 0.0
    %7661 = vmatpush2.msra.mxu0 0.0
    %7662 = vmatprep.subr.mxu0 0.0
    %7663 = vmatpush2.msra.mxu0 0.0
    %7664 = vmatprep.subr.mxu0 0.0
    %7665 = vmatpush2.msra.mxu0 0.0
    %7666 = vmatprep.subr.mxu0 0.0
    %7667 = vmatpush2.msra.mxu0 0.0
    %7668 = vmatprep.subr.mxu0 0.0
    %7669 = vmatpush2.msra.mxu0 0.0
    %7670 = vmatprep.subr.mxu0 0.0
    %7671 = vmatpush2.msra.mxu0 0.0
    %7672 = vmatprep.subr.mxu0 0.0
    %7673 = vmatpush2.msra.mxu0 0.0
    %7674 = vmatprep.subr.mxu0 0.0
    %7675 = vmatpush2.msra.mxu0 0.0
    %7676 = vmatprep.subr.mxu0 0.0
    %7677 = vmatpush2.msra.mxu0 0.0
    %7678 = vmatprep.mubr.f32.mxu0 0.0
    %7679 = vmatmul.mubr.f32.gmra.mxu0 %v7610
    %v7680 = vpop.f32.mrf.mxu0
    %v7681 = vadd.f32 0.0, %v7680
    %v7682 = vpop.f32.mrf.mxu0
    %7683 = vdwg.mxu0
    %7685 = vset.pattern.permute.xlu0 0
    %7686 = vperm.xlu0 %7685, %v6588
    %v7687 = vpop.permute.xlu0 %7686
    %v7688 = vlaneseq
    %v7689 = vshrl.u32 %v7688, 7
    %v7690 = vsub.s32 %v2520, %v7689
    %v7691 = vrot.slane %v7687, %v7690
    %v7692 = vcombine.low %v5905, %v5907
    %v7693 = vcombine.low %v5909, %v5933
    %v7695 = vunpack.c.l.s4 1966171168
    %v7696 = vunpack.c.0.s8 %v7695
    %v7697 = vlaneseq
    %v7698 = vshrl.u32 %v7697, 7
    %v7699 = vsub.s32 %v7696, %v7698
    %v7700 = vrot.slane %v7692, %v7699
    %v7702 = vunpack.c.l.s4 1966171168
    %v7703 = vunpack.c.0.s8 %v7702
    %v7704 = vlaneseq
    %v7705 = vshrl.u32 %v7704, 7
    %v7706 = vsub.s32 %v7703, %v7705
    %v7707 = vrot.slane %v7693, %v7706
    %v7709 = vunpack.c.l.s4 1966171168
    %v7710 = vunpack.c.0.s8 %v7709
    %v7711 = vlaneseq
    %v7712 = vshrl.u32 %v7711, 7
    %v7713 = vsub.s32 %v7710, %v7712
    %v7714 = vrot.slane %v5947, %v7713
    %v7715 = vcombine.low %v7700, %v7707
    %v7717 = vunpack.c.l.s4 1966171168
    %v7718 = vunpack.c.0.s8 %v7717
    %v7719 = vlaneseq
    %v7720 = vshrl.u32 %v7719, 7
    %v7721 = vsub.s32 %v7718, %v7720
    %v7722 = vrot.slane %v7715, %v7721
    %v7724 = vunpack.c.l.s4 1966171168
    %v7725 = vunpack.c.0.s8 %v7724
    %v7726 = vlaneseq
    %v7727 = vshrl.u32 %v7726, 7
    %v7728 = vsub.s32 %v7725, %v7727
    %v7729 = vrot.slane %v7714, %v7728
    %v7730 = vcombine.low %v7722, %v7729
    %v7731 = vsel %vm6208, %v7691, 0
    %v7733 = vsel %vm5531, %v7730, 0
    %7735 = vmatprep.subr.mxu0 0.0
    %7736 = vmatpush1.msra.mxu0 0.0
    %7737 = vmatprep.subr.mxu0 0.0
    %7738 = vmatpush1.msra.mxu0 0.0
    %7739 = vmatprep.subr.mxu0 0.0
    %7740 = vmatpush1.msra.mxu0 0.0
    %7741 = vmatprep.subr.mxu0 0.0
    %7742 = vmatpush1.msra.mxu0 0.0
    %7743 = vmatprep.subr.mxu0 0.0
    %7744 = vmatpush1.msra.mxu0 0.0
    %7745 = vmatprep.subr.mxu0 0.0
    %7746 = vmatpush1.msra.mxu0 0.0
    %7747 = vmatprep.subr.mxu0 0.0
    %7748 = vmatpush1.msra.mxu0 0.0
    %7749 = vmatprep.subr.mxu0 0.0
    %7750 = vmatpush1.msra.mxu0 0.0
    %7751 = vmatprep.subr.mxu0 0.0
    %7752 = vmatpush1.msra.mxu0 0.0
    %7753 = vmatprep.subr.mxu0 0.0
    %7754 = vmatpush1.msra.mxu0 0.0
    %7755 = vmatprep.subr.mxu0 0.0
    %7756 = vmatpush1.msra.mxu0 0.0
    %7757 = vmatprep.subr.mxu0 0.0
    %7758 = vmatpush1.msra.mxu0 0.0
    %7759 = vmatprep.subr.mxu0 0.0
    %7760 = vmatpush1.msra.mxu0 0.0
    %7761 = vmatprep.subr.mxu0 0.0
    %7762 = vmatpush1.msra.mxu0 0.0
    %7763 = vmatprep.subr.mxu0 0.0
    %7764 = vmatpush1.msra.mxu0 0.0
    %7765 = vmatprep.subr.mxu0 0.0
    %7766 = vmatpush1.msra.mxu0 %v7733
    %7767 = vmatprep.subr.mxu0 0.0
    %7768 = vmatpush2.msra.mxu0 0.0
    %7769 = vmatprep.subr.mxu0 0.0
    %7770 = vmatpush2.msra.mxu0 0.0
    %7771 = vmatprep.subr.mxu0 0.0
    %7772 = vmatpush2.msra.mxu0 0.0
    %7773 = vmatprep.subr.mxu0 0.0
    %7774 = vmatpush2.msra.mxu0 0.0
    %7775 = vmatprep.subr.mxu0 0.0
    %7776 = vmatpush2.msra.mxu0 0.0
    %7777 = vmatprep.subr.mxu0 0.0
    %7778 = vmatpush2.msra.mxu0 0.0
    %7779 = vmatprep.subr.mxu0 0.0
    %7780 = vmatpush2.msra.mxu0 0.0
    %7781 = vmatprep.subr.mxu0 0.0
    %7782 = vmatpush2.msra.mxu0 0.0
    %7783 = vmatprep.subr.mxu0 0.0
    %7784 = vmatpush2.msra.mxu0 0.0
    %7785 = vmatprep.subr.mxu0 0.0
    %7786 = vmatpush2.msra.mxu0 0.0
    %7787 = vmatprep.subr.mxu0 0.0
    %7788 = vmatpush2.msra.mxu0 0.0
    %7789 = vmatprep.subr.mxu0 0.0
    %7790 = vmatpush2.msra.mxu0 0.0
    %7791 = vmatprep.subr.mxu0 0.0
    %7792 = vmatpush2.msra.mxu0 0.0
    %7793 = vmatprep.subr.mxu0 0.0
    %7794 = vmatpush2.msra.mxu0 0.0
    %7795 = vmatprep.subr.mxu0 0.0
    %7796 = vmatpush2.msra.mxu0 0.0
    %7797 = vmatprep.subr.mxu0 0.0
    %7798 = vmatpush2.msra.mxu0 0.0
    %7799 = vmatprep.mubr.f32.mxu0 0.0
    %7800 = vmatmul.mubr.f32.gmra.mxu0 %v7731
    %v7801 = vpop.f32.mrf.mxu0
    %v7802 = vadd.f32 0.0, %v7801
    %v7803 = vpop.f32.mrf.mxu0
    %7804 = vdwg.mxu0
    %7806 = vset.pattern.permute.xlu0 0
    %7807 = vperm.xlu0 %7806, %v6589
    %v7808 = vpop.permute.xlu0 %7807
    %v7809 = vlaneseq
    %v7810 = vshrl.u32 %v7809, 7
    %v7811 = vsub.s32 %v2520, %v7810
    %v7812 = vrot.slane %v7808, %v7811
    %v7813 = vcombine.low %v5955, %v5957
    %v7814 = vcombine.low %v5940, %v5954
    %v7816 = vunpack.c.l.s4 1966171168
    %v7817 = vunpack.c.0.s8 %v7816
    %v7818 = vlaneseq
    %v7819 = vshrl.u32 %v7818, 7
    %v7820 = vsub.s32 %v7817, %v7819
    %v7821 = vrot.slane %v7813, %v7820
    %v7823 = vunpack.c.l.s4 1966171168
    %v7824 = vunpack.c.0.s8 %v7823
    %v7825 = vlaneseq
    %v7826 = vshrl.u32 %v7825, 7
    %v7827 = vsub.s32 %v7824, %v7826
    %v7828 = vrot.slane %v7814, %v7827
    %v7830 = vunpack.c.l.s4 1966171168
    %v7831 = vunpack.c.0.s8 %v7830
    %v7832 = vlaneseq
    %v7833 = vshrl.u32 %v7832, 7
    %v7834 = vsub.s32 %v7831, %v7833
    %v7835 = vrot.slane %v5956, %v7834
    %v7836 = vcombine.low %v7821, %v7828
    %v7838 = vunpack.c.l.s4 1966171168
    %v7839 = vunpack.c.0.s8 %v7838
    %v7840 = vlaneseq
    %v7841 = vshrl.u32 %v7840, 7
    %v7842 = vsub.s32 %v7839, %v7841
    %v7843 = vrot.slane %v7836, %v7842
    %v7845 = vunpack.c.l.s4 1966171168
    %v7846 = vunpack.c.0.s8 %v7845
    %v7847 = vlaneseq
    %v7848 = vshrl.u32 %v7847, 7
    %v7849 = vsub.s32 %v7846, %v7848
    %v7850 = vrot.slane %v7835, %v7849
    %v7851 = vcombine.low %v7843, %v7850
    %v7852 = vsel %vm6208, %v7812, 0
    %v7854 = vsel %vm5531, %v7851, 0
    %7856 = vmatprep.subr.mxu0 0.0
    %7857 = vmatpush1.msra.mxu0 0.0
    %7858 = vmatprep.subr.mxu0 0.0
    %7859 = vmatpush1.msra.mxu0 0.0
    %7860 = vmatprep.subr.mxu0 0.0
    %7861 = vmatpush1.msra.mxu0 0.0
    %7862 = vmatprep.subr.mxu0 0.0
    %7863 = vmatpush1.msra.mxu0 0.0
    %7864 = vmatprep.subr.mxu0 0.0
    %7865 = vmatpush1.msra.mxu0 0.0
    %7866 = vmatprep.subr.mxu0 0.0
    %7867 = vmatpush1.msra.mxu0 0.0
    %7868 = vmatprep.subr.mxu0 0.0
    %7869 = vmatpush1.msra.mxu0 0.0
    %7870 = vmatprep.subr.mxu0 0.0
    %7871 = vmatpush1.msra.mxu0 0.0
    %7872 = vmatprep.subr.mxu0 0.0
    %7873 = vmatpush1.msra.mxu0 0.0
    %7874 = vmatprep.subr.mxu0 0.0
    %7875 = vmatpush1.msra.mxu0 0.0
    %7876 = vmatprep.subr.mxu0 0.0
    %7877 = vmatpush1.msra.mxu0 0.0
    %7878 = vmatprep.subr.mxu0 0.0
    %7879 = vmatpush1.msra.mxu0 0.0
    %7880 = vmatprep.subr.mxu0 0.0
    %7881 = vmatpush1.msra.mxu0 0.0
    %7882 = vmatprep.subr.mxu0 0.0
    %7883 = vmatpush1.msra.mxu0 0.0
    %7884 = vmatprep.subr.mxu0 0.0
    %7885 = vmatpush1.msra.mxu0 0.0
    %7886 = vmatprep.subr.mxu0 0.0
    %7887 = vmatpush1.msra.mxu0 %v7854
    %7888 = vmatprep.subr.mxu0 0.0
    %7889 = vmatpush2.msra.mxu0 0.0
    %7890 = vmatprep.subr.mxu0 0.0
    %7891 = vmatpush2.msra.mxu0 0.0
    %7892 = vmatprep.subr.mxu0 0.0
    %7893 = vmatpush2.msra.mxu0 0.0
    %7894 = vmatprep.subr.mxu0 0.0
    %7895 = vmatpush2.msra.mxu0 0.0
    %7896 = vmatprep.subr.mxu0 0.0
    %7897 = vmatpush2.msra.mxu0 0.0
    %7898 = vmatprep.subr.mxu0 0.0
    %7899 = vmatpush2.msra.mxu0 0.0
    %7900 = vmatprep.subr.mxu0 0.0
    %7901 = vmatpush2.msra.mxu0 0.0
    %7902 = vmatprep.subr.mxu0 0.0
    %7903 = vmatpush2.msra.mxu0 0.0
    %7904 = vmatprep.subr.mxu0 0.0
    %7905 = vmatpush2.msra.mxu0 0.0
    %7906 = vmatprep.subr.mxu0 0.0
    %7907 = vmatpush2.msra.mxu0 0.0
    %7908 = vmatprep.subr.mxu0 0.0
    %7909 = vmatpush2.msra.mxu0 0.0
    %7910 = vmatprep.subr.mxu0 0.0
    %7911 = vmatpush2.msra.mxu0 0.0
    %7912 = vmatprep.subr.mxu0 0.0
    %7913 = vmatpush2.msra.mxu0 0.0
    %7914 = vmatprep.subr.mxu0 0.0
    %7915 = vmatpush2.msra.mxu0 0.0
    %7916 = vmatprep.subr.mxu0 0.0
    %7917 = vmatpush2.msra.mxu0 0.0
    %7918 = vmatprep.subr.mxu0 0.0
    %7919 = vmatpush2.msra.mxu0 0.0
    %7920 = vmatprep.mubr.f32.mxu0 0.0
    %7921 = vmatmul.mubr.f32.gmra.mxu0 %v7852
    %v7922 = vpop.f32.mrf.mxu0
    %v7923 = vadd.f32 0.0, %v7922
    %v7924 = vpop.f32.mrf.mxu0
    %7925 = vdwg.mxu0
    %7927 = vset.pattern.permute.xlu0 0
    %7928 = vperm.xlu0 %7927, %v6590
    %v7929 = vpop.permute.xlu0 %7928
    %v7930 = vlaneseq
    %v7931 = vshrl.u32 %v7930, 7
    %v7932 = vsub.s32 %v2520, %v7931
    %v7933 = vrot.slane %v7929, %v7932
    %v7934 = vcombine.low %v5958, %v5982
    %v7935 = vcombine.low %v5996, %v6004
    %v7937 = vunpack.c.l.s4 1966171168
    %v7938 = vunpack.c.0.s8 %v7937
    %v7939 = vlaneseq
    %v7940 = vshrl.u32 %v7939, 7
    %v7941 = vsub.s32 %v7938, %v7940
    %v7942 = vrot.slane %v7934, %v7941
    %v7944 = vunpack.c.l.s4 1966171168
    %v7945 = vunpack.c.0.s8 %v7944
    %v7946 = vlaneseq
    %v7947 = vshrl.u32 %v7946, 7
    %v7948 = vsub.s32 %v7945, %v7947
    %v7949 = vrot.slane %v7935, %v7948
    %v7951 = vunpack.c.l.s4 1966171168
    %v7952 = vunpack.c.0.s8 %v7951
    %v7953 = vlaneseq
    %v7954 = vshrl.u32 %v7953, 7
    %v7955 = vsub.s32 %v7952, %v7954
    %v7956 = vrot.slane %v6006, %v7955
    %v7957 = vcombine.low %v7942, %v7949
    %v7959 = vunpack.c.l.s4 1966171168
    %v7960 = vunpack.c.0.s8 %v7959
    %v7961 = vlaneseq
    %v7962 = vshrl.u32 %v7961, 7
    %v7963 = vsub.s32 %v7960, %v7962
    %v7964 = vrot.slane %v7957, %v7963
    %v7966 = vunpack.c.l.s4 1966171168
    %v7967 = vunpack.c.0.s8 %v7966
    %v7968 = vlaneseq
    %v7969 = vshrl.u32 %v7968, 7
    %v7970 = vsub.s32 %v7967, %v7969
    %v7971 = vrot.slane %v7956, %v7970
    %v7972 = vcombine.low %v7964, %v7971
    %v7973 = vsel %vm6208, %v7933, 0
    %v7975 = vsel %vm5531, %v7972, 0
    %7977 = vmatprep.subr.mxu0 0.0
    %7978 = vmatpush1.msra.mxu0 0.0
    %7979 = vmatprep.subr.mxu0 0.0
    %7980 = vmatpush1.msra.mxu0 0.0
    %7981 = vmatprep.subr.mxu0 0.0
    %7982 = vmatpush1.msra.mxu0 0.0
    %7983 = vmatprep.subr.mxu0 0.0
    %7984 = vmatpush1.msra.mxu0 0.0
    %7985 = vmatprep.subr.mxu0 0.0
    %7986 = vmatpush1.msra.mxu0 0.0
    %7987 = vmatprep.subr.mxu0 0.0
    %7988 = vmatpush1.msra.mxu0 0.0
    %7989 = vmatprep.subr.mxu0 0.0
    %7990 = vmatpush1.msra.mxu0 0.0
    %7991 = vmatprep.subr.mxu0 0.0
    %7992 = vmatpush1.msra.mxu0 0.0
    %7993 = vmatprep.subr.mxu0 0.0
    %7994 = vmatpush1.msra.mxu0 0.0
    %7995 = vmatprep.subr.mxu0 0.0
    %7996 = vmatpush1.msra.mxu0 0.0
    %7997 = vmatprep.subr.mxu0 0.0
    %7998 = vmatpush1.msra.mxu0 0.0
    %7999 = vmatprep.subr.mxu0 0.0
    %8000 = vmatpush1.msra.mxu0 0.0
    %8001 = vmatprep.subr.mxu0 0.0
    %8002 = vmatpush1.msra.mxu0 0.0
    %8003 = vmatprep.subr.mxu0 0.0
    %8004 = vmatpush1.msra.mxu0 0.0
    %8005 = vmatprep.subr.mxu0 0.0
    %8006 = vmatpush1.msra.mxu0 0.0
    %8007 = vmatprep.subr.mxu0 0.0
    %8008 = vmatpush1.msra.mxu0 %v7975
    %8009 = vmatprep.subr.mxu0 0.0
    %8010 = vmatpush2.msra.mxu0 0.0
    %8011 = vmatprep.subr.mxu0 0.0
    %8012 = vmatpush2.msra.mxu0 0.0
    %8013 = vmatprep.subr.mxu0 0.0
    %8014 = vmatpush2.msra.mxu0 0.0
    %8015 = vmatprep.subr.mxu0 0.0
    %8016 = vmatpush2.msra.mxu0 0.0
    %8017 = vmatprep.subr.mxu0 0.0
    %8018 = vmatpush2.msra.mxu0 0.0
    %8019 = vmatprep.subr.mxu0 0.0
    %8020 = vmatpush2.msra.mxu0 0.0
    %8021 = vmatprep.subr.mxu0 0.0
    %8022 = vmatpush2.msra.mxu0 0.0
    %8023 = vmatprep.subr.mxu0 0.0
    %8024 = vmatpush2.msra.mxu0 0.0
    %8025 = vmatprep.subr.mxu0 0.0
    %8026 = vmatpush2.msra.mxu0 0.0
    %8027 = vmatprep.subr.mxu0 0.0
    %8028 = vmatpush2.msra.mxu0 0.0
    %8029 = vmatprep.subr.mxu0 0.0
    %8030 = vmatpush2.msra.mxu0 0.0
    %8031 = vmatprep.subr.mxu0 0.0
    %8032 = vmatpush2.msra.mxu0 0.0
    %8033 = vmatprep.subr.mxu0 0.0
    %8034 = vmatpush2.msra.mxu0 0.0
    %8035 = vmatprep.subr.mxu0 0.0
    %8036 = vmatpush2.msra.mxu0 0.0
    %8037 = vmatprep.subr.mxu0 0.0
    %8038 = vmatpush2.msra.mxu0 0.0
    %8039 = vmatprep.subr.mxu0 0.0
    %8040 = vmatpush2.msra.mxu0 0.0
    %8041 = vmatprep.mubr.f32.mxu0 0.0
    %8042 = vmatmul.mubr.f32.gmra.mxu0 %v7973
    %v8043 = vpop.f32.mrf.mxu0
    %v8044 = vadd.f32 0.0, %v8043
    %v8045 = vpop.f32.mrf.mxu0
    %8046 = vdwg.mxu0
    %8048 = vset.pattern.permute.xlu0 0
    %8049 = vperm.xlu0 %8048, %v6591
    %v8050 = vpop.permute.xlu0 %8049
    %v8051 = vlaneseq
    %v8052 = vshrl.u32 %v8051, 7
    %v8053 = vsub.s32 %v2520, %v8052
    %v8054 = vrot.slane %v8050, %v8053
    %v8055 = vcombine.low %v5989, %v6003
    %v8056 = vcombine.low %v6005, %v6007
    %v8058 = vunpack.c.l.s4 1966171168
    %v8059 = vunpack.c.0.s8 %v8058
    %v8060 = vlaneseq
    %v8061 = vshrl.u32 %v8060, 7
    %v8062 = vsub.s32 %v8059, %v8061
    %v8063 = vrot.slane %v8055, %v8062
    %v8065 = vunpack.c.l.s4 1966171168
    %v8066 = vunpack.c.0.s8 %v8065
    %v8067 = vlaneseq
    %v8068 = vshrl.u32 %v8067, 7
    %v8069 = vsub.s32 %v8066, %v8068
    %v8070 = vrot.slane %v8056, %v8069
    %v8072 = vunpack.c.l.s4 1966171168
    %v8073 = vunpack.c.0.s8 %v8072
    %v8074 = vlaneseq
    %v8075 = vshrl.u32 %v8074, 7
    %v8076 = vsub.s32 %v8073, %v8075
    %v8077 = vrot.slane %v6031, %v8076
    %v8078 = vcombine.low %v8063, %v8070
    %v8080 = vunpack.c.l.s4 1966171168
    %v8081 = vunpack.c.0.s8 %v8080
    %v8082 = vlaneseq
    %v8083 = vshrl.u32 %v8082, 7
    %v8084 = vsub.s32 %v8081, %v8083
    %v8085 = vrot.slane %v8078, %v8084
    %v8087 = vunpack.c.l.s4 1966171168
    %v8088 = vunpack.c.0.s8 %v8087
    %v8089 = vlaneseq
    %v8090 = vshrl.u32 %v8089, 7
    %v8091 = vsub.s32 %v8088, %v8090
    %v8092 = vrot.slane %v8077, %v8091
    %v8093 = vcombine.low %v8085, %v8092
    %v8094 = vsel %vm6208, %v8054, 0
    %v8096 = vsel %vm5531, %v8093, 0
    %8098 = vmatprep.subr.mxu0 0.0
    %8099 = vmatpush1.msra.mxu0 0.0
    %8100 = vmatprep.subr.mxu0 0.0
    %8101 = vmatpush1.msra.mxu0 0.0
    %8102 = vmatprep.subr.mxu0 0.0
    %8103 = vmatpush1.msra.mxu0 0.0
    %8104 = vmatprep.subr.mxu0 0.0
    %8105 = vmatpush1.msra.mxu0 0.0
    %8106 = vmatprep.subr.mxu0 0.0
    %8107 = vmatpush1.msra.mxu0 0.0
    %8108 = vmatprep.subr.mxu0 0.0
    %8109 = vmatpush1.msra.mxu0 0.0
    %8110 = vmatprep.subr.mxu0 0.0
    %8111 = vmatpush1.msra.mxu0 0.0
    %8112 = vmatprep.subr.mxu0 0.0
    %8113 = vmatpush1.msra.mxu0 0.0
    %8114 = vmatprep.subr.mxu0 0.0
    %8115 = vmatpush1.msra.mxu0 0.0
    %8116 = vmatprep.subr.mxu0 0.0
    %8117 = vmatpush1.msra.mxu0 0.0
    %8118 = vmatprep.subr.mxu0 0.0
    %8119 = vmatpush1.msra.mxu0 0.0
    %8120 = vmatprep.subr.mxu0 0.0
    %8121 = vmatpush1.msra.mxu0 0.0
    %8122 = vmatprep.subr.mxu0 0.0
    %8123 = vmatpush1.msra.mxu0 0.0
    %8124 = vmatprep.subr.mxu0 0.0
    %8125 = vmatpush1.msra.mxu0 0.0
    %8126 = vmatprep.subr.mxu0 0.0
    %8127 = vmatpush1.msra.mxu0 0.0
    %8128 = vmatprep.subr.mxu0 0.0
    %8129 = vmatpush1.msra.mxu0 %v8096
    %8130 = vmatprep.subr.mxu0 0.0
    %8131 = vmatpush2.msra.mxu0 0.0
    %8132 = vmatprep.subr.mxu0 0.0
    %8133 = vmatpush2.msra.mxu0 0.0
    %8134 = vmatprep.subr.mxu0 0.0
    %8135 = vmatpush2.msra.mxu0 0.0
    %8136 = vmatprep.subr.mxu0 0.0
    %8137 = vmatpush2.msra.mxu0 0.0
    %8138 = vmatprep.subr.mxu0 0.0
    %8139 = vmatpush2.msra.mxu0 0.0
    %8140 = vmatprep.subr.mxu0 0.0
    %8141 = vmatpush2.msra.mxu0 0.0
    %8142 = vmatprep.subr.mxu0 0.0
    %8143 = vmatpush2.msra.mxu0 0.0
    %8144 = vmatprep.subr.mxu0 0.0
    %8145 = vmatpush2.msra.mxu0 0.0
    %8146 = vmatprep.subr.mxu0 0.0
    %8147 = vmatpush2.msra.mxu0 0.0
    %8148 = vmatprep.subr.mxu0 0.0
    %8149 = vmatpush2.msra.mxu0 0.0
    %8150 = vmatprep.subr.mxu0 0.0
    %8151 = vmatpush2.msra.mxu0 0.0
    %8152 = vmatprep.subr.mxu0 0.0
    %8153 = vmatpush2.msra.mxu0 0.0
    %8154 = vmatprep.subr.mxu0 0.0
    %8155 = vmatpush2.msra.mxu0 0.0
    %8156 = vmatprep.subr.mxu0 0.0
    %8157 = vmatpush2.msra.mxu0 0.0
    %8158 = vmatprep.subr.mxu0 0.0
    %8159 = vmatpush2.msra.mxu0 0.0
    %8160 = vmatprep.subr.mxu0 0.0
    %8161 = vmatpush2.msra.mxu0 0.0
    %8162 = vmatprep.mubr.f32.mxu0 0.0
    %8163 = vmatmul.mubr.f32.gmra.mxu0 %v8094
    %v8164 = vpop.f32.mrf.mxu0
    %v8165 = vadd.f32 0.0, %v8164
    %v8166 = vpop.f32.mrf.mxu0
    %8167 = vdwg.mxu0
    %8169 = vset.pattern.permute.xlu0 0
    %8170 = vperm.xlu0 %8169, %v6592
    %v8171 = vpop.permute.xlu0 %8170
    %v8172 = vlaneseq
    %v8173 = vshrl.u32 %v8172, 7
    %v8174 = vsub.s32 %v2520, %v8173
    %v8175 = vrot.slane %v8171, %v8174
    %v8176 = vcombine.low %v6045, %v6053
    %v8177 = vcombine.low %v6055, %v6038
    %v8179 = vunpack.c.l.s4 1966171168
    %v8180 = vunpack.c.0.s8 %v8179
    %v8181 = vlaneseq
    %v8182 = vshrl.u32 %v8181, 7
    %v8183 = vsub.s32 %v8180, %v8182
    %v8184 = vrot.slane %v8176, %v8183
    %v8186 = vunpack.c.l.s4 1966171168
    %v8187 = vunpack.c.0.s8 %v8186
    %v8188 = vlaneseq
    %v8189 = vshrl.u32 %v8188, 7
    %v8190 = vsub.s32 %v8187, %v8189
    %v8191 = vrot.slane %v8177, %v8190
    %v8193 = vunpack.c.l.s4 1966171168
    %v8194 = vunpack.c.0.s8 %v8193
    %v8195 = vlaneseq
    %v8196 = vshrl.u32 %v8195, 7
    %v8197 = vsub.s32 %v8194, %v8196
    %v8198 = vrot.slane %v6052, %v8197
    %v8199 = vcombine.low %v8184, %v8191
    %v8201 = vunpack.c.l.s4 1966171168
    %v8202 = vunpack.c.0.s8 %v8201
    %v8203 = vlaneseq
    %v8204 = vshrl.u32 %v8203, 7
    %v8205 = vsub.s32 %v8202, %v8204
    %v8206 = vrot.slane %v8199, %v8205
    %v8208 = vunpack.c.l.s4 1966171168
    %v8209 = vunpack.c.0.s8 %v8208
    %v8210 = vlaneseq
    %v8211 = vshrl.u32 %v8210, 7
    %v8212 = vsub.s32 %v8209, %v8211
    %v8213 = vrot.slane %v8198, %v8212
    %v8214 = vcombine.low %v8206, %v8213
    %v8215 = vsel %vm6208, %v8175, 0
    %v8217 = vsel %vm5531, %v8214, 0
    %8219 = vmatprep.subr.mxu0 0.0
    %8220 = vmatpush1.msra.mxu0 0.0
    %8221 = vmatprep.subr.mxu0 0.0
    %8222 = vmatpush1.msra.mxu0 0.0
    %8223 = vmatprep.subr.mxu0 0.0
    %8224 = vmatpush1.msra.mxu0 0.0
    %8225 = vmatprep.subr.mxu0 0.0
    %8226 = vmatpush1.msra.mxu0 0.0
    %8227 = vmatprep.subr.mxu0 0.0
    %8228 = vmatpush1.msra.mxu0 0.0
    %8229 = vmatprep.subr.mxu0 0.0
    %8230 = vmatpush1.msra.mxu0 0.0
    %8231 = vmatprep.subr.mxu0 0.0
    %8232 = vmatpush1.msra.mxu0 0.0
    %8233 = vmatprep.subr.mxu0 0.0
    %8234 = vmatpush1.msra.mxu0 0.0
    %8235 = vmatprep.subr.mxu0 0.0
    %8236 = vmatpush1.msra.mxu0 0.0
    %8237 = vmatprep.subr.mxu0 0.0
    %8238 = vmatpush1.msra.mxu0 0.0
    %8239 = vmatprep.subr.mxu0 0.0
    %8240 = vmatpush1.msra.mxu0 0.0
    %8241 = vmatprep.subr.mxu0 0.0
    %8242 = vmatpush1.msra.mxu0 0.0
    %8243 = vmatprep.subr.mxu0 0.0
    %8244 = vmatpush1.msra.mxu0 0.0
    %8245 = vmatprep.subr.mxu0 0.0
    %8246 = vmatpush1.msra.mxu0 0.0
    %8247 = vmatprep.subr.mxu0 0.0
    %8248 = vmatpush1.msra.mxu0 0.0
    %8249 = vmatprep.subr.mxu0 0.0
    %8250 = vmatpush1.msra.mxu0 %v8217
    %8251 = vmatprep.subr.mxu0 0.0
    %8252 = vmatpush2.msra.mxu0 0.0
    %8253 = vmatprep.subr.mxu0 0.0
    %8254 = vmatpush2.msra.mxu0 0.0
    %8255 = vmatprep.subr.mxu0 0.0
    %8256 = vmatpush2.msra.mxu0 0.0
    %8257 = vmatprep.subr.mxu0 0.0
    %8258 = vmatpush2.msra.mxu0 0.0
    %8259 = vmatprep.subr.mxu0 0.0
    %8260 = vmatpush2.msra.mxu0 0.0
    %8261 = vmatprep.subr.mxu0 0.0
    %8262 = vmatpush2.msra.mxu0 0.0
    %8263 = vmatprep.subr.mxu0 0.0
    %8264 = vmatpush2.msra.mxu0 0.0
    %8265 = vmatprep.subr.mxu0 0.0
    %8266 = vmatpush2.msra.mxu0 0.0
    %8267 = vmatprep.subr.mxu0 0.0
    %8268 = vmatpush2.msra.mxu0 0.0
    %8269 = vmatprep.subr.mxu0 0.0
    %8270 = vmatpush2.msra.mxu0 0.0
    %8271 = vmatprep.subr.mxu0 0.0
    %8272 = vmatpush2.msra.mxu0 0.0
    %8273 = vmatprep.subr.mxu0 0.0
    %8274 = vmatpush2.msra.mxu0 0.0
    %8275 = vmatprep.subr.mxu0 0.0
    %8276 = vmatpush2.msra.mxu0 0.0
    %8277 = vmatprep.subr.mxu0 0.0
    %8278 = vmatpush2.msra.mxu0 0.0
    %8279 = vmatprep.subr.mxu0 0.0
    %8280 = vmatpush2.msra.mxu0 0.0
    %8281 = vmatprep.subr.mxu0 0.0
    %8282 = vmatpush2.msra.mxu0 0.0
    %8283 = vmatprep.mubr.f32.mxu0 0.0
    %8284 = vmatmul.mubr.f32.gmra.mxu0 %v8215
    %v8285 = vpop.f32.mrf.mxu0
    %v8286 = vadd.f32 0.0, %v8285
    %v8287 = vpop.f32.mrf.mxu0
    %8288 = vdwg.mxu0
    %8290 = vset.pattern.permute.xlu0 0
    %8291 = vperm.xlu0 %8290, %v6593
    %v8292 = vpop.permute.xlu0 %8291
    %v8293 = vlaneseq
    %v8294 = vshrl.u32 %v8293, 7
    %v8295 = vsub.s32 %v2520, %v8294
    %v8296 = vrot.slane %v8292, %v8295
    %v8297 = vcombine.low %v6054, %v6056
    %v8298 = vcombine.low %v6080, %v6094
    %v8300 = vunpack.c.l.s4 1966171168
    %v8301 = vunpack.c.0.s8 %v8300
    %v8302 = vlaneseq
    %v8303 = vshrl.u32 %v8302, 7
    %v8304 = vsub.s32 %v8301, %v8303
    %v8305 = vrot.slane %v8297, %v8304
    %v8307 = vunpack.c.l.s4 1966171168
    %v8308 = vunpack.c.0.s8 %v8307
    %v8309 = vlaneseq
    %v8310 = vshrl.u32 %v8309, 7
    %v8311 = vsub.s32 %v8308, %v8310
    %v8312 = vrot.slane %v8298, %v8311
    %v8314 = vunpack.c.l.s4 1966171168
    %v8315 = vunpack.c.0.s8 %v8314
    %v8316 = vlaneseq
    %v8317 = vshrl.u32 %v8316, 7
    %v8318 = vsub.s32 %v8315, %v8317
    %v8319 = vrot.slane %v6102, %v8318
    %v8320 = vcombine.low %v8305, %v8312
    %v8322 = vunpack.c.l.s4 1966171168
    %v8323 = vunpack.c.0.s8 %v8322
    %v8324 = vlaneseq
    %v8325 = vshrl.u32 %v8324, 7
    %v8326 = vsub.s32 %v8323, %v8325
    %v8327 = vrot.slane %v8320, %v8326
    %v8329 = vunpack.c.l.s4 1966171168
    %v8330 = vunpack.c.0.s8 %v8329
    %v8331 = vlaneseq
    %v8332 = vshrl.u32 %v8331, 7
    %v8333 = vsub.s32 %v8330, %v8332
    %v8334 = vrot.slane %v8319, %v8333
    %v8335 = vcombine.low %v8327, %v8334
    %v8336 = vsel %vm6208, %v8296, 0
    %v8338 = vsel %vm5531, %v8335, 0
    %8340 = vmatprep.subr.mxu0 0.0
    %8341 = vmatpush1.msra.mxu0 0.0
    %8342 = vmatprep.subr.mxu0 0.0
    %8343 = vmatpush1.msra.mxu0 0.0
    %8344 = vmatprep.subr.mxu0 0.0
    %8345 = vmatpush1.msra.mxu0 0.0
    %8346 = vmatprep.subr.mxu0 0.0
    %8347 = vmatpush1.msra.mxu0 0.0
    %8348 = vmatprep.subr.mxu0 0.0
    %8349 = vmatpush1.msra.mxu0 0.0
    %8350 = vmatprep.subr.mxu0 0.0
    %8351 = vmatpush1.msra.mxu0 0.0
    %8352 = vmatprep.subr.mxu0 0.0
    %8353 = vmatpush1.msra.mxu0 0.0
    %8354 = vmatprep.subr.mxu0 0.0
    %8355 = vmatpush1.msra.mxu0 0.0
    %8356 = vmatprep.subr.mxu0 0.0
    %8357 = vmatpush1.msra.mxu0 0.0
    %8358 = vmatprep.subr.mxu0 0.0
    %8359 = vmatpush1.msra.mxu0 0.0
    %8360 = vmatprep.subr.mxu0 0.0
    %8361 = vmatpush1.msra.mxu0 0.0
    %8362 = vmatprep.subr.mxu0 0.0
    %8363 = vmatpush1.msra.mxu0 0.0
    %8364 = vmatprep.subr.mxu0 0.0
    %8365 = vmatpush1.msra.mxu0 0.0
    %8366 = vmatprep.subr.mxu0 0.0
    %8367 = vmatpush1.msra.mxu0 0.0
    %8368 = vmatprep.subr.mxu0 0.0
    %8369 = vmatpush1.msra.mxu0 0.0
    %8370 = vmatprep.subr.mxu0 0.0
    %8371 = vmatpush1.msra.mxu0 %v8338
    %8372 = vmatprep.subr.mxu0 0.0
    %8373 = vmatpush2.msra.mxu0 0.0
    %8374 = vmatprep.subr.mxu0 0.0
    %8375 = vmatpush2.msra.mxu0 0.0
    %8376 = vmatprep.subr.mxu0 0.0
    %8377 = vmatpush2.msra.mxu0 0.0
    %8378 = vmatprep.subr.mxu0 0.0
    %8379 = vmatpush2.msra.mxu0 0.0
    %8380 = vmatprep.subr.mxu0 0.0
    %8381 = vmatpush2.msra.mxu0 0.0
    %8382 = vmatprep.subr.mxu0 0.0
    %8383 = vmatpush2.msra.mxu0 0.0
    %8384 = vmatprep.subr.mxu0 0.0
    %8385 = vmatpush2.msra.mxu0 0.0
    %8386 = vmatprep.subr.mxu0 0.0
    %8387 = vmatpush2.msra.mxu0 0.0
    %8388 = vmatprep.subr.mxu0 0.0
    %8389 = vmatpush2.msra.mxu0 0.0
    %8390 = vmatprep.subr.mxu0 0.0
    %8391 = vmatpush2.msra.mxu0 0.0
    %8392 = vmatprep.subr.mxu0 0.0
    %8393 = vmatpush2.msra.mxu0 0.0
    %8394 = vmatprep.subr.mxu0 0.0
    %8395 = vmatpush2.msra.mxu0 0.0
    %8396 = vmatprep.subr.mxu0 0.0
    %8397 = vmatpush2.msra.mxu0 0.0
    %8398 = vmatprep.subr.mxu0 0.0
    %8399 = vmatpush2.msra.mxu0 0.0
    %8400 = vmatprep.subr.mxu0 0.0
    %8401 = vmatpush2.msra.mxu0 0.0
    %8402 = vmatprep.subr.mxu0 0.0
    %8403 = vmatpush2.msra.mxu0 0.0
    %8404 = vmatprep.mubr.f32.mxu0 0.0
    %8405 = vmatmul.mubr.f32.gmra.mxu0 %v8336
    %v8406 = vpop.f32.mrf.mxu0
    %v8407 = vadd.f32 0.0, %v8406
    %v8408 = vpop.f32.mrf.mxu0
    %8409 = vdwg.mxu0
    %8411 = vset.pattern.permute.xlu0 0
    %8412 = vperm.xlu0 %8411, %v6594
    %v8413 = vpop.permute.xlu0 %8412
    %v8414 = vlaneseq
    %v8415 = vshrl.u32 %v8414, 7
    %v8416 = vsub.s32 %v2520, %v8415
    %v8417 = vrot.slane %v8413, %v8416
    %v8418 = vcombine.low %v6104, %v6087
    %v8419 = vcombine.low %v6101, %v6103
    %v8421 = vunpack.c.l.s4 1966171168
    %v8422 = vunpack.c.0.s8 %v8421
    %v8423 = vlaneseq
    %v8424 = vshrl.u32 %v8423, 7
    %v8425 = vsub.s32 %v8422, %v8424
    %v8426 = vrot.slane %v8418, %v8425
    %v8428 = vunpack.c.l.s4 1966171168
    %v8429 = vunpack.c.0.s8 %v8428
    %v8430 = vlaneseq
    %v8431 = vshrl.u32 %v8430, 7
    %v8432 = vsub.s32 %v8429, %v8431
    %v8433 = vrot.slane %v8419, %v8432
    %v8435 = vunpack.c.l.s4 1966171168
    %v8436 = vunpack.c.0.s8 %v8435
    %v8437 = vlaneseq
    %v8438 = vshrl.u32 %v8437, 7
    %v8439 = vsub.s32 %v8436, %v8438
    %v8440 = vrot.slane %v6105, %v8439
    %v8441 = vcombine.low %v8426, %v8433
    %v8443 = vunpack.c.l.s4 1966171168
    %v8444 = vunpack.c.0.s8 %v8443
    %v8445 = vlaneseq
    %v8446 = vshrl.u32 %v8445, 7
    %v8447 = vsub.s32 %v8444, %v8446
    %v8448 = vrot.slane %v8441, %v8447
    %v8450 = vunpack.c.l.s4 1966171168
    %v8451 = vunpack.c.0.s8 %v8450
    %v8452 = vlaneseq
    %v8453 = vshrl.u32 %v8452, 7
    %v8454 = vsub.s32 %v8451, %v8453
    %v8455 = vrot.slane %v8440, %v8454
    %v8456 = vcombine.low %v8448, %v8455
    %v8457 = vsel %vm6208, %v8417, 0
    %v8459 = vsel %vm5531, %v8456, 0
    %8461 = vmatprep.subr.mxu0 0.0
    %8462 = vmatpush1.msra.mxu0 0.0
    %8463 = vmatprep.subr.mxu0 0.0
    %8464 = vmatpush1.msra.mxu0 0.0
    %8465 = vmatprep.subr.mxu0 0.0
    %8466 = vmatpush1.msra.mxu0 0.0
    %8467 = vmatprep.subr.mxu0 0.0
    %8468 = vmatpush1.msra.mxu0 0.0
    %8469 = vmatprep.subr.mxu0 0.0
    %8470 = vmatpush1.msra.mxu0 0.0
    %8471 = vmatprep.subr.mxu0 0.0
    %8472 = vmatpush1.msra.mxu0 0.0
    %8473 = vmatprep.subr.mxu0 0.0
    %8474 = vmatpush1.msra.mxu0 0.0
    %8475 = vmatprep.subr.mxu0 0.0
    %8476 = vmatpush1.msra.mxu0 0.0
    %8477 = vmatprep.subr.mxu0 0.0
    %8478 = vmatpush1.msra.mxu0 0.0
    %8479 = vmatprep.subr.mxu0 0.0
    %8480 = vmatpush1.msra.mxu0 0.0
    %8481 = vmatprep.subr.mxu0 0.0
    %8482 = vmatpush1.msra.mxu0 0.0
    %8483 = vmatprep.subr.mxu0 0.0
    %8484 = vmatpush1.msra.mxu0 0.0
    %8485 = vmatprep.subr.mxu0 0.0
    %8486 = vmatpush1.msra.mxu0 0.0
    %8487 = vmatprep.subr.mxu0 0.0
    %8488 = vmatpush1.msra.mxu0 0.0
    %8489 = vmatprep.subr.mxu0 0.0
    %8490 = vmatpush1.msra.mxu0 0.0
    %8491 = vmatprep.subr.mxu0 0.0
    %8492 = vmatpush1.msra.mxu0 %v8459
    %8493 = vmatprep.subr.mxu0 0.0
    %8494 = vmatpush2.msra.mxu0 0.0
    %8495 = vmatprep.subr.mxu0 0.0
    %8496 = vmatpush2.msra.mxu0 0.0
    %8497 = vmatprep.subr.mxu0 0.0
    %8498 = vmatpush2.msra.mxu0 0.0
    %8499 = vmatprep.subr.mxu0 0.0
    %8500 = vmatpush2.msra.mxu0 0.0
    %8501 = vmatprep.subr.mxu0 0.0
    %8502 = vmatpush2.msra.mxu0 0.0
    %8503 = vmatprep.subr.mxu0 0.0
    %8504 = vmatpush2.msra.mxu0 0.0
    %8505 = vmatprep.subr.mxu0 0.0
    %8506 = vmatpush2.msra.mxu0 0.0
    %8507 = vmatprep.subr.mxu0 0.0
    %8508 = vmatpush2.msra.mxu0 0.0
    %8509 = vmatprep.subr.mxu0 0.0
    %8510 = vmatpush2.msra.mxu0 0.0
    %8511 = vmatprep.subr.mxu0 0.0
    %8512 = vmatpush2.msra.mxu0 0.0
    %8513 = vmatprep.subr.mxu0 0.0
    %8514 = vmatpush2.msra.mxu0 0.0
    %8515 = vmatprep.subr.mxu0 0.0
    %8516 = vmatpush2.msra.mxu0 0.0
    %8517 = vmatprep.subr.mxu0 0.0
    %8518 = vmatpush2.msra.mxu0 0.0
    %8519 = vmatprep.subr.mxu0 0.0
    %8520 = vmatpush2.msra.mxu0 0.0
    %8521 = vmatprep.subr.mxu0 0.0
    %8522 = vmatpush2.msra.mxu0 0.0
    %8523 = vmatprep.subr.mxu0 0.0
    %8524 = vmatpush2.msra.mxu0 0.0
    %8525 = vmatprep.mubr.f32.mxu0 0.0
    %8526 = vmatmul.mubr.f32.gmra.mxu0 %v8457
    %v8527 = vpop.f32.mrf.mxu0
    %v8528 = vadd.f32 0.0, %v8527
    %v8529 = vpop.f32.mrf.mxu0
    %8530 = vdwg.mxu0
    %v8531 = vld [vmem:[#allocation22] sm:$0xff]
    %v8532 = vld [vmem:[#allocation22 + $0x8] sm:$0xff]
    %v8533 = vld [vmem:[#allocation22 + $0x10] sm:$0xff]
    %v8534 = vld [vmem:[#allocation22 + $0x18] sm:$0xff]
    %v8535 = vld [vmem:[#allocation22 + $0x20] sm:$0xff]
    %v8536 = vld [vmem:[#allocation22 + $0x28] sm:$0xff]
    %v8537 = vld [vmem:[#allocation22 + $0x30] sm:$0xff]
    %v8538 = vld [vmem:[#allocation22 + $0x38] sm:$0xff]
    %v8539 = vld [vmem:[#allocation22 + $0x40] sm:$0xff]
    %v8540 = vld [vmem:[#allocation22 + $0x48] sm:$0xff]
    %v8541 = vld [vmem:[#allocation22 + $0x50] sm:$0xff]
    %v8542 = vld [vmem:[#allocation22 + $0x58] sm:$0xff]
    %v8543 = vld [vmem:[#allocation22 + $0x60] sm:$0xff]
    %v8544 = vld [vmem:[#allocation22 + $0x68] sm:$0xff]
    %v8545 = vld [vmem:[#allocation22 + $0x70] sm:$0xff]
    %v8546 = vld [vmem:[#allocation22 + $0x78] sm:$0xff]
    %v8547 = vld [vmem:[#allocation22 + $0x80] sm:$0xff]
    %v8548 = vld [vmem:[#allocation22 + $0x88] sm:$0xff]
    %v8549 = vld [vmem:[#allocation22 + $0x90] sm:$0xff]
    %v8550 = vld [vmem:[#allocation22 + $0x98] sm:$0xff]
    %v8551 = vld [vmem:[#allocation22 + $0xa0] sm:$0xff]
    %v8552 = vld [vmem:[#allocation22 + $0xa8] sm:$0xff]
    %v8553 = vld [vmem:[#allocation22 + $0xb0] sm:$0xff]
    %v8554 = vld [vmem:[#allocation22 + $0xb8] sm:$0xff]
    %v8555 = vld [vmem:[#allocation22 + $0xc0] sm:$0xff]
    %v8556 = vld [vmem:[#allocation22 + $0xc8] sm:$0xff]
    %v8557 = vld [vmem:[#allocation22 + $0xd0] sm:$0xff]
    %v8558 = vld [vmem:[#allocation22 + $0xd8] sm:$0xff]
    %v8559 = vld [vmem:[#allocation22 + $0xe0] sm:$0xff]
    %v8560 = vld [vmem:[#allocation22 + $0xe8] sm:$0xff]
    %v8561 = vld [vmem:[#allocation22 + $0xf0] sm:$0xff]
    %v8562 = vld [vmem:[#allocation22 + $0xf8] sm:$0xff]
    %v8563 = vld [vmem:[#allocation24] sm:$0xff]
    %v8564 = vld [vmem:[#allocation24 + $0x8] sm:$0xff]
    %v8565 = vld [vmem:[#allocation24 + $0x10] sm:$0xff]
    %v8566 = vld [vmem:[#allocation24 + $0x18] sm:$0xff]
    %v8567 = vld [vmem:[#allocation24 + $0x20] sm:$0xff]
    %v8568 = vld [vmem:[#allocation24 + $0x28] sm:$0xff]
    %v8569 = vld [vmem:[#allocation24 + $0x30] sm:$0xff]
    %v8570 = vld [vmem:[#allocation24 + $0x38] sm:$0xff]
    %v8571 = vld [vmem:[#allocation24 + $0x40] sm:$0xff]
    %v8572 = vld [vmem:[#allocation24 + $0x48] sm:$0xff]
    %v8573 = vld [vmem:[#allocation24 + $0x50] sm:$0xff]
    %v8574 = vld [vmem:[#allocation24 + $0x58] sm:$0xff]
    %v8575 = vld [vmem:[#allocation24 + $0x60] sm:$0xff]
    %v8576 = vld [vmem:[#allocation24 + $0x68] sm:$0xff]
    %v8577 = vld [vmem:[#allocation24 + $0x70] sm:$0xff]
    %v8578 = vld [vmem:[#allocation24 + $0x78] sm:$0xff]
    %v8579 = vld [vmem:[#allocation24 + $0x80] sm:$0xff]
    %v8580 = vld [vmem:[#allocation24 + $0x88] sm:$0xff]
    %v8581 = vld [vmem:[#allocation24 + $0x90] sm:$0xff]
    %v8582 = vld [vmem:[#allocation24 + $0x98] sm:$0xff]
    %v8583 = vld [vmem:[#allocation24 + $0xa0] sm:$0xff]
    %v8584 = vld [vmem:[#allocation24 + $0xa8] sm:$0xff]
    %v8585 = vld [vmem:[#allocation24 + $0xb0] sm:$0xff]
    %v8586 = vld [vmem:[#allocation24 + $0xb8] sm:$0xff]
    %v8587 = vld [vmem:[#allocation24 + $0xc0] sm:$0xff]
    %v8588 = vld [vmem:[#allocation24 + $0xc8] sm:$0xff]
    %v8589 = vld [vmem:[#allocation24 + $0xd0] sm:$0xff]
    %v8590 = vld [vmem:[#allocation24 + $0xd8] sm:$0xff]
    %v8591 = vld [vmem:[#allocation24 + $0xe0] sm:$0xff]
    %v8592 = vld [vmem:[#allocation24 + $0xe8] sm:$0xff]
    %v8593 = vld [vmem:[#allocation24 + $0xf0] sm:$0xff]
    %v8594 = vld [vmem:[#allocation24 + $0xf8] sm:$0xff]
    %v8611 = vrot.slane %v6834, 7
    %v8612 = vsel %vm2541, %v8611, %v6713
    %v8613 = vrot.slane %v6955, 6
    %v8614 = vsel %vm6187, %v8613, %v8612
    %v8615 = vrot.slane %v7076, 5
    %v8616 = vsel %vm6189, %v8615, %v8614
    %v8617 = vrot.slane %v7197, 4
    %v8618 = vsel %vm6191, %v8617, %v8616
    %v8619 = vrot.slane %v7318, 3
    %v8620 = vsel %vm6193, %v8619, %v8618
    %v8621 = vrot.slane %v7439, 2
    %v8622 = vsel %vm6195, %v8621, %v8620
    %v8623 = vrot.slane %v7560, 1
    %v8624 = vsel %vm6197, %v8623, %v8622
    %v8625 = vrot.slane %v7802, 7
    %v8626 = vsel %vm2541, %v8625, %v7681
    %v8627 = vrot.slane %v7923, 6
    %v8628 = vsel %vm6187, %v8627, %v8626
    %v8629 = vrot.slane %v8044, 5
    %v8630 = vsel %vm6189, %v8629, %v8628
    %v8631 = vrot.slane %v8165, 4
    %v8632 = vsel %vm6191, %v8631, %v8630
    %v8633 = vrot.slane %v8286, 3
    %v8634 = vsel %vm6193, %v8633, %v8632
    %v8635 = vrot.slane %v8407, 2
    %v8636 = vsel %vm6195, %v8635, %v8634
    %v8637 = vrot.slane %v8528, 1
    %v8638 = vsel %vm6197, %v8637, %v8636
    %8641 = vmatprep.subr.mxu0 %v8594
    %8642 = vmatpush1.msra.mxu0 %v8593
    %8643 = vmatprep.subr.mxu0 %v8592
    %8644 = vmatpush1.msra.mxu0 %v8591
    %8645 = vmatprep.subr.mxu0 %v8590
    %8646 = vmatpush1.msra.mxu0 %v8589
    %8647 = vmatprep.subr.mxu0 %v8588
    %8648 = vmatpush1.msra.mxu0 %v8587
    %8649 = vmatprep.subr.mxu0 %v8586
    %8650 = vmatpush1.msra.mxu0 %v8585
    %8651 = vmatprep.subr.mxu0 %v8584
    %8652 = vmatpush1.msra.mxu0 %v8583
    %8653 = vmatprep.subr.mxu0 %v8582
    %8654 = vmatpush1.msra.mxu0 %v8581
    %8655 = vmatprep.subr.mxu0 %v8580
    %8656 = vmatpush1.msra.mxu0 %v8579
    %8657 = vmatprep.subr.mxu0 %v8578
    %8658 = vmatpush1.msra.mxu0 %v8577
    %8659 = vmatprep.subr.mxu0 %v8576
    %8660 = vmatpush1.msra.mxu0 %v8575
    %8661 = vmatprep.subr.mxu0 %v8574
    %8662 = vmatpush1.msra.mxu0 %v8573
    %8663 = vmatprep.subr.mxu0 %v8572
    %8664 = vmatpush1.msra.mxu0 %v8571
    %8665 = vmatprep.subr.mxu0 %v8570
    %8666 = vmatpush1.msra.mxu0 %v8569
    %8667 = vmatprep.subr.mxu0 %v8568
    %8668 = vmatpush1.msra.mxu0 %v8567
    %8669 = vmatprep.subr.mxu0 %v8566
    %8670 = vmatpush1.msra.mxu0 %v8565
    %8671 = vmatprep.subr.mxu0 %v8564
    %8672 = vmatpush1.msra.mxu0 %v8563
    %8673 = vmatprep.subr.mxu0 0.0
    %8674 = vmatpush2.msra.mxu0 0.0
    %8675 = vmatprep.subr.mxu0 0.0
    %8676 = vmatpush2.msra.mxu0 0.0
    %8677 = vmatprep.subr.mxu0 0.0
    %8678 = vmatpush2.msra.mxu0 0.0
    %8679 = vmatprep.subr.mxu0 0.0
    %8680 = vmatpush2.msra.mxu0 0.0
    %8681 = vmatprep.subr.mxu0 0.0
    %8682 = vmatpush2.msra.mxu0 0.0
    %8683 = vmatprep.subr.mxu0 0.0
    %8684 = vmatpush2.msra.mxu0 0.0
    %8685 = vmatprep.subr.mxu0 0.0
    %8686 = vmatpush2.msra.mxu0 0.0
    %8687 = vmatprep.subr.mxu0 0.0
    %8688 = vmatpush2.msra.mxu0 0.0
    %8689 = vmatprep.subr.mxu0 0.0
    %8690 = vmatpush2.msra.mxu0 0.0
    %8691 = vmatprep.subr.mxu0 0.0
    %8692 = vmatpush2.msra.mxu0 0.0
    %8693 = vmatprep.subr.mxu0 0.0
    %8694 = vmatpush2.msra.mxu0 0.0
    %8695 = vmatprep.subr.mxu0 0.0
    %8696 = vmatpush2.msra.mxu0 0.0
    %8697 = vmatprep.subr.mxu0 0.0
    %8698 = vmatpush2.msra.mxu0 0.0
    %8699 = vmatprep.subr.mxu0 0.0
    %8700 = vmatpush2.msra.mxu0 0.0
    %8701 = vmatprep.subr.mxu0 0.0
    %8702 = vmatpush2.msra.mxu0 0.0
    %8703 = vmatprep.subr.mxu0 0.0
    %8704 = vmatpush2.msra.mxu0 0.0
    %8705 = vmatprep.mubr.f32.mxu0 0.0
    %8706 = vmatmul.mubr.f32.gmra.mxu0 %v8624
    %v8707 = vpop.f32.mrf.mxu0
    %v8708 = vadd.f32 0.0, %v8707
    %v8709 = vpop.f32.mrf.mxu0
    %v8710 = vadd.f32 0.0, %v8709
    %8711 = vmatprep.mubr.f32.mxu0 0.0
    %8712 = vmatmul.mubr.f32.gmra.mxu0 %v8638
    %v8713 = vpop.f32.mrf.mxu0
    %v8714 = vadd.f32 0.0, %v8713
    %v8715 = vpop.f32.mrf.mxu0
    %v8716 = vadd.f32 0.0, %v8715
    %8717 = vdwg.mxu0
    %8718 = vmatprep.subr.mxu0 %v8562
    %8719 = vmatpush1.msra.mxu0 %v8561
    %8720 = vmatprep.subr.mxu0 %v8560
    %8721 = vmatpush1.msra.mxu0 %v8559
    %8722 = vmatprep.subr.mxu0 %v8558
    %8723 = vmatpush1.msra.mxu0 %v8557
    %8724 = vmatprep.subr.mxu0 %v8556
    %8725 = vmatpush1.msra.mxu0 %v8555
    %8726 = vmatprep.subr.mxu0 %v8554
    %8727 = vmatpush1.msra.mxu0 %v8553
    %8728 = vmatprep.subr.mxu0 %v8552
    %8729 = vmatpush1.msra.mxu0 %v8551
    %8730 = vmatprep.subr.mxu0 %v8550
    %8731 = vmatpush1.msra.mxu0 %v8549
    %8732 = vmatprep.subr.mxu0 %v8548
    %8733 = vmatpush1.msra.mxu0 %v8547
    %8734 = vmatprep.subr.mxu0 %v8546
    %8735 = vmatpush1.msra.mxu0 %v8545
    %8736 = vmatprep.subr.mxu0 %v8544
    %8737 = vmatpush1.msra.mxu0 %v8543
    %8738 = vmatprep.subr.mxu0 %v8542
    %8739 = vmatpush1.msra.mxu0 %v8541
    %8740 = vmatprep.subr.mxu0 %v8540
    %8741 = vmatpush1.msra.mxu0 %v8539
    %8742 = vmatprep.subr.mxu0 %v8538
    %8743 = vmatpush1.msra.mxu0 %v8537
    %8744 = vmatprep.subr.mxu0 %v8536
    %8745 = vmatpush1.msra.mxu0 %v8535
    %8746 = vmatprep.subr.mxu0 %v8534
    %8747 = vmatpush1.msra.mxu0 %v8533
    %8748 = vmatprep.subr.mxu0 %v8532
    %8749 = vmatpush1.msra.mxu0 %v8531
    %8750 = vmatprep.subr.mxu0 0.0
    %8751 = vmatpush2.msra.mxu0 0.0
    %8752 = vmatprep.subr.mxu0 0.0
    %8753 = vmatpush2.msra.mxu0 0.0
    %8754 = vmatprep.subr.mxu0 0.0
    %8755 = vmatpush2.msra.mxu0 0.0
    %8756 = vmatprep.subr.mxu0 0.0
    %8757 = vmatpush2.msra.mxu0 0.0
    %8758 = vmatprep.subr.mxu0 0.0
    %8759 = vmatpush2.msra.mxu0 0.0
    %8760 = vmatprep.subr.mxu0 0.0
    %8761 = vmatpush2.msra.mxu0 0.0
    %8762 = vmatprep.subr.mxu0 0.0
    %8763 = vmatpush2.msra.mxu0 0.0
    %8764 = vmatprep.subr.mxu0 0.0
    %8765 = vmatpush2.msra.mxu0 0.0
    %8766 = vmatprep.subr.mxu0 0.0
    %8767 = vmatpush2.msra.mxu0 0.0
    %8768 = vmatprep.subr.mxu0 0.0
    %8769 = vmatpush2.msra.mxu0 0.0
    %8770 = vmatprep.subr.mxu0 0.0
    %8771 = vmatpush2.msra.mxu0 0.0
    %8772 = vmatprep.subr.mxu0 0.0
    %8773 = vmatpush2.msra.mxu0 0.0
    %8774 = vmatprep.subr.mxu0 0.0
    %8775 = vmatpush2.msra.mxu0 0.0
    %8776 = vmatprep.subr.mxu0 0.0
    %8777 = vmatpush2.msra.mxu0 0.0
    %8778 = vmatprep.subr.mxu0 0.0
    %8779 = vmatpush2.msra.mxu0 0.0
    %8780 = vmatprep.subr.mxu0 0.0
    %8781 = vmatpush2.msra.mxu0 0.0
    %8782 = vmatprep.mubr.f32.mxu0 0.0
    %8783 = vmatmul.mubr.f32.gmra.mxu0 %v2806
    %v8784 = vpop.f32.mrf.mxu0
    %v8785 = vadd.f32 %v8708, %v8784
    %v8786 = vpop.f32.mrf.mxu0
    %v8787 = vadd.f32 %v8710, %v8786
    %8788 = vmatprep.mubr.f32.mxu0 0.0
    %8789 = vmatmul.mubr.f32.gmra.mxu0 %v2807
    %v8790 = vpop.f32.mrf.mxu0
    %v8791 = vadd.f32 %v8714, %v8790
    %v8792 = vpop.f32.mrf.mxu0
    %v8793 = vadd.f32 %v8716, %v8792
    %8794 = vdwg.mxu0
    %v8795 = vld [vmem:[#allocation25] sm:$0x3]
    %v8797 = vlaneseq
    %v8798 = vshrl.u32 %v8797, 7
    %v8799 = vsub.s32 0, %v8798
    %v8800 = vrot.slane %v8795, %v8799
    %v8801 = vlaneseq
    %v8802 = vshrl.u32 %v8801, 7
    %v8803 = vsub.s32 1, %v8802
    %v8804 = vrot.slane %v8795, %v8803
    %v8807 = vadd.f32 %v8785, %v8800
    %v8808 = vadd.f32 %v8787, %v8804
    %v8809 = vadd.f32 %v8791, %v8800
    %v8810 = vadd.f32 %v8793, %v8804
    %v8811 = vtanh.pop %v8807
    %v8812 = vtanh.pop %v8809
    %v8813 = vrot.slane %v8811, 4
    %v8814 = vadd.f32 %v8811, %v8813
    %v8815 = vrot.slane %v8814, 2
    %v8816 = vadd.f32 %v8814, %v8815
    %v8817 = vrot.slane %v8816, 1
    %v8818 = vadd.f32 %v8816, %v8817
    %v8819 = vrot.slane %v8812, 4
    %v8820 = vadd.f32 %v8812, %v8819
    %v8821 = vrot.slane %v8820, 2
    %v8822 = vadd.f32 %v8820, %v8821
    %v8823 = vrot.slane %v8822, 1
    %v8824 = vadd.f32 %v8822, %v8823
    %v8825 = vrcp.pop 8.0
    %v8826 = vmul.f32 %v8818, %v8825
    %v8827 = vmul.f32 %v8824, %v8825
    %v8828 = vld [vmem:[#allocation27] sm:$0xff]
    %v8829 = vld [vmem:[#allocation27 + $0x8] sm:$0xff]
    %v8830 = vld [vmem:[#allocation27 + $0x10] sm:$0xff]
    %v8831 = vld [vmem:[#allocation27 + $0x18] sm:$0xff]
    %v8832 = vld [vmem:[#allocation27 + $0x20] sm:$0xff]
    %v8833 = vld [vmem:[#allocation27 + $0x28] sm:$0xff]
    %v8834 = vld [vmem:[#allocation27 + $0x30] sm:$0xff]
    %v8835 = vld [vmem:[#allocation27 + $0x38] sm:$0xff]
    %v8836 = vld [vmem:[#allocation27 + $0x40] sm:$0xff]
    %v8837 = vld [vmem:[#allocation27 + $0x48] sm:$0xff]
    %v8838 = vld [vmem:[#allocation27 + $0x50] sm:$0xff]
    %v8839 = vld [vmem:[#allocation27 + $0x58] sm:$0xff]
    %v8840 = vld [vmem:[#allocation27 + $0x60] sm:$0xff]
    %v8841 = vld [vmem:[#allocation27 + $0x68] sm:$0xff]
    %v8842 = vld [vmem:[#allocation27 + $0x70] sm:$0xff]
    %v8843 = vld [vmem:[#allocation27 + $0x78] sm:$0xff]
    %v8844 = vld [vmem:[#allocation28] sm:$0x1]
    %v8846 = vlaneseq
    %v8847 = vshrl.u32 %v8846, 7
    %v8848 = vsub.s32 0, %v8847
    %v8849 = vrot.slane %v8844, %v8848
    %v8853 = vsel %vm2541, %v8827, %v8826
    %8855 = vmatprep.subr.mxu0 0.0
    %8856 = vmatpush1.msra.mxu0 %v8843
    %8857 = vmatprep.subr.mxu0 0.0
    %8858 = vmatpush1.msra.mxu0 %v8842
    %8859 = vmatprep.subr.mxu0 0.0
    %8860 = vmatpush1.msra.mxu0 %v8841
    %8861 = vmatprep.subr.mxu0 0.0
    %8862 = vmatpush1.msra.mxu0 %v8840
    %8863 = vmatprep.subr.mxu0 0.0
    %8864 = vmatpush1.msra.mxu0 %v8839
    %8865 = vmatprep.subr.mxu0 0.0
    %8866 = vmatpush1.msra.mxu0 %v8838
    %8867 = vmatprep.subr.mxu0 0.0
    %8868 = vmatpush1.msra.mxu0 %v8837
    %8869 = vmatprep.subr.mxu0 0.0
    %8870 = vmatpush1.msra.mxu0 %v8836
    %8871 = vmatprep.subr.mxu0 0.0
    %8872 = vmatpush1.msra.mxu0 %v8835
    %8873 = vmatprep.subr.mxu0 0.0
    %8874 = vmatpush1.msra.mxu0 %v8834
    %8875 = vmatprep.subr.mxu0 0.0
    %8876 = vmatpush1.msra.mxu0 %v8833
    %8877 = vmatprep.subr.mxu0 0.0
    %8878 = vmatpush1.msra.mxu0 %v8832
    %8879 = vmatprep.subr.mxu0 0.0
    %8880 = vmatpush1.msra.mxu0 %v8831
    %8881 = vmatprep.subr.mxu0 0.0
    %8882 = vmatpush1.msra.mxu0 %v8830
    %8883 = vmatprep.subr.mxu0 0.0
    %8884 = vmatpush1.msra.mxu0 %v8829
    %8885 = vmatprep.subr.mxu0 0.0
    %8886 = vmatpush1.msra.mxu0 %v8828
    %8887 = vmatprep.subr.mxu0 0.0
    %8888 = vmatpush2.msra.mxu0 0.0
    %8889 = vmatprep.subr.mxu0 0.0
    %8890 = vmatpush2.msra.mxu0 0.0
    %8891 = vmatprep.subr.mxu0 0.0
    %8892 = vmatpush2.msra.mxu0 0.0
    %8893 = vmatprep.subr.mxu0 0.0
    %8894 = vmatpush2.msra.mxu0 0.0
    %8895 = vmatprep.subr.mxu0 0.0
    %8896 = vmatpush2.msra.mxu0 0.0
    %8897 = vmatprep.subr.mxu0 0.0
    %8898 = vmatpush2.msra.mxu0 0.0
    %8899 = vmatprep.subr.mxu0 0.0
    %8900 = vmatpush2.msra.mxu0 0.0
    %8901 = vmatprep.subr.mxu0 0.0
    %8902 = vmatpush2.msra.mxu0 0.0
    %8903 = vmatprep.subr.mxu0 0.0
    %8904 = vmatpush2.msra.mxu0 0.0
    %8905 = vmatprep.subr.mxu0 0.0
    %8906 = vmatpush2.msra.mxu0 0.0
    %8907 = vmatprep.subr.mxu0 0.0
    %8908 = vmatpush2.msra.mxu0 0.0
    %8909 = vmatprep.subr.mxu0 0.0
    %8910 = vmatpush2.msra.mxu0 0.0
    %8911 = vmatprep.subr.mxu0 0.0
    %8912 = vmatpush2.msra.mxu0 0.0
    %8913 = vmatprep.subr.mxu0 0.0
    %8914 = vmatpush2.msra.mxu0 0.0
    %8915 = vmatprep.subr.mxu0 0.0
    %8916 = vmatpush2.msra.mxu0 0.0
    %8917 = vmatprep.subr.mxu0 0.0
    %8918 = vmatpush2.msra.mxu0 0.0
    %8919 = vmatprep.mubr.f32.mxu0 0.0
    %8920 = vmatmul.mubr.f32.gmra.mxu0 %v8853
    %v8921 = vpop.f32.mrf.mxu0
    %v8922 = vadd.f32 %v8849, %v8921
    %v8923 = vpop.f32.mrf.mxu0
    %8924 = vdwg.mxu0
    %v8925 = vmax.f32 %v8922, 0.0
    %v8926 = vld [vmem:[#allocation12] sm:$0x1]
    %v8927 = vld [vmem:[#allocation13] sm:$0x1]
    %vm8928 = vcmask 1041408
    %v8929 = vsel %vm8928, %v8925, 0.0
    %8930 = vadd.xlane.f32.xlu0 %v8929
    %v8931 = vpop.xlane.xlu0 %8930
    %v8932 = vmul.f32 %v8931, %v2323
    %v8933 = vsub.f32 %v8925, %v8932
    %v8934 = vmul.f32 %v8933, %v8933
    %v8935 = vsel %vm8928, %v8934, 0.0
    %8936 = vadd.xlane.f32.xlu0 %v8935
    %v8937 = vpop.xlane.xlu0 %8936
    %v8938 = vmul.f32 %v8937, %v2323
    %v8939 = vadd.f32 %v8938, 1e-05
    %v8940 = vrsqrt.pop %v8939
    %v8941 = vmul.f32 %v8933, %v8940
    %v8943 = vlaneseq
    %v8944 = vshrl.u32 %v8943, 7
    %v8945 = vsub.s32 0, %v8944
    %v8946 = vrot.slane %v8926, %v8945
    %v8948 = vmul.f32 %v8941, %v8946
    %v8950 = vlaneseq
    %v8951 = vshrl.u32 %v8950, 7
    %v8952 = vsub.s32 0, %v8951
    %v8953 = vrot.slane %v8927, %v8952
    %v8955 = vadd.f32 %v8948, %v8953
    %v8958 = vunpack.c.l.s4 1966171168
    %v8959 = vunpack.c.0.s8 %v8958
    %v8960 = vlaneseq
    %v8961 = vshrl.u32 %v8960, 7
    %v8962 = vsub.s32 %v8959, %v8961
    %v8963 = vrot.slane %v8955, %v8962
    %v8964 = vcombine.high %v8963, %v8963
    %v8966 = vunpack.c.l.s4 1966171168
    %v8967 = vunpack.c.0.s8 %v8966
    %v8968 = vlaneseq
    %v8969 = vshrl.u32 %v8968, 7
    %v8970 = vsub.s32 %v8967, %v8969
    %v8971 = vrot.slane %v8963, %v8970
    %v8973 = vunpack.c.l.s4 1966171168
    %v8974 = vunpack.c.0.s8 %v8973
    %v8975 = vlaneseq
    %v8976 = vshrl.u32 %v8975, 7
    %v8977 = vsub.s32 %v8974, %v8976
    %v8978 = vrot.slane %v8964, %v8977
    %v8979 = vlaneseq
    %v8980 = vshrl.u32 %v8979, 7
    %v8981 = vsub.s32 0, %v8980
    %v8982 = vrot.slane %v8971, %v8981
    %v8983 = vlaneseq
    %v8984 = vshrl.u32 %v8983, 7
    %v8985 = vsub.s32 0, %v8984
    %v8986 = vrot.slane %v8978, %v8985
    %v8989 = vld [vmem:[%s43] sm:$0xff]
    %v8990 = vld [vmem:[%s43 + $0x8] sm:$0xff]
    %v8991 = vld [vmem:[%s43 + $0x10] sm:$0xff]
    %v8992 = vld [vmem:[%s43 + $0x18] sm:$0xff]
    %v8993 = vld [vmem:[%s43 + $0x20] sm:$0xff]
    %v8994 = vld [vmem:[%s43 + $0x28] sm:$0xff]
    %v8995 = vld [vmem:[%s43 + $0x30] sm:$0xff]
    %v8996 = vld [vmem:[%s43 + $0x38] sm:$0xff]
    %v8997 = vld [vmem:[%s43 + $0x40] sm:$0xff]
    %v8998 = vld [vmem:[%s43 + $0x48] sm:$0xff]
    %v8999 = vld [vmem:[%s43 + $0x50] sm:$0xff]
    %v9000 = vld [vmem:[%s43 + $0x58] sm:$0xff]
    %v9001 = vld [vmem:[%s43 + $0x60] sm:$0xff]
    %v9002 = vld [vmem:[%s43 + $0x68] sm:$0xff]
    %v9003 = vld [vmem:[%s43 + $0x70] sm:$0xff]
    %v9004 = vld [vmem:[%s43 + $0x78] sm:$0xff]
    %v9005 = vld [vmem:[%s45] sm:$0x1]
    %v9006 = vld [vmem:[%s47] sm:$0x1]
    %v9008 = vlaneseq
    %v9009 = vshrl.u32 %v9008, 7
    %v9010 = vsub.s32 0, %v9009
    %v9011 = vrot.slane %v9005, %v9010
    %9013 = vmatprep.subr.mxu0 0.0
    %9014 = vmatpush1.msra.mxu0 %v9004
    %9015 = vmatprep.subr.mxu0 0.0
    %9016 = vmatpush1.msra.mxu0 %v9003
    %9017 = vmatprep.subr.mxu0 0.0
    %9018 = vmatpush1.msra.mxu0 %v9002
    %9019 = vmatprep.subr.mxu0 0.0
    %9020 = vmatpush1.msra.mxu0 %v9001
    %9021 = vmatprep.subr.mxu0 0.0
    %9022 = vmatpush1.msra.mxu0 %v9000
    %9023 = vmatprep.subr.mxu0 0.0
    %9024 = vmatpush1.msra.mxu0 %v8999
    %9025 = vmatprep.subr.mxu0 0.0
    %9026 = vmatpush1.msra.mxu0 %v8998
    %9027 = vmatprep.subr.mxu0 0.0
    %9028 = vmatpush1.msra.mxu0 %v8997
    %9029 = vmatprep.subr.mxu0 0.0
    %9030 = vmatpush1.msra.mxu0 %v8996
    %9031 = vmatprep.subr.mxu0 0.0
    %9032 = vmatpush1.msra.mxu0 %v8995
    %9033 = vmatprep.subr.mxu0 0.0
    %9034 = vmatpush1.msra.mxu0 %v8994
    %9035 = vmatprep.subr.mxu0 0.0
    %9036 = vmatpush1.msra.mxu0 %v8993
    %9037 = vmatprep.subr.mxu0 0.0
    %9038 = vmatpush1.msra.mxu0 %v8992
    %9039 = vmatprep.subr.mxu0 0.0
    %9040 = vmatpush1.msra.mxu0 %v8991
    %9041 = vmatprep.subr.mxu0 0.0
    %9042 = vmatpush1.msra.mxu0 %v8990
    %9043 = vmatprep.subr.mxu0 0.0
    %9044 = vmatpush1.msra.mxu0 %v8989
    %9045 = vmatprep.subr.mxu0 0.0
    %9046 = vmatpush2.msra.mxu0 0.0
    %9047 = vmatprep.subr.mxu0 0.0
    %9048 = vmatpush2.msra.mxu0 0.0
    %9049 = vmatprep.subr.mxu0 0.0
    %9050 = vmatpush2.msra.mxu0 0.0
    %9051 = vmatprep.subr.mxu0 0.0
    %9052 = vmatpush2.msra.mxu0 0.0
    %9053 = vmatprep.subr.mxu0 0.0
    %9054 = vmatpush2.msra.mxu0 0.0
    %9055 = vmatprep.subr.mxu0 0.0
    %9056 = vmatpush2.msra.mxu0 0.0
    %9057 = vmatprep.subr.mxu0 0.0
    %9058 = vmatpush2.msra.mxu0 0.0
    %9059 = vmatprep.subr.mxu0 0.0
    %9060 = vmatpush2.msra.mxu0 0.0
    %9061 = vmatprep.subr.mxu0 0.0
    %9062 = vmatpush2.msra.mxu0 0.0
    %9063 = vmatprep.subr.mxu0 0.0
    %9064 = vmatpush2.msra.mxu0 0.0
    %9065 = vmatprep.subr.mxu0 0.0
    %9066 = vmatpush2.msra.mxu0 0.0
    %9067 = vmatprep.subr.mxu0 0.0
    %9068 = vmatpush2.msra.mxu0 0.0
    %9069 = vmatprep.subr.mxu0 0.0
    %9070 = vmatpush2.msra.mxu0 0.0
    %9071 = vmatprep.subr.mxu0 0.0
    %9072 = vmatpush2.msra.mxu0 0.0
    %9073 = vmatprep.subr.mxu0 0.0
    %9074 = vmatpush2.msra.mxu0 0.0
    %9075 = vmatprep.subr.mxu0 0.0
    %9076 = vmatpush2.msra.mxu0 0.0
    %9077 = vmatprep.mubr.f32.mxu0 0.0
    %9078 = vmatmul.mubr.f32.gmra.mxu0 %v8982
    %v9079 = vpop.f32.mrf.mxu0
    %v9080 = vadd.f32 %v9011, %v9079
    %v9081 = vpop.f32.mrf.mxu0
    %9082 = vmatprep.mubr.f32.mxu0 0.0
    %9083 = vmatmul.mubr.f32.gmra.mxu0 %v8986
    %v9084 = vpop.f32.mrf.mxu0
    %v9085 = vadd.f32 %v9011, %v9084
    %v9086 = vpop.f32.mrf.mxu0
    %9087 = vdwg.mxu0
    %v9088 = vtanh.pop %v9080
    %v9089 = vtanh.pop %v9085
    %v9091 = vlaneseq
    %v9092 = vshrl.u32 %v9091, 7
    %v9093 = vsub.s32 0, %v9092
    %v9094 = vrot.slane %v9006, %v9093
    %v9096 = vmul.f32 %v9088, %v9094
    %v9097 = vmul.f32 %v9089, %v9094
    %v9098 = vsel %vm345, %v9096, 0.0
    %9099 = vadd.xlane.f32.xlu0 %v9098
    %v9100 = vpop.xlane.xlu0 %9099
    %v9101 = vsel %vm345, %v9097, 0.0
    %9102 = vadd.xlane.f32.xlu0 %v9101
    %v9103 = vpop.xlane.xlu0 %9102
    %v9106 = vlaneseq
    %v9107 = vshrl.u32 %v9106, 7
    %v9108 = vsub.s32 %v2520, %v9107
    %v9109 = vrot.slane %v9100, %v9108
    %v9110 = vlaneseq
    %v9111 = vshrl.u32 %v9110, 7
    %v9112 = vsub.s32 %v2520, %v9111
    %v9113 = vrot.slane %v9103, %v9112
    %v9114 = vsel %vm2541, %v9113, %v9109
    %vm9116 = vcmask 58368
    %v9117 = vsel %vm9116, %v9114, -inf
    %9118 = vmax.xlane.f32.xlu0 %v9117
    %v9119 = vpop.xlane.xlu0 %9118
    %v9121 = vlaneseq
    %v9122 = vshrl.u32 %v9121, 7
    %v9123 = vsub.s32 0, %v9122
    %v9124 = vrot.slane %v9119, %v9123
    %v9125 = vlaneseq
    %v9126 = vshrl.u32 %v9125, 7
    %v9127 = vsub.s32 1, %v9126
    %v9128 = vrot.slane %v9119, %v9127
    %v9131 = vsub.f32 %v9100, %v9124
    %v9132 = vsub.f32 %v9103, %v9128
    %v9133 = vmul.f32 %v9131, 1.442695
    %v9134 = vpow.pop %v9133
    %v9135 = vmul.f32 %v9132, 1.442695
    %v9136 = vpow.pop %v9135
    %9139 = vset.pattern.permute.xlu0 0
    %9140 = vperm.xlu0 %9139, %v9134
    %v9141 = vpop.permute.xlu0 %9140
    %9142 = vset.pattern.permute.xlu0 0
    %9143 = vperm.xlu0 %9142, %v9136
    %v9144 = vpop.permute.xlu0 %9143
    %v9145 = vlaneseq
    %v9146 = vshrl.u32 %v9145, 7
    %v9147 = vsub.s32 %v2520, %v9146
    %v9148 = vrot.slane %v9141, %v9147
    %v9149 = vlaneseq
    %v9150 = vshrl.u32 %v9149, 7
    %v9151 = vsub.s32 %v2520, %v9150
    %v9152 = vrot.slane %v9144, %v9151
    %v9153 = vsel %vm2541, %v9152, %v9148
    %v9155 = vsel %vm9116, %v9153, 0.0
    %9156 = vadd.xlane.f32.xlu0 %v9155
    %v9157 = vpop.xlane.xlu0 %9156
    %v9158 = vrcp.pop %v9157
    %v9160 = vlaneseq
    %v9161 = vshrl.u32 %v9160, 7
    %v9162 = vsub.s32 0, %v9161
    %v9163 = vrot.slane %v9158, %v9162
    %v9164 = vlaneseq
    %v9165 = vshrl.u32 %v9164, 7
    %v9166 = vsub.s32 1, %v9165
    %v9167 = vrot.slane %v9158, %v9166
    %v9170 = vmul.f32 %v9134, %v9163
    %v9171 = vmul.f32 %v9136, %v9167
    %9173 = vset.pattern.permute.xlu0 0
    %9174 = vperm.xlu0 %9173, %v9170
    %v9175 = vpop.permute.xlu0 %9174
    %v9176 = vlaneseq
    %v9177 = vshrl.u32 %v9176, 7
    %v9178 = vsub.s32 %v2520, %v9177
    %v9179 = vrot.slane %v9175, %v9178
    %vm9180 = vcmask 64512
    %v9181 = vsel %vm9180, %v9179, 0
    %9183 = vmatprep.subr.mxu0 0.0
    %9184 = vmatpush1.msra.mxu0 0.0
    %9185 = vmatprep.subr.mxu0 0.0
    %9186 = vmatpush1.msra.mxu0 0.0
    %9187 = vmatprep.subr.mxu0 0.0
    %9188 = vmatpush1.msra.mxu0 0.0
    %9189 = vmatprep.subr.mxu0 0.0
    %9190 = vmatpush1.msra.mxu0 0.0
    %9191 = vmatprep.subr.mxu0 0.0
    %9192 = vmatpush1.msra.mxu0 0.0
    %9193 = vmatprep.subr.mxu0 0.0
    %9194 = vmatpush1.msra.mxu0 0.0
    %9195 = vmatprep.subr.mxu0 0.0
    %9196 = vmatpush1.msra.mxu0 0.0
    %9197 = vmatprep.subr.mxu0 0.0
    %9198 = vmatpush1.msra.mxu0 0.0
    %9199 = vmatprep.subr.mxu0 0.0
    %9200 = vmatpush1.msra.mxu0 0.0
    %9201 = vmatprep.subr.mxu0 0.0
    %9202 = vmatpush1.msra.mxu0 0.0
    %9203 = vmatprep.subr.mxu0 0.0
    %9204 = vmatpush1.msra.mxu0 0.0
    %9205 = vmatprep.subr.mxu0 0.0
    %9206 = vmatpush1.msra.mxu0 0.0
    %9207 = vmatprep.subr.mxu0 0.0
    %9208 = vmatpush1.msra.mxu0 0.0
    %9209 = vmatprep.subr.mxu0 0.0
    %9210 = vmatpush1.msra.mxu0 0.0
    %9211 = vmatprep.subr.mxu0 0.0
    %9212 = vmatpush1.msra.mxu0 0.0
    %9213 = vmatprep.subr.mxu0 0.0
    %9214 = vmatpush1.msra.mxu0 %v8982
    %9215 = vmatprep.subr.mxu0 0.0
    %9216 = vmatpush2.msra.mxu0 0.0
    %9217 = vmatprep.subr.mxu0 0.0
    %9218 = vmatpush2.msra.mxu0 0.0
    %9219 = vmatprep.subr.mxu0 0.0
    %9220 = vmatpush2.msra.mxu0 0.0
    %9221 = vmatprep.subr.mxu0 0.0
    %9222 = vmatpush2.msra.mxu0 0.0
    %9223 = vmatprep.subr.mxu0 0.0
    %9224 = vmatpush2.msra.mxu0 0.0
    %9225 = vmatprep.subr.mxu0 0.0
    %9226 = vmatpush2.msra.mxu0 0.0
    %9227 = vmatprep.subr.mxu0 0.0
    %9228 = vmatpush2.msra.mxu0 0.0
    %9229 = vmatprep.subr.mxu0 0.0
    %9230 = vmatpush2.msra.mxu0 0.0
    %9231 = vmatprep.subr.mxu0 0.0
    %9232 = vmatpush2.msra.mxu0 0.0
    %9233 = vmatprep.subr.mxu0 0.0
    %9234 = vmatpush2.msra.mxu0 0.0
    %9235 = vmatprep.subr.mxu0 0.0
    %9236 = vmatpush2.msra.mxu0 0.0
    %9237 = vmatprep.subr.mxu0 0.0
    %9238 = vmatpush2.msra.mxu0 0.0
    %9239 = vmatprep.subr.mxu0 0.0
    %9240 = vmatpush2.msra.mxu0 0.0
    %9241 = vmatprep.subr.mxu0 0.0
    %9242 = vmatpush2.msra.mxu0 0.0
    %9243 = vmatprep.subr.mxu0 0.0
    %9244 = vmatpush2.msra.mxu0 0.0
    %9245 = vmatprep.subr.mxu0 0.0
    %9246 = vmatpush2.msra.mxu0 0.0
    %9247 = vmatprep.mubr.f32.mxu0 0.0
    %9248 = vmatmul.mubr.f32.gmra.mxu0 %v9181
    %v9249 = vpop.f32.mrf.mxu0
    %v9250 = vadd.f32 0.0, %v9249
    %v9251 = vpop.f32.mrf.mxu0
    %9252 = vdwg.mxu0
    %9254 = vset.pattern.permute.xlu0 0
    %9255 = vperm.xlu0 %9254, %v9171
    %v9256 = vpop.permute.xlu0 %9255
    %v9257 = vlaneseq
    %v9258 = vshrl.u32 %v9257, 7
    %v9259 = vsub.s32 %v2520, %v9258
    %v9260 = vrot.slane %v9256, %v9259
    %v9261 = vsel %vm9180, %v9260, 0
    %9263 = vmatprep.subr.mxu0 0.0
    %9264 = vmatpush1.msra.mxu0 0.0
    %9265 = vmatprep.subr.mxu0 0.0
    %9266 = vmatpush1.msra.mxu0 0.0
    %9267 = vmatprep.subr.mxu0 0.0
    %9268 = vmatpush1.msra.mxu0 0.0
    %9269 = vmatprep.subr.mxu0 0.0
    %9270 = vmatpush1.msra.mxu0 0.0
    %9271 = vmatprep.subr.mxu0 0.0
    %9272 = vmatpush1.msra.mxu0 0.0
    %9273 = vmatprep.subr.mxu0 0.0
    %9274 = vmatpush1.msra.mxu0 0.0
    %9275 = vmatprep.subr.mxu0 0.0
    %9276 = vmatpush1.msra.mxu0 0.0
    %9277 = vmatprep.subr.mxu0 0.0
    %9278 = vmatpush1.msra.mxu0 0.0
    %9279 = vmatprep.subr.mxu0 0.0
    %9280 = vmatpush1.msra.mxu0 0.0
    %9281 = vmatprep.subr.mxu0 0.0
    %9282 = vmatpush1.msra.mxu0 0.0
    %9283 = vmatprep.subr.mxu0 0.0
    %9284 = vmatpush1.msra.mxu0 0.0
    %9285 = vmatprep.subr.mxu0 0.0
    %9286 = vmatpush1.msra.mxu0 0.0
    %9287 = vmatprep.subr.mxu0 0.0
    %9288 = vmatpush1.msra.mxu0 0.0
    %9289 = vmatprep.subr.mxu0 0.0
    %9290 = vmatpush1.msra.mxu0 0.0
    %9291 = vmatprep.subr.mxu0 0.0
    %9292 = vmatpush1.msra.mxu0 0.0
    %9293 = vmatprep.subr.mxu0 0.0
    %9294 = vmatpush1.msra.mxu0 %v8986
    %9295 = vmatprep.subr.mxu0 0.0
    %9296 = vmatpush2.msra.mxu0 0.0
    %9297 = vmatprep.subr.mxu0 0.0
    %9298 = vmatpush2.msra.mxu0 0.0
    %9299 = vmatprep.subr.mxu0 0.0
    %9300 = vmatpush2.msra.mxu0 0.0
    %9301 = vmatprep.subr.mxu0 0.0
    %9302 = vmatpush2.msra.mxu0 0.0
    %9303 = vmatprep.subr.mxu0 0.0
    %9304 = vmatpush2.msra.mxu0 0.0
    %9305 = vmatprep.subr.mxu0 0.0
    %9306 = vmatpush2.msra.mxu0 0.0
    %9307 = vmatprep.subr.mxu0 0.0
    %9308 = vmatpush2.msra.mxu0 0.0
    %9309 = vmatprep.subr.mxu0 0.0
    %9310 = vmatpush2.msra.mxu0 0.0
    %9311 = vmatprep.subr.mxu0 0.0
    %9312 = vmatpush2.msra.mxu0 0.0
    %9313 = vmatprep.subr.mxu0 0.0
    %9314 = vmatpush2.msra.mxu0 0.0
    %9315 = vmatprep.subr.mxu0 0.0
    %9316 = vmatpush2.msra.mxu0 0.0
    %9317 = vmatprep.subr.mxu0 0.0
    %9318 = vmatpush2.msra.mxu0 0.0
    %9319 = vmatprep.subr.mxu0 0.0
    %9320 = vmatpush2.msra.mxu0 0.0
    %9321 = vmatprep.subr.mxu0 0.0
    %9322 = vmatpush2.msra.mxu0 0.0
    %9323 = vmatprep.subr.mxu0 0.0
    %9324 = vmatpush2.msra.mxu0 0.0
    %9325 = vmatprep.subr.mxu0 0.0
    %9326 = vmatpush2.msra.mxu0 0.0
    %9327 = vmatprep.mubr.f32.mxu0 0.0
    %9328 = vmatmul.mubr.f32.gmra.mxu0 %v9261
    %v9329 = vpop.f32.mrf.mxu0
    %v9330 = vadd.f32 0.0, %v9329
    %v9331 = vpop.f32.mrf.mxu0
    %9332 = vdwg.mxu0
    %v9333 = vtanh.pop %v9250
    %v9334 = vtanh.pop %v9330
    %v9337 = vunpack.c.l.s4 1966171168
    %v9338 = vunpack.c.0.s8 %v9337
    %v9339 = vlaneseq
    %v9340 = vshrl.u32 %v9339, 7
    %v9341 = vsub.s32 %v9338, %v9340
    %v9342 = vrot.slane %v420, %v9341
    %v9343 = vcombine.high %v9342, %v9342
    %v9345 = vunpack.c.l.s4 1966171168
    %v9346 = vunpack.c.0.s8 %v9345
    %v9347 = vlaneseq
    %v9348 = vshrl.u32 %v9347, 7
    %v9349 = vsub.s32 %v9346, %v9348
    %v9350 = vrot.slane %v9342, %v9349
    %v9352 = vunpack.c.l.s4 1966171168
    %v9353 = vunpack.c.0.s8 %v9352
    %v9354 = vlaneseq
    %v9355 = vshrl.u32 %v9354, 7
    %v9356 = vsub.s32 %v9353, %v9355
    %v9357 = vrot.slane %v9343, %v9356
    %v9360 = vunpack.c.l.s4 1966171168
    %v9361 = vunpack.c.0.s8 %v9360
    %v9362 = vlaneseq
    %v9363 = vshrl.u32 %v9362, 7
    %v9364 = vsub.s32 %v9361, %v9363
    %v9365 = vrot.slane %v421, %v9364
    %v9366 = vcombine.high %v9365, %v9365
    %v9368 = vunpack.c.l.s4 1966171168
    %v9369 = vunpack.c.0.s8 %v9368
    %v9370 = vlaneseq
    %v9371 = vshrl.u32 %v9370, 7
    %v9372 = vsub.s32 %v9369, %v9371
    %v9373 = vrot.slane %v9365, %v9372
    %v9375 = vunpack.c.l.s4 1966171168
    %v9376 = vunpack.c.0.s8 %v9375
    %v9377 = vlaneseq
    %v9378 = vshrl.u32 %v9377, 7
    %v9379 = vsub.s32 %v9376, %v9378
    %v9380 = vrot.slane %v9366, %v9379
    %v9383 = vrot.slane %v9333, 7
    %v9384 = vrot.slane %v9334, 7
    %v9387 = vlaneseq
    %v9388 = vshrl.u32 %v9387, 7
    %v9389 = vsub.s32 0, %v9388
    %v9390 = vrot.slane %v9350, %v9389
    %v9391 = vlaneseq
    %v9392 = vshrl.u32 %v9391, 7
    %v9393 = vsub.s32 0, %v9392
    %v9394 = vrot.slane %v9357, %v9393
    %v9397 = vlaneseq
    %v9398 = vshrl.u32 %v9397, 7
    %v9399 = vsub.s32 0, %v9398
    %v9400 = vrot.slane %v9373, %v9399
    %v9401 = vlaneseq
    %v9402 = vshrl.u32 %v9401, 7
    %v9403 = vsub.s32 0, %v9402
    %v9404 = vrot.slane %v9380, %v9403
    %vm9407 = vcmask 1040384
    %v9408 = vsel %vm9407, %v2804, %v9383
    %v9409 = vsel %vm9407, %v2805, %v9384
    %v9410 = vsel %vm8928, %v9408, %v9390
    %v9411 = vsel %vm8928, %v9409, %v9394
    %vm9412 = vcmask 1042432
    %v9413 = vsel %vm9412, %v9410, %v9400
    %v9414 = vsel %vm9412, %v9411, %v9404
    %v9415 = vld [vmem:[%s49] sm:$0xff]
    %v9416 = vld [vmem:[%s49 + $0x8] sm:$0xff]
    %v9417 = vld [vmem:[%s49 + $0x10] sm:$0xff]
    %v9418 = vld [vmem:[%s49 + $0x18] sm:$0xff]
    %v9419 = vld [vmem:[%s49 + $0x20] sm:$0xff]
    %v9420 = vld [vmem:[%s49 + $0x28] sm:$0xff]
    %v9421 = vld [vmem:[%s49 + $0x30] sm:$0xff]
    %v9422 = vld [vmem:[%s49 + $0x38] sm:$0xff]
    %v9423 = vld [vmem:[%s49 + $0x40] sm:$0xff]
    %v9424 = vld [vmem:[%s49 + $0x48] sm:$0xff]
    %v9425 = vld [vmem:[%s49 + $0x50] sm:$0xff]
    %v9426 = vld [vmem:[%s49 + $0x58] sm:$0xff]
    %v9427 = vld [vmem:[%s49 + $0x60] sm:$0xff]
    %v9428 = vld [vmem:[%s49 + $0x68] sm:$0xff]
    %v9429 = vld [vmem:[%s49 + $0x70] sm:$0xff]
    %v9430 = vld [vmem:[%s49 + $0x78] sm:$0xff]
    %v9431 = vld [vmem:[%s51] sm:$0x1]
    %v9432 = vld [vmem:[%s53] sm:$0x1]
    %v9434 = vlaneseq
    %v9435 = vshrl.u32 %v9434, 7
    %v9436 = vsub.s32 0, %v9435
    %v9437 = vrot.slane %v9431, %v9436
    %v9441 = vcombine.low %v9413, %v9414
    %9443 = vmatprep.subr.mxu0 0.0
    %9444 = vmatpush1.msra.mxu0 %v9430
    %9445 = vmatprep.subr.mxu0 0.0
    %9446 = vmatpush1.msra.mxu0 %v9429
    %9447 = vmatprep.subr.mxu0 0.0
    %9448 = vmatpush1.msra.mxu0 %v9428
    %9449 = vmatprep.subr.mxu0 0.0
    %9450 = vmatpush1.msra.mxu0 %v9427
    %9451 = vmatprep.subr.mxu0 0.0
    %9452 = vmatpush1.msra.mxu0 %v9426
    %9453 = vmatprep.subr.mxu0 0.0
    %9454 = vmatpush1.msra.mxu0 %v9425
    %9455 = vmatprep.subr.mxu0 0.0
    %9456 = vmatpush1.msra.mxu0 %v9424
    %9457 = vmatprep.subr.mxu0 0.0
    %9458 = vmatpush1.msra.mxu0 %v9423
    %9459 = vmatprep.subr.mxu0 0.0
    %9460 = vmatpush1.msra.mxu0 %v9422
    %9461 = vmatprep.subr.mxu0 0.0
    %9462 = vmatpush1.msra.mxu0 %v9421
    %9463 = vmatprep.subr.mxu0 0.0
    %9464 = vmatpush1.msra.mxu0 %v9420
    %9465 = vmatprep.subr.mxu0 0.0
    %9466 = vmatpush1.msra.mxu0 %v9419
    %9467 = vmatprep.subr.mxu0 0.0
    %9468 = vmatpush1.msra.mxu0 %v9418
    %9469 = vmatprep.subr.mxu0 0.0
    %9470 = vmatpush1.msra.mxu0 %v9417
    %9471 = vmatprep.subr.mxu0 0.0
    %9472 = vmatpush1.msra.mxu0 %v9416
    %9473 = vmatprep.subr.mxu0 0.0
    %9474 = vmatpush1.msra.mxu0 %v9415
    %9475 = vmatprep.subr.mxu0 0.0
    %9476 = vmatpush2.msra.mxu0 0.0
    %9477 = vmatprep.subr.mxu0 0.0
    %9478 = vmatpush2.msra.mxu0 0.0
    %9479 = vmatprep.subr.mxu0 0.0
    %9480 = vmatpush2.msra.mxu0 0.0
    %9481 = vmatprep.subr.mxu0 0.0
    %9482 = vmatpush2.msra.mxu0 0.0
    %9483 = vmatprep.subr.mxu0 0.0
    %9484 = vmatpush2.msra.mxu0 0.0
    %9485 = vmatprep.subr.mxu0 0.0
    %9486 = vmatpush2.msra.mxu0 0.0
    %9487 = vmatprep.subr.mxu0 0.0
    %9488 = vmatpush2.msra.mxu0 0.0
    %9489 = vmatprep.subr.mxu0 0.0
    %9490 = vmatpush2.msra.mxu0 0.0
    %9491 = vmatprep.subr.mxu0 0.0
    %9492 = vmatpush2.msra.mxu0 0.0
    %9493 = vmatprep.subr.mxu0 0.0
    %9494 = vmatpush2.msra.mxu0 0.0
    %9495 = vmatprep.subr.mxu0 0.0
    %9496 = vmatpush2.msra.mxu0 0.0
    %9497 = vmatprep.subr.mxu0 0.0
    %9498 = vmatpush2.msra.mxu0 0.0
    %9499 = vmatprep.subr.mxu0 0.0
    %9500 = vmatpush2.msra.mxu0 0.0
    %9501 = vmatprep.subr.mxu0 0.0
    %9502 = vmatpush2.msra.mxu0 0.0
    %9503 = vmatprep.subr.mxu0 0.0
    %9504 = vmatpush2.msra.mxu0 0.0
    %9505 = vmatprep.subr.mxu0 0.0
    %9506 = vmatpush2.msra.mxu0 0.0
    %9507 = vmatprep.mubr.f32.mxu0 0.0
    %9508 = vmatmul.mubr.f32.gmra.mxu0 %v9441
    %v9509 = vpop.f32.mrf.mxu0
    %v9510 = vadd.f32 %v9437, %v9509
    %v9511 = vpop.f32.mrf.mxu0
    %9512 = vdwg.mxu0
    %v9513 = vtanh.pop %v9510
    %v9515 = vcombine.high %v9513, %v9513
    %v9518 = vlaneseq
    %v9519 = vshrl.u32 %v9518, 7
    %v9520 = vsub.s32 0, %v9519
    %v9521 = vrot.slane %v9432, %v9520
    %v9523 = vmul.f32 %v9513, %v9521
    %v9524 = vmul.f32 %v9515, %v9521
    %vm9525 = vcmask 257024
    %v9526 = vsel %vm9525, %v9523, 0.0
    %9527 = vadd.xlane.f32.xlu0 %v9526
    %v9528 = vpop.xlane.xlu0 %9527
    %v9529 = vsel %vm9525, %v9524, 0.0
    %9530 = vadd.xlane.f32.xlu0 %v9529
    %v9531 = vpop.xlane.xlu0 %9530
    %v9534 = vlaneseq
    %v9535 = vshrl.u32 %v9534, 7
    %v9536 = vsub.s32 %v2520, %v9535
    %v9537 = vrot.slane %v9528, %v9536
    %v9538 = vlaneseq
    %v9539 = vshrl.u32 %v9538, 7
    %v9540 = vsub.s32 %v2520, %v9539
    %v9541 = vrot.slane %v9531, %v9540
    %v9542 = vsel %vm2541, %v9541, %v9537
    %vm9544 = vcmask 25600
    %v9545 = vsel %vm9544, %v9542, -inf
    %9546 = vmax.xlane.f32.xlu0 %v9545
    %v9547 = vpop.xlane.xlu0 %9546
    %v9549 = vlaneseq
    %v9550 = vshrl.u32 %v9549, 7
    %v9551 = vsub.s32 0, %v9550
    %v9552 = vrot.slane %v9547, %v9551
    %v9553 = vlaneseq
    %v9554 = vshrl.u32 %v9553, 7
    %v9555 = vsub.s32 1, %v9554
    %v9556 = vrot.slane %v9547, %v9555
    %v9559 = vsub.f32 %v9528, %v9552
    %v9560 = vsub.f32 %v9531, %v9556
    %v9561 = vmul.f32 %v9559, 1.442695
    %v9562 = vpow.pop %v9561
    %v9563 = vmul.f32 %v9560, 1.442695
    %v9564 = vpow.pop %v9563
    %9567 = vset.pattern.permute.xlu0 0
    %9568 = vperm.xlu0 %9567, %v9562
    %v9569 = vpop.permute.xlu0 %9568
    %9570 = vset.pattern.permute.xlu0 0
    %9571 = vperm.xlu0 %9570, %v9564
    %v9572 = vpop.permute.xlu0 %9571
    %v9573 = vlaneseq
    %v9574 = vshrl.u32 %v9573, 7
    %v9575 = vsub.s32 %v2520, %v9574
    %v9576 = vrot.slane %v9569, %v9575
    %v9577 = vlaneseq
    %v9578 = vshrl.u32 %v9577, 7
    %v9579 = vsub.s32 %v2520, %v9578
    %v9580 = vrot.slane %v9572, %v9579
    %v9581 = vsel %vm2541, %v9580, %v9576
    %v9583 = vsel %vm9544, %v9581, 0.0
    %9584 = vadd.xlane.f32.xlu0 %v9583
    %v9585 = vpop.xlane.xlu0 %9584
    %v9586 = vrcp.pop %v9585
    %v9588 = vlaneseq
    %v9589 = vshrl.u32 %v9588, 7
    %v9590 = vsub.s32 0, %v9589
    %v9591 = vrot.slane %v9586, %v9590
    %v9592 = vlaneseq
    %v9593 = vshrl.u32 %v9592, 7
    %v9594 = vsub.s32 1, %v9593
    %v9595 = vrot.slane %v9586, %v9594
    %v9598 = vmul.f32 %v9562, %v9591
    %v9599 = vmul.f32 %v9564, %v9595
    %9601 = vset.pattern.permute.xlu0 0
    %9602 = vperm.xlu0 %9601, %v9598
    %v9603 = vpop.permute.xlu0 %9602
    %v9604 = vlaneseq
    %v9605 = vshrl.u32 %v9604, 7
    %v9606 = vsub.s32 %v2520, %v9605
    %v9607 = vrot.slane %v9603, %v9606
    %vm9608 = vcmask 31744
    %v9609 = vsel %vm9608, %v9607, 0
    %vm9611 = vcmask 1043456
    %v9612 = vsel %vm9611, %v9413, 0
    %9614 = vmatprep.subr.mxu0 0.0
    %9615 = vmatpush1.msra.mxu0 0.0
    %9616 = vmatprep.subr.mxu0 0.0
    %9617 = vmatpush1.msra.mxu0 0.0
    %9618 = vmatprep.subr.mxu0 0.0
    %9619 = vmatpush1.msra.mxu0 0.0
    %9620 = vmatprep.subr.mxu0 0.0
    %9621 = vmatpush1.msra.mxu0 0.0
    %9622 = vmatprep.subr.mxu0 0.0
    %9623 = vmatpush1.msra.mxu0 0.0
    %9624 = vmatprep.subr.mxu0 0.0
    %9625 = vmatpush1.msra.mxu0 0.0
    %9626 = vmatprep.subr.mxu0 0.0
    %9627 = vmatpush1.msra.mxu0 0.0
    %9628 = vmatprep.subr.mxu0 0.0
    %9629 = vmatpush1.msra.mxu0 0.0
    %9630 = vmatprep.subr.mxu0 0.0
    %9631 = vmatpush1.msra.mxu0 0.0
    %9632 = vmatprep.subr.mxu0 0.0
    %9633 = vmatpush1.msra.mxu0 0.0
    %9634 = vmatprep.subr.mxu0 0.0
    %9635 = vmatpush1.msra.mxu0 0.0
    %9636 = vmatprep.subr.mxu0 0.0
    %9637 = vmatpush1.msra.mxu0 0.0
    %9638 = vmatprep.subr.mxu0 0.0
    %9639 = vmatpush1.msra.mxu0 0.0
    %9640 = vmatprep.subr.mxu0 0.0
    %9641 = vmatpush1.msra.mxu0 0.0
    %9642 = vmatprep.subr.mxu0 0.0
    %9643 = vmatpush1.msra.mxu0 0.0
    %9644 = vmatprep.subr.mxu0 0.0
    %9645 = vmatpush1.msra.mxu0 %v9612
    %9646 = vmatprep.subr.mxu0 0.0
    %9647 = vmatpush2.msra.mxu0 0.0
    %9648 = vmatprep.subr.mxu0 0.0
    %9649 = vmatpush2.msra.mxu0 0.0
    %9650 = vmatprep.subr.mxu0 0.0
    %9651 = vmatpush2.msra.mxu0 0.0
    %9652 = vmatprep.subr.mxu0 0.0
    %9653 = vmatpush2.msra.mxu0 0.0
    %9654 = vmatprep.subr.mxu0 0.0
    %9655 = vmatpush2.msra.mxu0 0.0
    %9656 = vmatprep.subr.mxu0 0.0
    %9657 = vmatpush2.msra.mxu0 0.0
    %9658 = vmatprep.subr.mxu0 0.0
    %9659 = vmatpush2.msra.mxu0 0.0
    %9660 = vmatprep.subr.mxu0 0.0
    %9661 = vmatpush2.msra.mxu0 0.0
    %9662 = vmatprep.subr.mxu0 0.0
    %9663 = vmatpush2.msra.mxu0 0.0
    %9664 = vmatprep.subr.mxu0 0.0
    %9665 = vmatpush2.msra.mxu0 0.0
    %9666 = vmatprep.subr.mxu0 0.0
    %9667 = vmatpush2.msra.mxu0 0.0
    %9668 = vmatprep.subr.mxu0 0.0
    %9669 = vmatpush2.msra.mxu0 0.0
    %9670 = vmatprep.subr.mxu0 0.0
    %9671 = vmatpush2.msra.mxu0 0.0
    %9672 = vmatprep.subr.mxu0 0.0
    %9673 = vmatpush2.msra.mxu0 0.0
    %9674 = vmatprep.subr.mxu0 0.0
    %9675 = vmatpush2.msra.mxu0 0.0
    %9676 = vmatprep.subr.mxu0 0.0
    %9677 = vmatpush2.msra.mxu0 0.0
    %9678 = vmatprep.mubr.f32.mxu0 0.0
    %9679 = vmatmul.mubr.f32.gmra.mxu0 %v9609
    %v9680 = vpop.f32.mrf.mxu0
    %v9681 = vadd.f32 0.0, %v9680
    %v9682 = vpop.f32.mrf.mxu0
    %9683 = vdwg.mxu0
    %9685 = vset.pattern.permute.xlu0 0
    %9686 = vperm.xlu0 %9685, %v9599
    %v9687 = vpop.permute.xlu0 %9686
    %v9688 = vlaneseq
    %v9689 = vshrl.u32 %v9688, 7
    %v9690 = vsub.s32 %v2520, %v9689
    %v9691 = vrot.slane %v9687, %v9690
    %v9692 = vsel %vm9608, %v9691, 0
    %v9694 = vsel %vm9611, %v9414, 0
    %9696 = vmatprep.subr.mxu0 0.0
    %9697 = vmatpush1.msra.mxu0 0.0
    %9698 = vmatprep.subr.mxu0 0.0
    %9699 = vmatpush1.msra.mxu0 0.0
    %9700 = vmatprep.subr.mxu0 0.0
    %9701 = vmatpush1.msra.mxu0 0.0
    %9702 = vmatprep.subr.mxu0 0.0
    %9703 = vmatpush1.msra.mxu0 0.0
    %9704 = vmatprep.subr.mxu0 0.0
    %9705 = vmatpush1.msra.mxu0 0.0
    %9706 = vmatprep.subr.mxu0 0.0
    %9707 = vmatpush1.msra.mxu0 0.0
    %9708 = vmatprep.subr.mxu0 0.0
    %9709 = vmatpush1.msra.mxu0 0.0
    %9710 = vmatprep.subr.mxu0 0.0
    %9711 = vmatpush1.msra.mxu0 0.0
    %9712 = vmatprep.subr.mxu0 0.0
    %9713 = vmatpush1.msra.mxu0 0.0
    %9714 = vmatprep.subr.mxu0 0.0
    %9715 = vmatpush1.msra.mxu0 0.0
    %9716 = vmatprep.subr.mxu0 0.0
    %9717 = vmatpush1.msra.mxu0 0.0
    %9718 = vmatprep.subr.mxu0 0.0
    %9719 = vmatpush1.msra.mxu0 0.0
    %9720 = vmatprep.subr.mxu0 0.0
    %9721 = vmatpush1.msra.mxu0 0.0
    %9722 = vmatprep.subr.mxu0 0.0
    %9723 = vmatpush1.msra.mxu0 0.0
    %9724 = vmatprep.subr.mxu0 0.0
    %9725 = vmatpush1.msra.mxu0 0.0
    %9726 = vmatprep.subr.mxu0 0.0
    %9727 = vmatpush1.msra.mxu0 %v9694
    %9728 = vmatprep.subr.mxu0 0.0
    %9729 = vmatpush2.msra.mxu0 0.0
    %9730 = vmatprep.subr.mxu0 0.0
    %9731 = vmatpush2.msra.mxu0 0.0
    %9732 = vmatprep.subr.mxu0 0.0
    %9733 = vmatpush2.msra.mxu0 0.0
    %9734 = vmatprep.subr.mxu0 0.0
    %9735 = vmatpush2.msra.mxu0 0.0
    %9736 = vmatprep.subr.mxu0 0.0
    %9737 = vmatpush2.msra.mxu0 0.0
    %9738 = vmatprep.subr.mxu0 0.0
    %9739 = vmatpush2.msra.mxu0 0.0
    %9740 = vmatprep.subr.mxu0 0.0
    %9741 = vmatpush2.msra.mxu0 0.0
    %9742 = vmatprep.subr.mxu0 0.0
    %9743 = vmatpush2.msra.mxu0 0.0
    %9744 = vmatprep.subr.mxu0 0.0
    %9745 = vmatpush2.msra.mxu0 0.0
    %9746 = vmatprep.subr.mxu0 0.0
    %9747 = vmatpush2.msra.mxu0 0.0
    %9748 = vmatprep.subr.mxu0 0.0
    %9749 = vmatpush2.msra.mxu0 0.0
    %9750 = vmatprep.subr.mxu0 0.0
    %9751 = vmatpush2.msra.mxu0 0.0
    %9752 = vmatprep.subr.mxu0 0.0
    %9753 = vmatpush2.msra.mxu0 0.0
    %9754 = vmatprep.subr.mxu0 0.0
    %9755 = vmatpush2.msra.mxu0 0.0
    %9756 = vmatprep.subr.mxu0 0.0
    %9757 = vmatpush2.msra.mxu0 0.0
    %9758 = vmatprep.subr.mxu0 0.0
    %9759 = vmatpush2.msra.mxu0 0.0
    %9760 = vmatprep.mubr.f32.mxu0 0.0
    %9761 = vmatmul.mubr.f32.gmra.mxu0 %v9692
    %v9762 = vpop.f32.mrf.mxu0
    %v9763 = vadd.f32 0.0, %v9762
    %v9764 = vpop.f32.mrf.mxu0
    %9765 = vdwg.mxu0
    %v9766 = vtanh.pop %v9681
    %v9767 = vtanh.pop %v9763
    %v9768 = vlaneseq
    %v9769 = vshrl.u32 %v9768, 7
    %v9770 = vsub.s32 0, %v9769
    %v9771 = vrot.slane %v9766, %v9770
    %v9772 = vlaneseq
    %v9773 = vshrl.u32 %v9772, 7
    %v9774 = vsub.s32 0, %v9773
    %v9775 = vrot.slane %v9767, %v9774
    %v9776 = vmul.f32 %v8808, %v9771
    %v9777 = vmul.f32 %v8810, %v9775
    %9778 = vadd.xlane.f32.xlu0 %v9776
    %v9779 = vpop.xlane.xlu0 %9778
    %9780 = vadd.xlane.f32.xlu0 %v9777
    %v9781 = vpop.xlane.xlu0 %9780
    %v9784 = vlaneseq
    %v9785 = vshrl.u32 %v9784, 7
    %v9786 = vsub.s32 %v2520, %v9785
    %v9787 = vrot.slane %v9779, %v9786
    %v9788 = vlaneseq
    %v9789 = vshrl.u32 %v9788, 7
    %v9790 = vsub.s32 %v2520, %v9789
    %v9791 = vrot.slane %v9781, %v9790
    %v9792 = vsel %vm2541, %v9791, %v9787
    %v9794 = vsel %vm9116, %v9792, -inf
    %9795 = vmax.xlane.f32.xlu0 %v9794
    %v9796 = vpop.xlane.xlu0 %9795
    %v9798 = vlaneseq
    %v9799 = vshrl.u32 %v9798, 7
    %v9800 = vsub.s32 0, %v9799
    %v9801 = vrot.slane %v9796, %v9800
    %v9802 = vlaneseq
    %v9803 = vshrl.u32 %v9802, 7
    %v9804 = vsub.s32 1, %v9803
    %v9805 = vrot.slane %v9796, %v9804
    %v9808 = vsub.f32 %v9779, %v9801
    %v9809 = vsub.f32 %v9781, %v9805
    %v9810 = vmul.f32 %v9808, 1.442695
    %v9811 = vpow.pop %v9810
    %v9812 = vmul.f32 %v9809, 1.442695
    %v9813 = vpow.pop %v9812
    %9816 = vset.pattern.permute.xlu0 0
    %9817 = vperm.xlu0 %9816, %v9811
    %v9818 = vpop.permute.xlu0 %9817
    %9819 = vset.pattern.permute.xlu0 0
    %9820 = vperm.xlu0 %9819, %v9813
    %v9821 = vpop.permute.xlu0 %9820
    %v9822 = vlaneseq
    %v9823 = vshrl.u32 %v9822, 7
    %v9824 = vsub.s32 %v2520, %v9823
    %v9825 = vrot.slane %v9818, %v9824
    %v9826 = vlaneseq
    %v9827 = vshrl.u32 %v9826, 7
    %v9828 = vsub.s32 %v2520, %v9827
    %v9829 = vrot.slane %v9821, %v9828
    %v9830 = vsel %vm2541, %v9829, %v9825
    %v9832 = vsel %vm9116, %v9830, 0.0
    %9833 = vadd.xlane.f32.xlu0 %v9832
    %v9834 = vpop.xlane.xlu0 %9833
    %v9835 = vrcp.pop %v9834
    %v9837 = vlaneseq
    %v9838 = vshrl.u32 %v9837, 7
    %v9839 = vsub.s32 0, %v9838
    %v9840 = vrot.slane %v9835, %v9839
    %v9841 = vlaneseq
    %v9842 = vshrl.u32 %v9841, 7
    %v9843 = vsub.s32 1, %v9842
    %v9844 = vrot.slane %v9835, %v9843
    %v9847 = vmul.f32 %v9811, %v9840
    %v9848 = vmul.f32 %v9813, %v9844
    %9850 = vset.pattern.permute.xlu0 0
    %9851 = vperm.xlu0 %9850, %v9847
    %v9852 = vpop.permute.xlu0 %9851
    %v9853 = vlaneseq
    %v9854 = vshrl.u32 %v9853, 7
    %v9855 = vsub.s32 %v2520, %v9854
    %v9856 = vrot.slane %v9852, %v9855
    %v9857 = vsel %vm9180, %v9856, 0
    %9859 = vmatprep.subr.mxu0 0.0
    %9860 = vmatpush1.msra.mxu0 0.0
    %9861 = vmatprep.subr.mxu0 0.0
    %9862 = vmatpush1.msra.mxu0 0.0
    %9863 = vmatprep.subr.mxu0 0.0
    %9864 = vmatpush1.msra.mxu0 0.0
    %9865 = vmatprep.subr.mxu0 0.0
    %9866 = vmatpush1.msra.mxu0 0.0
    %9867 = vmatprep.subr.mxu0 0.0
    %9868 = vmatpush1.msra.mxu0 0.0
    %9869 = vmatprep.subr.mxu0 0.0
    %9870 = vmatpush1.msra.mxu0 0.0
    %9871 = vmatprep.subr.mxu0 0.0
    %9872 = vmatpush1.msra.mxu0 0.0
    %9873 = vmatprep.subr.mxu0 0.0
    %9874 = vmatpush1.msra.mxu0 0.0
    %9875 = vmatprep.subr.mxu0 0.0
    %9876 = vmatpush1.msra.mxu0 0.0
    %9877 = vmatprep.subr.mxu0 0.0
    %9878 = vmatpush1.msra.mxu0 0.0
    %9879 = vmatprep.subr.mxu0 0.0
    %9880 = vmatpush1.msra.mxu0 0.0
    %9881 = vmatprep.subr.mxu0 0.0
    %9882 = vmatpush1.msra.mxu0 0.0
    %9883 = vmatprep.subr.mxu0 0.0
    %9884 = vmatpush1.msra.mxu0 0.0
    %9885 = vmatprep.subr.mxu0 0.0
    %9886 = vmatpush1.msra.mxu0 0.0
    %9887 = vmatprep.subr.mxu0 0.0
    %9888 = vmatpush1.msra.mxu0 0.0
    %9889 = vmatprep.subr.mxu0 0.0
    %9890 = vmatpush1.msra.mxu0 %v8808
    %9891 = vmatprep.subr.mxu0 0.0
    %9892 = vmatpush2.msra.mxu0 0.0
    %9893 = vmatprep.subr.mxu0 0.0
    %9894 = vmatpush2.msra.mxu0 0.0
    %9895 = vmatprep.subr.mxu0 0.0
    %9896 = vmatpush2.msra.mxu0 0.0
    %9897 = vmatprep.subr.mxu0 0.0
    %9898 = vmatpush2.msra.mxu0 0.0
    %9899 = vmatprep.subr.mxu0 0.0
    %9900 = vmatpush2.msra.mxu0 0.0
    %9901 = vmatprep.subr.mxu0 0.0
    %9902 = vmatpush2.msra.mxu0 0.0
    %9903 = vmatprep.subr.mxu0 0.0
    %9904 = vmatpush2.msra.mxu0 0.0
    %9905 = vmatprep.subr.mxu0 0.0
    %9906 = vmatpush2.msra.mxu0 0.0
    %9907 = vmatprep.subr.mxu0 0.0
    %9908 = vmatpush2.msra.mxu0 0.0
    %9909 = vmatprep.subr.mxu0 0.0
    %9910 = vmatpush2.msra.mxu0 0.0
    %9911 = vmatprep.subr.mxu0 0.0
    %9912 = vmatpush2.msra.mxu0 0.0
    %9913 = vmatprep.subr.mxu0 0.0
    %9914 = vmatpush2.msra.mxu0 0.0
    %9915 = vmatprep.subr.mxu0 0.0
    %9916 = vmatpush2.msra.mxu0 0.0
    %9917 = vmatprep.subr.mxu0 0.0
    %9918 = vmatpush2.msra.mxu0 0.0
    %9919 = vmatprep.subr.mxu0 0.0
    %9920 = vmatpush2.msra.mxu0 0.0
    %9921 = vmatprep.subr.mxu0 0.0
    %9922 = vmatpush2.msra.mxu0 0.0
    %9923 = vmatprep.mubr.f32.mxu0 0.0
    %9924 = vmatmul.mubr.f32.gmra.mxu0 %v9857
    %v9925 = vpop.f32.mrf.mxu0
    %v9926 = vadd.f32 0.0, %v9925
    %v9927 = vpop.f32.mrf.mxu0
    %9928 = vdwg.mxu0
    %9930 = vset.pattern.permute.xlu0 0
    %9931 = vperm.xlu0 %9930, %v9848
    %v9932 = vpop.permute.xlu0 %9931
    %v9933 = vlaneseq
    %v9934 = vshrl.u32 %v9933, 7
    %v9935 = vsub.s32 %v2520, %v9934
    %v9936 = vrot.slane %v9932, %v9935
    %v9937 = vsel %vm9180, %v9936, 0
    %9939 = vmatprep.subr.mxu0 0.0
    %9940 = vmatpush1.msra.mxu0 0.0
    %9941 = vmatprep.subr.mxu0 0.0
    %9942 = vmatpush1.msra.mxu0 0.0
    %9943 = vmatprep.subr.mxu0 0.0
    %9944 = vmatpush1.msra.mxu0 0.0
    %9945 = vmatprep.subr.mxu0 0.0
    %9946 = vmatpush1.msra.mxu0 0.0
    %9947 = vmatprep.subr.mxu0 0.0
    %9948 = vmatpush1.msra.mxu0 0.0
    %9949 = vmatprep.subr.mxu0 0.0
    %9950 = vmatpush1.msra.mxu0 0.0
    %9951 = vmatprep.subr.mxu0 0.0
    %9952 = vmatpush1.msra.mxu0 0.0
    %9953 = vmatprep.subr.mxu0 0.0
    %9954 = vmatpush1.msra.mxu0 0.0
    %9955 = vmatprep.subr.mxu0 0.0
    %9956 = vmatpush1.msra.mxu0 0.0
    %9957 = vmatprep.subr.mxu0 0.0
    %9958 = vmatpush1.msra.mxu0 0.0
    %9959 = vmatprep.subr.mxu0 0.0
    %9960 = vmatpush1.msra.mxu0 0.0
    %9961 = vmatprep.subr.mxu0 0.0
    %9962 = vmatpush1.msra.mxu0 0.0
    %9963 = vmatprep.subr.mxu0 0.0
    %9964 = vmatpush1.msra.mxu0 0.0
    %9965 = vmatprep.subr.mxu0 0.0
    %9966 = vmatpush1.msra.mxu0 0.0
    %9967 = vmatprep.subr.mxu0 0.0
    %9968 = vmatpush1.msra.mxu0 0.0
    %9969 = vmatprep.subr.mxu0 0.0
    %9970 = vmatpush1.msra.mxu0 %v8810
    %9971 = vmatprep.subr.mxu0 0.0
    %9972 = vmatpush2.msra.mxu0 0.0
    %9973 = vmatprep.subr.mxu0 0.0
    %9974 = vmatpush2.msra.mxu0 0.0
    %9975 = vmatprep.subr.mxu0 0.0
    %9976 = vmatpush2.msra.mxu0 0.0
    %9977 = vmatprep.subr.mxu0 0.0
    %9978 = vmatpush2.msra.mxu0 0.0
    %9979 = vmatprep.subr.mxu0 0.0
    %9980 = vmatpush2.msra.mxu0 0.0
    %9981 = vmatprep.subr.mxu0 0.0
    %9982 = vmatpush2.msra.mxu0 0.0
    %9983 = vmatprep.subr.mxu0 0.0
    %9984 = vmatpush2.msra.mxu0 0.0
    %9985 = vmatprep.subr.mxu0 0.0
    %9986 = vmatpush2.msra.mxu0 0.0
    %9987 = vmatprep.subr.mxu0 0.0
    %9988 = vmatpush2.msra.mxu0 0.0
    %9989 = vmatprep.subr.mxu0 0.0
    %9990 = vmatpush2.msra.mxu0 0.0
    %9991 = vmatprep.subr.mxu0 0.0
    %9992 = vmatpush2.msra.mxu0 0.0
    %9993 = vmatprep.subr.mxu0 0.0
    %9994 = vmatpush2.msra.mxu0 0.0
    %9995 = vmatprep.subr.mxu0 0.0
    %9996 = vmatpush2.msra.mxu0 0.0
    %9997 = vmatprep.subr.mxu0 0.0
    %9998 = vmatpush2.msra.mxu0 0.0
    %9999 = vmatprep.subr.mxu0 0.0
    %10000 = vmatpush2.msra.mxu0 0.0
    %10001 = vmatprep.subr.mxu0 0.0
    %10002 = vmatpush2.msra.mxu0 0.0
    %10003 = vmatprep.mubr.f32.mxu0 0.0
    %10004 = vmatmul.mubr.f32.gmra.mxu0 %v9937
    %v10005 = vpop.f32.mrf.mxu0
    %v10006 = vadd.f32 0.0, %v10005
    %v10007 = vpop.f32.mrf.mxu0
    %10008 = vdwg.mxu0
    %v10009 = vtanh.pop %v9926
    %v10010 = vtanh.pop %v10006
    %v10013 = vrot.slane %v10009, 7
    %v10014 = vrot.slane %v10010, 7
    %v10017 = vsel %vm9407, %v9766, %v10013
    %v10018 = vsel %vm9407, %v9767, %v10014
    %v10019 = vtanh.pop %v10017
    %v10020 = vtanh.pop %v10018
    %10021 = vst [vmem:[#allocation30] sm:$0x3] %v10019
    %10022 = vst [vmem:[#allocation30 + $0x2] sm:$0x3] %v10020
    // Predicated region
    $region182: #{tpu_custom_call.1} parent=1 // pred_check
      _
    $region183: #{tpu_custom_call.1} parent=1 // pred_check_branch
      %10024 = sbr.rel (0) target = $region185
    $region184: #{tpu_custom_call.1} parent=1 // pred_region
      %s10026 = ssub.s32 64, 64
      %10027 = vsyncadd [#allocation6], %s10026
      %s10028 = sshll.u32 [#allocation30], 4
      %s10029 = int_to_ptr.vmem [resolvable:$true] %s10028
      %10034 = dma.vmem_to_hbm [thread:$0]  %s10029, 64, %s59, [#allocation6], 32, 32, 2
    $region185: #{tpu_custom_call.1} parent=1 // pred_fallthru
      _
    // Predicated region
    $region186: #{tpu_custom_call.1} parent=1 // pred_check
      _
    $region187: #{tpu_custom_call.1} parent=1 // pred_check_branch
      %10036 = sbr.rel (0) target = $region189
    $region188: #{tpu_custom_call.1} parent=1 // pred_region
      %10037 = dma.done [#allocation6], 64
    $region189: #{tpu_custom_call.1} parent=1 // pred_fallthru
      _
    %10038 = vsyncpa [#allocation5], 1
    %10039 = vsyncpa [#allocation8], 1
    %10040 = vsyncpa [#allocation11], 1
    %10041 = vsyncpa [#allocation14], 1
    %10042 = vsyncpa [#allocation17], 1
    %10043 = vsyncpa [#allocation20], 1
    %10044 = vsyncpa [#allocation23], 1
    %10045 = vsyncpa [#allocation26], 1
    %10046 = vsyncpa [#allocation29], 1
    %10047 = vsyncpa [#allocation6], 1

</llo_original>
